<compile_context>
chip_gen: v5e
topology: v5e:2x2
jax: 0.10.0
libtpu: 0.0.40
codegen_flags: <defaults>
</compile_context>

<pallas_src>
import math
import functools

import jax
import jax.numpy as jnp
from jax import lax
from jax.experimental import pallas as pl
from jax.experimental.pallas import tpu as pltpu


_VMEM_LIMIT = 64 * 1024 * 1024  # raise scoped VMEM so larger tiles compile


def _cparams():
    return pltpu.CompilerParams(
        dimension_semantics=("parallel",),
        vmem_limit_bytes=_VMEM_LIMIT,
    )


def _tile_rows(M, target=256):
    """Largest row-tile <= target that divides M (multiple of 8 when < M)."""
    if M <= target:
        return M
    t = target
    while M % t != 0:
        t //= 2
        if t < 8:
            return M
    return t


# ---------------------------------------------------------------------------
# LayerNorm helper (traced inside kernels): torch.std unbiased, eps on std.
# ---------------------------------------------------------------------------
def _ln(h, g, b, eps):
    Hs = h.shape[-1]
    mean = jnp.mean(h, axis=-1, keepdims=True)
    d = h - mean
    var = jnp.sum(d * d, axis=-1, keepdims=True) * (1.0 / (Hs - 1))
    std = jnp.sqrt(var)
    inv = pl.reciprocal(std + eps, approx=True)
    return g * d * inv + b


# ---------------------------------------------------------------------------
# Kernel 1: dense  y = x @ W + b   (used for fused QKV / Q / fused KV proj)
#           gridded over rows, weights resident in VMEM.
# ---------------------------------------------------------------------------
def _dense_kernel(x_ref, w_ref, b_ref, o_ref):
    acc = jnp.dot(x_ref[...], w_ref[...], preferred_element_type=jnp.float32)
    o_ref[...] = (acc + b_ref[...]).astype(o_ref.dtype)


def dense(x2d, w, b, *, tile_rows=256):
    M, K = x2d.shape
    N = w.shape[1]
    tm = _tile_rows(M, tile_rows)
    return pl.pallas_call(
        _dense_kernel,
        grid=(M // tm,),
        in_specs=[pl.BlockSpec((tm, K), lambda i: (i, 0)),
                  pl.BlockSpec((K, N), lambda i: (0, 0)),
                  pl.BlockSpec((1, N), lambda i: (0, 0))],
        out_specs=pl.BlockSpec((tm, N), lambda i: (i, 0)),
        out_shape=jax.ShapeDtypeStruct((M, N), x2d.dtype),
        compiler_params=_cparams(),
    )(x2d, w, b.reshape(1, N))


# ---------------------------------------------------------------------------
# Kernel 2: fused merge-projection + residual add + LayerNorm
#   out = LN(resid + (x @ Wm + bm))
# ---------------------------------------------------------------------------
def _proj_add_ln_kernel(x_ref, r_ref, w_ref, b_ref, g_ref, beta_ref, o_ref, *, eps):
    proj = jnp.dot(x_ref[...], w_ref[...],
                   preferred_element_type=jnp.float32) + b_ref[...]
    h = r_ref[...].astype(jnp.float32) + proj
    o_ref[...] = _ln(h, g_ref[...], beta_ref[...], eps).astype(o_ref.dtype)


def proj_add_ln(x2d, resid2d, w, b, gamma, beta, *, eps=1e-6, tile_rows=256):
    M, K = x2d.shape
    N = w.shape[1]
    tm = _tile_rows(M, tile_rows)
    vec = pl.BlockSpec((1, N), lambda i: (0, 0))
    return pl.pallas_call(
        functools.partial(_proj_add_ln_kernel, eps=eps),
        grid=(M // tm,),
        in_specs=[pl.BlockSpec((tm, K), lambda i: (i, 0)),
                  pl.BlockSpec((tm, N), lambda i: (i, 0)),
                  pl.BlockSpec((K, N), lambda i: (0, 0)),
                  vec, vec, vec],
        out_specs=pl.BlockSpec((tm, N), lambda i: (i, 0)),
        out_shape=jax.ShapeDtypeStruct((M, N), x2d.dtype),
        compiler_params=_cparams(),
    )(x2d, resid2d, w, b.reshape(1, N), gamma.reshape(1, N), beta.reshape(1, N))


# ---------------------------------------------------------------------------
# Kernel 3: fused FFN (Linear -> ReLU -> Linear) + residual add + LayerNorm
#   out = LN(x + W2 @ relu(W1 @ x + b1) + b2);  dropout is identity (eval)
# ---------------------------------------------------------------------------
def _ffn_add_ln_kernel(x_ref, w1_ref, b1_ref, w2_ref, b2_ref, g_ref, beta_ref,
                       o_ref, *, eps):
    x = x_ref[...]
    h = jnp.dot(x, w1_ref[...], preferred_element_type=jnp.float32) + b1_ref[...]
    h = jnp.maximum(h, 0.0)
    ff = jnp.dot(h.astype(x.dtype), w2_ref[...],
                 preferred_element_type=jnp.float32) + b2_ref[...]
    t = x.astype(jnp.float32) + ff
    o_ref[...] = _ln(t, g_ref[...], beta_ref[...], eps).astype(o_ref.dtype)


def ffn_add_ln(x2d, w1, b1, w2, b2, gamma, beta, *, eps=1e-6, tile_rows=256):
    M, H = x2d.shape
    F = w1.shape[1]
    tm = _tile_rows(M, tile_rows)
    vecH = pl.BlockSpec((1, H), lambda i: (0, 0))
    return pl.pallas_call(
        functools.partial(_ffn_add_ln_kernel, eps=eps),
        grid=(M // tm,),
        in_specs=[pl.BlockSpec((tm, H), lambda i: (i, 0)),
                  pl.BlockSpec((H, F), lambda i: (0, 0)),
                  pl.BlockSpec((1, F), lambda i: (0, 0)),
                  pl.BlockSpec((F, H), lambda i: (0, 0)),
                  vecH, vecH, vecH],
        out_specs=pl.BlockSpec((tm, H), lambda i: (i, 0)),
        out_shape=jax.ShapeDtypeStruct((M, H), x2d.dtype),
        compiler_params=_cparams(),
    )(x2d, w1, b1.reshape(1, F), w2, b2.reshape(1, H),
      gamma.reshape(1, H), beta.reshape(1, H))


# ---------------------------------------------------------------------------
# Kernel 4: multi-head attention (grid over batch, all heads in one call).
#   Heads are sliced on the lane axis inside the kernel; per-head outputs are
#   concatenated before the store so the output block is lane-dense [S, H].
# ---------------------------------------------------------------------------
def _mha_core(q, k, v, mask_row, num_heads, scale):
    # q: (Sq, H), k/v: (Sk, H), mask_row: (1, Sk) float (1.0 == masked)
    H = q.shape[-1]
    dh = H // num_heads
    neg = jnp.float32(-1e9)
    outs = []
    for h in range(num_heads):
        sl = slice(h * dh, (h + 1) * dh)
        qh = q[:, sl]
        kh = k[:, sl]
        vh = v[:, sl]
        # q @ k^T with contraction on the head dim (Sq, Sk)
        s = lax.dot_general(qh, kh, (((1,), (1,)), ((), ())),
                            preferred_element_type=jnp.float32) * scale
        s = jnp.where(mask_row > 0.5, neg, s)
        mx = jnp.max(s, axis=-1, keepdims=True)
        e = jnp.exp(s - mx)
        p = e * pl.reciprocal(jnp.sum(e, axis=-1, keepdims=True), approx=True)
        outs.append(jnp.dot(p.astype(vh.dtype), vh,
                            preferred_element_type=jnp.float32))
    return jnp.concatenate(outs, axis=-1)           # (Sq, H), lane-dense


def _self_attn_kernel(qkv_ref, m_ref, o_ref, *, num_heads, scale):
    qkv = qkv_ref[0]                                # (S, 3H)
    H = qkv.shape[-1] // 3
    Sk = qkv.shape[0]
    q = qkv[:, :H]
    k = qkv[:, H:2 * H]
    v = qkv[:, 2 * H:]
    mask_row = m_ref[...].reshape(1, Sk)
    o_ref[0] = _mha_core(q, k, v, mask_row, num_heads, scale).astype(o_ref.dtype)


def self_attention(qkv, mask_f, num_heads):
    B, S, H3 = qkv.shape
    H = H3 // 3
    dh = H // num_heads
    return pl.pallas_call(
        functools.partial(_self_attn_kernel, num_heads=num_heads,
                          scale=1.0 / math.sqrt(dh)),
        grid=(B,),
        in_specs=[pl.BlockSpec((1, S, H3), lambda b: (b, 0, 0)),
                  pl.BlockSpec((1, 1, 1, S), lambda b: (b, 0, 0, 0))],
        out_specs=pl.BlockSpec((1, S, H), lambda b: (b, 0, 0)),
        out_shape=jax.ShapeDtypeStruct((B, S, H), qkv.dtype),
        compiler_params=_cparams(),
    )(qkv, mask_f)


def _cross_attn_kernel(q_ref, kv_ref, m_ref, o_ref, *, num_heads, scale):
    q = q_ref[0]                                    # (Sq, H)
    kv = kv_ref[0]                                  # (Sk, 2H)
    H = q.shape[-1]
    Sk = kv.shape[0]
    k = kv[:, :H]
    v = kv[:, H:]
    mask_row = m_ref[...].reshape(1, Sk)
    o_ref[0] = _mha_core(q, k, v, mask_row, num_heads, scale).astype(o_ref.dtype)


def cross_attention(q, kv, mask_f, num_heads):
    B, Sq, H = q.shape
    Sk = kv.shape[1]
    dh = H // num_heads
    return pl.pallas_call(
        functools.partial(_cross_attn_kernel, num_heads=num_heads,
                          scale=1.0 / math.sqrt(dh)),
        grid=(B,),
        in_specs=[pl.BlockSpec((1, Sq, H), lambda b: (b, 0, 0)),
                  pl.BlockSpec((1, Sk, 2 * H), lambda b: (b, 0, 0)),
                  pl.BlockSpec((1, 1, 1, Sk), lambda b: (b, 0, 0, 0))],
        out_specs=pl.BlockSpec((1, Sq, H), lambda b: (b, 0, 0)),
        out_shape=jax.ShapeDtypeStruct((B, Sq, H), q.dtype),
        compiler_params=_cparams(),
    )(q, kv, mask_f)


# ---------------------------------------------------------------------------
# SA / SGA layers and MCA_ED forward (glue in plain JAX; hot paths in Pallas)
# ---------------------------------------------------------------------------
def sa_layer(p, x, x_mask_f, num_heads):
    B, S, H = x.shape
    x2 = x.reshape(B * S, H)
    qkv = dense(x2, p["wqkv"], p["bqkv"])                         # [B*S, 3H]
    att = self_attention(qkv.reshape(B, S, 3 * H), x_mask_f, num_heads)
    # dropout1 is identity in eval mode
    x1 = proj_add_ln(att.reshape(B * S, H), x2,
                     p["wm"], p["bm"], p["g1"], p["bt1"])
    # dropout2 is identity in eval mode
    out = ffn_add_ln(x1, p["w1"], p["b1"], p["w2"], p["b2"], p["g2"], p["bt2"])
    return out.reshape(B, S, H)


def sga_layer(p, x, y, x_mask_f, y_mask_f, num_heads):
    """SGA.forward(x, y, x_mask, y_mask): self-att on x, cross-att q=x k=v=y."""
    B, Sx, H = x.shape
    Sy = y.shape[1]
    x2 = x.reshape(B * Sx, H)
    # self-attention on x (mask = x_mask)
    qkv = dense(x2, p["wqkv1"], p["bqkv1"])
    att1 = self_attention(qkv.reshape(B, Sx, 3 * H), x_mask_f, num_heads)
    x1 = proj_add_ln(att1.reshape(B * Sx, H), x2,
                     p["wm1"], p["bm1"], p["g1"], p["bt1"])
    # cross-attention: query from x, key/value from y (mask = y_mask)
    q = dense(x1, p["wq2"], p["bq2"])                             # [B*Sx, H]
    kv = dense(y.reshape(B * Sy, H), p["wkv2"], p["bkv2"])        # [B*Sy, 2H]
    att2 = cross_attention(q.reshape(B, Sx, H), kv.reshape(B, Sy, 2 * H),
                           y_mask_f, num_heads)
    xc = proj_add_ln(att2.reshape(B * Sx, H), x1,
                     p["wm2"], p["bm2"], p["g2"], p["bt2"])
    # FFN
    out = ffn_add_ln(xc, p["w1"], p["b1"], p["w2"], p["b2"], p["g3"], p["bt3"])
    return out.reshape(B, Sx, H)


def mca_ed_forward(params, x, y, x_mask, y_mask, *, num_heads):
    """x: [B,Sx,H], y: [B,Sy,H]; masks: [B,1,1,S] bool (True == masked)."""
    x_mask_f = x_mask.astype(jnp.float32)
    y_mask_f = y_mask.astype(jnp.float32)
    for p in params["enc"]:
        x = sa_layer(p, x, x_mask_f, num_heads)
    for p in params["dec"]:
        # MCA_ED: y = dec(y, x, y_mask, x_mask)
        y = sga_layer(p, y, x, y_mask_f, x_mask_f, num_heads)
    return x, y


# ---------------------------------------------------------------------------
# Parameter init
# ---------------------------------------------------------------------------
def _rand(key, shape, s=0.02):
    return jax.random.normal(key, shape, jnp.float32) * s


def init_sa_params(key, H, FF):
    ks = jax.random.split(key, 8)
    return {
        "wqkv": _rand(ks[0], (H, 3 * H)), "bqkv": _rand(ks[1], (3 * H,)),
        "wm": _rand(ks[2], (H, H)), "bm": _rand(ks[3], (H,)),
        "g1": jnp.ones((H,), jnp.float32), "bt1": jnp.zeros((H,), jnp.float32),
        "w1": _rand(ks[4], (H, FF)), "b1": _rand(ks[5], (FF,)),
        "w2": _rand(ks[6], (FF, H)), "b2": _rand(ks[7], (H,)),
        "g2": jnp.ones((H,), jnp.float32), "bt2": jnp.zeros((H,), jnp.float32),
    }


def init_sga_params(key, H, FF):
    ks = jax.random.split(key, 14)
    return {
        "wqkv1": _rand(ks[0], (H, 3 * H)), "bqkv1": _rand(ks[1], (3 * H,)),
        "wm1": _rand(ks[2], (H, H)), "bm1": _rand(ks[3], (H,)),
        "g1": jnp.ones((H,), jnp.float32), "bt1": jnp.zeros((H,), jnp.float32),
        "wq2": _rand(ks[4], (H, H)), "bq2": _rand(ks[5], (H,)),
        "wkv2": _rand(ks[6], (H, 2 * H)), "bkv2": _rand(ks[7], (2 * H,)),
        "wm2": _rand(ks[8], (H, H)), "bm2": _rand(ks[9], (H,)),
        "g2": jnp.ones((H,), jnp.float32), "bt2": jnp.zeros((H,), jnp.float32),
        "w1": _rand(ks[10], (H, FF)), "b1": _rand(ks[11], (FF,)),
        "w2": _rand(ks[12], (FF, H)), "b2": _rand(ks[13], (H,)),
        "g3": jnp.ones((H,), jnp.float32), "bt3": jnp.zeros((H,), jnp.float32),
    }


def init_params(key, hidden, ff_size, num_layers):
    keys = jax.random.split(key, 2 * num_layers)
    return {
        "enc": [init_sa_params(keys[i], hidden, ff_size)
                for i in range(num_layers)],
        "dec": [init_sga_params(keys[num_layers + i], hidden, ff_size)
                for i in range(num_layers)],
    }


if __name__ == "__main__":
    # Small config consistent with the module structure
    # (HIDDEN_SIZE, MULTI_HEAD, FF_SIZE = 4*HIDDEN, LAYER — all scaled down).
    B, Sx, Sy, H, NH = 2, 8, 16, 128, 4
    FF = 4 * H
    LAYERS = 2

    key = jax.random.PRNGKey(0)
    kx, ky, kp = jax.random.split(key, 3)
    x = jax.random.normal(kx, (B, Sx, H), jnp.float32)
    y = jax.random.normal(ky, (B, Sy, H), jnp.float32)

    # masks: True == masked key position
    x_mask = jnp.zeros((B, 1, 1, Sx), dtype=bool).at[1, 0, 0, Sx - 2:].set(True)
    y_mask = jnp.zeros((B, 1, 1, Sy), dtype=bool).at[1, 0, 0, Sy - 3:].set(True)

    params = init_params(kp, H, FF, LAYERS)

    fwd = jax.jit(functools.partial(mca_ed_forward, num_heads=NH))
    x_out, y_out = fwd(params, x, y, x_mask, y_mask)
    jax.block_until_ready((x_out, y_out))

    assert x_out.shape == (B, Sx, H) and x_out.dtype == jnp.float32
    assert y_out.shape == (B, Sy, H) and y_out.dtype == jnp.float32
    print("KERNEL_OK")
</pallas_src>

<mosaic_0001>
module attributes {stable_mosaic.version = 11 : i64} {
  func.func @_self_attn_kernel(%arg0: i32, %arg1: memref<1x8x384xf32, #tpu.memory_space<vmem>>, %arg2: memref<1x1x1x8xf32, #tpu.memory_space<vmem>>, %arg3: memref<1x8x128xf32, #tpu.memory_space<vmem>>) attributes {dimension_semantics = [#tpu.dimension_semantics<parallel>], iteration_bounds = array<i64: 2>, scalar_prefetch = 0 : i64, scratch_operands = 0 : i64, tpu.core_type = #tpu.core_type<tc>, window_params = [{transform_indices = @transform_0, window_bounds = array<i64: 1, 8, 384>}, {transform_indices = @transform_1, window_bounds = array<i64: 1, 1, 1, 8>}, {transform_indices = @transform_2, window_bounds = array<i64: 1, 8, 128>}]} {
    %c0 = arith.constant 0 : index
    %c0_0 = arith.constant 0 : index
    %c0_1 = arith.constant 0 : index
    %0 = vector.load %arg1[%c0, %c0_0, %c0_1] : memref<1x8x384xf32, #tpu.memory_space<vmem>>, vector<1x8x384xf32>
    %1 = vector.shape_cast %0 : vector<1x8x384xf32> to vector<8x384xf32>
    %2 = vector.extract_strided_slice %1 {offsets = [0, 0], sizes = [8, 128], strides = [1, 1]} : vector<8x384xf32> to vector<8x128xf32>
    %3 = vector.extract_strided_slice %1 {offsets = [0, 128], sizes = [8, 128], strides = [1, 1]} : vector<8x384xf32> to vector<8x128xf32>
    %4 = vector.extract_strided_slice %1 {offsets = [0, 256], sizes = [8, 128], strides = [1, 1]} : vector<8x384xf32> to vector<8x128xf32>
    %c0_2 = arith.constant 0 : index
    %c0_3 = arith.constant 0 : index
    %c0_4 = arith.constant 0 : index
    %c0_5 = arith.constant 0 : index
    %5 = vector.load %arg2[%c0_2, %c0_3, %c0_4, %c0_5] : memref<1x1x1x8xf32, #tpu.memory_space<vmem>>, vector<1x1x1x8xf32>
    %6 = vector.shape_cast %5 : vector<1x1x1x8xf32> to vector<1x8xf32>
    %7 = vector.extract_strided_slice %2 {offsets = [0, 0], sizes = [8, 32], strides = [1, 1]} : vector<8x128xf32> to vector<8x32xf32>
    %8 = vector.extract_strided_slice %3 {offsets = [0, 0], sizes = [8, 32], strides = [1, 1]} : vector<8x128xf32> to vector<8x32xf32>
    %9 = vector.extract_strided_slice %4 {offsets = [0, 0], sizes = [8, 32], strides = [1, 1]} : vector<8x128xf32> to vector<8x32xf32>
    %cst = arith.constant dense<0.000000e+00> : vector<8x8xf32>
    %10 = tpu.matmul %7, %8, %cst {dimension_numbers = #tpu.dot_dimension_numbers<[1], [1], [0], [0], [0, 0, 1, 0], [], []>} : vector<8x32xf32>, vector<8x32xf32>, vector<8x8xf32> -> vector<8x8xf32>
    %cst_6 = arith.constant 0.176776692 : f32
    %11 = vector.broadcast %cst_6 : f32 to vector<8x8xf32>
    %12 = arith.mulf %10, %11 : vector<8x8xf32>
    %cst_7 = arith.constant 5.000000e-01 : f32
    %13 = vector.broadcast %cst_7 : f32 to vector<1x8xf32>
    %14 = arith.cmpf ogt, %6, %13 : vector<1x8xf32>
    %cst_8 = arith.constant -1.000000e+09 : f32
    %15 = vector.shape_cast %14 : vector<1x8xi1> to vector<1x8xi1>
    %16 = vector.broadcast %15 : vector<1x8xi1> to vector<8x8xi1>
    %17 = vector.broadcast %cst_8 : f32 to vector<8x8xf32>
    %18 = arith.select %16, %17, %12 : vector<8x8xi1>, vector<8x8xf32>
    %cst_9 = arith.constant dense<0xFF800000> : vector<8xf32>
    %19 = vector.multi_reduction <maximumf>, %18, %cst_9 [1] : vector<8x8xf32> to vector<8xf32>
    %20 = vector.shape_cast %19 : vector<8xf32> to vector<8x1xf32>
    %21 = vector.broadcast %20 : vector<8x1xf32> to vector<8x8xf32>
    %22 = arith.subf %18, %21 : vector<8x8xf32>
    %23 = math.exp %22 : vector<8x8xf32>
    %cst_10 = arith.constant dense<0.000000e+00> : vector<8xf32>
    %24 = vector.multi_reduction <add>, %23, %cst_10 [1] : vector<8x8xf32> to vector<8xf32>
    %25 = vector.shape_cast %24 : vector<8xf32> to vector<8x1xf32>
    %26 = tpu.reciprocal %25 {approx = true} : vector<8x1xf32> -> vector<8x1xf32>
    %27 = vector.broadcast %26 : vector<8x1xf32> to vector<8x8xf32>
    %28 = arith.mulf %23, %27 : vector<8x8xf32>
    %cst_11 = arith.constant dense<0.000000e+00> : vector<8x32xf32>
    %29 = tpu.matmul %28, %9, %cst_11 {dimension_numbers = #tpu.dot_dimension_numbers<[1], [0], [0], [1], [0, 0, 1, 1], [], []>} : vector<8x8xf32>, vector<8x32xf32>, vector<8x32xf32> -> vector<8x32xf32>
    %30 = vector.extract_strided_slice %2 {offsets = [0, 32], sizes = [8, 32], strides = [1, 1]} : vector<8x128xf32> to vector<8x32xf32>
    %31 = vector.extract_strided_slice %3 {offsets = [0, 32], sizes = [8, 32], strides = [1, 1]} : vector<8x128xf32> to vector<8x32xf32>
    %32 = vector.extract_strided_slice %4 {offsets = [0, 32], sizes = [8, 32], strides = [1, 1]} : vector<8x128xf32> to vector<8x32xf32>
    %cst_12 = arith.constant dense<0.000000e+00> : vector<8x8xf32>
    %33 = tpu.matmul %30, %31, %cst_12 {dimension_numbers = #tpu.dot_dimension_numbers<[1], [1], [0], [0], [0, 0, 1, 0], [], []>} : vector<8x32xf32>, vector<8x32xf32>, vector<8x8xf32> -> vector<8x8xf32>
    %cst_13 = arith.constant 0.176776692 : f32
    %34 = vector.broadcast %cst_13 : f32 to vector<8x8xf32>
    %35 = arith.mulf %33, %34 : vector<8x8xf32>
    %cst_14 = arith.constant 5.000000e-01 : f32
    %36 = vector.broadcast %cst_14 : f32 to vector<1x8xf32>
    %37 = arith.cmpf ogt, %6, %36 : vector<1x8xf32>
    %cst_15 = arith.constant -1.000000e+09 : f32
    %38 = vector.shape_cast %37 : vector<1x8xi1> to vector<1x8xi1>
    %39 = vector.broadcast %38 : vector<1x8xi1> to vector<8x8xi1>
    %40 = vector.broadcast %cst_15 : f32 to vector<8x8xf32>
    %41 = arith.select %39, %40, %35 : vector<8x8xi1>, vector<8x8xf32>
    %cst_16 = arith.constant dense<0xFF800000> : vector<8xf32>
    %42 = vector.multi_reduction <maximumf>, %41, %cst_16 [1] : vector<8x8xf32> to vector<8xf32>
    %43 = vector.shape_cast %42 : vector<8xf32> to vector<8x1xf32>
    %44 = vector.broadcast %43 : vector<8x1xf32> to vector<8x8xf32>
    %45 = arith.subf %41, %44 : vector<8x8xf32>
    %46 = math.exp %45 : vector<8x8xf32>
    %cst_17 = arith.constant dense<0.000000e+00> : vector<8xf32>
    %47 = vector.multi_reduction <add>, %46, %cst_17 [1] : vector<8x8xf32> to vector<8xf32>
    %48 = vector.shape_cast %47 : vector<8xf32> to vector<8x1xf32>
    %49 = tpu.reciprocal %48 {approx = true} : vector<8x1xf32> -> vector<8x1xf32>
    %50 = vector.broadcast %49 : vector<8x1xf32> to vector<8x8xf32>
    %51 = arith.mulf %46, %50 : vector<8x8xf32>
    %cst_18 = arith.constant dense<0.000000e+00> : vector<8x32xf32>
    %52 = tpu.matmul %51, %32, %cst_18 {dimension_numbers = #tpu.dot_dimension_numbers<[1], [0], [0], [1], [0, 0, 1, 1], [], []>} : vector<8x8xf32>, vector<8x32xf32>, vector<8x32xf32> -> vector<8x32xf32>
    %53 = vector.extract_strided_slice %2 {offsets = [0, 64], sizes = [8, 32], strides = [1, 1]} : vector<8x128xf32> to vector<8x32xf32>
    %54 = vector.extract_strided_slice %3 {offsets = [0, 64], sizes = [8, 32], strides = [1, 1]} : vector<8x128xf32> to vector<8x32xf32>
    %55 = vector.extract_strided_slice %4 {offsets = [0, 64], sizes = [8, 32], strides = [1, 1]} : vector<8x128xf32> to vector<8x32xf32>
    %cst_19 = arith.constant dense<0.000000e+00> : vector<8x8xf32>
    %56 = tpu.matmul %53, %54, %cst_19 {dimension_numbers = #tpu.dot_dimension_numbers<[1], [1], [0], [0], [0, 0, 1, 0], [], []>} : vector<8x32xf32>, vector<8x32xf32>, vector<8x8xf32> -> vector<8x8xf32>
    %cst_20 = arith.constant 0.176776692 : f32
    %57 = vector.broadcast %cst_20 : f32 to vector<8x8xf32>
    %58 = arith.mulf %56, %57 : vector<8x8xf32>
    %cst_21 = arith.constant 5.000000e-01 : f32
    %59 = vector.broadcast %cst_21 : f32 to vector<1x8xf32>
    %60 = arith.cmpf ogt, %6, %59 : vector<1x8xf32>
    %cst_22 = arith.constant -1.000000e+09 : f32
    %61 = vector.shape_cast %60 : vector<1x8xi1> to vector<1x8xi1>
    %62 = vector.broadcast %61 : vector<1x8xi1> to vector<8x8xi1>
    %63 = vector.broadcast %cst_22 : f32 to vector<8x8xf32>
    %64 = arith.select %62, %63, %58 : vector<8x8xi1>, vector<8x8xf32>
    %cst_23 = arith.constant dense<0xFF800000> : vector<8xf32>
    %65 = vector.multi_reduction <maximumf>, %64, %cst_23 [1] : vector<8x8xf32> to vector<8xf32>
    %66 = vector.shape_cast %65 : vector<8xf32> to vector<8x1xf32>
    %67 = vector.broadcast %66 : vector<8x1xf32> to vector<8x8xf32>
    %68 = arith.subf %64, %67 : vector<8x8xf32>
    %69 = math.exp %68 : vector<8x8xf32>
    %cst_24 = arith.constant dense<0.000000e+00> : vector<8xf32>
    %70 = vector.multi_reduction <add>, %69, %cst_24 [1] : vector<8x8xf32> to vector<8xf32>
    %71 = vector.shape_cast %70 : vector<8xf32> to vector<8x1xf32>
    %72 = tpu.reciprocal %71 {approx = true} : vector<8x1xf32> -> vector<8x1xf32>
    %73 = vector.broadcast %72 : vector<8x1xf32> to vector<8x8xf32>
    %74 = arith.mulf %69, %73 : vector<8x8xf32>
    %cst_25 = arith.constant dense<0.000000e+00> : vector<8x32xf32>
    %75 = tpu.matmul %74, %55, %cst_25 {dimension_numbers = #tpu.dot_dimension_numbers<[1], [0], [0], [1], [0, 0, 1, 1], [], []>} : vector<8x8xf32>, vector<8x32xf32>, vector<8x32xf32> -> vector<8x32xf32>
    %76 = vector.extract_strided_slice %2 {offsets = [0, 96], sizes = [8, 32], strides = [1, 1]} : vector<8x128xf32> to vector<8x32xf32>
    %77 = vector.extract_strided_slice %3 {offsets = [0, 96], sizes = [8, 32], strides = [1, 1]} : vector<8x128xf32> to vector<8x32xf32>
    %78 = vector.extract_strided_slice %4 {offsets = [0, 96], sizes = [8, 32], strides = [1, 1]} : vector<8x128xf32> to vector<8x32xf32>
    %cst_26 = arith.constant dense<0.000000e+00> : vector<8x8xf32>
    %79 = tpu.matmul %76, %77, %cst_26 {dimension_numbers = #tpu.dot_dimension_numbers<[1], [1], [0], [0], [0, 0, 1, 0], [], []>} : vector<8x32xf32>, vector<8x32xf32>, vector<8x8xf32> -> vector<8x8xf32>
    %cst_27 = arith.constant 0.176776692 : f32
    %80 = vector.broadcast %cst_27 : f32 to vector<8x8xf32>
    %81 = arith.mulf %79, %80 : vector<8x8xf32>
    %cst_28 = arith.constant 5.000000e-01 : f32
    %82 = vector.broadcast %cst_28 : f32 to vector<1x8xf32>
    %83 = arith.cmpf ogt, %6, %82 : vector<1x8xf32>
    %cst_29 = arith.constant -1.000000e+09 : f32
    %84 = vector.shape_cast %83 : vector<1x8xi1> to vector<1x8xi1>
    %85 = vector.broadcast %84 : vector<1x8xi1> to vector<8x8xi1>
    %86 = vector.broadcast %cst_29 : f32 to vector<8x8xf32>
    %87 = arith.select %85, %86, %81 : vector<8x8xi1>, vector<8x8xf32>
    %cst_30 = arith.constant dense<0xFF800000> : vector<8xf32>
    %88 = vector.multi_reduction <maximumf>, %87, %cst_30 [1] : vector<8x8xf32> to vector<8xf32>
    %89 = vector.shape_cast %88 : vector<8xf32> to vector<8x1xf32>
    %90 = vector.broadcast %89 : vector<8x1xf32> to vector<8x8xf32>
    %91 = arith.subf %87, %90 : vector<8x8xf32>
    %92 = math.exp %91 : vector<8x8xf32>
    %cst_31 = arith.constant dense<0.000000e+00> : vector<8xf32>
    %93 = vector.multi_reduction <add>, %92, %cst_31 [1] : vector<8x8xf32> to vector<8xf32>
    %94 = vector.shape_cast %93 : vector<8xf32> to vector<8x1xf32>
    %95 = tpu.reciprocal %94 {approx = true} : vector<8x1xf32> -> vector<8x1xf32>
    %96 = vector.broadcast %95 : vector<8x1xf32> to vector<8x8xf32>
    %97 = arith.mulf %92, %96 : vector<8x8xf32>
    %cst_32 = arith.constant dense<0.000000e+00> : vector<8x32xf32>
    %98 = tpu.matmul %97, %78, %cst_32 {dimension_numbers = #tpu.dot_dimension_numbers<[1], [0], [0], [1], [0, 0, 1, 1], [], []>} : vector<8x8xf32>, vector<8x32xf32>, vector<8x32xf32> -> vector<8x32xf32>
    %99 = tpu.concatenate %29, %52, %75, %98 in 1 : vector<8x32xf32>, vector<8x32xf32>, vector<8x32xf32>, vector<8x32xf32> -> vector<8x128xf32>
    %c0_33 = arith.constant 0 : index
    %c0_34 = arith.constant 0 : index
    %c0_35 = arith.constant 0 : index
    %100 = vector.load %arg3[%c0_33, %c0_34, %c0_35] : memref<1x8x128xf32, #tpu.memory_space<vmem>>, vector<1x8x128xf32>
    %101 = vector.shape_cast %100 : vector<1x8x128xf32> to vector<8x128xf32>
    %102 = vector.shape_cast %99 : vector<8x128xf32> to vector<1x8x128xf32>
    tpu.vector_store %arg3[%c0_33, %c0_34, %c0_35], %102 {strides = array<i32>} : memref<1x8x128xf32, #tpu.memory_space<vmem>>, vector<1x8x128xf32>,
    return
  }
  func.func @transform_0(%arg0: i32) -> (i32, i32, i32) {
    %c0_i32 = arith.constant 0 : i32
    %c0_i32_0 = arith.constant 0 : i32
    %c0_i32_1 = arith.constant 0 : i32
    return %arg0, %c0_i32, %c0_i32_0 : i32, i32, i32
  }
  func.func @transform_1(%arg0: i32) -> (i32, i32, i32, i32) {
    %c0_i32 = arith.constant 0 : i32
    %c0_i32_0 = arith.constant 0 : i32
    %c0_i32_1 = arith.constant 0 : i32
    %c0_i32_2 = arith.constant 0 : i32
    return %arg0, %c0_i32, %c0_i32_0, %c0_i32_1 : i32, i32, i32, i32
  }
  func.func @transform_2(%arg0: i32) -> (i32, i32, i32) {
    %c0_i32 = arith.constant 0 : i32
    %c0_i32_0 = arith.constant 0 : i32
    %c0_i32_1 = arith.constant 0 : i32
    return %arg0, %c0_i32, %c0_i32_0 : i32, i32, i32
  }
}

module attributes {stable_mosaic.version = 11 : i64} {
  func.func @_dense_kernel(%arg0: i32, %arg1: memref<16x128xf32, #tpu.memory_space<vmem>>, %arg2: memref<128x384xf32, #tpu.memory_space<vmem>>, %arg3: memref<1x384xf32, #tpu.memory_space<vmem>>, %arg4: memref<16x384xf32, #tpu.memory_space<vmem>>) attributes {dimension_semantics = [#tpu.dimension_semantics<parallel>], iteration_bounds = array<i64: 1>, scalar_prefetch = 0 : i64, scratch_operands = 0 : i64, tpu.core_type = #tpu.core_type<tc>, window_params = [{transform_indices = @transform_0, window_bounds = array<i64: 16, 128>}, {pipeline_mode = #tpu.pipeline_mode<synchronous>, transform_indices = @transform_1, window_bounds = array<i64: 128, 384>}, {pipeline_mode = #tpu.pipeline_mode<synchronous>, transform_indices = @transform_2, window_bounds = array<i64: 1, 384>}, {transform_indices = @transform_3, window_bounds = array<i64: 16, 384>}]} {
    %c0 = arith.constant 0 : index
    %c0_0 = arith.constant 0 : index
    %0 = vector.load %arg1[%c0, %c0_0] : memref<16x128xf32, #tpu.memory_space<vmem>>, vector<16x128xf32>
    %c0_1 = arith.constant 0 : index
    %c0_2 = arith.constant 0 : index
    %1 = vector.load %arg2[%c0_1, %c0_2] : memref<128x384xf32, #tpu.memory_space<vmem>>, vector<128x384xf32>
    %cst = arith.constant dense<0.000000e+00> : vector<16x384xf32>
    %2 = tpu.matmul %0, %1, %cst {dimension_numbers = #tpu.dot_dimension_numbers<[1], [0], [0], [1], [0, 0, 1, 1], [], []>} : vector<16x128xf32>, vector<128x384xf32>, vector<16x384xf32> -> vector<16x384xf32>
    %c0_3 = arith.constant 0 : index
    %c0_4 = arith.constant 0 : index
    %3 = vector.load %arg3[%c0_3, %c0_4] : memref<1x384xf32, #tpu.memory_space<vmem>>, vector<1x384xf32>
    %4 = vector.broadcast %3 : vector<1x384xf32> to vector<16x384xf32>
    %5 = arith.addf %2, %4 : vector<16x384xf32>
    %c0_5 = arith.constant 0 : index
    %c0_6 = arith.constant 0 : index
    %6 = vector.load %arg4[%c0_5, %c0_6] : memref<16x384xf32, #tpu.memory_space<vmem>>, vector<16x384xf32>
    tpu.vector_store %arg4[%c0_5, %c0_6], %5 {strides = array<i32>} : memref<16x384xf32, #tpu.memory_space<vmem>>, vector<16x384xf32>,
    return
  }
  func.func @transform_0(%arg0: i32) -> (i32, i32) {
    %c0_i32 = arith.constant 0 : i32
    %c0_i32_0 = arith.constant 0 : i32
    return %arg0, %c0_i32 : i32, i32
  }
  func.func @transform_1(%arg0: i32) -> (i32, i32) {
    %c0_i32 = arith.constant 0 : i32
    %c0_i32_0 = arith.constant 0 : i32
    %c0_i32_1 = arith.constant 0 : i32
    return %c0_i32, %c0_i32_0 : i32, i32
  }
  func.func @transform_2(%arg0: i32) -> (i32, i32) {
    %c0_i32 = arith.constant 0 : i32
    %c0_i32_0 = arith.constant 0 : i32
    %c0_i32_1 = arith.constant 0 : i32
    return %c0_i32, %c0_i32_0 : i32, i32
  }
  func.func @transform_3(%arg0: i32) -> (i32, i32) {
    %c0_i32 = arith.constant 0 : i32
    %c0_i32_0 = arith.constant 0 : i32
    return %arg0, %c0_i32 : i32, i32
  }
}

module attributes {stable_mosaic.version = 11 : i64} {
  func.func @_proj_add_ln_kernel(%arg0: i32, %arg1: memref<16x128xf32, #tpu.memory_space<vmem>>, %arg2: memref<16x128xf32, #tpu.memory_space<vmem>>, %arg3: memref<128x128xf32, #tpu.memory_space<vmem>>, %arg4: memref<1x128xf32, #tpu.memory_space<vmem>>, %arg5: memref<1x128xf32, #tpu.memory_space<vmem>>, %arg6: memref<1x128xf32, #tpu.memory_space<vmem>>, %arg7: memref<16x128xf32, #tpu.memory_space<vmem>>) attributes {dimension_semantics = [#tpu.dimension_semantics<parallel>], iteration_bounds = array<i64: 1>, scalar_prefetch = 0 : i64, scratch_operands = 0 : i64, tpu.core_type = #tpu.core_type<tc>, window_params = [{transform_indices = @transform_0, window_bounds = array<i64: 16, 128>}, {transform_indices = @transform_1, window_bounds = array<i64: 16, 128>}, {pipeline_mode = #tpu.pipeline_mode<synchronous>, transform_indices = @transform_2, window_bounds = array<i64: 128, 128>}, {pipeline_mode = #tpu.pipeline_mode<synchronous>, transform_indices = @transform_3, window_bounds = array<i64: 1, 128>}, {pipeline_mode = #tpu.pipeline_mode<synchronous>, transform_indices = @transform_4, window_bounds = array<i64: 1, 128>}, {pipeline_mode = #tpu.pipeline_mode<synchronous>, transform_indices = @transform_5, window_bounds = array<i64: 1, 128>}, {transform_indices = @transform_6, window_bounds = array<i64: 16, 128>}]} {
    %c0 = arith.constant 0 : index
    %c0_0 = arith.constant 0 : index
    %0 = vector.load %arg1[%c0, %c0_0] : memref<16x128xf32, #tpu.memory_space<vmem>>, vector<16x128xf32>
    %c0_1 = arith.constant 0 : index
    %c0_2 = arith.constant 0 : index
    %1 = vector.load %arg3[%c0_1, %c0_2] : memref<128x128xf32, #tpu.memory_space<vmem>>, vector<128x128xf32>
    %cst = arith.constant dense<0.000000e+00> : vector<16x128xf32>
    %2 = tpu.matmul %0, %1, %cst {dimension_numbers = #tpu.dot_dimension_numbers<[1], [0], [0], [1], [0, 0, 1, 1], [], []>} : vector<16x128xf32>, vector<128x128xf32>, vector<16x128xf32> -> vector<16x128xf32>
    %c0_3 = arith.constant 0 : index
    %c0_4 = arith.constant 0 : index
    %3 = vector.load %arg4[%c0_3, %c0_4] : memref<1x128xf32, #tpu.memory_space<vmem>>, vector<1x128xf32>
    %4 = vector.broadcast %3 : vector<1x128xf32> to vector<16x128xf32>
    %5 = arith.addf %2, %4 : vector<16x128xf32>
    %c0_5 = arith.constant 0 : index
    %c0_6 = arith.constant 0 : index
    %6 = vector.load %arg2[%c0_5, %c0_6] : memref<16x128xf32, #tpu.memory_space<vmem>>, vector<16x128xf32>
    %7 = arith.addf %6, %5 : vector<16x128xf32>
    %c0_7 = arith.constant 0 : index
    %c0_8 = arith.constant 0 : index
    %8 = vector.load %arg5[%c0_7, %c0_8] : memref<1x128xf32, #tpu.memory_space<vmem>>, vector<1x128xf32>
    %c0_9 = arith.constant 0 : index
    %c0_10 = arith.constant 0 : index
    %9 = vector.load %arg6[%c0_9, %c0_10] : memref<1x128xf32, #tpu.memory_space<vmem>>, vector<1x128xf32>
    %cst_11 = arith.constant dense<0.000000e+00> : vector<16xf32>
    %10 = vector.multi_reduction <add>, %7, %cst_11 [1] : vector<16x128xf32> to vector<16xf32>
    %11 = vector.shape_cast %10 : vector<16xf32> to vector<16x1xf32>
    %cst_12 = arith.constant 1.280000e+02 : f32
    %12 = vector.broadcast %cst_12 : f32 to vector<16x1xf32>
    %13 = arith.divf %11, %12 : vector<16x1xf32>
    %14 = vector.broadcast %13 : vector<16x1xf32> to vector<16x128xf32>
    %15 = arith.subf %7, %14 : vector<16x128xf32>
    %16 = arith.mulf %15, %15 : vector<16x128xf32>
    %cst_13 = arith.constant dense<0.000000e+00> : vector<16xf32>
    %17 = vector.multi_reduction <add>, %16, %cst_13 [1] : vector<16x128xf32> to vector<16xf32>
    %18 = vector.shape_cast %17 : vector<16xf32> to vector<16x1xf32>
    %cst_14 = arith.constant 0.00787401571 : f32
    %19 = vector.broadcast %cst_14 : f32 to vector<16x1xf32>
    %20 = arith.mulf %18, %19 : vector<16x1xf32>
    %21 = math.sqrt %20 : vector<16x1xf32>
    %cst_15 = arith.constant 9.99999997E-7 : f32
    %22 = vector.broadcast %cst_15 : f32 to vector<16x1xf32>
    %23 = arith.addf %21, %22 : vector<16x1xf32>
    %24 = tpu.reciprocal %23 {approx = true} : vector<16x1xf32> -> vector<16x1xf32>
    %25 = vector.broadcast %8 : vector<1x128xf32> to vector<16x128xf32>
    %26 = arith.mulf %25, %15 : vector<16x128xf32>
    %27 = vector.broadcast %24 : vector<16x1xf32> to vector<16x128xf32>
    %28 = arith.mulf %26, %27 : vector<16x128xf32>
    %29 = vector.broadcast %9 : vector<1x128xf32> to vector<16x128xf32>
    %30 = arith.addf %28, %29 : vector<16x128xf32>
    %c0_16 = arith.constant 0 : index
    %c0_17 = arith.constant 0 : index
    %31 = vector.load %arg7[%c0_16, %c0_17] : memref<16x128xf32, #tpu.memory_space<vmem>>, vector<16x128xf32>
    tpu.vector_store %arg7[%c0_16, %c0_17], %30 {strides = array<i32>} : memref<16x128xf32, #tpu.memory_space<vmem>>, vector<16x128xf32>,
    return
  }
  func.func @transform_0(%arg0: i32) -> (i32, i32) {
    %c0_i32 = arith.constant 0 : i32
    %c0_i32_0 = arith.constant 0 : i32
    return %arg0, %c0_i32 : i32, i32
  }
  func.func @transform_1(%arg0: i32) -> (i32, i32) {
    %c0_i32 = arith.constant 0 : i32
    %c0_i32_0 = arith.constant 0 : i32
    return %arg0, %c0_i32 : i32, i32
  }
  func.func @transform_2(%arg0: i32) -> (i32, i32) {
    %c0_i32 = arith.constant 0 : i32
    %c0_i32_0 = arith.constant 0 : i32
    %c0_i32_1 = arith.constant 0 : i32
    return %c0_i32, %c0_i32_0 : i32, i32
  }
  func.func @transform_3(%arg0: i32) -> (i32, i32) {
    %c0_i32 = arith.constant 0 : i32
    %c0_i32_0 = arith.constant 0 : i32
    %c0_i32_1 = arith.constant 0 : i32
    return %c0_i32, %c0_i32_0 : i32, i32
  }
  func.func @transform_4(%arg0: i32) -> (i32, i32) {
    %c0_i32 = arith.constant 0 : i32
    %c0_i32_0 = arith.constant 0 : i32
    %c0_i32_1 = arith.constant 0 : i32
    return %c0_i32, %c0_i32_0 : i32, i32
  }
  func.func @transform_5(%arg0: i32) -> (i32, i32) {
    %c0_i32 = arith.constant 0 : i32
    %c0_i32_0 = arith.constant 0 : i32
    %c0_i32_1 = arith.constant 0 : i32
    return %c0_i32, %c0_i32_0 : i32, i32
  }
  func.func @transform_6(%arg0: i32) -> (i32, i32) {
    %c0_i32 = arith.constant 0 : i32
    %c0_i32_0 = arith.constant 0 : i32
    return %arg0, %c0_i32 : i32, i32
  }
}

module attributes {stable_mosaic.version = 11 : i64} {
  func.func @_ffn_add_ln_kernel(%arg0: i32, %arg1: memref<16x128xf32, #tpu.memory_space<vmem>>, %arg2: memref<128x512xf32, #tpu.memory_space<vmem>>, %arg3: memref<1x512xf32, #tpu.memory_space<vmem>>, %arg4: memref<512x128xf32, #tpu.memory_space<vmem>>, %arg5: memref<1x128xf32, #tpu.memory_space<vmem>>, %arg6: memref<1x128xf32, #tpu.memory_space<vmem>>, %arg7: memref<1x128xf32, #tpu.memory_space<vmem>>, %arg8: memref<16x128xf32, #tpu.memory_space<vmem>>) attributes {dimension_semantics = [#tpu.dimension_semantics<parallel>], iteration_bounds = array<i64: 1>, scalar_prefetch = 0 : i64, scratch_operands = 0 : i64, tpu.core_type = #tpu.core_type<tc>, window_params = [{transform_indices = @transform_0, window_bounds = array<i64: 16, 128>}, {pipeline_mode = #tpu.pipeline_mode<synchronous>, transform_indices = @transform_1, window_bounds = array<i64: 128, 512>}, {pipeline_mode = #tpu.pipeline_mode<synchronous>, transform_indices = @transform_2, window_bounds = array<i64: 1, 512>}, {pipeline_mode = #tpu.pipeline_mode<synchronous>, transform_indices = @transform_3, window_bounds = array<i64: 512, 128>}, {pipeline_mode = #tpu.pipeline_mode<synchronous>, transform_indices = @transform_4, window_bounds = array<i64: 1, 128>}, {pipeline_mode = #tpu.pipeline_mode<synchronous>, transform_indices = @transform_5, window_bounds = array<i64: 1, 128>}, {pipeline_mode = #tpu.pipeline_mode<synchronous>, transform_indices = @transform_6, window_bounds = array<i64: 1, 128>}, {transform_indices = @transform_7, window_bounds = array<i64: 16, 128>}]} {
    %c0 = arith.constant 0 : index
    %c0_0 = arith.constant 0 : index
    %0 = vector.load %arg1[%c0, %c0_0] : memref<16x128xf32, #tpu.memory_space<vmem>>, vector<16x128xf32>
    %c0_1 = arith.constant 0 : index
    %c0_2 = arith.constant 0 : index
    %1 = vector.load %arg2[%c0_1, %c0_2] : memref<128x512xf32, #tpu.memory_space<vmem>>, vector<128x512xf32>
    %cst = arith.constant dense<0.000000e+00> : vector<16x512xf32>
    %2 = tpu.matmul %0, %1, %cst {dimension_numbers = #tpu.dot_dimension_numbers<[1], [0], [0], [1], [0, 0, 1, 1], [], []>} : vector<16x128xf32>, vector<128x512xf32>, vector<16x512xf32> -> vector<16x512xf32>
    %c0_3 = arith.constant 0 : index
    %c0_4 = arith.constant 0 : index
    %3 = vector.load %arg3[%c0_3, %c0_4] : memref<1x512xf32, #tpu.memory_space<vmem>>, vector<1x512xf32>
    %4 = vector.broadcast %3 : vector<1x512xf32> to vector<16x512xf32>
    %5 = arith.addf %2, %4 : vector<16x512xf32>
    %cst_5 = arith.constant 0.000000e+00 : f32
    %6 = vector.broadcast %cst_5 : f32 to vector<16x512xf32>
    %7 = arith.maximumf %5, %6 : vector<16x512xf32>
    %c0_6 = arith.constant 0 : index
    %c0_7 = arith.constant 0 : index
    %8 = vector.load %arg4[%c0_6, %c0_7] : memref<512x128xf32, #tpu.memory_space<vmem>>, vector<512x128xf32>
    %cst_8 = arith.constant dense<0.000000e+00> : vector<16x128xf32>
    %9 = tpu.matmul %7, %8, %cst_8 {dimension_numbers = #tpu.dot_dimension_numbers<[1], [0], [0], [1], [0, 0, 1, 1], [], []>} : vector<16x512xf32>, vector<512x128xf32>, vector<16x128xf32> -> vector<16x128xf32>
    %c0_9 = arith.constant 0 : index
    %c0_10 = arith.constant 0 : index
    %10 = vector.load %arg5[%c0_9, %c0_10] : memref<1x128xf32, #tpu.memory_space<vmem>>, vector<1x128xf32>
    %11 = vector.broadcast %10 : vector<1x128xf32> to vector<16x128xf32>
    %12 = arith.addf %9, %11 : vector<16x128xf32>
    %13 = arith.addf %0, %12 : vector<16x128xf32>
    %c0_11 = arith.constant 0 : index
    %c0_12 = arith.constant 0 : index
    %14 = vector.load %arg6[%c0_11, %c0_12] : memref<1x128xf32, #tpu.memory_space<vmem>>, vector<1x128xf32>
    %c0_13 = arith.constant 0 : index
    %c0_14 = arith.constant 0 : index
    %15 = vector.load %arg7[%c0_13, %c0_14] : memref<1x128xf32, #tpu.memory_space<vmem>>, vector<1x128xf32>
    %cst_15 = arith.constant dense<0.000000e+00> : vector<16xf32>
    %16 = vector.multi_reduction <add>, %13, %cst_15 [1] : vector<16x128xf32> to vector<16xf32>
    %17 = vector.shape_cast %16 : vector<16xf32> to vector<16x1xf32>
    %cst_16 = arith.constant 1.280000e+02 : f32
    %18 = vector.broadcast %cst_16 : f32 to vector<16x1xf32>
    %19 = arith.divf %17, %18 : vector<16x1xf32>
    %20 = vector.broadcast %19 : vector<16x1xf32> to vector<16x128xf32>
    %21 = arith.subf %13, %20 : vector<16x128xf32>
    %22 = arith.mulf %21, %21 : vector<16x128xf32>
    %cst_17 = arith.constant dense<0.000000e+00> : vector<16xf32>
    %23 = vector.multi_reduction <add>, %22, %cst_17 [1] : vector<16x128xf32> to vector<16xf32>
    %24 = vector.shape_cast %23 : vector<16xf32> to vector<16x1xf32>
    %cst_18 = arith.constant 0.00787401571 : f32
    %25 = vector.broadcast %cst_18 : f32 to vector<16x1xf32>
    %26 = arith.mulf %24, %25 : vector<16x1xf32>
    %27 = math.sqrt %26 : vector<16x1xf32>
    %cst_19 = arith.constant 9.99999997E-7 : f32
    %28 = vector.broadcast %cst_19 : f32 to vector<16x1xf32>
    %29 = arith.addf %27, %28 : vector<16x1xf32>
    %30 = tpu.reciprocal %29 {approx = true} : vector<16x1xf32> -> vector<16x1xf32>
    %31 = vector.broadcast %14 : vector<1x128xf32> to vector<16x128xf32>
    %32 = arith.mulf %31, %21 : vector<16x128xf32>
    %33 = vector.broadcast %30 : vector<16x1xf32> to vector<16x128xf32>
    %34 = arith.mulf %32, %33 : vector<16x128xf32>
    %35 = vector.broadcast %15 : vector<1x128xf32> to vector<16x128xf32>
    %36 = arith.addf %34, %35 : vector<16x128xf32>
    %c0_20 = arith.constant 0 : index
    %c0_21 = arith.constant 0 : index
    %37 = vector.load %arg8[%c0_20, %c0_21] : memref<16x128xf32, #tpu.memory_space<vmem>>, vector<16x128xf32>
    tpu.vector_store %arg8[%c0_20, %c0_21], %36 {strides = array<i32>} : memref<16x128xf32, #tpu.memory_space<vmem>>, vector<16x128xf32>,
    return
  }
  func.func @transform_0(%arg0: i32) -> (i32, i32) {
    %c0_i32 = arith.constant 0 : i32
    %c0_i32_0 = arith.constant 0 : i32
    return %arg0, %c0_i32 : i32, i32
  }
  func.func @transform_1(%arg0: i32) -> (i32, i32) {
    %c0_i32 = arith.constant 0 : i32
    %c0_i32_0 = arith.constant 0 : i32
    %c0_i32_1 = arith.constant 0 : i32
    return %c0_i32, %c0_i32_0 : i32, i32
  }
  func.func @transform_2(%arg0: i32) -> (i32, i32) {
    %c0_i32 = arith.constant 0 : i32
    %c0_i32_0 = arith.constant 0 : i32
    %c0_i32_1 = arith.constant 0 : i32
    return %c0_i32, %c0_i32_0 : i32, i32
  }
  func.func @transform_3(%arg0: i32) -> (i32, i32) {
    %c0_i32 = arith.constant 0 : i32
    %c0_i32_0 = arith.constant 0 : i32
    %c0_i32_1 = arith.constant 0 : i32
    return %c0_i32, %c0_i32_0 : i32, i32
  }
  func.func @transform_4(%arg0: i32) -> (i32, i32) {
    %c0_i32 = arith.constant 0 : i32
    %c0_i32_0 = arith.constant 0 : i32
    %c0_i32_1 = arith.constant 0 : i32
    return %c0_i32, %c0_i32_0 : i32, i32
  }
  func.func @transform_5(%arg0: i32) -> (i32, i32) {
    %c0_i32 = arith.constant 0 : i32
    %c0_i32_0 = arith.constant 0 : i32
    %c0_i32_1 = arith.constant 0 : i32
    return %c0_i32, %c0_i32_0 : i32, i32
  }
  func.func @transform_6(%arg0: i32) -> (i32, i32) {
    %c0_i32 = arith.constant 0 : i32
    %c0_i32_0 = arith.constant 0 : i32
    %c0_i32_1 = arith.constant 0 : i32
    return %c0_i32, %c0_i32_0 : i32, i32
  }
  func.func @transform_7(%arg0: i32) -> (i32, i32) {
    %c0_i32 = arith.constant 0 : i32
    %c0_i32_0 = arith.constant 0 : i32
    return %arg0, %c0_i32 : i32, i32
  }
}

module attributes {stable_mosaic.version = 11 : i64} {
  func.func @_dense_kernel(%arg0: i32, %arg1: memref<32x128xf32, #tpu.memory_space<vmem>>, %arg2: memref<128x384xf32, #tpu.memory_space<vmem>>, %arg3: memref<1x384xf32, #tpu.memory_space<vmem>>, %arg4: memref<32x384xf32, #tpu.memory_space<vmem>>) attributes {dimension_semantics = [#tpu.dimension_semantics<parallel>], iteration_bounds = array<i64: 1>, scalar_prefetch = 0 : i64, scratch_operands = 0 : i64, tpu.core_type = #tpu.core_type<tc>, window_params = [{transform_indices = @transform_0, window_bounds = array<i64: 32, 128>}, {pipeline_mode = #tpu.pipeline_mode<synchronous>, transform_indices = @transform_1, window_bounds = array<i64: 128, 384>}, {pipeline_mode = #tpu.pipeline_mode<synchronous>, transform_indices = @transform_2, window_bounds = array<i64: 1, 384>}, {transform_indices = @transform_3, window_bounds = array<i64: 32, 384>}]} {
    %c0 = arith.constant 0 : index
    %c0_0 = arith.constant 0 : index
    %0 = vector.load %arg1[%c0, %c0_0] : memref<32x128xf32, #tpu.memory_space<vmem>>, vector<32x128xf32>
    %c0_1 = arith.constant 0 : index
    %c0_2 = arith.constant 0 : index
    %1 = vector.load %arg2[%c0_1, %c0_2] : memref<128x384xf32, #tpu.memory_space<vmem>>, vector<128x384xf32>
    %cst = arith.constant dense<0.000000e+00> : vector<32x384xf32>
    %2 = tpu.matmul %0, %1, %cst {dimension_numbers = #tpu.dot_dimension_numbers<[1], [0], [0], [1], [0, 0, 1, 1], [], []>} : vector<32x128xf32>, vector<128x384xf32>, vector<32x384xf32> -> vector<32x384xf32>
    %c0_3 = arith.constant 0 : index
    %c0_4 = arith.constant 0 : index
    %3 = vector.load %arg3[%c0_3, %c0_4] : memref<1x384xf32, #tpu.memory_space<vmem>>, vector<1x384xf32>
    %4 = vector.broadcast %3 : vector<1x384xf32> to vector<32x384xf32>
    %5 = arith.addf %2, %4 : vector<32x384xf32>
    %c0_5 = arith.constant 0 : index
    %c0_6 = arith.constant 0 : index
    %6 = vector.load %arg4[%c0_5, %c0_6] : memref<32x384xf32, #tpu.memory_space<vmem>>, vector<32x384xf32>
    tpu.vector_store %arg4[%c0_5, %c0_6], %5 {strides = array<i32>} : memref<32x384xf32, #tpu.memory_space<vmem>>, vector<32x384xf32>,
    return
  }
  func.func @transform_0(%arg0: i32) -> (i32, i32) {
    %c0_i32 = arith.constant 0 : i32
    %c0_i32_0 = arith.constant 0 : i32
    return %arg0, %c0_i32 : i32, i32
  }
  func.func @transform_1(%arg0: i32) -> (i32, i32) {
    %c0_i32 = arith.constant 0 : i32
    %c0_i32_0 = arith.constant 0 : i32
    %c0_i32_1 = arith.constant 0 : i32
    return %c0_i32, %c0_i32_0 : i32, i32
  }
  func.func @transform_2(%arg0: i32) -> (i32, i32) {
    %c0_i32 = arith.constant 0 : i32
    %c0_i32_0 = arith.constant 0 : i32
    %c0_i32_1 = arith.constant 0 : i32
    return %c0_i32, %c0_i32_0 : i32, i32
  }
  func.func @transform_3(%arg0: i32) -> (i32, i32) {
    %c0_i32 = arith.constant 0 : i32
    %c0_i32_0 = arith.constant 0 : i32
    return %arg0, %c0_i32 : i32, i32
  }
}

module attributes {stable_mosaic.version = 11 : i64} {
  func.func @_dense_kernel(%arg0: i32, %arg1: memref<16x128xf32, #tpu.memory_space<vmem>>, %arg2: memref<128x256xf32, #tpu.memory_space<vmem>>, %arg3: memref<1x256xf32, #tpu.memory_space<vmem>>, %arg4: memref<16x256xf32, #tpu.memory_space<vmem>>) attributes {dimension_semantics = [#tpu.dimension_semantics<parallel>], iteration_bounds = array<i64: 1>, scalar_prefetch = 0 : i64, scratch_operands = 0 : i64, tpu.core_type = #tpu.core_type<tc>, window_params = [{transform_indices = @transform_0, window_bounds = array<i64: 16, 128>}, {pipeline_mode = #tpu.pipeline_mode<synchronous>, transform_indices = @transform_1, window_bounds = array<i64: 128, 256>}, {pipeline_mode = #tpu.pipeline_mode<synchronous>, transform_indices = @transform_2, window_bounds = array<i64: 1, 256>}, {transform_indices = @transform_3, window_bounds = array<i64: 16, 256>}]} {
    %c0 = arith.constant 0 : index
    %c0_0 = arith.constant 0 : index
    %0 = vector.load %arg1[%c0, %c0_0] : memref<16x128xf32, #tpu.memory_space<vmem>>, vector<16x128xf32>
    %c0_1 = arith.constant 0 : index
    %c0_2 = arith.constant 0 : index
    %1 = vector.load %arg2[%c0_1, %c0_2] : memref<128x256xf32, #tpu.memory_space<vmem>>, vector<128x256xf32>
    %cst = arith.constant dense<0.000000e+00> : vector<16x256xf32>
    %2 = tpu.matmul %0, %1, %cst {dimension_numbers = #tpu.dot_dimension_numbers<[1], [0], [0], [1], [0, 0, 1, 1], [], []>} : vector<16x128xf32>, vector<128x256xf32>, vector<16x256xf32> -> vector<16x256xf32>
    %c0_3 = arith.constant 0 : index
    %c0_4 = arith.constant 0 : index
    %3 = vector.load %arg3[%c0_3, %c0_4] : memref<1x256xf32, #tpu.memory_space<vmem>>, vector<1x256xf32>
    %4 = vector.broadcast %3 : vector<1x256xf32> to vector<16x256xf32>
    %5 = arith.addf %2, %4 : vector<16x256xf32>
    %c0_5 = arith.constant 0 : index
    %c0_6 = arith.constant 0 : index
    %6 = vector.load %arg4[%c0_5, %c0_6] : memref<16x256xf32, #tpu.memory_space<vmem>>, vector<16x256xf32>
    tpu.vector_store %arg4[%c0_5, %c0_6], %5 {strides = array<i32>} : memref<16x256xf32, #tpu.memory_space<vmem>>, vector<16x256xf32>,
    return
  }
  func.func @transform_0(%arg0: i32) -> (i32, i32) {
    %c0_i32 = arith.constant 0 : i32
    %c0_i32_0 = arith.constant 0 : i32
    return %arg0, %c0_i32 : i32, i32
  }
  func.func @transform_1(%arg0: i32) -> (i32, i32) {
    %c0_i32 = arith.constant 0 : i32
    %c0_i32_0 = arith.constant 0 : i32
    %c0_i32_1 = arith.constant 0 : i32
    return %c0_i32, %c0_i32_0 : i32, i32
  }
  func.func @transform_2(%arg0: i32) -> (i32, i32) {
    %c0_i32 = arith.constant 0 : i32
    %c0_i32_0 = arith.constant 0 : i32
    %c0_i32_1 = arith.constant 0 : i32
    return %c0_i32, %c0_i32_0 : i32, i32
  }
  func.func @transform_3(%arg0: i32) -> (i32, i32) {
    %c0_i32 = arith.constant 0 : i32
    %c0_i32_0 = arith.constant 0 : i32
    return %arg0, %c0_i32 : i32, i32
  }
}

module attributes {stable_mosaic.version = 11 : i64} {
  func.func @_self_attn_kernel(%arg0: i32, %arg1: memref<1x16x384xf32, #tpu.memory_space<vmem>>, %arg2: memref<1x1x1x16xf32, #tpu.memory_space<vmem>>, %arg3: memref<1x16x128xf32, #tpu.memory_space<vmem>>) attributes {dimension_semantics = [#tpu.dimension_semantics<parallel>], iteration_bounds = array<i64: 2>, scalar_prefetch = 0 : i64, scratch_operands = 0 : i64, tpu.core_type = #tpu.core_type<tc>, window_params = [{transform_indices = @transform_0, window_bounds = array<i64: 1, 16, 384>}, {transform_indices = @transform_1, window_bounds = array<i64: 1, 1, 1, 16>}, {transform_indices = @transform_2, window_bounds = array<i64: 1, 16, 128>}]} {
    %c0 = arith.constant 0 : index
    %c0_0 = arith.constant 0 : index
    %c0_1 = arith.constant 0 : index
    %0 = vector.load %arg1[%c0, %c0_0, %c0_1] : memref<1x16x384xf32, #tpu.memory_space<vmem>>, vector<1x16x384xf32>
    %1 = vector.shape_cast %0 : vector<1x16x384xf32> to vector<16x384xf32>
    %2 = vector.extract_strided_slice %1 {offsets = [0, 0], sizes = [16, 128], strides = [1, 1]} : vector<16x384xf32> to vector<16x128xf32>
    %3 = vector.extract_strided_slice %1 {offsets = [0, 128], sizes = [16, 128], strides = [1, 1]} : vector<16x384xf32> to vector<16x128xf32>
    %4 = vector.extract_strided_slice %1 {offsets = [0, 256], sizes = [16, 128], strides = [1, 1]} : vector<16x384xf32> to vector<16x128xf32>
    %c0_2 = arith.constant 0 : index
    %c0_3 = arith.constant 0 : index
    %c0_4 = arith.constant 0 : index
    %c0_5 = arith.constant 0 : index
    %5 = vector.load %arg2[%c0_2, %c0_3, %c0_4, %c0_5] : memref<1x1x1x16xf32, #tpu.memory_space<vmem>>, vector<1x1x1x16xf32>
    %6 = vector.shape_cast %5 : vector<1x1x1x16xf32> to vector<1x16xf32>
    %7 = vector.extract_strided_slice %2 {offsets = [0, 0], sizes = [16, 32], strides = [1, 1]} : vector<16x128xf32> to vector<16x32xf32>
    %8 = vector.extract_strided_slice %3 {offsets = [0, 0], sizes = [16, 32], strides = [1, 1]} : vector<16x128xf32> to vector<16x32xf32>
    %9 = vector.extract_strided_slice %4 {offsets = [0, 0], sizes = [16, 32], strides = [1, 1]} : vector<16x128xf32> to vector<16x32xf32>
    %cst = arith.constant dense<0.000000e+00> : vector<16x16xf32>
    %10 = tpu.matmul %7, %8, %cst {dimension_numbers = #tpu.dot_dimension_numbers<[1], [1], [0], [0], [0, 0, 1, 0], [], []>} : vector<16x32xf32>, vector<16x32xf32>, vector<16x16xf32> -> vector<16x16xf32>
    %cst_6 = arith.constant 0.176776692 : f32
    %11 = vector.broadcast %cst_6 : f32 to vector<16x16xf32>
    %12 = arith.mulf %10, %11 : vector<16x16xf32>
    %cst_7 = arith.constant 5.000000e-01 : f32
    %13 = vector.broadcast %cst_7 : f32 to vector<1x16xf32>
    %14 = arith.cmpf ogt, %6, %13 : vector<1x16xf32>
    %cst_8 = arith.constant -1.000000e+09 : f32
    %15 = vector.shape_cast %14 : vector<1x16xi1> to vector<1x16xi1>
    %16 = vector.broadcast %15 : vector<1x16xi1> to vector<16x16xi1>
    %17 = vector.broadcast %cst_8 : f32 to vector<16x16xf32>
    %18 = arith.select %16, %17, %12 : vector<16x16xi1>, vector<16x16xf32>
    %cst_9 = arith.constant dense<0xFF800000> : vector<16xf32>
    %19 = vector.multi_reduction <maximumf>, %18, %cst_9 [1] : vector<16x16xf32> to vector<16xf32>
    %20 = vector.shape_cast %19 : vector<16xf32> to vector<16x1xf32>
    %21 = vector.broadcast %20 : vector<16x1xf32> to vector<16x16xf32>
    %22 = arith.subf %18, %21 : vector<16x16xf32>
    %23 = math.exp %22 : vector<16x16xf32>
    %cst_10 = arith.constant dense<0.000000e+00> : vector<16xf32>
    %24 = vector.multi_reduction <add>, %23, %cst_10 [1] : vector<16x16xf32> to vector<16xf32>
    %25 = vector.shape_cast %24 : vector<16xf32> to vector<16x1xf32>
    %26 = tpu.reciprocal %25 {approx = true} : vector<16x1xf32> -> vector<16x1xf32>
    %27 = vector.broadcast %26 : vector<16x1xf32> to vector<16x16xf32>
    %28 = arith.mulf %23, %27 : vector<16x16xf32>
    %cst_11 = arith.constant dense<0.000000e+00> : vector<16x32xf32>
    %29 = tpu.matmul %28, %9, %cst_11 {dimension_numbers = #tpu.dot_dimension_numbers<[1], [0], [0], [1], [0, 0, 1, 1], [], []>} : vector<16x16xf32>, vector<16x32xf32>, vector<16x32xf32> -> vector<16x32xf32>
    %30 = vector.extract_strided_slice %2 {offsets = [0, 32], sizes = [16, 32], strides = [1, 1]} : vector<16x128xf32> to vector<16x32xf32>
    %31 = vector.extract_strided_slice %3 {offsets = [0, 32], sizes = [16, 32], strides = [1, 1]} : vector<16x128xf32> to vector<16x32xf32>
    %32 = vector.extract_strided_slice %4 {offsets = [0, 32], sizes = [16, 32], strides = [1, 1]} : vector<16x128xf32> to vector<16x32xf32>
    %cst_12 = arith.constant dense<0.000000e+00> : vector<16x16xf32>
    %33 = tpu.matmul %30, %31, %cst_12 {dimension_numbers = #tpu.dot_dimension_numbers<[1], [1], [0], [0], [0, 0, 1, 0], [], []>} : vector<16x32xf32>, vector<16x32xf32>, vector<16x16xf32> -> vector<16x16xf32>
    %cst_13 = arith.constant 0.176776692 : f32
    %34 = vector.broadcast %cst_13 : f32 to vector<16x16xf32>
    %35 = arith.mulf %33, %34 : vector<16x16xf32>
    %cst_14 = arith.constant 5.000000e-01 : f32
    %36 = vector.broadcast %cst_14 : f32 to vector<1x16xf32>
    %37 = arith.cmpf ogt, %6, %36 : vector<1x16xf32>
    %cst_15 = arith.constant -1.000000e+09 : f32
    %38 = vector.shape_cast %37 : vector<1x16xi1> to vector<1x16xi1>
    %39 = vector.broadcast %38 : vector<1x16xi1> to vector<16x16xi1>
    %40 = vector.broadcast %cst_15 : f32 to vector<16x16xf32>
    %41 = arith.select %39, %40, %35 : vector<16x16xi1>, vector<16x16xf32>
    %cst_16 = arith.constant dense<0xFF800000> : vector<16xf32>
    %42 = vector.multi_reduction <maximumf>, %41, %cst_16 [1] : vector<16x16xf32> to vector<16xf32>
    %43 = vector.shape_cast %42 : vector<16xf32> to vector<16x1xf32>
    %44 = vector.broadcast %43 : vector<16x1xf32> to vector<16x16xf32>
    %45 = arith.subf %41, %44 : vector<16x16xf32>
    %46 = math.exp %45 : vector<16x16xf32>
    %cst_17 = arith.constant dense<0.000000e+00> : vector<16xf32>
    %47 = vector.multi_reduction <add>, %46, %cst_17 [1] : vector<16x16xf32> to vector<16xf32>
    %48 = vector.shape_cast %47 : vector<16xf32> to vector<16x1xf32>
    %49 = tpu.reciprocal %48 {approx = true} : vector<16x1xf32> -> vector<16x1xf32>
    %50 = vector.broadcast %49 : vector<16x1xf32> to vector<16x16xf32>
    %51 = arith.mulf %46, %50 : vector<16x16xf32>
    %cst_18 = arith.constant dense<0.000000e+00> : vector<16x32xf32>
    %52 = tpu.matmul %51, %32, %cst_18 {dimension_numbers = #tpu.dot_dimension_numbers<[1], [0], [0], [1], [0, 0, 1, 1], [], []>} : vector<16x16xf32>, vector<16x32xf32>, vector<16x32xf32> -> vector<16x32xf32>
    %53 = vector.extract_strided_slice %2 {offsets = [0, 64], sizes = [16, 32], strides = [1, 1]} : vector<16x128xf32> to vector<16x32xf32>
    %54 = vector.extract_strided_slice %3 {offsets = [0, 64], sizes = [16, 32], strides = [1, 1]} : vector<16x128xf32> to vector<16x32xf32>
    %55 = vector.extract_strided_slice %4 {offsets = [0, 64], sizes = [16, 32], strides = [1, 1]} : vector<16x128xf32> to vector<16x32xf32>
    %cst_19 = arith.constant dense<0.000000e+00> : vector<16x16xf32>
    %56 = tpu.matmul %53, %54, %cst_19 {dimension_numbers = #tpu.dot_dimension_numbers<[1], [1], [0], [0], [0, 0, 1, 0], [], []>} : vector<16x32xf32>, vector<16x32xf32>, vector<16x16xf32> -> vector<16x16xf32>
    %cst_20 = arith.constant 0.176776692 : f32
    %57 = vector.broadcast %cst_20 : f32 to vector<16x16xf32>
    %58 = arith.mulf %56, %57 : vector<16x16xf32>
    %cst_21 = arith.constant 5.000000e-01 : f32
    %59 = vector.broadcast %cst_21 : f32 to vector<1x16xf32>
    %60 = arith.cmpf ogt, %6, %59 : vector<1x16xf32>
    %cst_22 = arith.constant -1.000000e+09 : f32
    %61 = vector.shape_cast %60 : vector<1x16xi1> to vector<1x16xi1>
    %62 = vector.broadcast %61 : vector<1x16xi1> to vector<16x16xi1>
    %63 = vector.broadcast %cst_22 : f32 to vector<16x16xf32>
    %64 = arith.select %62, %63, %58 : vector<16x16xi1>, vector<16x16xf32>
    %cst_23 = arith.constant dense<0xFF800000> : vector<16xf32>
    %65 = vector.multi_reduction <maximumf>, %64, %cst_23 [1] : vector<16x16xf32> to vector<16xf32>
    %66 = vector.shape_cast %65 : vector<16xf32> to vector<16x1xf32>
    %67 = vector.broadcast %66 : vector<16x1xf32> to vector<16x16xf32>
    %68 = arith.subf %64, %67 : vector<16x16xf32>
    %69 = math.exp %68 : vector<16x16xf32>
    %cst_24 = arith.constant dense<0.000000e+00> : vector<16xf32>
    %70 = vector.multi_reduction <add>, %69, %cst_24 [1] : vector<16x16xf32> to vector<16xf32>
    %71 = vector.shape_cast %70 : vector<16xf32> to vector<16x1xf32>
    %72 = tpu.reciprocal %71 {approx = true} : vector<16x1xf32> -> vector<16x1xf32>
    %73 = vector.broadcast %72 : vector<16x1xf32> to vector<16x16xf32>
    %74 = arith.mulf %69, %73 : vector<16x16xf32>
    %cst_25 = arith.constant dense<0.000000e+00> : vector<16x32xf32>
    %75 = tpu.matmul %74, %55, %cst_25 {dimension_numbers = #tpu.dot_dimension_numbers<[1], [0], [0], [1], [0, 0, 1, 1], [], []>} : vector<16x16xf32>, vector<16x32xf32>, vector<16x32xf32> -> vector<16x32xf32>
    %76 = vector.extract_strided_slice %2 {offsets = [0, 96], sizes = [16, 32], strides = [1, 1]} : vector<16x128xf32> to vector<16x32xf32>
    %77 = vector.extract_strided_slice %3 {offsets = [0, 96], sizes = [16, 32], strides = [1, 1]} : vector<16x128xf32> to vector<16x32xf32>
    %78 = vector.extract_strided_slice %4 {offsets = [0, 96], sizes = [16, 32], strides = [1, 1]} : vector<16x128xf32> to vector<16x32xf32>
    %cst_26 = arith.constant dense<0.000000e+00> : vector<16x16xf32>
    %79 = tpu.matmul %76, %77, %cst_26 {dimension_numbers = #tpu.dot_dimension_numbers<[1], [1], [0], [0], [0, 0, 1, 0], [], []>} : vector<16x32xf32>, vector<16x32xf32>, vector<16x16xf32> -> vector<16x16xf32>
    %cst_27 = arith.constant 0.176776692 : f32
    %80 = vector.broadcast %cst_27 : f32 to vector<16x16xf32>
    %81 = arith.mulf %79, %80 : vector<16x16xf32>
    %cst_28 = arith.constant 5.000000e-01 : f32
    %82 = vector.broadcast %cst_28 : f32 to vector<1x16xf32>
    %83 = arith.cmpf ogt, %6, %82 : vector<1x16xf32>
    %cst_29 = arith.constant -1.000000e+09 : f32
    %84 = vector.shape_cast %83 : vector<1x16xi1> to vector<1x16xi1>
    %85 = vector.broadcast %84 : vector<1x16xi1> to vector<16x16xi1>
    %86 = vector.broadcast %cst_29 : f32 to vector<16x16xf32>
    %87 = arith.select %85, %86, %81 : vector<16x16xi1>, vector<16x16xf32>
    %cst_30 = arith.constant dense<0xFF800000> : vector<16xf32>
    %88 = vector.multi_reduction <maximumf>, %87, %cst_30 [1] : vector<16x16xf32> to vector<16xf32>
    %89 = vector.shape_cast %88 : vector<16xf32> to vector<16x1xf32>
    %90 = vector.broadcast %89 : vector<16x1xf32> to vector<16x16xf32>
    %91 = arith.subf %87, %90 : vector<16x16xf32>
    %92 = math.exp %91 : vector<16x16xf32>
    %cst_31 = arith.constant dense<0.000000e+00> : vector<16xf32>
    %93 = vector.multi_reduction <add>, %92, %cst_31 [1] : vector<16x16xf32> to vector<16xf32>
    %94 = vector.shape_cast %93 : vector<16xf32> to vector<16x1xf32>
    %95 = tpu.reciprocal %94 {approx = true} : vector<16x1xf32> -> vector<16x1xf32>
    %96 = vector.broadcast %95 : vector<16x1xf32> to vector<16x16xf32>
    %97 = arith.mulf %92, %96 : vector<16x16xf32>
    %cst_32 = arith.constant dense<0.000000e+00> : vector<16x32xf32>
    %98 = tpu.matmul %97, %78, %cst_32 {dimension_numbers = #tpu.dot_dimension_numbers<[1], [0], [0], [1], [0, 0, 1, 1], [], []>} : vector<16x16xf32>, vector<16x32xf32>, vector<16x32xf32> -> vector<16x32xf32>
    %99 = tpu.concatenate %29, %52, %75, %98 in 1 : vector<16x32xf32>, vector<16x32xf32>, vector<16x32xf32>, vector<16x32xf32> -> vector<16x128xf32>
    %c0_33 = arith.constant 0 : index
    %c0_34 = arith.constant 0 : index
    %c0_35 = arith.constant 0 : index
    %100 = vector.load %arg3[%c0_33, %c0_34, %c0_35] : memref<1x16x128xf32, #tpu.memory_space<vmem>>, vector<1x16x128xf32>
    %101 = vector.shape_cast %100 : vector<1x16x128xf32> to vector<16x128xf32>
    %102 = vector.shape_cast %99 : vector<16x128xf32> to vector<1x16x128xf32>
    tpu.vector_store %arg3[%c0_33, %c0_34, %c0_35], %102 {strides = array<i32>} : memref<1x16x128xf32, #tpu.memory_space<vmem>>, vector<1x16x128xf32>,
    return
  }
  func.func @transform_0(%arg0: i32) -> (i32, i32, i32) {
    %c0_i32 = arith.constant 0 : i32
    %c0_i32_0 = arith.constant 0 : i32
    %c0_i32_1 = arith.constant 0 : i32
    return %arg0, %c0_i32, %c0_i32_0 : i32, i32, i32
  }
  func.func @transform_1(%arg0: i32) -> (i32, i32, i32, i32) {
    %c0_i32 = arith.constant 0 : i32
    %c0_i32_0 = arith.constant 0 : i32
    %c0_i32_1 = arith.constant 0 : i32
    %c0_i32_2 = arith.constant 0 : i32
    return %arg0, %c0_i32, %c0_i32_0, %c0_i32_1 : i32, i32, i32, i32
  }
  func.func @transform_2(%arg0: i32) -> (i32, i32, i32) {
    %c0_i32 = arith.constant 0 : i32
    %c0_i32_0 = arith.constant 0 : i32
    %c0_i32_1 = arith.constant 0 : i32
    return %arg0, %c0_i32, %c0_i32_0 : i32, i32, i32
  }
}

module attributes {stable_mosaic.version = 11 : i64} {
  func.func @_proj_add_ln_kernel(%arg0: i32, %arg1: memref<32x128xf32, #tpu.memory_space<vmem>>, %arg2: memref<32x128xf32, #tpu.memory_space<vmem>>, %arg3: memref<128x128xf32, #tpu.memory_space<vmem>>, %arg4: memref<1x128xf32, #tpu.memory_space<vmem>>, %arg5: memref<1x128xf32, #tpu.memory_space<vmem>>, %arg6: memref<1x128xf32, #tpu.memory_space<vmem>>, %arg7: memref<32x128xf32, #tpu.memory_space<vmem>>) attributes {dimension_semantics = [#tpu.dimension_semantics<parallel>], iteration_bounds = array<i64: 1>, scalar_prefetch = 0 : i64, scratch_operands = 0 : i64, tpu.core_type = #tpu.core_type<tc>, window_params = [{transform_indices = @transform_0, window_bounds = array<i64: 32, 128>}, {transform_indices = @transform_1, window_bounds = array<i64: 32, 128>}, {pipeline_mode = #tpu.pipeline_mode<synchronous>, transform_indices = @transform_2, window_bounds = array<i64: 128, 128>}, {pipeline_mode = #tpu.pipeline_mode<synchronous>, transform_indices = @transform_3, window_bounds = array<i64: 1, 128>}, {pipeline_mode = #tpu.pipeline_mode<synchronous>, transform_indices = @transform_4, window_bounds = array<i64: 1, 128>}, {pipeline_mode = #tpu.pipeline_mode<synchronous>, transform_indices = @transform_5, window_bounds = array<i64: 1, 128>}, {transform_indices = @transform_6, window_bounds = array<i64: 32, 128>}]} {
    %c0 = arith.constant 0 : index
    %c0_0 = arith.constant 0 : index
    %0 = vector.load %arg1[%c0, %c0_0] : memref<32x128xf32, #tpu.memory_space<vmem>>, vector<32x128xf32>
    %c0_1 = arith.constant 0 : index
    %c0_2 = arith.constant 0 : index
    %1 = vector.load %arg3[%c0_1, %c0_2] : memref<128x128xf32, #tpu.memory_space<vmem>>, vector<128x128xf32>
    %cst = arith.constant dense<0.000000e+00> : vector<32x128xf32>
    %2 = tpu.matmul %0, %1, %cst {dimension_numbers = #tpu.dot_dimension_numbers<[1], [0], [0], [1], [0, 0, 1, 1], [], []>} : vector<32x128xf32>, vector<128x128xf32>, vector<32x128xf32> -> vector<32x128xf32>
    %c0_3 = arith.constant 0 : index
    %c0_4 = arith.constant 0 : index
    %3 = vector.load %arg4[%c0_3, %c0_4] : memref<1x128xf32, #tpu.memory_space<vmem>>, vector<1x128xf32>
    %4 = vector.broadcast %3 : vector<1x128xf32> to vector<32x128xf32>
    %5 = arith.addf %2, %4 : vector<32x128xf32>
    %c0_5 = arith.constant 0 : index
    %c0_6 = arith.constant 0 : index
    %6 = vector.load %arg2[%c0_5, %c0_6] : memref<32x128xf32, #tpu.memory_space<vmem>>, vector<32x128xf32>
    %7 = arith.addf %6, %5 : vector<32x128xf32>
    %c0_7 = arith.constant 0 : index
    %c0_8 = arith.constant 0 : index
    %8 = vector.load %arg5[%c0_7, %c0_8] : memref<1x128xf32, #tpu.memory_space<vmem>>, vector<1x128xf32>
    %c0_9 = arith.constant 0 : index
    %c0_10 = arith.constant 0 : index
    %9 = vector.load %arg6[%c0_9, %c0_10] : memref<1x128xf32, #tpu.memory_space<vmem>>, vector<1x128xf32>
    %cst_11 = arith.constant dense<0.000000e+00> : vector<32xf32>
    %10 = vector.multi_reduction <add>, %7, %cst_11 [1] : vector<32x128xf32> to vector<32xf32>
    %11 = vector.shape_cast %10 : vector<32xf32> to vector<32x1xf32>
    %cst_12 = arith.constant 1.280000e+02 : f32
    %12 = vector.broadcast %cst_12 : f32 to vector<32x1xf32>
    %13 = arith.divf %11, %12 : vector<32x1xf32>
    %14 = vector.broadcast %13 : vector<32x1xf32> to vector<32x128xf32>
    %15 = arith.subf %7, %14 : vector<32x128xf32>
    %16 = arith.mulf %15, %15 : vector<32x128xf32>
    %cst_13 = arith.constant dense<0.000000e+00> : vector<32xf32>
    %17 = vector.multi_reduction <add>, %16, %cst_13 [1] : vector<32x128xf32> to vector<32xf32>
    %18 = vector.shape_cast %17 : vector<32xf32> to vector<32x1xf32>
    %cst_14 = arith.constant 0.00787401571 : f32
    %19 = vector.broadcast %cst_14 : f32 to vector<32x1xf32>
    %20 = arith.mulf %18, %19 : vector<32x1xf32>
    %21 = math.sqrt %20 : vector<32x1xf32>
    %cst_15 = arith.constant 9.99999997E-7 : f32
    %22 = vector.broadcast %cst_15 : f32 to vector<32x1xf32>
    %23 = arith.addf %21, %22 : vector<32x1xf32>
    %24 = tpu.reciprocal %23 {approx = true} : vector<32x1xf32> -> vector<32x1xf32>
    %25 = vector.broadcast %8 : vector<1x128xf32> to vector<32x128xf32>
    %26 = arith.mulf %25, %15 : vector<32x128xf32>
    %27 = vector.broadcast %24 : vector<32x1xf32> to vector<32x128xf32>
    %28 = arith.mulf %26, %27 : vector<32x128xf32>
    %29 = vector.broadcast %9 : vector<1x128xf32> to vector<32x128xf32>
    %30 = arith.addf %28, %29 : vector<32x128xf32>
    %c0_16 = arith.constant 0 : index
    %c0_17 = arith.constant 0 : index
    %31 = vector.load %arg7[%c0_16, %c0_17] : memref<32x128xf32, #tpu.memory_space<vmem>>, vector<32x128xf32>
    tpu.vector_store %arg7[%c0_16, %c0_17], %30 {strides = array<i32>} : memref<32x128xf32, #tpu.memory_space<vmem>>, vector<32x128xf32>,
    return
  }
  func.func @transform_0(%arg0: i32) -> (i32, i32) {
    %c0_i32 = arith.constant 0 : i32
    %c0_i32_0 = arith.constant 0 : i32
    return %arg0, %c0_i32 : i32, i32
  }
  func.func @transform_1(%arg0: i32) -> (i32, i32) {
    %c0_i32 = arith.constant 0 : i32
    %c0_i32_0 = arith.constant 0 : i32
    return %arg0, %c0_i32 : i32, i32
  }
  func.func @transform_2(%arg0: i32) -> (i32, i32) {
    %c0_i32 = arith.constant 0 : i32
    %c0_i32_0 = arith.constant 0 : i32
    %c0_i32_1 = arith.constant 0 : i32
    return %c0_i32, %c0_i32_0 : i32, i32
  }
  func.func @transform_3(%arg0: i32) -> (i32, i32) {
    %c0_i32 = arith.constant 0 : i32
    %c0_i32_0 = arith.constant 0 : i32
    %c0_i32_1 = arith.constant 0 : i32
    return %c0_i32, %c0_i32_0 : i32, i32
  }
  func.func @transform_4(%arg0: i32) -> (i32, i32) {
    %c0_i32 = arith.constant 0 : i32
    %c0_i32_0 = arith.constant 0 : i32
    %c0_i32_1 = arith.constant 0 : i32
    return %c0_i32, %c0_i32_0 : i32, i32
  }
  func.func @transform_5(%arg0: i32) -> (i32, i32) {
    %c0_i32 = arith.constant 0 : i32
    %c0_i32_0 = arith.constant 0 : i32
    %c0_i32_1 = arith.constant 0 : i32
    return %c0_i32, %c0_i32_0 : i32, i32
  }
  func.func @transform_6(%arg0: i32) -> (i32, i32) {
    %c0_i32 = arith.constant 0 : i32
    %c0_i32_0 = arith.constant 0 : i32
    return %arg0, %c0_i32 : i32, i32
  }
}

module attributes {stable_mosaic.version = 11 : i64} {
  func.func @_dense_kernel(%arg0: i32, %arg1: memref<32x128xf32, #tpu.memory_space<vmem>>, %arg2: memref<128x128xf32, #tpu.memory_space<vmem>>, %arg3: memref<1x128xf32, #tpu.memory_space<vmem>>, %arg4: memref<32x128xf32, #tpu.memory_space<vmem>>) attributes {dimension_semantics = [#tpu.dimension_semantics<parallel>], iteration_bounds = array<i64: 1>, scalar_prefetch = 0 : i64, scratch_operands = 0 : i64, tpu.core_type = #tpu.core_type<tc>, window_params = [{transform_indices = @transform_0, window_bounds = array<i64: 32, 128>}, {pipeline_mode = #tpu.pipeline_mode<synchronous>, transform_indices = @transform_1, window_bounds = array<i64: 128, 128>}, {pipeline_mode = #tpu.pipeline_mode<synchronous>, transform_indices = @transform_2, window_bounds = array<i64: 1, 128>}, {transform_indices = @transform_3, window_bounds = array<i64: 32, 128>}]} {
    %c0 = arith.constant 0 : index
    %c0_0 = arith.constant 0 : index
    %0 = vector.load %arg1[%c0, %c0_0] : memref<32x128xf32, #tpu.memory_space<vmem>>, vector<32x128xf32>
    %c0_1 = arith.constant 0 : index
    %c0_2 = arith.constant 0 : index
    %1 = vector.load %arg2[%c0_1, %c0_2] : memref<128x128xf32, #tpu.memory_space<vmem>>, vector<128x128xf32>
    %cst = arith.constant dense<0.000000e+00> : vector<32x128xf32>
    %2 = tpu.matmul %0, %1, %cst {dimension_numbers = #tpu.dot_dimension_numbers<[1], [0], [0], [1], [0, 0, 1, 1], [], []>} : vector<32x128xf32>, vector<128x128xf32>, vector<32x128xf32> -> vector<32x128xf32>
    %c0_3 = arith.constant 0 : index
    %c0_4 = arith.constant 0 : index
    %3 = vector.load %arg3[%c0_3, %c0_4] : memref<1x128xf32, #tpu.memory_space<vmem>>, vector<1x128xf32>
    %4 = vector.broadcast %3 : vector<1x128xf32> to vector<32x128xf32>
    %5 = arith.addf %2, %4 : vector<32x128xf32>
    %c0_5 = arith.constant 0 : index
    %c0_6 = arith.constant 0 : index
    %6 = vector.load %arg4[%c0_5, %c0_6] : memref<32x128xf32, #tpu.memory_space<vmem>>, vector<32x128xf32>
    tpu.vector_store %arg4[%c0_5, %c0_6], %5 {strides = array<i32>} : memref<32x128xf32, #tpu.memory_space<vmem>>, vector<32x128xf32>,
    return
  }
  func.func @transform_0(%arg0: i32) -> (i32, i32) {
    %c0_i32 = arith.constant 0 : i32
    %c0_i32_0 = arith.constant 0 : i32
    return %arg0, %c0_i32 : i32, i32
  }
  func.func @transform_1(%arg0: i32) -> (i32, i32) {
    %c0_i32 = arith.constant 0 : i32
    %c0_i32_0 = arith.constant 0 : i32
    %c0_i32_1 = arith.constant 0 : i32
    return %c0_i32, %c0_i32_0 : i32, i32
  }
  func.func @transform_2(%arg0: i32) -> (i32, i32) {
    %c0_i32 = arith.constant 0 : i32
    %c0_i32_0 = arith.constant 0 : i32
    %c0_i32_1 = arith.constant 0 : i32
    return %c0_i32, %c0_i32_0 : i32, i32
  }
  func.func @transform_3(%arg0: i32) -> (i32, i32) {
    %c0_i32 = arith.constant 0 : i32
    %c0_i32_0 = arith.constant 0 : i32
    return %arg0, %c0_i32 : i32, i32
  }
}

module attributes {stable_mosaic.version = 11 : i64} {
  func.func @_cross_attn_kernel(%arg0: i32, %arg1: memref<1x16x128xf32, #tpu.memory_space<vmem>>, %arg2: memref<1x8x256xf32, #tpu.memory_space<vmem>>, %arg3: memref<1x1x1x8xf32, #tpu.memory_space<vmem>>, %arg4: memref<1x16x128xf32, #tpu.memory_space<vmem>>) attributes {dimension_semantics = [#tpu.dimension_semantics<parallel>], iteration_bounds = array<i64: 2>, scalar_prefetch = 0 : i64, scratch_operands = 0 : i64, tpu.core_type = #tpu.core_type<tc>, window_params = [{transform_indices = @transform_0, window_bounds = array<i64: 1, 16, 128>}, {transform_indices = @transform_1, window_bounds = array<i64: 1, 8, 256>}, {transform_indices = @transform_2, window_bounds = array<i64: 1, 1, 1, 8>}, {transform_indices = @transform_3, window_bounds = array<i64: 1, 16, 128>}]} {
    %c0 = arith.constant 0 : index
    %c0_0 = arith.constant 0 : index
    %c0_1 = arith.constant 0 : index
    %0 = vector.load %arg1[%c0, %c0_0, %c0_1] : memref<1x16x128xf32, #tpu.memory_space<vmem>>, vector<1x16x128xf32>
    %1 = vector.shape_cast %0 : vector<1x16x128xf32> to vector<16x128xf32>
    %c0_2 = arith.constant 0 : index
    %c0_3 = arith.constant 0 : index
    %c0_4 = arith.constant 0 : index
    %2 = vector.load %arg2[%c0_2, %c0_3, %c0_4] : memref<1x8x256xf32, #tpu.memory_space<vmem>>, vector<1x8x256xf32>
    %3 = vector.shape_cast %2 : vector<1x8x256xf32> to vector<8x256xf32>
    %4 = vector.extract_strided_slice %3 {offsets = [0, 0], sizes = [8, 128], strides = [1, 1]} : vector<8x256xf32> to vector<8x128xf32>
    %5 = vector.extract_strided_slice %3 {offsets = [0, 128], sizes = [8, 128], strides = [1, 1]} : vector<8x256xf32> to vector<8x128xf32>
    %c0_5 = arith.constant 0 : index
    %c0_6 = arith.constant 0 : index
    %c0_7 = arith.constant 0 : index
    %c0_8 = arith.constant 0 : index
    %6 = vector.load %arg3[%c0_5, %c0_6, %c0_7, %c0_8] : memref<1x1x1x8xf32, #tpu.memory_space<vmem>>, vector<1x1x1x8xf32>
    %7 = vector.shape_cast %6 : vector<1x1x1x8xf32> to vector<1x8xf32>
    %8 = vector.extract_strided_slice %1 {offsets = [0, 0], sizes = [16, 32], strides = [1, 1]} : vector<16x128xf32> to vector<16x32xf32>
    %9 = vector.extract_strided_slice %4 {offsets = [0, 0], sizes = [8, 32], strides = [1, 1]} : vector<8x128xf32> to vector<8x32xf32>
    %10 = vector.extract_strided_slice %5 {offsets = [0, 0], sizes = [8, 32], strides = [1, 1]} : vector<8x128xf32> to vector<8x32xf32>
    %cst = arith.constant dense<0.000000e+00> : vector<16x8xf32>
    %11 = tpu.matmul %8, %9, %cst {dimension_numbers = #tpu.dot_dimension_numbers<[1], [1], [0], [0], [0, 0, 1, 0], [], []>} : vector<16x32xf32>, vector<8x32xf32>, vector<16x8xf32> -> vector<16x8xf32>
    %cst_9 = arith.constant 0.176776692 : f32
    %12 = vector.broadcast %cst_9 : f32 to vector<16x8xf32>
    %13 = arith.mulf %11, %12 : vector<16x8xf32>
    %cst_10 = arith.constant 5.000000e-01 : f32
    %14 = vector.broadcast %cst_10 : f32 to vector<1x8xf32>
    %15 = arith.cmpf ogt, %7, %14 : vector<1x8xf32>
    %cst_11 = arith.constant -1.000000e+09 : f32
    %16 = vector.shape_cast %15 : vector<1x8xi1> to vector<1x8xi1>
    %17 = vector.broadcast %16 : vector<1x8xi1> to vector<16x8xi1>
    %18 = vector.broadcast %cst_11 : f32 to vector<16x8xf32>
    %19 = arith.select %17, %18, %13 : vector<16x8xi1>, vector<16x8xf32>
    %cst_12 = arith.constant dense<0xFF800000> : vector<16xf32>
    %20 = vector.multi_reduction <maximumf>, %19, %cst_12 [1] : vector<16x8xf32> to vector<16xf32>
    %21 = vector.shape_cast %20 : vector<16xf32> to vector<16x1xf32>
    %22 = vector.broadcast %21 : vector<16x1xf32> to vector<16x8xf32>
    %23 = arith.subf %19, %22 : vector<16x8xf32>
    %24 = math.exp %23 : vector<16x8xf32>
    %cst_13 = arith.constant dense<0.000000e+00> : vector<16xf32>
    %25 = vector.multi_reduction <add>, %24, %cst_13 [1] : vector<16x8xf32> to vector<16xf32>
    %26 = vector.shape_cast %25 : vector<16xf32> to vector<16x1xf32>
    %27 = tpu.reciprocal %26 {approx = true} : vector<16x1xf32> -> vector<16x1xf32>
    %28 = vector.broadcast %27 : vector<16x1xf32> to vector<16x8xf32>
    %29 = arith.mulf %24, %28 : vector<16x8xf32>
    %cst_14 = arith.constant dense<0.000000e+00> : vector<16x32xf32>
    %30 = tpu.matmul %29, %10, %cst_14 {dimension_numbers = #tpu.dot_dimension_numbers<[1], [0], [0], [1], [0, 0, 1, 1], [], []>} : vector<16x8xf32>, vector<8x32xf32>, vector<16x32xf32> -> vector<16x32xf32>
    %31 = vector.extract_strided_slice %1 {offsets = [0, 32], sizes = [16, 32], strides = [1, 1]} : vector<16x128xf32> to vector<16x32xf32>
    %32 = vector.extract_strided_slice %4 {offsets = [0, 32], sizes = [8, 32], strides = [1, 1]} : vector<8x128xf32> to vector<8x32xf32>
    %33 = vector.extract_strided_slice %5 {offsets = [0, 32], sizes = [8, 32], strides = [1, 1]} : vector<8x128xf32> to vector<8x32xf32>
    %cst_15 = arith.constant dense<0.000000e+00> : vector<16x8xf32>
    %34 = tpu.matmul %31, %32, %cst_15 {dimension_numbers = #tpu.dot_dimension_numbers<[1], [1], [0], [0], [0, 0, 1, 0], [], []>} : vector<16x32xf32>, vector<8x32xf32>, vector<16x8xf32> -> vector<16x8xf32>
    %cst_16 = arith.constant 0.176776692 : f32
    %35 = vector.broadcast %cst_16 : f32 to vector<16x8xf32>
    %36 = arith.mulf %34, %35 : vector<16x8xf32>
    %cst_17 = arith.constant 5.000000e-01 : f32
    %37 = vector.broadcast %cst_17 : f32 to vector<1x8xf32>
    %38 = arith.cmpf ogt, %7, %37 : vector<1x8xf32>
    %cst_18 = arith.constant -1.000000e+09 : f32
    %39 = vector.shape_cast %38 : vector<1x8xi1> to vector<1x8xi1>
    %40 = vector.broadcast %39 : vector<1x8xi1> to vector<16x8xi1>
    %41 = vector.broadcast %cst_18 : f32 to vector<16x8xf32>
    %42 = arith.select %40, %41, %36 : vector<16x8xi1>, vector<16x8xf32>
    %cst_19 = arith.constant dense<0xFF800000> : vector<16xf32>
    %43 = vector.multi_reduction <maximumf>, %42, %cst_19 [1] : vector<16x8xf32> to vector<16xf32>
    %44 = vector.shape_cast %43 : vector<16xf32> to vector<16x1xf32>
    %45 = vector.broadcast %44 : vector<16x1xf32> to vector<16x8xf32>
    %46 = arith.subf %42, %45 : vector<16x8xf32>
    %47 = math.exp %46 : vector<16x8xf32>
    %cst_20 = arith.constant dense<0.000000e+00> : vector<16xf32>
    %48 = vector.multi_reduction <add>, %47, %cst_20 [1] : vector<16x8xf32> to vector<16xf32>
    %49 = vector.shape_cast %48 : vector<16xf32> to vector<16x1xf32>
    %50 = tpu.reciprocal %49 {approx = true} : vector<16x1xf32> -> vector<16x1xf32>
    %51 = vector.broadcast %50 : vector<16x1xf32> to vector<16x8xf32>
    %52 = arith.mulf %47, %51 : vector<16x8xf32>
    %cst_21 = arith.constant dense<0.000000e+00> : vector<16x32xf32>
    %53 = tpu.matmul %52, %33, %cst_21 {dimension_numbers = #tpu.dot_dimension_numbers<[1], [0], [0], [1], [0, 0, 1, 1], [], []>} : vector<16x8xf32>, vector<8x32xf32>, vector<16x32xf32> -> vector<16x32xf32>
    %54 = vector.extract_strided_slice %1 {offsets = [0, 64], sizes = [16, 32], strides = [1, 1]} : vector<16x128xf32> to vector<16x32xf32>
    %55 = vector.extract_strided_slice %4 {offsets = [0, 64], sizes = [8, 32], strides = [1, 1]} : vector<8x128xf32> to vector<8x32xf32>
    %56 = vector.extract_strided_slice %5 {offsets = [0, 64], sizes = [8, 32], strides = [1, 1]} : vector<8x128xf32> to vector<8x32xf32>
    %cst_22 = arith.constant dense<0.000000e+00> : vector<16x8xf32>
    %57 = tpu.matmul %54, %55, %cst_22 {dimension_numbers = #tpu.dot_dimension_numbers<[1], [1], [0], [0], [0, 0, 1, 0], [], []>} : vector<16x32xf32>, vector<8x32xf32>, vector<16x8xf32> -> vector<16x8xf32>
    %cst_23 = arith.constant 0.176776692 : f32
    %58 = vector.broadcast %cst_23 : f32 to vector<16x8xf32>
    %59 = arith.mulf %57, %58 : vector<16x8xf32>
    %cst_24 = arith.constant 5.000000e-01 : f32
    %60 = vector.broadcast %cst_24 : f32 to vector<1x8xf32>
    %61 = arith.cmpf ogt, %7, %60 : vector<1x8xf32>
    %cst_25 = arith.constant -1.000000e+09 : f32
    %62 = vector.shape_cast %61 : vector<1x8xi1> to vector<1x8xi1>
    %63 = vector.broadcast %62 : vector<1x8xi1> to vector<16x8xi1>
    %64 = vector.broadcast %cst_25 : f32 to vector<16x8xf32>
    %65 = arith.select %63, %64, %59 : vector<16x8xi1>, vector<16x8xf32>
    %cst_26 = arith.constant dense<0xFF800000> : vector<16xf32>
    %66 = vector.multi_reduction <maximumf>, %65, %cst_26 [1] : vector<16x8xf32> to vector<16xf32>
    %67 = vector.shape_cast %66 : vector<16xf32> to vector<16x1xf32>
    %68 = vector.broadcast %67 : vector<16x1xf32> to vector<16x8xf32>
    %69 = arith.subf %65, %68 : vector<16x8xf32>
    %70 = math.exp %69 : vector<16x8xf32>
    %cst_27 = arith.constant dense<0.000000e+00> : vector<16xf32>
    %71 = vector.multi_reduction <add>, %70, %cst_27 [1] : vector<16x8xf32> to vector<16xf32>
    %72 = vector.shape_cast %71 : vector<16xf32> to vector<16x1xf32>
    %73 = tpu.reciprocal %72 {approx = true} : vector<16x1xf32> -> vector<16x1xf32>
    %74 = vector.broadcast %73 : vector<16x1xf32> to vector<16x8xf32>
    %75 = arith.mulf %70, %74 : vector<16x8xf32>
    %cst_28 = arith.constant dense<0.000000e+00> : vector<16x32xf32>
    %76 = tpu.matmul %75, %56, %cst_28 {dimension_numbers = #tpu.dot_dimension_numbers<[1], [0], [0], [1], [0, 0, 1, 1], [], []>} : vector<16x8xf32>, vector<8x32xf32>, vector<16x32xf32> -> vector<16x32xf32>
    %77 = vector.extract_strided_slice %1 {offsets = [0, 96], sizes = [16, 32], strides = [1, 1]} : vector<16x128xf32> to vector<16x32xf32>
    %78 = vector.extract_strided_slice %4 {offsets = [0, 96], sizes = [8, 32], strides = [1, 1]} : vector<8x128xf32> to vector<8x32xf32>
    %79 = vector.extract_strided_slice %5 {offsets = [0, 96], sizes = [8, 32], strides = [1, 1]} : vector<8x128xf32> to vector<8x32xf32>
    %cst_29 = arith.constant dense<0.000000e+00> : vector<16x8xf32>
    %80 = tpu.matmul %77, %78, %cst_29 {dimension_numbers = #tpu.dot_dimension_numbers<[1], [1], [0], [0], [0, 0, 1, 0], [], []>} : vector<16x32xf32>, vector<8x32xf32>, vector<16x8xf32> -> vector<16x8xf32>
    %cst_30 = arith.constant 0.176776692 : f32
    %81 = vector.broadcast %cst_30 : f32 to vector<16x8xf32>
    %82 = arith.mulf %80, %81 : vector<16x8xf32>
    %cst_31 = arith.constant 5.000000e-01 : f32
    %83 = vector.broadcast %cst_31 : f32 to vector<1x8xf32>
    %84 = arith.cmpf ogt, %7, %83 : vector<1x8xf32>
    %cst_32 = arith.constant -1.000000e+09 : f32
    %85 = vector.shape_cast %84 : vector<1x8xi1> to vector<1x8xi1>
    %86 = vector.broadcast %85 : vector<1x8xi1> to vector<16x8xi1>
    %87 = vector.broadcast %cst_32 : f32 to vector<16x8xf32>
    %88 = arith.select %86, %87, %82 : vector<16x8xi1>, vector<16x8xf32>
    %cst_33 = arith.constant dense<0xFF800000> : vector<16xf32>
    %89 = vector.multi_reduction <maximumf>, %88, %cst_33 [1] : vector<16x8xf32> to vector<16xf32>
    %90 = vector.shape_cast %89 : vector<16xf32> to vector<16x1xf32>
    %91 = vector.broadcast %90 : vector<16x1xf32> to vector<16x8xf32>
    %92 = arith.subf %88, %91 : vector<16x8xf32>
    %93 = math.exp %92 : vector<16x8xf32>
    %cst_34 = arith.constant dense<0.000000e+00> : vector<16xf32>
    %94 = vector.multi_reduction <add>, %93, %cst_34 [1] : vector<16x8xf32> to vector<16xf32>
    %95 = vector.shape_cast %94 : vector<16xf32> to vector<16x1xf32>
    %96 = tpu.reciprocal %95 {approx = true} : vector<16x1xf32> -> vector<16x1xf32>
    %97 = vector.broadcast %96 : vector<16x1xf32> to vector<16x8xf32>
    %98 = arith.mulf %93, %97 : vector<16x8xf32>
    %cst_35 = arith.constant dense<0.000000e+00> : vector<16x32xf32>
    %99 = tpu.matmul %98, %79, %cst_35 {dimension_numbers = #tpu.dot_dimension_numbers<[1], [0], [0], [1], [0, 0, 1, 1], [], []>} : vector<16x8xf32>, vector<8x32xf32>, vector<16x32xf32> -> vector<16x32xf32>
    %100 = tpu.concatenate %30, %53, %76, %99 in 1 : vector<16x32xf32>, vector<16x32xf32>, vector<16x32xf32>, vector<16x32xf32> -> vector<16x128xf32>
    %c0_36 = arith.constant 0 : index
    %c0_37 = arith.constant 0 : index
    %c0_38 = arith.constant 0 : index
    %101 = vector.load %arg4[%c0_36, %c0_37, %c0_38] : memref<1x16x128xf32, #tpu.memory_space<vmem>>, vector<1x16x128xf32>
    %102 = vector.shape_cast %101 : vector<1x16x128xf32> to vector<16x128xf32>
    %103 = vector.shape_cast %100 : vector<16x128xf32> to vector<1x16x128xf32>
    tpu.vector_store %arg4[%c0_36, %c0_37, %c0_38], %103 {strides = array<i32>} : memref<1x16x128xf32, #tpu.memory_space<vmem>>, vector<1x16x128xf32>,
    return
  }
  func.func @transform_0(%arg0: i32) -> (i32, i32, i32) {
    %c0_i32 = arith.constant 0 : i32
    %c0_i32_0 = arith.constant 0 : i32
    %c0_i32_1 = arith.constant 0 : i32
    return %arg0, %c0_i32, %c0_i32_0 : i32, i32, i32
  }
  func.func @transform_1(%arg0: i32) -> (i32, i32, i32) {
    %c0_i32 = arith.constant 0 : i32
    %c0_i32_0 = arith.constant 0 : i32
    %c0_i32_1 = arith.constant 0 : i32
    return %arg0, %c0_i32, %c0_i32_0 : i32, i32, i32
  }
  func.func @transform_2(%arg0: i32) -> (i32, i32, i32, i32) {
    %c0_i32 = arith.constant 0 : i32
    %c0_i32_0 = arith.constant 0 : i32
    %c0_i32_1 = arith.constant 0 : i32
    %c0_i32_2 = arith.constant 0 : i32
    return %arg0, %c0_i32, %c0_i32_0, %c0_i32_1 : i32, i32, i32, i32
  }
  func.func @transform_3(%arg0: i32) -> (i32, i32, i32) {
    %c0_i32 = arith.constant 0 : i32
    %c0_i32_0 = arith.constant 0 : i32
    %c0_i32_1 = arith.constant 0 : i32
    return %arg0, %c0_i32, %c0_i32_0 : i32, i32, i32
  }
}

module attributes {stable_mosaic.version = 11 : i64} {
  func.func @_ffn_add_ln_kernel(%arg0: i32, %arg1: memref<32x128xf32, #tpu.memory_space<vmem>>, %arg2: memref<128x512xf32, #tpu.memory_space<vmem>>, %arg3: memref<1x512xf32, #tpu.memory_space<vmem>>, %arg4: memref<512x128xf32, #tpu.memory_space<vmem>>, %arg5: memref<1x128xf32, #tpu.memory_space<vmem>>, %arg6: memref<1x128xf32, #tpu.memory_space<vmem>>, %arg7: memref<1x128xf32, #tpu.memory_space<vmem>>, %arg8: memref<32x128xf32, #tpu.memory_space<vmem>>) attributes {dimension_semantics = [#tpu.dimension_semantics<parallel>], iteration_bounds = array<i64: 1>, scalar_prefetch = 0 : i64, scratch_operands = 0 : i64, tpu.core_type = #tpu.core_type<tc>, window_params = [{transform_indices = @transform_0, window_bounds = array<i64: 32, 128>}, {pipeline_mode = #tpu.pipeline_mode<synchronous>, transform_indices = @transform_1, window_bounds = array<i64: 128, 512>}, {pipeline_mode = #tpu.pipeline_mode<synchronous>, transform_indices = @transform_2, window_bounds = array<i64: 1, 512>}, {pipeline_mode = #tpu.pipeline_mode<synchronous>, transform_indices = @transform_3, window_bounds = array<i64: 512, 128>}, {pipeline_mode = #tpu.pipeline_mode<synchronous>, transform_indices = @transform_4, window_bounds = array<i64: 1, 128>}, {pipeline_mode = #tpu.pipeline_mode<synchronous>, transform_indices = @transform_5, window_bounds = array<i64: 1, 128>}, {pipeline_mode = #tpu.pipeline_mode<synchronous>, transform_indices = @transform_6, window_bounds = array<i64: 1, 128>}, {transform_indices = @transform_7, window_bounds = array<i64: 32, 128>}]} {
    %c0 = arith.constant 0 : index
    %c0_0 = arith.constant 0 : index
    %0 = vector.load %arg1[%c0, %c0_0] : memref<32x128xf32, #tpu.memory_space<vmem>>, vector<32x128xf32>
    %c0_1 = arith.constant 0 : index
    %c0_2 = arith.constant 0 : index
    %1 = vector.load %arg2[%c0_1, %c0_2] : memref<128x512xf32, #tpu.memory_space<vmem>>, vector<128x512xf32>
    %cst = arith.constant dense<0.000000e+00> : vector<32x512xf32>
    %2 = tpu.matmul %0, %1, %cst {dimension_numbers = #tpu.dot_dimension_numbers<[1], [0], [0], [1], [0, 0, 1, 1], [], []>} : vector<32x128xf32>, vector<128x512xf32>, vector<32x512xf32> -> vector<32x512xf32>
    %c0_3 = arith.constant 0 : index
    %c0_4 = arith.constant 0 : index
    %3 = vector.load %arg3[%c0_3, %c0_4] : memref<1x512xf32, #tpu.memory_space<vmem>>, vector<1x512xf32>
    %4 = vector.broadcast %3 : vector<1x512xf32> to vector<32x512xf32>
    %5 = arith.addf %2, %4 : vector<32x512xf32>
    %cst_5 = arith.constant 0.000000e+00 : f32
    %6 = vector.broadcast %cst_5 : f32 to vector<32x512xf32>
    %7 = arith.maximumf %5, %6 : vector<32x512xf32>
    %c0_6 = arith.constant 0 : index
    %c0_7 = arith.constant 0 : index
    %8 = vector.load %arg4[%c0_6, %c0_7] : memref<512x128xf32, #tpu.memory_space<vmem>>, vector<512x128xf32>
    %cst_8 = arith.constant dense<0.000000e+00> : vector<32x128xf32>
    %9 = tpu.matmul %7, %8, %cst_8 {dimension_numbers = #tpu.dot_dimension_numbers<[1], [0], [0], [1], [0, 0, 1, 1], [], []>} : vector<32x512xf32>, vector<512x128xf32>, vector<32x128xf32> -> vector<32x128xf32>
    %c0_9 = arith.constant 0 : index
    %c0_10 = arith.constant 0 : index
    %10 = vector.load %arg5[%c0_9, %c0_10] : memref<1x128xf32, #tpu.memory_space<vmem>>, vector<1x128xf32>
    %11 = vector.broadcast %10 : vector<1x128xf32> to vector<32x128xf32>
    %12 = arith.addf %9, %11 : vector<32x128xf32>
    %13 = arith.addf %0, %12 : vector<32x128xf32>
    %c0_11 = arith.constant 0 : index
    %c0_12 = arith.constant 0 : index
    %14 = vector.load %arg6[%c0_11, %c0_12] : memref<1x128xf32, #tpu.memory_space<vmem>>, vector<1x128xf32>
    %c0_13 = arith.constant 0 : index
    %c0_14 = arith.constant 0 : index
    %15 = vector.load %arg7[%c0_13, %c0_14] : memref<1x128xf32, #tpu.memory_space<vmem>>, vector<1x128xf32>
    %cst_15 = arith.constant dense<0.000000e+00> : vector<32xf32>
    %16 = vector.multi_reduction <add>, %13, %cst_15 [1] : vector<32x128xf32> to vector<32xf32>
    %17 = vector.shape_cast %16 : vector<32xf32> to vector<32x1xf32>
    %cst_16 = arith.constant 1.280000e+02 : f32
    %18 = vector.broadcast %cst_16 : f32 to vector<32x1xf32>
    %19 = arith.divf %17, %18 : vector<32x1xf32>
    %20 = vector.broadcast %19 : vector<32x1xf32> to vector<32x128xf32>
    %21 = arith.subf %13, %20 : vector<32x128xf32>
    %22 = arith.mulf %21, %21 : vector<32x128xf32>
    %cst_17 = arith.constant dense<0.000000e+00> : vector<32xf32>
    %23 = vector.multi_reduction <add>, %22, %cst_17 [1] : vector<32x128xf32> to vector<32xf32>
    %24 = vector.shape_cast %23 : vector<32xf32> to vector<32x1xf32>
    %cst_18 = arith.constant 0.00787401571 : f32
    %25 = vector.broadcast %cst_18 : f32 to vector<32x1xf32>
    %26 = arith.mulf %24, %25 : vector<32x1xf32>
    %27 = math.sqrt %26 : vector<32x1xf32>
    %cst_19 = arith.constant 9.99999997E-7 : f32
    %28 = vector.broadcast %cst_19 : f32 to vector<32x1xf32>
    %29 = arith.addf %27, %28 : vector<32x1xf32>
    %30 = tpu.reciprocal %29 {approx = true} : vector<32x1xf32> -> vector<32x1xf32>
    %31 = vector.broadcast %14 : vector<1x128xf32> to vector<32x128xf32>
    %32 = arith.mulf %31, %21 : vector<32x128xf32>
    %33 = vector.broadcast %30 : vector<32x1xf32> to vector<32x128xf32>
    %34 = arith.mulf %32, %33 : vector<32x128xf32>
    %35 = vector.broadcast %15 : vector<1x128xf32> to vector<32x128xf32>
    %36 = arith.addf %34, %35 : vector<32x128xf32>
    %c0_20 = arith.constant 0 : index
    %c0_21 = arith.constant 0 : index
    %37 = vector.load %arg8[%c0_20, %c0_21] : memref<32x128xf32, #tpu.memory_space<vmem>>, vector<32x128xf32>
    tpu.vector_store %arg8[%c0_20, %c0_21], %36 {strides = array<i32>} : memref<32x128xf32, #tpu.memory_space<vmem>>, vector<32x128xf32>,
    return
  }
  func.func @transform_0(%arg0: i32) -> (i32, i32) {
    %c0_i32 = arith.constant 0 : i32
    %c0_i32_0 = arith.constant 0 : i32
    return %arg0, %c0_i32 : i32, i32
  }
  func.func @transform_1(%arg0: i32) -> (i32, i32) {
    %c0_i32 = arith.constant 0 : i32
    %c0_i32_0 = arith.constant 0 : i32
    %c0_i32_1 = arith.constant 0 : i32
    return %c0_i32, %c0_i32_0 : i32, i32
  }
  func.func @transform_2(%arg0: i32) -> (i32, i32) {
    %c0_i32 = arith.constant 0 : i32
    %c0_i32_0 = arith.constant 0 : i32
    %c0_i32_1 = arith.constant 0 : i32
    return %c0_i32, %c0_i32_0 : i32, i32
  }
  func.func @transform_3(%arg0: i32) -> (i32, i32) {
    %c0_i32 = arith.constant 0 : i32
    %c0_i32_0 = arith.constant 0 : i32
    %c0_i32_1 = arith.constant 0 : i32
    return %c0_i32, %c0_i32_0 : i32, i32
  }
  func.func @transform_4(%arg0: i32) -> (i32, i32) {
    %c0_i32 = arith.constant 0 : i32
    %c0_i32_0 = arith.constant 0 : i32
    %c0_i32_1 = arith.constant 0 : i32
    return %c0_i32, %c0_i32_0 : i32, i32
  }
  func.func @transform_5(%arg0: i32) -> (i32, i32) {
    %c0_i32 = arith.constant 0 : i32
    %c0_i32_0 = arith.constant 0 : i32
    %c0_i32_1 = arith.constant 0 : i32
    return %c0_i32, %c0_i32_0 : i32, i32
  }
  func.func @transform_6(%arg0: i32) -> (i32, i32) {
    %c0_i32 = arith.constant 0 : i32
    %c0_i32_0 = arith.constant 0 : i32
    %c0_i32_1 = arith.constant 0 : i32
    return %c0_i32, %c0_i32_0 : i32, i32
  }
  func.func @transform_7(%arg0: i32) -> (i32, i32) {
    %c0_i32 = arith.constant 0 : i32
    %c0_i32_0 = arith.constant 0 : i32
    return %arg0, %c0_i32 : i32, i32
  }
}

module attributes {stable_mosaic.version = 11 : i64} {
  func.func @_ffn_add_ln_kernel(%arg0: i32, %arg1: memref<32x128xf32, #tpu.memory_space<vmem>>, %arg2: memref<128x512xf32, #tpu.memory_space<vmem>>, %arg3: memref<1x512xf32, #tpu.memory_space<vmem>>, %arg4: memref<512x128xf32, #tpu.memory_space<vmem>>, %arg5: memref<1x128xf32, #tpu.memory_space<vmem>>, %arg6: memref<1x128xf32, #tpu.memory_space<vmem>>, %arg7: memref<1x128xf32, #tpu.memory_space<vmem>>, %arg8: memref<32x128xf32, #tpu.memory_space<vmem>>) attributes {dimension_semantics = [#tpu.dimension_semantics<parallel>], iteration_bounds = array<i64: 1>, scalar_prefetch = 0 : i64, scratch_operands = 0 : i64, tpu.core_type = #tpu.core_type<tc>, window_params = [{transform_indices = @transform_0, window_bounds = array<i64: 32, 128>}, {pipeline_mode = #tpu.pipeline_mode<synchronous>, transform_indices = @transform_1, window_bounds = array<i64: 128, 512>}, {pipeline_mode = #tpu.pipeline_mode<synchronous>, transform_indices = @transform_2, window_bounds = array<i64: 1, 512>}, {pipeline_mode = #tpu.pipeline_mode<synchronous>, transform_indices = @transform_3, window_bounds = array<i64: 512, 128>}, {pipeline_mode = #tpu.pipeline_mode<synchronous>, transform_indices = @transform_4, window_bounds = array<i64: 1, 128>}, {pipeline_mode = #tpu.pipeline_mode<synchronous>, transform_indices = @transform_5, window_bounds = array<i64: 1, 128>}, {pipeline_mode = #tpu.pipeline_mode<synchronous>, transform_indices = @transform_6, window_bounds = array<i64: 1, 128>}, {transform_indices = @transform_7, window_bounds = array<i64: 32, 128>}]} {
    %c0 = arith.constant 0 : index
    %c0_0 = arith.constant 0 : index
    %0 = vector.load %arg1[%c0, %c0_0] : memref<32x128xf32, #tpu.memory_space<vmem>>, vector<32x128xf32>
    %c0_1 = arith.constant 0 : index
    %c0_2 = arith.constant 0 : index
    %1 = vector.load %arg2[%c0_1, %c0_2] : memref<128x512xf32, #tpu.memory_space<vmem>>, vector<128x512xf32>
    %cst = arith.constant dense<0.000000e+00> : vector<32x512xf32>
    %2 = tpu.matmul %0, %1, %cst {dimension_numbers = #tpu.dot_dimension_numbers<[1], [0], [0], [1], [0, 0, 1, 1], [], []>} : vector<32x128xf32>, vector<128x512xf32>, vector<32x512xf32> -> vector<32x512xf32>
    %c0_3 = arith.constant 0 : index
    %c0_4 = arith.constant 0 : index
    %3 = vector.load %arg3[%c0_3, %c0_4] : memref<1x512xf32, #tpu.memory_space<vmem>>, vector<1x512xf32>
    %4 = vector.broadcast %3 : vector<1x512xf32> to vector<32x512xf32>
    %5 = arith.addf %2, %4 : vector<32x512xf32>
    %cst_5 = arith.constant 0.000000e+00 : f32
    %6 = vector.broadcast %cst_5 : f32 to vector<32x512xf32>
    %7 = arith.maximumf %5, %6 : vector<32x512xf32>
    %c0_6 = arith.constant 0 : index
    %c0_7 = arith.constant 0 : index
    %8 = vector.load %arg4[%c0_6, %c0_7] : memref<512x128xf32, #tpu.memory_space<vmem>>, vector<512x128xf32>
    %cst_8 = arith.constant dense<0.000000e+00> : vector<32x128xf32>
    %9 = tpu.matmul %7, %8, %cst_8 {dimension_numbers = #tpu.dot_dimension_numbers<[1], [0], [0], [1], [0, 0, 1, 1], [], []>} : vector<32x512xf32>, vector<512x128xf32>, vector<32x128xf32> -> vector<32x128xf32>
    %c0_9 = arith.constant 0 : index
    %c0_10 = arith.constant 0 : index
    %10 = vector.load %arg5[%c0_9, %c0_10] : memref<1x128xf32, #tpu.memory_space<vmem>>, vector<1x128xf32>
    %11 = vector.broadcast %10 : vector<1x128xf32> to vector<32x128xf32>
    %12 = arith.addf %9, %11 : vector<32x128xf32>
    %13 = arith.addf %0, %12 : vector<32x128xf32>
    %c0_11 = arith.constant 0 : index
    %c0_12 = arith.constant 0 : index
    %14 = vector.load %arg6[%c0_11, %c0_12] : memref<1x128xf32, #tpu.memory_space<vmem>>, vector<1x128xf32>
    %c0_13 = arith.constant 0 : index
    %c0_14 = arith.constant 0 : index
    %15 = vector.load %arg7[%c0_13, %c0_14] : memref<1x128xf32, #tpu.memory_space<vmem>>, vector<1x128xf32>
    %cst_15 = arith.constant dense<0.000000e+00> : vector<32xf32>
    %16 = vector.multi_reduction <add>, %13, %cst_15 [1] : vector<32x128xf32> to vector<32xf32>
    %17 = vector.shape_cast %16 : vector<32xf32> to vector<32x1xf32>
    %cst_16 = arith.constant 1.280000e+02 : f32
    %18 = vector.broadcast %cst_16 : f32 to vector<32x1xf32>
    %19 = arith.divf %17, %18 : vector<32x1xf32>
    %20 = vector.broadcast %19 : vector<32x1xf32> to vector<32x128xf32>
    %21 = arith.subf %13, %20 : vector<32x128xf32>
    %22 = arith.mulf %21, %21 : vector<32x128xf32>
    %cst_17 = arith.constant dense<0.000000e+00> : vector<32xf32>
    %23 = vector.multi_reduction <add>, %22, %cst_17 [1] : vector<32x128xf32> to vector<32xf32>
    %24 = vector.shape_cast %23 : vector<32xf32> to vector<32x1xf32>
    %cst_18 = arith.constant 0.00787401571 : f32
    %25 = vector.broadcast %cst_18 : f32 to vector<32x1xf32>
    %26 = arith.mulf %24, %25 : vector<32x1xf32>
    %27 = math.sqrt %26 : vector<32x1xf32>
    %cst_19 = arith.constant 9.99999997E-7 : f32
    %28 = vector.broadcast %cst_19 : f32 to vector<32x1xf32>
    %29 = arith.addf %27, %28 : vector<32x1xf32>
    %30 = tpu.reciprocal %29 {approx = true} : vector<32x1xf32> -> vector<32x1xf32>
    %31 = vector.broadcast %14 : vector<1x128xf32> to vector<32x128xf32>
    %32 = arith.mulf %31, %21 : vector<32x128xf32>
    %33 = vector.broadcast %30 : vector<32x1xf32> to vector<32x128xf32>
    %34 = arith.mulf %32, %33 : vector<32x128xf32>
    %35 = vector.broadcast %15 : vector<1x128xf32> to vector<32x128xf32>
    %36 = arith.addf %34, %35 : vector<32x128xf32>
    %c0_20 = arith.constant 0 : index
    %c0_21 = arith.constant 0 : index
    %37 = vector.load %arg8[%c0_20, %c0_21] : memref<32x128xf32, #tpu.memory_space<vmem>>, vector<32x128xf32>
    tpu.vector_store %arg8[%c0_20, %c0_21], %36 {strides = array<i32>} : memref<32x128xf32, #tpu.memory_space<vmem>>, vector<32x128xf32>,
    return
  }
  func.func @transform_0(%arg0: i32) -> (i32, i32) {
    %c0_i32 = arith.constant 0 : i32
    %c0_i32_0 = arith.constant 0 : i32
    return %arg0, %c0_i32 : i32, i32
  }
  func.func @transform_1(%arg0: i32) -> (i32, i32) {
    %c0_i32 = arith.constant 0 : i32
    %c0_i32_0 = arith.constant 0 : i32
    %c0_i32_1 = arith.constant 0 : i32
    return %c0_i32, %c0_i32_0 : i32, i32
  }
  func.func @transform_2(%arg0: i32) -> (i32, i32) {
    %c0_i32 = arith.constant 0 : i32
    %c0_i32_0 = arith.constant 0 : i32
    %c0_i32_1 = arith.constant 0 : i32
    return %c0_i32, %c0_i32_0 : i32, i32
  }
  func.func @transform_3(%arg0: i32) -> (i32, i32) {
    %c0_i32 = arith.constant 0 : i32
    %c0_i32_0 = arith.constant 0 : i32
    %c0_i32_1 = arith.constant 0 : i32
    return %c0_i32, %c0_i32_0 : i32, i32
  }
  func.func @transform_4(%arg0: i32) -> (i32, i32) {
    %c0_i32 = arith.constant 0 : i32
    %c0_i32_0 = arith.constant 0 : i32
    %c0_i32_1 = arith.constant 0 : i32
    return %c0_i32, %c0_i32_0 : i32, i32
  }
  func.func @transform_5(%arg0: i32) -> (i32, i32) {
    %c0_i32 = arith.constant 0 : i32
    %c0_i32_0 = arith.constant 0 : i32
    %c0_i32_1 = arith.constant 0 : i32
    return %c0_i32, %c0_i32_0 : i32, i32
  }
  func.func @transform_6(%arg0: i32) -> (i32, i32) {
    %c0_i32 = arith.constant 0 : i32
    %c0_i32_0 = arith.constant 0 : i32
    %c0_i32_1 = arith.constant 0 : i32
    return %c0_i32, %c0_i32_0 : i32, i32
  }
  func.func @transform_7(%arg0: i32) -> (i32, i32) {
    %c0_i32 = arith.constant 0 : i32
    %c0_i32_0 = arith.constant 0 : i32
    return %arg0, %c0_i32 : i32, i32
  }
}

</mosaic_0001>

<llo_original>
// kernel: mca_ed_forward.25
$region0: #{mca_ed_forward.25}
  #allocation0 [shape = 'u32[]', space=smem, size = 0x4, offset = 0x4, fixed_abs, tag = 'smem constant byte address 0x4 - core index']
  #allocation1 [shape = 'u32[72,128]{1,0:T(1,128)}', space=vmem, size = 0x9000, scoped, tag = 'internal scratch']
  %s0 = inlined_call_operand.vmem [shape: f32[2,8,384], index: 0, kind: input, shape index: {}]
  %s1 = inlined_call_operand.vmem [shape: f32[2,1,1,8], index: 1, kind: input, shape index: {}]
  %s2 = inlined_call_operand.vmem [shape: f32[2,8,128], index: 2, kind: output, shape index: {}]
  %s3 = sld [smem:[#allocation0]]
  $region41: #{mca_ed_forward.25} parent=0
    _
  %s5 = ssub.s32 1, %s3
  %s6 = scalar_select 0, %s5, %s3
  loop: start=0, step=1, limit=4
  $region2: #{mca_ed_forward.25} parent=0 // loop_pre_header
    _
  $region3: #{mca_ed_forward.25} parent=0 // loop_header
    %s8 = sphi 0, %s12
    %p9 = scmp.ge.s32.totalorder %s8, 4
    %s18 = sphi 0, %s20
    %s21 = sphi 0, %s18
    %s22 = sphi 0, %s21
    %s38 = sphi 0, %s22
    %s44 = sphi 0, %s46
    %s47 = sphi 0, %s44
    %s48 = sphi 0, %s47
    %s64 = sphi 0, %s48
    %s70 = sphi 0, %s72
    %s73 = sphi 0, %s70
    %s74 = sphi 0, %s73
    %s90 = sphi 0, %s74
  $region4: #{mca_ed_forward.25} parent=0 // loop_header_branch
    %11 = sbr.rel (%p9) target = $region8
  $region5: #{mca_ed_forward.25} parent=0 // loop_body
    %s13 = ssub.s32 %s8, 1
    %s14 = ssub.s32 %s8, 2
    %s15 = sadd.s32 %s8, 1
    %s16 = ssub.s32 %s8, %s15
    %p17 = scmp.eq.s32.totalorder %s16, 0
    %s19 = sadd.s32 %s18, 1
    %s20 = scalar_select %p17, %s18, %s19
    %p23 = pneg %p17
    %p24 = scmp.eq.s32.totalorder %s8, 1
    %p25 = por %p23, %p24
    %p26 = scmp.ne.s32.totalorder %s18, %s21
    %p27 = scmp.eq.s32.totalorder %s8, 0
    %p28 = por %p26, %p27
    %p29 = scmp.ne.s32.totalorder %s18, %s21
    %p30 = scmp.eq.s32.totalorder %s13, 1
    %p31 = por %p29, %p30
    %p32 = scmp.ne.s32.totalorder %s21, %s22
    %p33 = scmp.eq.s32.totalorder %s13, 0
    %p34 = por %p32, %p33
    %p35 = scmp.ne.s32.totalorder %s21, %s22
    %p36 = scmp.eq.s32.totalorder %s14, 1
    %p37 = por %p35, %p36
    %p39 = scmp.ne.s32.totalorder %s22, %s38
    %p40 = scmp.eq.s32.totalorder %s14, 0
    %p41 = por %p39, %p40
    %s42 = ssub.s32 %s8, %s15
    %p43 = scmp.eq.s32.totalorder %s42, 0
    %s45 = sadd.s32 %s44, 1
    %s46 = scalar_select %p43, %s44, %s45
    %p49 = pneg %p43
    %p50 = scmp.eq.s32.totalorder %s8, 1
    %p51 = por %p49, %p50
    %p52 = scmp.ne.s32.totalorder %s44, %s47
    %p53 = scmp.eq.s32.totalorder %s8, 0
    %p54 = por %p52, %p53
    %p55 = scmp.ne.s32.totalorder %s44, %s47
    %p56 = scmp.eq.s32.totalorder %s13, 1
    %p57 = por %p55, %p56
    %p58 = scmp.ne.s32.totalorder %s47, %s48
    %p59 = scmp.eq.s32.totalorder %s13, 0
    %p60 = por %p58, %p59
    %p61 = scmp.ne.s32.totalorder %s47, %s48
    %p62 = scmp.eq.s32.totalorder %s14, 1
    %p63 = por %p61, %p62
    %p65 = scmp.ne.s32.totalorder %s48, %s64
    %p66 = scmp.eq.s32.totalorder %s14, 0
    %p67 = por %p65, %p66
    %s68 = ssub.s32 %s8, %s15
    %p69 = scmp.eq.s32.totalorder %s68, 0
    %s71 = sadd.s32 %s70, 1
    %s72 = scalar_select %p69, %s70, %s71
    %p75 = pneg %p69
    %p76 = scmp.eq.s32.totalorder %s8, 1
    %p77 = por %p75, %p76
    %p78 = scmp.ne.s32.totalorder %s70, %s73
    %p79 = scmp.eq.s32.totalorder %s8, 0
    %p80 = por %p78, %p79
    %p81 = scmp.ne.s32.totalorder %s70, %s73
    %p82 = scmp.eq.s32.totalorder %s13, 1
    %p83 = por %p81, %p82
    %p84 = scmp.ne.s32.totalorder %s73, %s74
    %p85 = scmp.eq.s32.totalorder %s13, 0
    %p86 = por %p84, %p85
    %p87 = scmp.ne.s32.totalorder %s73, %s74
    %p88 = scmp.eq.s32.totalorder %s14, 1
    %p89 = por %p87, %p88
    %p91 = scmp.ne.s32.totalorder %s74, %s90
    %p92 = scmp.eq.s32.totalorder %s14, 0
    %p93 = por %p91, %p92
    %p94 = scmp.le.s32.totalorder 1, %s8
    %p95 = scmp.lt.s32.totalorder %s8, 3
    %p96 = pnand %p94, %p95
    %p97 = pneg %p96
    // Predicated region
    $region9: #{mca_ed_forward.25} parent=5 // pred_check
      _
    $region10: #{mca_ed_forward.25} parent=5 // pred_check_branch
      %99 = sbr.rel (%p96) target = $region12
    $region11: #{mca_ed_forward.25} parent=5 // pred_region
      %s100 = ssub.s32 %s8, 1
    $region12: #{mca_ed_forward.25} parent=5 // pred_fallthru
      _
    %p101 = scmp.lt.s32.totalorder %s8, 2
    // Predicated region
    $region13: #{mca_ed_forward.25} parent=5 // pred_check
      %p102 = pneg %p101
    $region14: #{mca_ed_forward.25} parent=5 // pred_check_branch
      %104 = sbr.rel (%p102) target = $region16
    $region15: #{mca_ed_forward.25} parent=5 // pred_region
      // Predicated region
      $region17: #{mca_ed_forward.25} parent=15 // pred_check
        %p105 = pneg %p28
      $region18: #{mca_ed_forward.25} parent=15 // pred_check_branch
        %107 = sbr.rel (%p105) target = $region20
      $region19: #{mca_ed_forward.25} parent=15 // pred_region
        %p108 = scmp.lt.s32.totalorder %s8, 1
        %s109 = scalar_select %p108, %s8, 1
        %s110 = smul.addr %s109, 3
        %s111 = smul.addr %s110, 8
        %s112 = scalar_lea.vmem %s0, %s111
      $region20: #{mca_ed_forward.25} parent=15 // pred_fallthru
        _
      // Predicated region
      $region21: #{mca_ed_forward.25} parent=15 // pred_check
        %p113 = pneg %p54
      $region22: #{mca_ed_forward.25} parent=15 // pred_check_branch
        %115 = sbr.rel (%p113) target = $region24
      $region23: #{mca_ed_forward.25} parent=15 // pred_region
        %p116 = scmp.lt.s32.totalorder %s8, 1
        %s117 = scalar_select %p116, %s8, 1
        %s118 = scalar_lea.vmem %s1, %s117
      $region24: #{mca_ed_forward.25} parent=15 // pred_fallthru
        _
    $region16: #{mca_ed_forward.25} parent=5 // pred_fallthru
      _
    %p119 = scmp.le.s32.totalorder 1, %s8
    %p120 = scmp.lt.s32.totalorder %s8, 3
    %p121 = pnand %p119, %p120
    %p122 = pneg %p121
    // Predicated region
    $region25: #{mca_ed_forward.25} parent=5 // pred_check
      _
    $region26: #{mca_ed_forward.25} parent=5 // pred_check_branch
      %124 = sbr.rel (%p121) target = $region28
    $region27: #{mca_ed_forward.25} parent=5 // pred_region
      %s125 = ssub.s32 %s8, 1
      %p126 = scmp.lt.s32.totalorder %s13, 1
      %s127 = scalar_select %p126, %s13, 1
      %s128 = smul.addr %s127, 3
      %s129 = smul.addr %s128, 8
      %s130 = scalar_lea.vmem %s0, %s129
      %p131 = pneg %p34
      %p132 = pneg %p31
      %p133 = scmp.lt.s32.totalorder %s13, 1
      %s134 = scalar_select %p133, %s13, 1
      %s135 = scalar_lea.vmem %s1, %s134
      %p136 = pneg %p60
      %p137 = pneg %p57
      %p138 = pneg %p86
      %p139 = pneg %p83
      %p140 = scmp.lt.s32.totalorder %s13, 1
      %s141 = scalar_select %p140, %s13, 1
      %s142 = smul.addr %s141, 8
      %s143 = scalar_lea.vmem %s2, %s142
      %p144 = scmp.lt.s32.totalorder %s13, 1
      %s145 = scalar_select %p144, %s13, 1
      %s146 = smul.addr %s145, 3
      %s147 = smul.addr %s146, 8
      %s148 = scalar_lea.vmem %s0, %s147
      %p149 = scmp.lt.s32.totalorder %s13, 1
      %s150 = scalar_select %p149, %s13, 1
      %s151 = scalar_lea.vmem %s1, %s150
      %p152 = scmp.lt.s32.totalorder %s13, 1
      %s153 = scalar_select %p152, %s13, 1
      %s154 = smul.addr %s153, 8
      %s155 = scalar_lea.vmem %s2, %s154
      %v156 = vld [vmem:[%s148] sm:$0xff]
      %v157 = vld [vmem:[%s148 + $0x8] sm:$0xff]
      %v158 = vld [vmem:[%s148 + $0x10] sm:$0xff]
      %v159 = vld [vmem:[%s151] sm:$0x1]
      %vm160 = vcmask 261120
      %v162 = vsel %vm160, %v156, 0
      %v165 = vsel %vm160, %v157, 0
      %167 = vmatpush.xpose.msra.mxu0 0.0
      %168 = vmatpush.xpose.msra.mxu0 0.0
      %169 = vmatpush.xpose.msra.mxu0 0.0
      %170 = vmatpush.xpose.msra.mxu0 0.0
      %171 = vmatpush.xpose.msra.mxu0 0.0
      %172 = vmatpush.xpose.msra.mxu0 0.0
      %173 = vmatpush.xpose.msra.mxu0 0.0
      %174 = vmatpush.xpose.msra.mxu0 0.0
      %175 = vmatpush.xpose.msra.mxu0 0.0
      %176 = vmatpush.xpose.msra.mxu0 0.0
      %177 = vmatpush.xpose.msra.mxu0 0.0
      %178 = vmatpush.xpose.msra.mxu0 0.0
      %179 = vmatpush.xpose.msra.mxu0 0.0
      %180 = vmatpush.xpose.msra.mxu0 0.0
      %181 = vmatpush.xpose.msra.mxu0 0.0
      %182 = vmatpush.xpose.msra.mxu0 %v165
      %183 = vmatmul.f32.gmra.mxu0 %v162
      %v184 = vpop.f32.mrf.mxu0
      %v185 = vadd.f32 0.0, %v184
      %186 = vdwg.mxu0
      %v187 = vmul.f32 %v185, 0.17677669
      %vm188 = vcmp.gt.f32.partialorder %v159, 0.5
      %v189 = vsel %vm188, 1, 0
      %v190 = vperm.slane %v189, 0
      %vm191 = vcmp.eq.s32.totalorder %v190, 1
      %v192 = vsel %vm191, -1e+09, %v187
      %vm193 = vcmask 64512
      %v194 = vsel %vm193, %v192, -inf
      %195 = vmax.xlane.f32.xlu0 %v194
      %v196 = vpop.xlane.xlu0 %195
      %v197 = vsub.f32 %v192, %v196
      %v198 = vmul.f32 %v197, 1.442695
      %v199 = vpow.pop %v198
      %v200 = vsel %vm193, %v199, 0.0
      %201 = vadd.xlane.f32.xlu0 %v200
      %v202 = vpop.xlane.xlu0 %201
      %v203 = vrcp.pop %v202
      %v204 = vmul.f32 %v199, %v203
      %v206 = vsel %vm193, %v204, 0
      %208 = vmatpush.msra.mxu0 0.0
      %209 = vmatpush.msra.mxu0 0.0
      %210 = vmatpush.msra.mxu0 0.0
      %211 = vmatpush.msra.mxu0 0.0
      %212 = vmatpush.msra.mxu0 0.0
      %213 = vmatpush.msra.mxu0 0.0
      %214 = vmatpush.msra.mxu0 0.0
      %215 = vmatpush.msra.mxu0 0.0
      %216 = vmatpush.msra.mxu0 0.0
      %217 = vmatpush.msra.mxu0 0.0
      %218 = vmatpush.msra.mxu0 0.0
      %219 = vmatpush.msra.mxu0 0.0
      %220 = vmatpush.msra.mxu0 0.0
      %221 = vmatpush.msra.mxu0 0.0
      %222 = vmatpush.msra.mxu0 0.0
      %223 = vmatpush.msra.mxu0 %v158
      %224 = vmatmul.f32.gmra.mxu0 %v206
      %v225 = vpop.f32.mrf.mxu0
      %v226 = vadd.f32 0.0, %v225
      %227 = vdwg.mxu0
      %228 = vrot.lane.b32.xlu0 %v156, 96
      %v229 = vpop.permute.xlu0 %228
      %230 = vrot.lane.b32.xlu0 %v157, 96
      %v231 = vpop.permute.xlu0 %230
      %v232 = vsel %vm160, %v229, 0
      %v234 = vsel %vm160, %v231, 0
      %236 = vmatpush.xpose.msra.mxu0 0.0
      %237 = vmatpush.xpose.msra.mxu0 0.0
      %238 = vmatpush.xpose.msra.mxu0 0.0
      %239 = vmatpush.xpose.msra.mxu0 0.0
      %240 = vmatpush.xpose.msra.mxu0 0.0
      %241 = vmatpush.xpose.msra.mxu0 0.0
      %242 = vmatpush.xpose.msra.mxu0 0.0
      %243 = vmatpush.xpose.msra.mxu0 0.0
      %244 = vmatpush.xpose.msra.mxu0 0.0
      %245 = vmatpush.xpose.msra.mxu0 0.0
      %246 = vmatpush.xpose.msra.mxu0 0.0
      %247 = vmatpush.xpose.msra.mxu0 0.0
      %248 = vmatpush.xpose.msra.mxu0 0.0
      %249 = vmatpush.xpose.msra.mxu0 0.0
      %250 = vmatpush.xpose.msra.mxu0 0.0
      %251 = vmatpush.xpose.msra.mxu0 %v234
      %252 = vmatmul.f32.gmra.mxu0 %v232
      %v253 = vpop.f32.mrf.mxu0
      %v254 = vadd.f32 0.0, %v253
      %255 = vdwg.mxu0
      %v256 = vmul.f32 %v254, 0.17677669
      %v257 = vsel %vm191, -1e+09, %v256
      %v258 = vsel %vm193, %v257, -inf
      %259 = vmax.xlane.f32.xlu0 %v258
      %v260 = vpop.xlane.xlu0 %259
      %v261 = vsub.f32 %v257, %v260
      %v262 = vmul.f32 %v261, 1.442695
      %v263 = vpow.pop %v262
      %v264 = vsel %vm193, %v263, 0.0
      %265 = vadd.xlane.f32.xlu0 %v264
      %v266 = vpop.xlane.xlu0 %265
      %v267 = vrcp.pop %v266
      %v268 = vmul.f32 %v263, %v267
      %270 = vrot.lane.b32.xlu0 %v158, 96
      %v271 = vpop.permute.xlu0 %270
      %v274 = vsel %vm193, %v268, 0
      %276 = vmatpush.msra.mxu0 0.0
      %277 = vmatpush.msra.mxu0 0.0
      %278 = vmatpush.msra.mxu0 0.0
      %279 = vmatpush.msra.mxu0 0.0
      %280 = vmatpush.msra.mxu0 0.0
      %281 = vmatpush.msra.mxu0 0.0
      %282 = vmatpush.msra.mxu0 0.0
      %283 = vmatpush.msra.mxu0 0.0
      %284 = vmatpush.msra.mxu0 0.0
      %285 = vmatpush.msra.mxu0 0.0
      %286 = vmatpush.msra.mxu0 0.0
      %287 = vmatpush.msra.mxu0 0.0
      %288 = vmatpush.msra.mxu0 0.0
      %289 = vmatpush.msra.mxu0 0.0
      %290 = vmatpush.msra.mxu0 0.0
      %291 = vmatpush.msra.mxu0 %v271
      %292 = vmatmul.f32.gmra.mxu0 %v274
      %v293 = vpop.f32.mrf.mxu0
      %v294 = vadd.f32 0.0, %v293
      %295 = vdwg.mxu0
      %296 = vrot.lane.b32.xlu0 %v156, 64
      %v297 = vpop.permute.xlu0 %296
      %298 = vrot.lane.b32.xlu0 %v157, 64
      %v299 = vpop.permute.xlu0 %298
      %v300 = vsel %vm160, %v297, 0
      %v302 = vsel %vm160, %v299, 0
      %304 = vmatpush.xpose.msra.mxu0 0.0
      %305 = vmatpush.xpose.msra.mxu0 0.0
      %306 = vmatpush.xpose.msra.mxu0 0.0
      %307 = vmatpush.xpose.msra.mxu0 0.0
      %308 = vmatpush.xpose.msra.mxu0 0.0
      %309 = vmatpush.xpose.msra.mxu0 0.0
      %310 = vmatpush.xpose.msra.mxu0 0.0
      %311 = vmatpush.xpose.msra.mxu0 0.0
      %312 = vmatpush.xpose.msra.mxu0 0.0
      %313 = vmatpush.xpose.msra.mxu0 0.0
      %314 = vmatpush.xpose.msra.mxu0 0.0
      %315 = vmatpush.xpose.msra.mxu0 0.0
      %316 = vmatpush.xpose.msra.mxu0 0.0
      %317 = vmatpush.xpose.msra.mxu0 0.0
      %318 = vmatpush.xpose.msra.mxu0 0.0
      %319 = vmatpush.xpose.msra.mxu0 %v302
      %320 = vmatmul.f32.gmra.mxu0 %v300
      %v321 = vpop.f32.mrf.mxu0
      %v322 = vadd.f32 0.0, %v321
      %323 = vdwg.mxu0
      %v324 = vmul.f32 %v322, 0.17677669
      %v325 = vsel %vm191, -1e+09, %v324
      %v326 = vsel %vm193, %v325, -inf
      %327 = vmax.xlane.f32.xlu0 %v326
      %v328 = vpop.xlane.xlu0 %327
      %v329 = vsub.f32 %v325, %v328
      %v330 = vmul.f32 %v329, 1.442695
      %v331 = vpow.pop %v330
      %v332 = vsel %vm193, %v331, 0.0
      %333 = vadd.xlane.f32.xlu0 %v332
      %v334 = vpop.xlane.xlu0 %333
      %v335 = vrcp.pop %v334
      %v336 = vmul.f32 %v331, %v335
      %337 = vrot.lane.b32.xlu0 %v158, 64
      %v338 = vpop.permute.xlu0 %337
      %v341 = vsel %vm193, %v336, 0
      %343 = vmatpush.msra.mxu0 0.0
      %344 = vmatpush.msra.mxu0 0.0
      %345 = vmatpush.msra.mxu0 0.0
      %346 = vmatpush.msra.mxu0 0.0
      %347 = vmatpush.msra.mxu0 0.0
      %348 = vmatpush.msra.mxu0 0.0
      %349 = vmatpush.msra.mxu0 0.0
      %350 = vmatpush.msra.mxu0 0.0
      %351 = vmatpush.msra.mxu0 0.0
      %352 = vmatpush.msra.mxu0 0.0
      %353 = vmatpush.msra.mxu0 0.0
      %354 = vmatpush.msra.mxu0 0.0
      %355 = vmatpush.msra.mxu0 0.0
      %356 = vmatpush.msra.mxu0 0.0
      %357 = vmatpush.msra.mxu0 0.0
      %358 = vmatpush.msra.mxu0 %v338
      %359 = vmatmul.f32.gmra.mxu0 %v341
      %v360 = vpop.f32.mrf.mxu0
      %v361 = vadd.f32 0.0, %v360
      %362 = vdwg.mxu0
      %363 = vrot.lane.b32.xlu0 %v156, 32
      %v364 = vpop.permute.xlu0 %363
      %365 = vrot.lane.b32.xlu0 %v157, 32
      %v366 = vpop.permute.xlu0 %365
      %v367 = vsel %vm160, %v364, 0
      %v369 = vsel %vm160, %v366, 0
      %371 = vmatpush.xpose.msra.mxu0 0.0
      %372 = vmatpush.xpose.msra.mxu0 0.0
      %373 = vmatpush.xpose.msra.mxu0 0.0
      %374 = vmatpush.xpose.msra.mxu0 0.0
      %375 = vmatpush.xpose.msra.mxu0 0.0
      %376 = vmatpush.xpose.msra.mxu0 0.0
      %377 = vmatpush.xpose.msra.mxu0 0.0
      %378 = vmatpush.xpose.msra.mxu0 0.0
      %379 = vmatpush.xpose.msra.mxu0 0.0
      %380 = vmatpush.xpose.msra.mxu0 0.0
      %381 = vmatpush.xpose.msra.mxu0 0.0
      %382 = vmatpush.xpose.msra.mxu0 0.0
      %383 = vmatpush.xpose.msra.mxu0 0.0
      %384 = vmatpush.xpose.msra.mxu0 0.0
      %385 = vmatpush.xpose.msra.mxu0 0.0
      %386 = vmatpush.xpose.msra.mxu0 %v369
      %387 = vmatmul.f32.gmra.mxu0 %v367
      %v388 = vpop.f32.mrf.mxu0
      %v389 = vadd.f32 0.0, %v388
      %390 = vdwg.mxu0
      %v391 = vmul.f32 %v389, 0.17677669
      %v392 = vsel %vm191, -1e+09, %v391
      %v393 = vsel %vm193, %v392, -inf
      %394 = vmax.xlane.f32.xlu0 %v393
      %v395 = vpop.xlane.xlu0 %394
      %v396 = vsub.f32 %v392, %v395
      %v397 = vmul.f32 %v396, 1.442695
      %v398 = vpow.pop %v397
      %v399 = vsel %vm193, %v398, 0.0
      %400 = vadd.xlane.f32.xlu0 %v399
      %v401 = vpop.xlane.xlu0 %400
      %v402 = vrcp.pop %v401
      %v403 = vmul.f32 %v398, %v402
      %404 = vrot.lane.b32.xlu0 %v158, 32
      %v405 = vpop.permute.xlu0 %404
      %v408 = vsel %vm193, %v403, 0
      %410 = vmatpush.msra.mxu0 0.0
      %411 = vmatpush.msra.mxu0 0.0
      %412 = vmatpush.msra.mxu0 0.0
      %413 = vmatpush.msra.mxu0 0.0
      %414 = vmatpush.msra.mxu0 0.0
      %415 = vmatpush.msra.mxu0 0.0
      %416 = vmatpush.msra.mxu0 0.0
      %417 = vmatpush.msra.mxu0 0.0
      %418 = vmatpush.msra.mxu0 0.0
      %419 = vmatpush.msra.mxu0 0.0
      %420 = vmatpush.msra.mxu0 0.0
      %421 = vmatpush.msra.mxu0 0.0
      %422 = vmatpush.msra.mxu0 0.0
      %423 = vmatpush.msra.mxu0 0.0
      %424 = vmatpush.msra.mxu0 0.0
      %425 = vmatpush.msra.mxu0 %v405
      %426 = vmatmul.f32.gmra.mxu0 %v408
      %v427 = vpop.f32.mrf.mxu0
      %v428 = vadd.f32 0.0, %v427
      %429 = vdwg.mxu0
      %431 = vrot.lane.b32.xlu0 %v294, 32
      %v432 = vpop.permute.xlu0 %431
      %435 = vrot.lane.b32.xlu0 %v361, 64
      %v436 = vpop.permute.xlu0 %435
      %439 = vrot.lane.b32.xlu0 %v428, 96
      %v440 = vpop.permute.xlu0 %439
      %v442 = vsel %vm160, %v226, %v432
      %vm443 = vcmask 523264
      %v444 = vsel %vm443, %v442, %v436
      %vm445 = vcmask 785408
      %v446 = vsel %vm445, %v444, %v440
      %447 = vst [vmem:[%s155] sm:$0xff] %v446
      %p448 = scmp.lt.s32.totalorder %s13, 1
      %s449 = scalar_select %p448, %s13, 1
      %s450 = smul.addr %s449, 8
      %s451 = scalar_lea.vmem %s2, %s450
      // Predicated region
      $region29: #{mca_ed_forward.25} parent=27 // pred_check
        %p452 = pneg %p83
      $region30: #{mca_ed_forward.25} parent=27 // pred_check_branch
        %454 = sbr.rel (%p452) target = $region32
      $region31: #{mca_ed_forward.25} parent=27 // pred_region
        _
      $region32: #{mca_ed_forward.25} parent=27 // pred_fallthru
        _
    $region28: #{mca_ed_forward.25} parent=5 // pred_fallthru
      _
    %p455 = scmp.le.s32.totalorder 2, %s8
    // Predicated region
    $region33: #{mca_ed_forward.25} parent=5 // pred_check
      %p456 = pneg %p455
    $region34: #{mca_ed_forward.25} parent=5 // pred_check_branch
      %458 = sbr.rel (%p456) target = $region36
    $region35: #{mca_ed_forward.25} parent=5 // pred_region
      %s459 = ssub.s32 %s8, 2
      // Predicated region
      $region37: #{mca_ed_forward.25} parent=35 // pred_check
        %p460 = pneg %p89
      $region38: #{mca_ed_forward.25} parent=35 // pred_check_branch
        %462 = sbr.rel (%p460) target = $region40
      $region39: #{mca_ed_forward.25} parent=35 // pred_region
        %p463 = scmp.lt.s32.totalorder %s14, 1
        %s464 = scalar_select %p463, %s14, 1
        %s465 = smul.addr %s464, 8
        %s466 = scalar_lea.vmem %s2, %s465
      $region40: #{mca_ed_forward.25} parent=35 // pred_fallthru
        _
    $region36: #{mca_ed_forward.25} parent=5 // pred_fallthru
      _
  $region6: #{mca_ed_forward.25} parent=0 // loop_footer
    %s12 = sadd.s32 1, %s8
  $region7: #{mca_ed_forward.25} parent=0 // loop_footer_branch
    %7 = sbr.rel target = $region3
  $region8: #{mca_ed_forward.25} parent=0 // loop_exit
    _

// kernel: mca_ed_forward.24
$region0: #{mca_ed_forward.24}
  #allocation0 [shape = 'u32[]', space=smem, size = 0x4, offset = 0x4, fixed_abs, tag = 'smem constant byte address 0x4 - core index']
  #allocation1 [shape = 'u32[72,128]{1,0:T(1,128)}', space=vmem, size = 0x9000, scoped, tag = 'internal scratch']
  %s0 = inlined_call_operand.vmem [shape: f32[16,128], index: 0, kind: input, shape index: {}]
  %s1 = inlined_call_operand.hbm [shape: f32[128,384], index: 1, kind: input, shape index: {}]
  %s2 = inlined_call_operand.vmem [shape: f32[1,384], index: 2, kind: input, shape index: {}]
  %s3 = inlined_call_operand.vmem [shape: f32[16,384], index: 3, kind: output, shape index: {}]
  %s4 = sld [smem:[#allocation0]]
  $region26: #{mca_ed_forward.24} parent=0
    _
  %s6 = ssub.s32 1, %s4
  %s7 = scalar_select 0, %s6, %s4
  $region1: #{mca_ed_forward.24} parent=0
    #allocation2 [shape = 'u8[196608]{0}', space=vmem, size = 0x30000, scoped, tag = 'input window, operand 1, single buffered']
    #allocation3 [shape = 's32[1]{0}', space=sflag, size = 0x4, scoped, tag = 'scoped memory for mca_ed_forward.24']
    %8 = vsyncpa [#allocation3], 0
    // Predicated region
    $region2: #{mca_ed_forward.24} parent=1 // pred_check
      _
    $region3: #{mca_ed_forward.24} parent=1 // pred_check_branch
      %10 = sbr.rel (0) target = $region5
    $region4: #{mca_ed_forward.24} parent=1 // pred_region
      _
    $region5: #{mca_ed_forward.24} parent=1 // pred_fallthru
      _
    // Predicated region
    $region6: #{mca_ed_forward.24} parent=1 // pred_check
      _
    $region7: #{mca_ed_forward.24} parent=1 // pred_check_branch
      %12 = sbr.rel (0) target = $region9
    $region8: #{mca_ed_forward.24} parent=1 // pred_region
      %14 = vsyncadd [#allocation3], 0
      %s15 = sshll.u32 %s1, 4
      %s16 = int_to_ptr.hbm [resolvable:$true] %s15
      %s17 = sshll.u32 [#allocation2], 4
      %s18 = int_to_ptr.vmem [resolvable:$true] %s17
      %23 = dma.hbm_to_vmem [thread:$0]  %s16, 6144, %s18, [#allocation3], 384, 384, 24
    $region9: #{mca_ed_forward.24} parent=1 // pred_fallthru
      _
    // Predicated region
    $region10: #{mca_ed_forward.24} parent=1 // pred_check
      _
    $region11: #{mca_ed_forward.24} parent=1 // pred_check_branch
      %25 = sbr.rel (0) target = $region13
    $region12: #{mca_ed_forward.24} parent=1 // pred_region
      _
    $region13: #{mca_ed_forward.24} parent=1 // pred_fallthru
      _
    // Predicated region
    $region14: #{mca_ed_forward.24} parent=1 // pred_check
      _
    $region15: #{mca_ed_forward.24} parent=1 // pred_check_branch
      %27 = sbr.rel (0) target = $region17
    $region16: #{mca_ed_forward.24} parent=1 // pred_region
      %29 = dma.done [#allocation3], 6144
    $region17: #{mca_ed_forward.24} parent=1 // pred_fallthru
      _
    %v30 = vld [vmem:[%s0] sm:$0xff]
    %v31 = vld [vmem:[%s0 + $0x8] sm:$0xff]
    %v32 = vld [vmem:[#allocation2] sm:$0xff]
    %v33 = vld [vmem:[#allocation2 + $0x8] sm:$0xff]
    %v34 = vld [vmem:[#allocation2 + $0x10] sm:$0xff]
    %v35 = vld [vmem:[#allocation2 + $0x18] sm:$0xff]
    %v36 = vld [vmem:[#allocation2 + $0x20] sm:$0xff]
    %v37 = vld [vmem:[#allocation2 + $0x28] sm:$0xff]
    %v38 = vld [vmem:[#allocation2 + $0x30] sm:$0xff]
    %v39 = vld [vmem:[#allocation2 + $0x38] sm:$0xff]
    %v40 = vld [vmem:[#allocation2 + $0x40] sm:$0xff]
    %v41 = vld [vmem:[#allocation2 + $0x48] sm:$0xff]
    %v42 = vld [vmem:[#allocation2 + $0x50] sm:$0xff]
    %v43 = vld [vmem:[#allocation2 + $0x58] sm:$0xff]
    %v44 = vld [vmem:[#allocation2 + $0x60] sm:$0xff]
    %v45 = vld [vmem:[#allocation2 + $0x68] sm:$0xff]
    %v46 = vld [vmem:[#allocation2 + $0x70] sm:$0xff]
    %v47 = vld [vmem:[#allocation2 + $0x78] sm:$0xff]
    %v48 = vld [vmem:[#allocation2 + $0x80] sm:$0xff]
    %v49 = vld [vmem:[#allocation2 + $0x88] sm:$0xff]
    %v50 = vld [vmem:[#allocation2 + $0x90] sm:$0xff]
    %v51 = vld [vmem:[#allocation2 + $0x98] sm:$0xff]
    %v52 = vld [vmem:[#allocation2 + $0xa0] sm:$0xff]
    %v53 = vld [vmem:[#allocation2 + $0xa8] sm:$0xff]
    %v54 = vld [vmem:[#allocation2 + $0xb0] sm:$0xff]
    %v55 = vld [vmem:[#allocation2 + $0xb8] sm:$0xff]
    %v56 = vld [vmem:[#allocation2 + $0xc0] sm:$0xff]
    %v57 = vld [vmem:[#allocation2 + $0xc8] sm:$0xff]
    %v58 = vld [vmem:[#allocation2 + $0xd0] sm:$0xff]
    %v59 = vld [vmem:[#allocation2 + $0xd8] sm:$0xff]
    %v60 = vld [vmem:[#allocation2 + $0xe0] sm:$0xff]
    %v61 = vld [vmem:[#allocation2 + $0xe8] sm:$0xff]
    %v62 = vld [vmem:[#allocation2 + $0xf0] sm:$0xff]
    %v63 = vld [vmem:[#allocation2 + $0xf8] sm:$0xff]
    %v64 = vld [vmem:[#allocation2 + $0x100] sm:$0xff]
    %v65 = vld [vmem:[#allocation2 + $0x108] sm:$0xff]
    %v66 = vld [vmem:[#allocation2 + $0x110] sm:$0xff]
    %v67 = vld [vmem:[#allocation2 + $0x118] sm:$0xff]
    %v68 = vld [vmem:[#allocation2 + $0x120] sm:$0xff]
    %v69 = vld [vmem:[#allocation2 + $0x128] sm:$0xff]
    %v70 = vld [vmem:[#allocation2 + $0x130] sm:$0xff]
    %v71 = vld [vmem:[#allocation2 + $0x138] sm:$0xff]
    %v72 = vld [vmem:[#allocation2 + $0x140] sm:$0xff]
    %v73 = vld [vmem:[#allocation2 + $0x148] sm:$0xff]
    %v74 = vld [vmem:[#allocation2 + $0x150] sm:$0xff]
    %v75 = vld [vmem:[#allocation2 + $0x158] sm:$0xff]
    %v76 = vld [vmem:[#allocation2 + $0x160] sm:$0xff]
    %v77 = vld [vmem:[#allocation2 + $0x168] sm:$0xff]
    %v78 = vld [vmem:[#allocation2 + $0x170] sm:$0xff]
    %v79 = vld [vmem:[#allocation2 + $0x178] sm:$0xff]
    %v80 = vld [vmem:[%s2] sm:$0x7]
    %v82 = vperm.slane %v80, 0
    %v83 = vperm.slane %v80, 1
    %v84 = vperm.slane %v80, 2
    %88 = vmatpush.msra.mxu0 %v77
    %89 = vmatpush.msra.mxu0 %v74
    %90 = vmatpush.msra.mxu0 %v71
    %91 = vmatpush.msra.mxu0 %v68
    %92 = vmatpush.msra.mxu0 %v65
    %93 = vmatpush.msra.mxu0 %v62
    %94 = vmatpush.msra.mxu0 %v59
    %95 = vmatpush.msra.mxu0 %v56
    %96 = vmatpush.msra.mxu0 %v53
    %97 = vmatpush.msra.mxu0 %v50
    %98 = vmatpush.msra.mxu0 %v47
    %99 = vmatpush.msra.mxu0 %v44
    %100 = vmatpush.msra.mxu0 %v41
    %101 = vmatpush.msra.mxu0 %v38
    %102 = vmatpush.msra.mxu0 %v35
    %103 = vmatpush.msra.mxu0 %v32
    %104 = vmatmul.f32.gmra.mxu0 %v30
    %v105 = vpop.f32.mrf.mxu0
    %v106 = vadd.f32 %v82, %v105
    %107 = vmatmul.f32.gmra.mxu0 %v31
    %v108 = vpop.f32.mrf.mxu0
    %v109 = vadd.f32 %v82, %v108
    %110 = vdwg.mxu0
    %111 = vmatpush.msra.mxu0 %v78
    %112 = vmatpush.msra.mxu0 %v75
    %113 = vmatpush.msra.mxu0 %v72
    %114 = vmatpush.msra.mxu0 %v69
    %115 = vmatpush.msra.mxu0 %v66
    %116 = vmatpush.msra.mxu0 %v63
    %117 = vmatpush.msra.mxu0 %v60
    %118 = vmatpush.msra.mxu0 %v57
    %119 = vmatpush.msra.mxu0 %v54
    %120 = vmatpush.msra.mxu0 %v51
    %121 = vmatpush.msra.mxu0 %v48
    %122 = vmatpush.msra.mxu0 %v45
    %123 = vmatpush.msra.mxu0 %v42
    %124 = vmatpush.msra.mxu0 %v39
    %125 = vmatpush.msra.mxu0 %v36
    %126 = vmatpush.msra.mxu0 %v33
    %127 = vmatmul.f32.gmra.mxu0 %v30
    %v128 = vpop.f32.mrf.mxu0
    %v129 = vadd.f32 %v83, %v128
    %130 = vmatmul.f32.gmra.mxu0 %v31
    %v131 = vpop.f32.mrf.mxu0
    %v132 = vadd.f32 %v83, %v131
    %133 = vdwg.mxu0
    %134 = vmatpush.msra.mxu0 %v79
    %135 = vmatpush.msra.mxu0 %v76
    %136 = vmatpush.msra.mxu0 %v73
    %137 = vmatpush.msra.mxu0 %v70
    %138 = vmatpush.msra.mxu0 %v67
    %139 = vmatpush.msra.mxu0 %v64
    %140 = vmatpush.msra.mxu0 %v61
    %141 = vmatpush.msra.mxu0 %v58
    %142 = vmatpush.msra.mxu0 %v55
    %143 = vmatpush.msra.mxu0 %v52
    %144 = vmatpush.msra.mxu0 %v49
    %145 = vmatpush.msra.mxu0 %v46
    %146 = vmatpush.msra.mxu0 %v43
    %147 = vmatpush.msra.mxu0 %v40
    %148 = vmatpush.msra.mxu0 %v37
    %149 = vmatpush.msra.mxu0 %v34
    %150 = vmatmul.f32.gmra.mxu0 %v30
    %v151 = vpop.f32.mrf.mxu0
    %v152 = vadd.f32 %v84, %v151
    %153 = vmatmul.f32.gmra.mxu0 %v31
    %v154 = vpop.f32.mrf.mxu0
    %v155 = vadd.f32 %v84, %v154
    %156 = vdwg.mxu0
    %157 = vst [vmem:[%s3] sm:$0xff] %v106
    %158 = vst [vmem:[%s3 + $0x8] sm:$0xff] %v129
    %159 = vst [vmem:[%s3 + $0x10] sm:$0xff] %v152
    %160 = vst [vmem:[%s3 + $0x18] sm:$0xff] %v109
    %161 = vst [vmem:[%s3 + $0x20] sm:$0xff] %v132
    %162 = vst [vmem:[%s3 + $0x28] sm:$0xff] %v155
    // Predicated region
    $region18: #{mca_ed_forward.24} parent=1 // pred_check
      _
    $region19: #{mca_ed_forward.24} parent=1 // pred_check_branch
      %164 = sbr.rel (0) target = $region21
    $region20: #{mca_ed_forward.24} parent=1 // pred_region
      _
    $region21: #{mca_ed_forward.24} parent=1 // pred_fallthru
      _
    // Predicated region
    $region22: #{mca_ed_forward.24} parent=1 // pred_check
      _
    $region23: #{mca_ed_forward.24} parent=1 // pred_check_branch
      %166 = sbr.rel (0) target = $region25
    $region24: #{mca_ed_forward.24} parent=1 // pred_region
      _
    $region25: #{mca_ed_forward.24} parent=1 // pred_fallthru
      _
    %167 = vsyncpa [#allocation3], 1

// kernel: mca_ed_forward.26
$region0: #{mca_ed_forward.26}
  #allocation0 [shape = 'u32[]', space=smem, size = 0x4, offset = 0x4, fixed_abs, tag = 'smem constant byte address 0x4 - core index']
  #allocation1 [shape = 'u32[72,128]{1,0:T(1,128)}', space=vmem, size = 0x9000, scoped, tag = 'internal scratch']
  %s0 = inlined_call_operand.vmem [shape: f32[16,128], index: 0, kind: input, shape index: {}]
  %s1 = inlined_call_operand.vmem [shape: f32[16,128], index: 1, kind: input, shape index: {}]
  %s2 = inlined_call_operand.hbm [shape: f32[128,128], index: 2, kind: input, shape index: {}]
  %s3 = inlined_call_operand.vmem [shape: f32[1,128], index: 3, kind: input, shape index: {}]
  %s4 = inlined_call_operand.vmem [shape: f32[1,128], index: 4, kind: input, shape index: {}]
  %s5 = inlined_call_operand.vmem [shape: f32[1,128], index: 5, kind: input, shape index: {}]
  %s6 = inlined_call_operand.vmem [shape: f32[16,128], index: 6, kind: output, shape index: {}]
  %s7 = sld [smem:[#allocation0]]
  $region38: #{mca_ed_forward.26} parent=0
    _
  %s9 = ssub.s32 1, %s7
  %s10 = scalar_select 0, %s9, %s7
  $region1: #{mca_ed_forward.26} parent=0
    #allocation2 [shape = 'u8[65536]{0}', space=vmem, size = 0x10000, scoped, tag = 'input window, operand 2, single buffered']
    #allocation3 [shape = 's32[1]{0}', space=sflag, size = 0x4, scoped, tag = 'scoped memory for mca_ed_forward.26']
    %11 = vsyncpa [#allocation3], 0
    // Predicated region
    $region2: #{mca_ed_forward.26} parent=1 // pred_check
      _
    $region3: #{mca_ed_forward.26} parent=1 // pred_check_branch
      %13 = sbr.rel (0) target = $region5
    $region4: #{mca_ed_forward.26} parent=1 // pred_region
      _
    $region5: #{mca_ed_forward.26} parent=1 // pred_fallthru
      _
    // Predicated region
    $region6: #{mca_ed_forward.26} parent=1 // pred_check
      _
    $region7: #{mca_ed_forward.26} parent=1 // pred_check_branch
      %15 = sbr.rel (0) target = $region9
    $region8: #{mca_ed_forward.26} parent=1 // pred_region
      _
    $region9: #{mca_ed_forward.26} parent=1 // pred_fallthru
      _
    // Predicated region
    $region10: #{mca_ed_forward.26} parent=1 // pred_check
      _
    $region11: #{mca_ed_forward.26} parent=1 // pred_check_branch
      %17 = sbr.rel (0) target = $region13
    $region12: #{mca_ed_forward.26} parent=1 // pred_region
      %19 = vsyncadd [#allocation3], 0
      %s20 = sshll.u32 %s2, 4
      %s21 = int_to_ptr.hbm [resolvable:$true] %s20
      %s22 = sshll.u32 [#allocation2], 4
      %s23 = int_to_ptr.vmem [resolvable:$true] %s22
      %28 = dma.hbm_to_vmem [thread:$0]  %s21, 2048, %s23, [#allocation3], 128, 128, 8
    $region13: #{mca_ed_forward.26} parent=1 // pred_fallthru
      _
    // Predicated region
    $region14: #{mca_ed_forward.26} parent=1 // pred_check
      _
    $region15: #{mca_ed_forward.26} parent=1 // pred_check_branch
      %30 = sbr.rel (0) target = $region17
    $region16: #{mca_ed_forward.26} parent=1 // pred_region
      _
    $region17: #{mca_ed_forward.26} parent=1 // pred_fallthru
      _
    // Predicated region
    $region18: #{mca_ed_forward.26} parent=1 // pred_check
      _
    $region19: #{mca_ed_forward.26} parent=1 // pred_check_branch
      %32 = sbr.rel (0) target = $region21
    $region20: #{mca_ed_forward.26} parent=1 // pred_region
      _
    $region21: #{mca_ed_forward.26} parent=1 // pred_fallthru
      _
    // Predicated region
    $region22: #{mca_ed_forward.26} parent=1 // pred_check
      _
    $region23: #{mca_ed_forward.26} parent=1 // pred_check_branch
      %34 = sbr.rel (0) target = $region25
    $region24: #{mca_ed_forward.26} parent=1 // pred_region
      _
    $region25: #{mca_ed_forward.26} parent=1 // pred_fallthru
      _
    // Predicated region
    $region26: #{mca_ed_forward.26} parent=1 // pred_check
      _
    $region27: #{mca_ed_forward.26} parent=1 // pred_check_branch
      %36 = sbr.rel (0) target = $region29
    $region28: #{mca_ed_forward.26} parent=1 // pred_region
      %38 = dma.done [#allocation3], 2048
    $region29: #{mca_ed_forward.26} parent=1 // pred_fallthru
      _
    %v39 = vld [vmem:[%s0] sm:$0xff]
    %v40 = vld [vmem:[%s0 + $0x8] sm:$0xff]
    %v41 = vld [vmem:[#allocation2] sm:$0xff]
    %v42 = vld [vmem:[#allocation2 + $0x8] sm:$0xff]
    %v43 = vld [vmem:[#allocation2 + $0x10] sm:$0xff]
    %v44 = vld [vmem:[#allocation2 + $0x18] sm:$0xff]
    %v45 = vld [vmem:[#allocation2 + $0x20] sm:$0xff]
    %v46 = vld [vmem:[#allocation2 + $0x28] sm:$0xff]
    %v47 = vld [vmem:[#allocation2 + $0x30] sm:$0xff]
    %v48 = vld [vmem:[#allocation2 + $0x38] sm:$0xff]
    %v49 = vld [vmem:[#allocation2 + $0x40] sm:$0xff]
    %v50 = vld [vmem:[#allocation2 + $0x48] sm:$0xff]
    %v51 = vld [vmem:[#allocation2 + $0x50] sm:$0xff]
    %v52 = vld [vmem:[#allocation2 + $0x58] sm:$0xff]
    %v53 = vld [vmem:[#allocation2 + $0x60] sm:$0xff]
    %v54 = vld [vmem:[#allocation2 + $0x68] sm:$0xff]
    %v55 = vld [vmem:[#allocation2 + $0x70] sm:$0xff]
    %v56 = vld [vmem:[#allocation2 + $0x78] sm:$0xff]
    %v57 = vld [vmem:[%s3] sm:$0x1]
    %v59 = vperm.slane %v57, 0
    %61 = vmatpush.msra.mxu0 %v56
    %62 = vmatpush.msra.mxu0 %v55
    %63 = vmatpush.msra.mxu0 %v54
    %64 = vmatpush.msra.mxu0 %v53
    %65 = vmatpush.msra.mxu0 %v52
    %66 = vmatpush.msra.mxu0 %v51
    %67 = vmatpush.msra.mxu0 %v50
    %68 = vmatpush.msra.mxu0 %v49
    %69 = vmatpush.msra.mxu0 %v48
    %70 = vmatpush.msra.mxu0 %v47
    %71 = vmatpush.msra.mxu0 %v46
    %72 = vmatpush.msra.mxu0 %v45
    %73 = vmatpush.msra.mxu0 %v44
    %74 = vmatpush.msra.mxu0 %v43
    %75 = vmatpush.msra.mxu0 %v42
    %76 = vmatpush.msra.mxu0 %v41
    %77 = vmatmul.f32.gmra.mxu0 %v39
    %v78 = vpop.f32.mrf.mxu0
    %v79 = vadd.f32 %v59, %v78
    %80 = vmatmul.f32.gmra.mxu0 %v40
    %v81 = vpop.f32.mrf.mxu0
    %v82 = vadd.f32 %v59, %v81
    %83 = vdwg.mxu0
    %v84 = vld [vmem:[%s1] sm:$0xff]
    %v85 = vld [vmem:[%s1 + $0x8] sm:$0xff]
    %v86 = vadd.f32 %v84, %v79
    %v87 = vadd.f32 %v85, %v82
    %v88 = vld [vmem:[%s4] sm:$0x1]
    %v89 = vld [vmem:[%s5] sm:$0x1]
    %90 = vadd.xlane.f32.xlu0 %v86
    %v91 = vpop.xlane.xlu0 %90
    %92 = vadd.xlane.f32.xlu0 %v87
    %v93 = vpop.xlane.xlu0 %92
    %v94 = vrcp.pop 128.0
    %v95 = vmul.f32 128.0, %v94
    %v96 = vsub.f32 1.0, %v95
    %v97 = vmul.f32 %v94, %v96
    %v98 = vadd.f32 %v94, %v97
    %vm99 = vweird.f32 %v94
    %v100 = vsel %vm99, %v94, %v98
    %v101 = vmul.f32 %v91, %v100
    %v102 = vmul.f32 %v93, %v100
    %v103 = vsub.f32 %v86, %v101
    %v104 = vsub.f32 %v87, %v102
    %v105 = vmul.f32 %v103, %v103
    %v106 = vmul.f32 %v104, %v104
    %107 = vadd.xlane.f32.xlu0 %v105
    %v108 = vpop.xlane.xlu0 %107
    %109 = vadd.xlane.f32.xlu0 %v106
    %v110 = vpop.xlane.xlu0 %109
    %v111 = vmul.f32 %v108, 0.007874016
    %v112 = vmul.f32 %v110, 0.007874016
    %v113 = vrsqrt.pop %v111
    %v114 = vmul.f32 %v113, %v111
    %v115 = vmul.f32 %v114, %v113
    %v116 = vmul.f32 0.5, %v115
    %v117 = vsub.f32 1.5, %v116
    %v118 = vmul.f32 %v113, %v117
    %v119 = vmul.f32 %v111, %v118
    %vm120 = vcmp.eq.f32.partialorder %v111, inf
    %v121 = vsel %vm120, %v111, %v119
    %vm122 = vcmp.eq.f32.partialorder %v111, 0.0
    %v123 = vand.u32 %v111, 2147483648
    %v124 = vsel %vm122, %v123, %v121
    %v125 = vrsqrt.pop %v112
    %v126 = vmul.f32 %v125, %v112
    %v127 = vmul.f32 %v126, %v125
    %v128 = vmul.f32 0.5, %v127
    %v129 = vsub.f32 1.5, %v128
    %v130 = vmul.f32 %v125, %v129
    %v131 = vmul.f32 %v112, %v130
    %vm132 = vcmp.eq.f32.partialorder %v112, inf
    %v133 = vsel %vm132, %v112, %v131
    %vm134 = vcmp.eq.f32.partialorder %v112, 0.0
    %v135 = vand.u32 %v112, 2147483648
    %v136 = vsel %vm134, %v135, %v133
    %v137 = vadd.f32 %v124, 1e-06
    %v138 = vadd.f32 %v136, 1e-06
    %v139 = vrcp.pop %v137
    %v140 = vrcp.pop %v138
    %v142 = vperm.slane %v88, 0
    %v144 = vmul.f32 %v142, %v103
    %v145 = vmul.f32 %v142, %v104
    %v146 = vmul.f32 %v144, %v139
    %v147 = vmul.f32 %v145, %v140
    %v149 = vperm.slane %v89, 0
    %v151 = vadd.f32 %v146, %v149
    %v152 = vadd.f32 %v147, %v149
    %153 = vst [vmem:[%s6] sm:$0xff] %v151
    %154 = vst [vmem:[%s6 + $0x8] sm:$0xff] %v152
    // Predicated region
    $region30: #{mca_ed_forward.26} parent=1 // pred_check
      _
    $region31: #{mca_ed_forward.26} parent=1 // pred_check_branch
      %156 = sbr.rel (0) target = $region33
    $region32: #{mca_ed_forward.26} parent=1 // pred_region
      _
    $region33: #{mca_ed_forward.26} parent=1 // pred_fallthru
      _
    // Predicated region
    $region34: #{mca_ed_forward.26} parent=1 // pred_check
      _
    $region35: #{mca_ed_forward.26} parent=1 // pred_check_branch
      %158 = sbr.rel (0) target = $region37
    $region36: #{mca_ed_forward.26} parent=1 // pred_region
      _
    $region37: #{mca_ed_forward.26} parent=1 // pred_fallthru
      _
    %159 = vsyncpa [#allocation3], 1

// kernel: mca_ed_forward.27
$region0: #{mca_ed_forward.27}
  #allocation0 [shape = 'u32[]', space=smem, size = 0x4, offset = 0x4, fixed_abs, tag = 'smem constant byte address 0x4 - core index']
  #allocation1 [shape = 'u32[72,128]{1,0:T(1,128)}', space=vmem, size = 0x9000, scoped, tag = 'internal scratch']
  %s0 = inlined_call_operand.vmem [shape: f32[16,128], index: 0, kind: input, shape index: {}]
  %s1 = inlined_call_operand.hbm [shape: f32[128,512], index: 1, kind: input, shape index: {}]
  %s2 = inlined_call_operand.vmem [shape: f32[1,512], index: 2, kind: input, shape index: {}]
  %s3 = inlined_call_operand.hbm [shape: f32[512,128], index: 3, kind: input, shape index: {}]
  %s4 = inlined_call_operand.vmem [shape: f32[1,128], index: 4, kind: input, shape index: {}]
  %s5 = inlined_call_operand.vmem [shape: f32[1,128], index: 5, kind: input, shape index: {}]
  %s6 = inlined_call_operand.vmem [shape: f32[1,128], index: 6, kind: input, shape index: {}]
  %s7 = inlined_call_operand.vmem [shape: f32[16,128], index: 7, kind: output, shape index: {}]
  %s8 = sld [smem:[#allocation0]]
  $region46: #{mca_ed_forward.27} parent=0
    _
  %s10 = ssub.s32 1, %s8
  %s11 = scalar_select 0, %s10, %s8
  $region1: #{mca_ed_forward.27} parent=0
    #allocation2 [shape = 'u8[262144]{0}', space=vmem, size = 0x40000, scoped, tag = 'input window, operand 1, single buffered']
    #allocation3 [shape = 's32[1]{0}', space=sflag, size = 0x4, scoped, tag = 'scoped memory for mca_ed_forward.27']
    #allocation4 [shape = 'u8[262144]{0}', space=vmem, size = 0x40000, scoped, tag = 'input window, operand 3, single buffered']
    #allocation5 [shape = 's32[1]{0}', space=sflag, size = 0x4, scoped, tag = 'scoped memory for mca_ed_forward.27']
    %12 = vsyncpa [#allocation3], 0
    %13 = vsyncpa [#allocation5], 0
    // Predicated region
    $region2: #{mca_ed_forward.27} parent=1 // pred_check
      _
    $region3: #{mca_ed_forward.27} parent=1 // pred_check_branch
      %15 = sbr.rel (0) target = $region5
    $region4: #{mca_ed_forward.27} parent=1 // pred_region
      _
    $region5: #{mca_ed_forward.27} parent=1 // pred_fallthru
      _
    // Predicated region
    $region6: #{mca_ed_forward.27} parent=1 // pred_check
      _
    $region7: #{mca_ed_forward.27} parent=1 // pred_check_branch
      %17 = sbr.rel (0) target = $region9
    $region8: #{mca_ed_forward.27} parent=1 // pred_region
      %19 = vsyncadd [#allocation3], 0
      %s20 = sshll.u32 %s1, 4
      %s21 = int_to_ptr.hbm [resolvable:$true] %s20
      %s22 = sshll.u32 [#allocation2], 4
      %s23 = int_to_ptr.vmem [resolvable:$true] %s22
      %28 = dma.hbm_to_vmem [thread:$0]  %s21, 8192, %s23, [#allocation3], 512, 512, 32
    $region9: #{mca_ed_forward.27} parent=1 // pred_fallthru
      _
    // Predicated region
    $region10: #{mca_ed_forward.27} parent=1 // pred_check
      _
    $region11: #{mca_ed_forward.27} parent=1 // pred_check_branch
      %30 = sbr.rel (0) target = $region13
    $region12: #{mca_ed_forward.27} parent=1 // pred_region
      _
    $region13: #{mca_ed_forward.27} parent=1 // pred_fallthru
      _
    // Predicated region
    $region14: #{mca_ed_forward.27} parent=1 // pred_check
      _
    $region15: #{mca_ed_forward.27} parent=1 // pred_check_branch
      %32 = sbr.rel (0) target = $region17
    $region16: #{mca_ed_forward.27} parent=1 // pred_region
      %34 = vsyncadd [#allocation5], 0
      %s35 = sshll.u32 %s3, 4
      %s36 = int_to_ptr.hbm [resolvable:$true] %s35
      %s37 = sshll.u32 [#allocation4], 4
      %s38 = int_to_ptr.vmem [resolvable:$true] %s37
      %43 = dma.hbm_to_vmem [thread:$0]  %s36, 8192, %s38, [#allocation5], 128, 128, 8
    $region17: #{mca_ed_forward.27} parent=1 // pred_fallthru
      _
    // Predicated region
    $region18: #{mca_ed_forward.27} parent=1 // pred_check
      _
    $region19: #{mca_ed_forward.27} parent=1 // pred_check_branch
      %45 = sbr.rel (0) target = $region21
    $region20: #{mca_ed_forward.27} parent=1 // pred_region
      _
    $region21: #{mca_ed_forward.27} parent=1 // pred_fallthru
      _
    // Predicated region
    $region22: #{mca_ed_forward.27} parent=1 // pred_check
      _
    $region23: #{mca_ed_forward.27} parent=1 // pred_check_branch
      %47 = sbr.rel (0) target = $region25
    $region24: #{mca_ed_forward.27} parent=1 // pred_region
      _
    $region25: #{mca_ed_forward.27} parent=1 // pred_fallthru
      _
    // Predicated region
    $region26: #{mca_ed_forward.27} parent=1 // pred_check
      _
    $region27: #{mca_ed_forward.27} parent=1 // pred_check_branch
      %49 = sbr.rel (0) target = $region29
    $region28: #{mca_ed_forward.27} parent=1 // pred_region
      _
    $region29: #{mca_ed_forward.27} parent=1 // pred_fallthru
      _
    // Predicated region
    $region30: #{mca_ed_forward.27} parent=1 // pred_check
      _
    $region31: #{mca_ed_forward.27} parent=1 // pred_check_branch
      %51 = sbr.rel (0) target = $region33
    $region32: #{mca_ed_forward.27} parent=1 // pred_region
      %53 = dma.done [#allocation3], 8192
    $region33: #{mca_ed_forward.27} parent=1 // pred_fallthru
      _
    // Predicated region
    $region34: #{mca_ed_forward.27} parent=1 // pred_check
      _
    $region35: #{mca_ed_forward.27} parent=1 // pred_check_branch
      %55 = sbr.rel (0) target = $region37
    $region36: #{mca_ed_forward.27} parent=1 // pred_region
      %57 = dma.done [#allocation5], 8192
    $region37: #{mca_ed_forward.27} parent=1 // pred_fallthru
      _
    %v58 = vld [vmem:[%s0] sm:$0xff]
    %v59 = vld [vmem:[%s0 + $0x8] sm:$0xff]
    %v60 = vld [vmem:[#allocation2] sm:$0xff]
    %v61 = vld [vmem:[#allocation2 + $0x8] sm:$0xff]
    %v62 = vld [vmem:[#allocation2 + $0x10] sm:$0xff]
    %v63 = vld [vmem:[#allocation2 + $0x18] sm:$0xff]
    %v64 = vld [vmem:[#allocation2 + $0x20] sm:$0xff]
    %v65 = vld [vmem:[#allocation2 + $0x28] sm:$0xff]
    %v66 = vld [vmem:[#allocation2 + $0x30] sm:$0xff]
    %v67 = vld [vmem:[#allocation2 + $0x38] sm:$0xff]
    %v68 = vld [vmem:[#allocation2 + $0x40] sm:$0xff]
    %v69 = vld [vmem:[#allocation2 + $0x48] sm:$0xff]
    %v70 = vld [vmem:[#allocation2 + $0x50] sm:$0xff]
    %v71 = vld [vmem:[#allocation2 + $0x58] sm:$0xff]
    %v72 = vld [vmem:[#allocation2 + $0x60] sm:$0xff]
    %v73 = vld [vmem:[#allocation2 + $0x68] sm:$0xff]
    %v74 = vld [vmem:[#allocation2 + $0x70] sm:$0xff]
    %v75 = vld [vmem:[#allocation2 + $0x78] sm:$0xff]
    %v76 = vld [vmem:[#allocation2 + $0x80] sm:$0xff]
    %v77 = vld [vmem:[#allocation2 + $0x88] sm:$0xff]
    %v78 = vld [vmem:[#allocation2 + $0x90] sm:$0xff]
    %v79 = vld [vmem:[#allocation2 + $0x98] sm:$0xff]
    %v80 = vld [vmem:[#allocation2 + $0xa0] sm:$0xff]
    %v81 = vld [vmem:[#allocation2 + $0xa8] sm:$0xff]
    %v82 = vld [vmem:[#allocation2 + $0xb0] sm:$0xff]
    %v83 = vld [vmem:[#allocation2 + $0xb8] sm:$0xff]
    %v84 = vld [vmem:[#allocation2 + $0xc0] sm:$0xff]
    %v85 = vld [vmem:[#allocation2 + $0xc8] sm:$0xff]
    %v86 = vld [vmem:[#allocation2 + $0xd0] sm:$0xff]
    %v87 = vld [vmem:[#allocation2 + $0xd8] sm:$0xff]
    %v88 = vld [vmem:[#allocation2 + $0xe0] sm:$0xff]
    %v89 = vld [vmem:[#allocation2 + $0xe8] sm:$0xff]
    %v90 = vld [vmem:[#allocation2 + $0xf0] sm:$0xff]
    %v91 = vld [vmem:[#allocation2 + $0xf8] sm:$0xff]
    %v92 = vld [vmem:[#allocation2 + $0x100] sm:$0xff]
    %v93 = vld [vmem:[#allocation2 + $0x108] sm:$0xff]
    %v94 = vld [vmem:[#allocation2 + $0x110] sm:$0xff]
    %v95 = vld [vmem:[#allocation2 + $0x118] sm:$0xff]
    %v96 = vld [vmem:[#allocation2 + $0x120] sm:$0xff]
    %v97 = vld [vmem:[#allocation2 + $0x128] sm:$0xff]
    %v98 = vld [vmem:[#allocation2 + $0x130] sm:$0xff]
    %v99 = vld [vmem:[#allocation2 + $0x138] sm:$0xff]
    %v100 = vld [vmem:[#allocation2 + $0x140] sm:$0xff]
    %v101 = vld [vmem:[#allocation2 + $0x148] sm:$0xff]
    %v102 = vld [vmem:[#allocation2 + $0x150] sm:$0xff]
    %v103 = vld [vmem:[#allocation2 + $0x158] sm:$0xff]
    %v104 = vld [vmem:[#allocation2 + $0x160] sm:$0xff]
    %v105 = vld [vmem:[#allocation2 + $0x168] sm:$0xff]
    %v106 = vld [vmem:[#allocation2 + $0x170] sm:$0xff]
    %v107 = vld [vmem:[#allocation2 + $0x178] sm:$0xff]
    %v108 = vld [vmem:[#allocation2 + $0x180] sm:$0xff]
    %v109 = vld [vmem:[#allocation2 + $0x188] sm:$0xff]
    %v110 = vld [vmem:[#allocation2 + $0x190] sm:$0xff]
    %v111 = vld [vmem:[#allocation2 + $0x198] sm:$0xff]
    %v112 = vld [vmem:[#allocation2 + $0x1a0] sm:$0xff]
    %v113 = vld [vmem:[#allocation2 + $0x1a8] sm:$0xff]
    %v114 = vld [vmem:[#allocation2 + $0x1b0] sm:$0xff]
    %v115 = vld [vmem:[#allocation2 + $0x1b8] sm:$0xff]
    %v116 = vld [vmem:[#allocation2 + $0x1c0] sm:$0xff]
    %v117 = vld [vmem:[#allocation2 + $0x1c8] sm:$0xff]
    %v118 = vld [vmem:[#allocation2 + $0x1d0] sm:$0xff]
    %v119 = vld [vmem:[#allocation2 + $0x1d8] sm:$0xff]
    %v120 = vld [vmem:[#allocation2 + $0x1e0] sm:$0xff]
    %v121 = vld [vmem:[#allocation2 + $0x1e8] sm:$0xff]
    %v122 = vld [vmem:[#allocation2 + $0x1f0] sm:$0xff]
    %v123 = vld [vmem:[#allocation2 + $0x1f8] sm:$0xff]
    %v124 = vld [vmem:[%s2] sm:$0xf]
    %v126 = vperm.slane %v124, 0
    %v127 = vperm.slane %v124, 1
    %v128 = vperm.slane %v124, 2
    %v129 = vperm.slane %v124, 3
    %134 = vmatpush.msra.mxu0 %v120
    %135 = vmatpush.msra.mxu0 %v116
    %136 = vmatpush.msra.mxu0 %v112
    %137 = vmatpush.msra.mxu0 %v108
    %138 = vmatpush.msra.mxu0 %v104
    %139 = vmatpush.msra.mxu0 %v100
    %140 = vmatpush.msra.mxu0 %v96
    %141 = vmatpush.msra.mxu0 %v92
    %142 = vmatpush.msra.mxu0 %v88
    %143 = vmatpush.msra.mxu0 %v84
    %144 = vmatpush.msra.mxu0 %v80
    %145 = vmatpush.msra.mxu0 %v76
    %146 = vmatpush.msra.mxu0 %v72
    %147 = vmatpush.msra.mxu0 %v68
    %148 = vmatpush.msra.mxu0 %v64
    %149 = vmatpush.msra.mxu0 %v60
    %150 = vmatmul.f32.gmra.mxu0 %v58
    %v151 = vpop.f32.mrf.mxu0
    %v152 = vadd.f32 %v126, %v151
    %153 = vmatmul.f32.gmra.mxu0 %v59
    %v154 = vpop.f32.mrf.mxu0
    %v155 = vadd.f32 %v126, %v154
    %156 = vdwg.mxu0
    %157 = vmatpush.msra.mxu0 %v121
    %158 = vmatpush.msra.mxu0 %v117
    %159 = vmatpush.msra.mxu0 %v113
    %160 = vmatpush.msra.mxu0 %v109
    %161 = vmatpush.msra.mxu0 %v105
    %162 = vmatpush.msra.mxu0 %v101
    %163 = vmatpush.msra.mxu0 %v97
    %164 = vmatpush.msra.mxu0 %v93
    %165 = vmatpush.msra.mxu0 %v89
    %166 = vmatpush.msra.mxu0 %v85
    %167 = vmatpush.msra.mxu0 %v81
    %168 = vmatpush.msra.mxu0 %v77
    %169 = vmatpush.msra.mxu0 %v73
    %170 = vmatpush.msra.mxu0 %v69
    %171 = vmatpush.msra.mxu0 %v65
    %172 = vmatpush.msra.mxu0 %v61
    %173 = vmatmul.f32.gmra.mxu0 %v58
    %v174 = vpop.f32.mrf.mxu0
    %v175 = vadd.f32 %v127, %v174
    %176 = vmatmul.f32.gmra.mxu0 %v59
    %v177 = vpop.f32.mrf.mxu0
    %v178 = vadd.f32 %v127, %v177
    %179 = vdwg.mxu0
    %180 = vmatpush.msra.mxu0 %v122
    %181 = vmatpush.msra.mxu0 %v118
    %182 = vmatpush.msra.mxu0 %v114
    %183 = vmatpush.msra.mxu0 %v110
    %184 = vmatpush.msra.mxu0 %v106
    %185 = vmatpush.msra.mxu0 %v102
    %186 = vmatpush.msra.mxu0 %v98
    %187 = vmatpush.msra.mxu0 %v94
    %188 = vmatpush.msra.mxu0 %v90
    %189 = vmatpush.msra.mxu0 %v86
    %190 = vmatpush.msra.mxu0 %v82
    %191 = vmatpush.msra.mxu0 %v78
    %192 = vmatpush.msra.mxu0 %v74
    %193 = vmatpush.msra.mxu0 %v70
    %194 = vmatpush.msra.mxu0 %v66
    %195 = vmatpush.msra.mxu0 %v62
    %196 = vmatmul.f32.gmra.mxu0 %v58
    %v197 = vpop.f32.mrf.mxu0
    %v198 = vadd.f32 %v128, %v197
    %199 = vmatmul.f32.gmra.mxu0 %v59
    %v200 = vpop.f32.mrf.mxu0
    %v201 = vadd.f32 %v128, %v200
    %202 = vdwg.mxu0
    %203 = vmatpush.msra.mxu0 %v123
    %204 = vmatpush.msra.mxu0 %v119
    %205 = vmatpush.msra.mxu0 %v115
    %206 = vmatpush.msra.mxu0 %v111
    %207 = vmatpush.msra.mxu0 %v107
    %208 = vmatpush.msra.mxu0 %v103
    %209 = vmatpush.msra.mxu0 %v99
    %210 = vmatpush.msra.mxu0 %v95
    %211 = vmatpush.msra.mxu0 %v91
    %212 = vmatpush.msra.mxu0 %v87
    %213 = vmatpush.msra.mxu0 %v83
    %214 = vmatpush.msra.mxu0 %v79
    %215 = vmatpush.msra.mxu0 %v75
    %216 = vmatpush.msra.mxu0 %v71
    %217 = vmatpush.msra.mxu0 %v67
    %218 = vmatpush.msra.mxu0 %v63
    %219 = vmatmul.f32.gmra.mxu0 %v58
    %v220 = vpop.f32.mrf.mxu0
    %v221 = vadd.f32 %v129, %v220
    %222 = vmatmul.f32.gmra.mxu0 %v59
    %v223 = vpop.f32.mrf.mxu0
    %v224 = vadd.f32 %v129, %v223
    %225 = vdwg.mxu0
    %v226 = vmax.f32 %v152, 0.0
    %v227 = vmax.f32 %v175, 0.0
    %v228 = vmax.f32 %v198, 0.0
    %v229 = vmax.f32 %v221, 0.0
    %v230 = vmax.f32 %v155, 0.0
    %v231 = vmax.f32 %v178, 0.0
    %v232 = vmax.f32 %v201, 0.0
    %v233 = vmax.f32 %v224, 0.0
    %v234 = vld [vmem:[#allocation4] sm:$0xff]
    %v235 = vld [vmem:[#allocation4 + $0x8] sm:$0xff]
    %v236 = vld [vmem:[#allocation4 + $0x10] sm:$0xff]
    %v237 = vld [vmem:[#allocation4 + $0x18] sm:$0xff]
    %v238 = vld [vmem:[#allocation4 + $0x20] sm:$0xff]
    %v239 = vld [vmem:[#allocation4 + $0x28] sm:$0xff]
    %v240 = vld [vmem:[#allocation4 + $0x30] sm:$0xff]
    %v241 = vld [vmem:[#allocation4 + $0x38] sm:$0xff]
    %v242 = vld [vmem:[#allocation4 + $0x40] sm:$0xff]
    %v243 = vld [vmem:[#allocation4 + $0x48] sm:$0xff]
    %v244 = vld [vmem:[#allocation4 + $0x50] sm:$0xff]
    %v245 = vld [vmem:[#allocation4 + $0x58] sm:$0xff]
    %v246 = vld [vmem:[#allocation4 + $0x60] sm:$0xff]
    %v247 = vld [vmem:[#allocation4 + $0x68] sm:$0xff]
    %v248 = vld [vmem:[#allocation4 + $0x70] sm:$0xff]
    %v249 = vld [vmem:[#allocation4 + $0x78] sm:$0xff]
    %v250 = vld [vmem:[#allocation4 + $0x80] sm:$0xff]
    %v251 = vld [vmem:[#allocation4 + $0x88] sm:$0xff]
    %v252 = vld [vmem:[#allocation4 + $0x90] sm:$0xff]
    %v253 = vld [vmem:[#allocation4 + $0x98] sm:$0xff]
    %v254 = vld [vmem:[#allocation4 + $0xa0] sm:$0xff]
    %v255 = vld [vmem:[#allocation4 + $0xa8] sm:$0xff]
    %v256 = vld [vmem:[#allocation4 + $0xb0] sm:$0xff]
    %v257 = vld [vmem:[#allocation4 + $0xb8] sm:$0xff]
    %v258 = vld [vmem:[#allocation4 + $0xc0] sm:$0xff]
    %v259 = vld [vmem:[#allocation4 + $0xc8] sm:$0xff]
    %v260 = vld [vmem:[#allocation4 + $0xd0] sm:$0xff]
    %v261 = vld [vmem:[#allocation4 + $0xd8] sm:$0xff]
    %v262 = vld [vmem:[#allocation4 + $0xe0] sm:$0xff]
    %v263 = vld [vmem:[#allocation4 + $0xe8] sm:$0xff]
    %v264 = vld [vmem:[#allocation4 + $0xf0] sm:$0xff]
    %v265 = vld [vmem:[#allocation4 + $0xf8] sm:$0xff]
    %v266 = vld [vmem:[#allocation4 + $0x100] sm:$0xff]
    %v267 = vld [vmem:[#allocation4 + $0x108] sm:$0xff]
    %v268 = vld [vmem:[#allocation4 + $0x110] sm:$0xff]
    %v269 = vld [vmem:[#allocation4 + $0x118] sm:$0xff]
    %v270 = vld [vmem:[#allocation4 + $0x120] sm:$0xff]
    %v271 = vld [vmem:[#allocation4 + $0x128] sm:$0xff]
    %v272 = vld [vmem:[#allocation4 + $0x130] sm:$0xff]
    %v273 = vld [vmem:[#allocation4 + $0x138] sm:$0xff]
    %v274 = vld [vmem:[#allocation4 + $0x140] sm:$0xff]
    %v275 = vld [vmem:[#allocation4 + $0x148] sm:$0xff]
    %v276 = vld [vmem:[#allocation4 + $0x150] sm:$0xff]
    %v277 = vld [vmem:[#allocation4 + $0x158] sm:$0xff]
    %v278 = vld [vmem:[#allocation4 + $0x160] sm:$0xff]
    %v279 = vld [vmem:[#allocation4 + $0x168] sm:$0xff]
    %v280 = vld [vmem:[#allocation4 + $0x170] sm:$0xff]
    %v281 = vld [vmem:[#allocation4 + $0x178] sm:$0xff]
    %v282 = vld [vmem:[#allocation4 + $0x180] sm:$0xff]
    %v283 = vld [vmem:[#allocation4 + $0x188] sm:$0xff]
    %v284 = vld [vmem:[#allocation4 + $0x190] sm:$0xff]
    %v285 = vld [vmem:[#allocation4 + $0x198] sm:$0xff]
    %v286 = vld [vmem:[#allocation4 + $0x1a0] sm:$0xff]
    %v287 = vld [vmem:[#allocation4 + $0x1a8] sm:$0xff]
    %v288 = vld [vmem:[#allocation4 + $0x1b0] sm:$0xff]
    %v289 = vld [vmem:[#allocation4 + $0x1b8] sm:$0xff]
    %v290 = vld [vmem:[#allocation4 + $0x1c0] sm:$0xff]
    %v291 = vld [vmem:[#allocation4 + $0x1c8] sm:$0xff]
    %v292 = vld [vmem:[#allocation4 + $0x1d0] sm:$0xff]
    %v293 = vld [vmem:[#allocation4 + $0x1d8] sm:$0xff]
    %v294 = vld [vmem:[#allocation4 + $0x1e0] sm:$0xff]
    %v295 = vld [vmem:[#allocation4 + $0x1e8] sm:$0xff]
    %v296 = vld [vmem:[#allocation4 + $0x1f0] sm:$0xff]
    %v297 = vld [vmem:[#allocation4 + $0x1f8] sm:$0xff]
    %v298 = vld [vmem:[%s4] sm:$0x1]
    %v300 = vperm.slane %v298, 0
    %302 = vmatpush.msra.mxu0 %v249
    %303 = vmatpush.msra.mxu0 %v248
    %304 = vmatpush.msra.mxu0 %v247
    %305 = vmatpush.msra.mxu0 %v246
    %306 = vmatpush.msra.mxu0 %v245
    %307 = vmatpush.msra.mxu0 %v244
    %308 = vmatpush.msra.mxu0 %v243
    %309 = vmatpush.msra.mxu0 %v242
    %310 = vmatpush.msra.mxu0 %v241
    %311 = vmatpush.msra.mxu0 %v240
    %312 = vmatpush.msra.mxu0 %v239
    %313 = vmatpush.msra.mxu0 %v238
    %314 = vmatpush.msra.mxu0 %v237
    %315 = vmatpush.msra.mxu0 %v236
    %316 = vmatpush.msra.mxu0 %v235
    %317 = vmatpush.msra.mxu0 %v234
    %318 = vmatmul.f32.gmra.mxu0 %v226
    %v319 = vpop.f32.mrf.mxu0
    %v320 = vadd.f32 %v300, %v319
    %321 = vmatmul.f32.gmra.mxu0 %v230
    %v322 = vpop.f32.mrf.mxu0
    %v323 = vadd.f32 %v300, %v322
    %324 = vdwg.mxu0
    %325 = vmatpush.msra.mxu0 %v265
    %326 = vmatpush.msra.mxu0 %v264
    %327 = vmatpush.msra.mxu0 %v263
    %328 = vmatpush.msra.mxu0 %v262
    %329 = vmatpush.msra.mxu0 %v261
    %330 = vmatpush.msra.mxu0 %v260
    %331 = vmatpush.msra.mxu0 %v259
    %332 = vmatpush.msra.mxu0 %v258
    %333 = vmatpush.msra.mxu0 %v257
    %334 = vmatpush.msra.mxu0 %v256
    %335 = vmatpush.msra.mxu0 %v255
    %336 = vmatpush.msra.mxu0 %v254
    %337 = vmatpush.msra.mxu0 %v253
    %338 = vmatpush.msra.mxu0 %v252
    %339 = vmatpush.msra.mxu0 %v251
    %340 = vmatpush.msra.mxu0 %v250
    %341 = vmatmul.f32.gmra.mxu0 %v227
    %v342 = vpop.f32.mrf.mxu0
    %v343 = vadd.f32 %v320, %v342
    %344 = vmatmul.f32.gmra.mxu0 %v231
    %v345 = vpop.f32.mrf.mxu0
    %v346 = vadd.f32 %v323, %v345
    %347 = vdwg.mxu0
    %348 = vmatpush.msra.mxu0 %v281
    %349 = vmatpush.msra.mxu0 %v280
    %350 = vmatpush.msra.mxu0 %v279
    %351 = vmatpush.msra.mxu0 %v278
    %352 = vmatpush.msra.mxu0 %v277
    %353 = vmatpush.msra.mxu0 %v276
    %354 = vmatpush.msra.mxu0 %v275
    %355 = vmatpush.msra.mxu0 %v274
    %356 = vmatpush.msra.mxu0 %v273
    %357 = vmatpush.msra.mxu0 %v272
    %358 = vmatpush.msra.mxu0 %v271
    %359 = vmatpush.msra.mxu0 %v270
    %360 = vmatpush.msra.mxu0 %v269
    %361 = vmatpush.msra.mxu0 %v268
    %362 = vmatpush.msra.mxu0 %v267
    %363 = vmatpush.msra.mxu0 %v266
    %364 = vmatmul.f32.gmra.mxu0 %v228
    %v365 = vpop.f32.mrf.mxu0
    %v366 = vadd.f32 %v343, %v365
    %367 = vmatmul.f32.gmra.mxu0 %v232
    %v368 = vpop.f32.mrf.mxu0
    %v369 = vadd.f32 %v346, %v368
    %370 = vdwg.mxu0
    %371 = vmatpush.msra.mxu0 %v297
    %372 = vmatpush.msra.mxu0 %v296
    %373 = vmatpush.msra.mxu0 %v295
    %374 = vmatpush.msra.mxu0 %v294
    %375 = vmatpush.msra.mxu0 %v293
    %376 = vmatpush.msra.mxu0 %v292
    %377 = vmatpush.msra.mxu0 %v291
    %378 = vmatpush.msra.mxu0 %v290
    %379 = vmatpush.msra.mxu0 %v289
    %380 = vmatpush.msra.mxu0 %v288
    %381 = vmatpush.msra.mxu0 %v287
    %382 = vmatpush.msra.mxu0 %v286
    %383 = vmatpush.msra.mxu0 %v285
    %384 = vmatpush.msra.mxu0 %v284
    %385 = vmatpush.msra.mxu0 %v283
    %386 = vmatpush.msra.mxu0 %v282
    %387 = vmatmul.f32.gmra.mxu0 %v229
    %v388 = vpop.f32.mrf.mxu0
    %v389 = vadd.f32 %v366, %v388
    %390 = vmatmul.f32.gmra.mxu0 %v233
    %v391 = vpop.f32.mrf.mxu0
    %v392 = vadd.f32 %v369, %v391
    %393 = vdwg.mxu0
    %v394 = vadd.f32 %v58, %v389
    %v395 = vadd.f32 %v59, %v392
    %v396 = vld [vmem:[%s5] sm:$0x1]
    %v397 = vld [vmem:[%s6] sm:$0x1]
    %398 = vadd.xlane.f32.xlu0 %v394
    %v399 = vpop.xlane.xlu0 %398
    %400 = vadd.xlane.f32.xlu0 %v395
    %v401 = vpop.xlane.xlu0 %400
    %v402 = vrcp.pop 128.0
    %v403 = vmul.f32 128.0, %v402
    %v404 = vsub.f32 1.0, %v403
    %v405 = vmul.f32 %v402, %v404
    %v406 = vadd.f32 %v402, %v405
    %vm407 = vweird.f32 %v402
    %v408 = vsel %vm407, %v402, %v406
    %v409 = vmul.f32 %v399, %v408
    %v410 = vmul.f32 %v401, %v408
    %v411 = vsub.f32 %v394, %v409
    %v412 = vsub.f32 %v395, %v410
    %v413 = vmul.f32 %v411, %v411
    %v414 = vmul.f32 %v412, %v412
    %415 = vadd.xlane.f32.xlu0 %v413
    %v416 = vpop.xlane.xlu0 %415
    %417 = vadd.xlane.f32.xlu0 %v414
    %v418 = vpop.xlane.xlu0 %417
    %v419 = vmul.f32 %v416, 0.007874016
    %v420 = vmul.f32 %v418, 0.007874016
    %v421 = vrsqrt.pop %v419
    %v422 = vmul.f32 %v421, %v419
    %v423 = vmul.f32 %v422, %v421
    %v424 = vmul.f32 0.5, %v423
    %v425 = vsub.f32 1.5, %v424
    %v426 = vmul.f32 %v421, %v425
    %v427 = vmul.f32 %v419, %v426
    %vm428 = vcmp.eq.f32.partialorder %v419, inf
    %v429 = vsel %vm428, %v419, %v427
    %vm430 = vcmp.eq.f32.partialorder %v419, 0.0
    %v431 = vand.u32 %v419, 2147483648
    %v432 = vsel %vm430, %v431, %v429
    %v433 = vrsqrt.pop %v420
    %v434 = vmul.f32 %v433, %v420
    %v435 = vmul.f32 %v434, %v433
    %v436 = vmul.f32 0.5, %v435
    %v437 = vsub.f32 1.5, %v436
    %v438 = vmul.f32 %v433, %v437
    %v439 = vmul.f32 %v420, %v438
    %vm440 = vcmp.eq.f32.partialorder %v420, inf
    %v441 = vsel %vm440, %v420, %v439
    %vm442 = vcmp.eq.f32.partialorder %v420, 0.0
    %v443 = vand.u32 %v420, 2147483648
    %v444 = vsel %vm442, %v443, %v441
    %v445 = vadd.f32 %v432, 1e-06
    %v446 = vadd.f32 %v444, 1e-06
    %v447 = vrcp.pop %v445
    %v448 = vrcp.pop %v446
    %v450 = vperm.slane %v396, 0
    %v452 = vmul.f32 %v450, %v411
    %v453 = vmul.f32 %v450, %v412
    %v454 = vmul.f32 %v452, %v447
    %v455 = vmul.f32 %v453, %v448
    %v457 = vperm.slane %v397, 0
    %v459 = vadd.f32 %v454, %v457
    %v460 = vadd.f32 %v455, %v457
    %461 = vst [vmem:[%s7] sm:$0xff] %v459
    %462 = vst [vmem:[%s7 + $0x8] sm:$0xff] %v460
    // Predicated region
    $region38: #{mca_ed_forward.27} parent=1 // pred_check
      _
    $region39: #{mca_ed_forward.27} parent=1 // pred_check_branch
      %464 = sbr.rel (0) target = $region41
    $region40: #{mca_ed_forward.27} parent=1 // pred_region
      _
    $region41: #{mca_ed_forward.27} parent=1 // pred_fallthru
      _
    // Predicated region
    $region42: #{mca_ed_forward.27} parent=1 // pred_check
      _
    $region43: #{mca_ed_forward.27} parent=1 // pred_check_branch
      %466 = sbr.rel (0) target = $region45
    $region44: #{mca_ed_forward.27} parent=1 // pred_region
      _
    $region45: #{mca_ed_forward.27} parent=1 // pred_fallthru
      _
    %467 = vsyncpa [#allocation3], 1
    %468 = vsyncpa [#allocation5], 1

// kernel: mca_ed_forward.32
$region0: #{mca_ed_forward.32}
  #allocation0 [shape = 'u32[]', space=smem, size = 0x4, offset = 0x4, fixed_abs, tag = 'smem constant byte address 0x4 - core index']
  #allocation1 [shape = 'u32[72,128]{1,0:T(1,128)}', space=vmem, size = 0x9000, scoped, tag = 'internal scratch']
  %s0 = inlined_call_operand.vmem [shape: f32[32,128], index: 0, kind: input, shape index: {}]
  %s1 = inlined_call_operand.hbm [shape: f32[128,384], index: 1, kind: input, shape index: {}]
  %s2 = inlined_call_operand.vmem [shape: f32[1,384], index: 2, kind: input, shape index: {}]
  %s3 = inlined_call_operand.vmem [shape: f32[32,384], index: 3, kind: output, shape index: {}]
  %s4 = sld [smem:[#allocation0]]
  $region26: #{mca_ed_forward.32} parent=0
    _
  %s6 = ssub.s32 1, %s4
  %s7 = scalar_select 0, %s6, %s4
  $region1: #{mca_ed_forward.32} parent=0
    #allocation2 [shape = 'u8[196608]{0}', space=vmem, size = 0x30000, scoped, tag = 'input window, operand 1, single buffered']
    #allocation3 [shape = 's32[1]{0}', space=sflag, size = 0x4, scoped, tag = 'scoped memory for mca_ed_forward.32']
    %8 = vsyncpa [#allocation3], 0
    // Predicated region
    $region2: #{mca_ed_forward.32} parent=1 // pred_check
      _
    $region3: #{mca_ed_forward.32} parent=1 // pred_check_branch
      %10 = sbr.rel (0) target = $region5
    $region4: #{mca_ed_forward.32} parent=1 // pred_region
      _
    $region5: #{mca_ed_forward.32} parent=1 // pred_fallthru
      _
    // Predicated region
    $region6: #{mca_ed_forward.32} parent=1 // pred_check
      _
    $region7: #{mca_ed_forward.32} parent=1 // pred_check_branch
      %12 = sbr.rel (0) target = $region9
    $region8: #{mca_ed_forward.32} parent=1 // pred_region
      %14 = vsyncadd [#allocation3], 0
      %s15 = sshll.u32 %s1, 4
      %s16 = int_to_ptr.hbm [resolvable:$true] %s15
      %s17 = sshll.u32 [#allocation2], 4
      %s18 = int_to_ptr.vmem [resolvable:$true] %s17
      %23 = dma.hbm_to_vmem [thread:$0]  %s16, 6144, %s18, [#allocation3], 384, 384, 24
    $region9: #{mca_ed_forward.32} parent=1 // pred_fallthru
      _
    // Predicated region
    $region10: #{mca_ed_forward.32} parent=1 // pred_check
      _
    $region11: #{mca_ed_forward.32} parent=1 // pred_check_branch
      %25 = sbr.rel (0) target = $region13
    $region12: #{mca_ed_forward.32} parent=1 // pred_region
      _
    $region13: #{mca_ed_forward.32} parent=1 // pred_fallthru
      _
    // Predicated region
    $region14: #{mca_ed_forward.32} parent=1 // pred_check
      _
    $region15: #{mca_ed_forward.32} parent=1 // pred_check_branch
      %27 = sbr.rel (0) target = $region17
    $region16: #{mca_ed_forward.32} parent=1 // pred_region
      %29 = dma.done [#allocation3], 6144
    $region17: #{mca_ed_forward.32} parent=1 // pred_fallthru
      _
    %v30 = vld [vmem:[%s0] sm:$0xff]
    %v31 = vld [vmem:[%s0 + $0x8] sm:$0xff]
    %v32 = vld [vmem:[%s0 + $0x10] sm:$0xff]
    %v33 = vld [vmem:[%s0 + $0x18] sm:$0xff]
    %v34 = vld [vmem:[#allocation2] sm:$0xff]
    %v35 = vld [vmem:[#allocation2 + $0x8] sm:$0xff]
    %v36 = vld [vmem:[#allocation2 + $0x10] sm:$0xff]
    %v37 = vld [vmem:[#allocation2 + $0x18] sm:$0xff]
    %v38 = vld [vmem:[#allocation2 + $0x20] sm:$0xff]
    %v39 = vld [vmem:[#allocation2 + $0x28] sm:$0xff]
    %v40 = vld [vmem:[#allocation2 + $0x30] sm:$0xff]
    %v41 = vld [vmem:[#allocation2 + $0x38] sm:$0xff]
    %v42 = vld [vmem:[#allocation2 + $0x40] sm:$0xff]
    %v43 = vld [vmem:[#allocation2 + $0x48] sm:$0xff]
    %v44 = vld [vmem:[#allocation2 + $0x50] sm:$0xff]
    %v45 = vld [vmem:[#allocation2 + $0x58] sm:$0xff]
    %v46 = vld [vmem:[#allocation2 + $0x60] sm:$0xff]
    %v47 = vld [vmem:[#allocation2 + $0x68] sm:$0xff]
    %v48 = vld [vmem:[#allocation2 + $0x70] sm:$0xff]
    %v49 = vld [vmem:[#allocation2 + $0x78] sm:$0xff]
    %v50 = vld [vmem:[#allocation2 + $0x80] sm:$0xff]
    %v51 = vld [vmem:[#allocation2 + $0x88] sm:$0xff]
    %v52 = vld [vmem:[#allocation2 + $0x90] sm:$0xff]
    %v53 = vld [vmem:[#allocation2 + $0x98] sm:$0xff]
    %v54 = vld [vmem:[#allocation2 + $0xa0] sm:$0xff]
    %v55 = vld [vmem:[#allocation2 + $0xa8] sm:$0xff]
    %v56 = vld [vmem:[#allocation2 + $0xb0] sm:$0xff]
    %v57 = vld [vmem:[#allocation2 + $0xb8] sm:$0xff]
    %v58 = vld [vmem:[#allocation2 + $0xc0] sm:$0xff]
    %v59 = vld [vmem:[#allocation2 + $0xc8] sm:$0xff]
    %v60 = vld [vmem:[#allocation2 + $0xd0] sm:$0xff]
    %v61 = vld [vmem:[#allocation2 + $0xd8] sm:$0xff]
    %v62 = vld [vmem:[#allocation2 + $0xe0] sm:$0xff]
    %v63 = vld [vmem:[#allocation2 + $0xe8] sm:$0xff]
    %v64 = vld [vmem:[#allocation2 + $0xf0] sm:$0xff]
    %v65 = vld [vmem:[#allocation2 + $0xf8] sm:$0xff]
    %v66 = vld [vmem:[#allocation2 + $0x100] sm:$0xff]
    %v67 = vld [vmem:[#allocation2 + $0x108] sm:$0xff]
    %v68 = vld [vmem:[#allocation2 + $0x110] sm:$0xff]
    %v69 = vld [vmem:[#allocation2 + $0x118] sm:$0xff]
    %v70 = vld [vmem:[#allocation2 + $0x120] sm:$0xff]
    %v71 = vld [vmem:[#allocation2 + $0x128] sm:$0xff]
    %v72 = vld [vmem:[#allocation2 + $0x130] sm:$0xff]
    %v73 = vld [vmem:[#allocation2 + $0x138] sm:$0xff]
    %v74 = vld [vmem:[#allocation2 + $0x140] sm:$0xff]
    %v75 = vld [vmem:[#allocation2 + $0x148] sm:$0xff]
    %v76 = vld [vmem:[#allocation2 + $0x150] sm:$0xff]
    %v77 = vld [vmem:[#allocation2 + $0x158] sm:$0xff]
    %v78 = vld [vmem:[#allocation2 + $0x160] sm:$0xff]
    %v79 = vld [vmem:[#allocation2 + $0x168] sm:$0xff]
    %v80 = vld [vmem:[#allocation2 + $0x170] sm:$0xff]
    %v81 = vld [vmem:[#allocation2 + $0x178] sm:$0xff]
    %v82 = vld [vmem:[%s2] sm:$0x7]
    %v84 = vperm.slane %v82, 0
    %v85 = vperm.slane %v82, 1
    %v86 = vperm.slane %v82, 2
    %90 = vmatpush.msra.mxu0 %v79
    %91 = vmatpush.msra.mxu0 %v76
    %92 = vmatpush.msra.mxu0 %v73
    %93 = vmatpush.msra.mxu0 %v70
    %94 = vmatpush.msra.mxu0 %v67
    %95 = vmatpush.msra.mxu0 %v64
    %96 = vmatpush.msra.mxu0 %v61
    %97 = vmatpush.msra.mxu0 %v58
    %98 = vmatpush.msra.mxu0 %v55
    %99 = vmatpush.msra.mxu0 %v52
    %100 = vmatpush.msra.mxu0 %v49
    %101 = vmatpush.msra.mxu0 %v46
    %102 = vmatpush.msra.mxu0 %v43
    %103 = vmatpush.msra.mxu0 %v40
    %104 = vmatpush.msra.mxu0 %v37
    %105 = vmatpush.msra.mxu0 %v34
    %106 = vmatmul.f32.gmra.mxu0 %v30
    %v107 = vpop.f32.mrf.mxu0
    %v108 = vadd.f32 %v84, %v107
    %109 = vmatmul.f32.gmra.mxu0 %v31
    %v110 = vpop.f32.mrf.mxu0
    %v111 = vadd.f32 %v84, %v110
    %112 = vmatmul.f32.gmra.mxu0 %v32
    %v113 = vpop.f32.mrf.mxu0
    %v114 = vadd.f32 %v84, %v113
    %115 = vmatmul.f32.gmra.mxu0 %v33
    %v116 = vpop.f32.mrf.mxu0
    %v117 = vadd.f32 %v84, %v116
    %118 = vdwg.mxu0
    %119 = vmatpush.msra.mxu0 %v80
    %120 = vmatpush.msra.mxu0 %v77
    %121 = vmatpush.msra.mxu0 %v74
    %122 = vmatpush.msra.mxu0 %v71
    %123 = vmatpush.msra.mxu0 %v68
    %124 = vmatpush.msra.mxu0 %v65
    %125 = vmatpush.msra.mxu0 %v62
    %126 = vmatpush.msra.mxu0 %v59
    %127 = vmatpush.msra.mxu0 %v56
    %128 = vmatpush.msra.mxu0 %v53
    %129 = vmatpush.msra.mxu0 %v50
    %130 = vmatpush.msra.mxu0 %v47
    %131 = vmatpush.msra.mxu0 %v44
    %132 = vmatpush.msra.mxu0 %v41
    %133 = vmatpush.msra.mxu0 %v38
    %134 = vmatpush.msra.mxu0 %v35
    %135 = vmatmul.f32.gmra.mxu0 %v30
    %v136 = vpop.f32.mrf.mxu0
    %v137 = vadd.f32 %v85, %v136
    %138 = vmatmul.f32.gmra.mxu0 %v31
    %v139 = vpop.f32.mrf.mxu0
    %v140 = vadd.f32 %v85, %v139
    %141 = vmatmul.f32.gmra.mxu0 %v32
    %v142 = vpop.f32.mrf.mxu0
    %v143 = vadd.f32 %v85, %v142
    %144 = vmatmul.f32.gmra.mxu0 %v33
    %v145 = vpop.f32.mrf.mxu0
    %v146 = vadd.f32 %v85, %v145
    %147 = vdwg.mxu0
    %148 = vmatpush.msra.mxu0 %v81
    %149 = vmatpush.msra.mxu0 %v78
    %150 = vmatpush.msra.mxu0 %v75
    %151 = vmatpush.msra.mxu0 %v72
    %152 = vmatpush.msra.mxu0 %v69
    %153 = vmatpush.msra.mxu0 %v66
    %154 = vmatpush.msra.mxu0 %v63
    %155 = vmatpush.msra.mxu0 %v60
    %156 = vmatpush.msra.mxu0 %v57
    %157 = vmatpush.msra.mxu0 %v54
    %158 = vmatpush.msra.mxu0 %v51
    %159 = vmatpush.msra.mxu0 %v48
    %160 = vmatpush.msra.mxu0 %v45
    %161 = vmatpush.msra.mxu0 %v42
    %162 = vmatpush.msra.mxu0 %v39
    %163 = vmatpush.msra.mxu0 %v36
    %164 = vmatmul.f32.gmra.mxu0 %v30
    %v165 = vpop.f32.mrf.mxu0
    %v166 = vadd.f32 %v86, %v165
    %167 = vmatmul.f32.gmra.mxu0 %v31
    %v168 = vpop.f32.mrf.mxu0
    %v169 = vadd.f32 %v86, %v168
    %170 = vmatmul.f32.gmra.mxu0 %v32
    %v171 = vpop.f32.mrf.mxu0
    %v172 = vadd.f32 %v86, %v171
    %173 = vmatmul.f32.gmra.mxu0 %v33
    %v174 = vpop.f32.mrf.mxu0
    %v175 = vadd.f32 %v86, %v174
    %176 = vdwg.mxu0
    %177 = vst [vmem:[%s3] sm:$0xff] %v108
    %178 = vst [vmem:[%s3 + $0x8] sm:$0xff] %v137
    %179 = vst [vmem:[%s3 + $0x10] sm:$0xff] %v166
    %180 = vst [vmem:[%s3 + $0x18] sm:$0xff] %v111
    %181 = vst [vmem:[%s3 + $0x20] sm:$0xff] %v140
    %182 = vst [vmem:[%s3 + $0x28] sm:$0xff] %v169
    %183 = vst [vmem:[%s3 + $0x30] sm:$0xff] %v114
    %184 = vst [vmem:[%s3 + $0x38] sm:$0xff] %v143
    %185 = vst [vmem:[%s3 + $0x40] sm:$0xff] %v172
    %186 = vst [vmem:[%s3 + $0x48] sm:$0xff] %v117
    %187 = vst [vmem:[%s3 + $0x50] sm:$0xff] %v146
    %188 = vst [vmem:[%s3 + $0x58] sm:$0xff] %v175
    // Predicated region
    $region18: #{mca_ed_forward.32} parent=1 // pred_check
      _
    $region19: #{mca_ed_forward.32} parent=1 // pred_check_branch
      %190 = sbr.rel (0) target = $region21
    $region20: #{mca_ed_forward.32} parent=1 // pred_region
      _
    $region21: #{mca_ed_forward.32} parent=1 // pred_fallthru
      _
    // Predicated region
    $region22: #{mca_ed_forward.32} parent=1 // pred_check
      _
    $region23: #{mca_ed_forward.32} parent=1 // pred_check_branch
      %192 = sbr.rel (0) target = $region25
    $region24: #{mca_ed_forward.32} parent=1 // pred_region
      _
    $region25: #{mca_ed_forward.32} parent=1 // pred_fallthru
      _
    %193 = vsyncpa [#allocation3], 1

// kernel: mca_ed_forward.36
$region0: #{mca_ed_forward.36}
  #allocation0 [shape = 'u32[]', space=smem, size = 0x4, offset = 0x4, fixed_abs, tag = 'smem constant byte address 0x4 - core index']
  #allocation1 [shape = 'u32[72,128]{1,0:T(1,128)}', space=vmem, size = 0x9000, scoped, tag = 'internal scratch']
  %s0 = inlined_call_operand.vmem [shape: f32[16,128], index: 0, kind: input, shape index: {}]
  %s1 = inlined_call_operand.hbm [shape: f32[128,256], index: 1, kind: input, shape index: {}]
  %s2 = inlined_call_operand.vmem [shape: f32[1,256], index: 2, kind: input, shape index: {}]
  %s3 = inlined_call_operand.vmem [shape: f32[16,256], index: 3, kind: output, shape index: {}]
  %s4 = sld [smem:[#allocation0]]
  $region26: #{mca_ed_forward.36} parent=0
    _
  %s6 = ssub.s32 1, %s4
  %s7 = scalar_select 0, %s6, %s4
  $region1: #{mca_ed_forward.36} parent=0
    #allocation2 [shape = 'u8[131072]{0}', space=vmem, size = 0x20000, scoped, tag = 'input window, operand 1, single buffered']
    #allocation3 [shape = 's32[1]{0}', space=sflag, size = 0x4, scoped, tag = 'scoped memory for mca_ed_forward.36']
    %8 = vsyncpa [#allocation3], 0
    // Predicated region
    $region2: #{mca_ed_forward.36} parent=1 // pred_check
      _
    $region3: #{mca_ed_forward.36} parent=1 // pred_check_branch
      %10 = sbr.rel (0) target = $region5
    $region4: #{mca_ed_forward.36} parent=1 // pred_region
      _
    $region5: #{mca_ed_forward.36} parent=1 // pred_fallthru
      _
    // Predicated region
    $region6: #{mca_ed_forward.36} parent=1 // pred_check
      _
    $region7: #{mca_ed_forward.36} parent=1 // pred_check_branch
      %12 = sbr.rel (0) target = $region9
    $region8: #{mca_ed_forward.36} parent=1 // pred_region
      %14 = vsyncadd [#allocation3], 0
      %s15 = sshll.u32 %s1, 4
      %s16 = int_to_ptr.hbm [resolvable:$true] %s15
      %s17 = sshll.u32 [#allocation2], 4
      %s18 = int_to_ptr.vmem [resolvable:$true] %s17
      %23 = dma.hbm_to_vmem [thread:$0]  %s16, 4096, %s18, [#allocation3], 256, 256, 16
    $region9: #{mca_ed_forward.36} parent=1 // pred_fallthru
      _
    // Predicated region
    $region10: #{mca_ed_forward.36} parent=1 // pred_check
      _
    $region11: #{mca_ed_forward.36} parent=1 // pred_check_branch
      %25 = sbr.rel (0) target = $region13
    $region12: #{mca_ed_forward.36} parent=1 // pred_region
      _
    $region13: #{mca_ed_forward.36} parent=1 // pred_fallthru
      _
    // Predicated region
    $region14: #{mca_ed_forward.36} parent=1 // pred_check
      _
    $region15: #{mca_ed_forward.36} parent=1 // pred_check_branch
      %27 = sbr.rel (0) target = $region17
    $region16: #{mca_ed_forward.36} parent=1 // pred_region
      %29 = dma.done [#allocation3], 4096
    $region17: #{mca_ed_forward.36} parent=1 // pred_fallthru
      _
    %v30 = vld [vmem:[%s0] sm:$0xff]
    %v31 = vld [vmem:[%s0 + $0x8] sm:$0xff]
    %v32 = vld [vmem:[#allocation2] sm:$0xff]
    %v33 = vld [vmem:[#allocation2 + $0x8] sm:$0xff]
    %v34 = vld [vmem:[#allocation2 + $0x10] sm:$0xff]
    %v35 = vld [vmem:[#allocation2 + $0x18] sm:$0xff]
    %v36 = vld [vmem:[#allocation2 + $0x20] sm:$0xff]
    %v37 = vld [vmem:[#allocation2 + $0x28] sm:$0xff]
    %v38 = vld [vmem:[#allocation2 + $0x30] sm:$0xff]
    %v39 = vld [vmem:[#allocation2 + $0x38] sm:$0xff]
    %v40 = vld [vmem:[#allocation2 + $0x40] sm:$0xff]
    %v41 = vld [vmem:[#allocation2 + $0x48] sm:$0xff]
    %v42 = vld [vmem:[#allocation2 + $0x50] sm:$0xff]
    %v43 = vld [vmem:[#allocation2 + $0x58] sm:$0xff]
    %v44 = vld [vmem:[#allocation2 + $0x60] sm:$0xff]
    %v45 = vld [vmem:[#allocation2 + $0x68] sm:$0xff]
    %v46 = vld [vmem:[#allocation2 + $0x70] sm:$0xff]
    %v47 = vld [vmem:[#allocation2 + $0x78] sm:$0xff]
    %v48 = vld [vmem:[#allocation2 + $0x80] sm:$0xff]
    %v49 = vld [vmem:[#allocation2 + $0x88] sm:$0xff]
    %v50 = vld [vmem:[#allocation2 + $0x90] sm:$0xff]
    %v51 = vld [vmem:[#allocation2 + $0x98] sm:$0xff]
    %v52 = vld [vmem:[#allocation2 + $0xa0] sm:$0xff]
    %v53 = vld [vmem:[#allocation2 + $0xa8] sm:$0xff]
    %v54 = vld [vmem:[#allocation2 + $0xb0] sm:$0xff]
    %v55 = vld [vmem:[#allocation2 + $0xb8] sm:$0xff]
    %v56 = vld [vmem:[#allocation2 + $0xc0] sm:$0xff]
    %v57 = vld [vmem:[#allocation2 + $0xc8] sm:$0xff]
    %v58 = vld [vmem:[#allocation2 + $0xd0] sm:$0xff]
    %v59 = vld [vmem:[#allocation2 + $0xd8] sm:$0xff]
    %v60 = vld [vmem:[#allocation2 + $0xe0] sm:$0xff]
    %v61 = vld [vmem:[#allocation2 + $0xe8] sm:$0xff]
    %v62 = vld [vmem:[#allocation2 + $0xf0] sm:$0xff]
    %v63 = vld [vmem:[#allocation2 + $0xf8] sm:$0xff]
    %v64 = vld [vmem:[%s2] sm:$0x3]
    %v66 = vperm.slane %v64, 0
    %v67 = vperm.slane %v64, 1
    %70 = vmatpush.msra.mxu0 %v62
    %71 = vmatpush.msra.mxu0 %v60
    %72 = vmatpush.msra.mxu0 %v58
    %73 = vmatpush.msra.mxu0 %v56
    %74 = vmatpush.msra.mxu0 %v54
    %75 = vmatpush.msra.mxu0 %v52
    %76 = vmatpush.msra.mxu0 %v50
    %77 = vmatpush.msra.mxu0 %v48
    %78 = vmatpush.msra.mxu0 %v46
    %79 = vmatpush.msra.mxu0 %v44
    %80 = vmatpush.msra.mxu0 %v42
    %81 = vmatpush.msra.mxu0 %v40
    %82 = vmatpush.msra.mxu0 %v38
    %83 = vmatpush.msra.mxu0 %v36
    %84 = vmatpush.msra.mxu0 %v34
    %85 = vmatpush.msra.mxu0 %v32
    %86 = vmatmul.f32.gmra.mxu0 %v30
    %v87 = vpop.f32.mrf.mxu0
    %v88 = vadd.f32 %v66, %v87
    %89 = vmatmul.f32.gmra.mxu0 %v31
    %v90 = vpop.f32.mrf.mxu0
    %v91 = vadd.f32 %v66, %v90
    %92 = vdwg.mxu0
    %93 = vmatpush.msra.mxu0 %v63
    %94 = vmatpush.msra.mxu0 %v61
    %95 = vmatpush.msra.mxu0 %v59
    %96 = vmatpush.msra.mxu0 %v57
    %97 = vmatpush.msra.mxu0 %v55
    %98 = vmatpush.msra.mxu0 %v53
    %99 = vmatpush.msra.mxu0 %v51
    %100 = vmatpush.msra.mxu0 %v49
    %101 = vmatpush.msra.mxu0 %v47
    %102 = vmatpush.msra.mxu0 %v45
    %103 = vmatpush.msra.mxu0 %v43
    %104 = vmatpush.msra.mxu0 %v41
    %105 = vmatpush.msra.mxu0 %v39
    %106 = vmatpush.msra.mxu0 %v37
    %107 = vmatpush.msra.mxu0 %v35
    %108 = vmatpush.msra.mxu0 %v33
    %109 = vmatmul.f32.gmra.mxu0 %v30
    %v110 = vpop.f32.mrf.mxu0
    %v111 = vadd.f32 %v67, %v110
    %112 = vmatmul.f32.gmra.mxu0 %v31
    %v113 = vpop.f32.mrf.mxu0
    %v114 = vadd.f32 %v67, %v113
    %115 = vdwg.mxu0
    %116 = vst [vmem:[%s3] sm:$0xff] %v88
    %117 = vst [vmem:[%s3 + $0x8] sm:$0xff] %v111
    %118 = vst [vmem:[%s3 + $0x10] sm:$0xff] %v91
    %119 = vst [vmem:[%s3 + $0x18] sm:$0xff] %v114
    // Predicated region
    $region18: #{mca_ed_forward.36} parent=1 // pred_check
      _
    $region19: #{mca_ed_forward.36} parent=1 // pred_check_branch
      %121 = sbr.rel (0) target = $region21
    $region20: #{mca_ed_forward.36} parent=1 // pred_region
      _
    $region21: #{mca_ed_forward.36} parent=1 // pred_fallthru
      _
    // Predicated region
    $region22: #{mca_ed_forward.36} parent=1 // pred_check
      _
    $region23: #{mca_ed_forward.36} parent=1 // pred_check_branch
      %123 = sbr.rel (0) target = $region25
    $region24: #{mca_ed_forward.36} parent=1 // pred_region
      _
    $region25: #{mca_ed_forward.36} parent=1 // pred_fallthru
      _
    %124 = vsyncpa [#allocation3], 1

// kernel: mca_ed_forward.33
$region0: #{mca_ed_forward.33}
  #allocation0 [shape = 'u32[]', space=smem, size = 0x4, offset = 0x4, fixed_abs, tag = 'smem constant byte address 0x4 - core index']
  #allocation1 [shape = 'u32[72,128]{1,0:T(1,128)}', space=vmem, size = 0x9000, scoped, tag = 'internal scratch']
  %s0 = inlined_call_operand.vmem [shape: f32[2,16,384], index: 0, kind: input, shape index: {}]
  %s1 = inlined_call_operand.vmem [shape: f32[2,1,1,16], index: 1, kind: input, shape index: {}]
  %s2 = inlined_call_operand.vmem [shape: f32[2,16,128], index: 2, kind: output, shape index: {}]
  %s3 = sld [smem:[#allocation0]]
  $region41: #{mca_ed_forward.33} parent=0
    _
  %s5 = ssub.s32 1, %s3
  %s6 = scalar_select 0, %s5, %s3
  loop: start=0, step=1, limit=4
  $region2: #{mca_ed_forward.33} parent=0 // loop_pre_header
    _
  $region3: #{mca_ed_forward.33} parent=0 // loop_header
    %s8 = sphi 0, %s12
    %p9 = scmp.ge.s32.totalorder %s8, 4
    %s18 = sphi 0, %s20
    %s21 = sphi 0, %s18
    %s22 = sphi 0, %s21
    %s38 = sphi 0, %s22
    %s44 = sphi 0, %s46
    %s47 = sphi 0, %s44
    %s48 = sphi 0, %s47
    %s64 = sphi 0, %s48
    %s70 = sphi 0, %s72
    %s73 = sphi 0, %s70
    %s74 = sphi 0, %s73
    %s90 = sphi 0, %s74
  $region4: #{mca_ed_forward.33} parent=0 // loop_header_branch
    %11 = sbr.rel (%p9) target = $region8
  $region5: #{mca_ed_forward.33} parent=0 // loop_body
    %s13 = ssub.s32 %s8, 1
    %s14 = ssub.s32 %s8, 2
    %s15 = sadd.s32 %s8, 1
    %s16 = ssub.s32 %s8, %s15
    %p17 = scmp.eq.s32.totalorder %s16, 0
    %s19 = sadd.s32 %s18, 1
    %s20 = scalar_select %p17, %s18, %s19
    %p23 = pneg %p17
    %p24 = scmp.eq.s32.totalorder %s8, 1
    %p25 = por %p23, %p24
    %p26 = scmp.ne.s32.totalorder %s18, %s21
    %p27 = scmp.eq.s32.totalorder %s8, 0
    %p28 = por %p26, %p27
    %p29 = scmp.ne.s32.totalorder %s18, %s21
    %p30 = scmp.eq.s32.totalorder %s13, 1
    %p31 = por %p29, %p30
    %p32 = scmp.ne.s32.totalorder %s21, %s22
    %p33 = scmp.eq.s32.totalorder %s13, 0
    %p34 = por %p32, %p33
    %p35 = scmp.ne.s32.totalorder %s21, %s22
    %p36 = scmp.eq.s32.totalorder %s14, 1
    %p37 = por %p35, %p36
    %p39 = scmp.ne.s32.totalorder %s22, %s38
    %p40 = scmp.eq.s32.totalorder %s14, 0
    %p41 = por %p39, %p40
    %s42 = ssub.s32 %s8, %s15
    %p43 = scmp.eq.s32.totalorder %s42, 0
    %s45 = sadd.s32 %s44, 1
    %s46 = scalar_select %p43, %s44, %s45
    %p49 = pneg %p43
    %p50 = scmp.eq.s32.totalorder %s8, 1
    %p51 = por %p49, %p50
    %p52 = scmp.ne.s32.totalorder %s44, %s47
    %p53 = scmp.eq.s32.totalorder %s8, 0
    %p54 = por %p52, %p53
    %p55 = scmp.ne.s32.totalorder %s44, %s47
    %p56 = scmp.eq.s32.totalorder %s13, 1
    %p57 = por %p55, %p56
    %p58 = scmp.ne.s32.totalorder %s47, %s48
    %p59 = scmp.eq.s32.totalorder %s13, 0
    %p60 = por %p58, %p59
    %p61 = scmp.ne.s32.totalorder %s47, %s48
    %p62 = scmp.eq.s32.totalorder %s14, 1
    %p63 = por %p61, %p62
    %p65 = scmp.ne.s32.totalorder %s48, %s64
    %p66 = scmp.eq.s32.totalorder %s14, 0
    %p67 = por %p65, %p66
    %s68 = ssub.s32 %s8, %s15
    %p69 = scmp.eq.s32.totalorder %s68, 0
    %s71 = sadd.s32 %s70, 1
    %s72 = scalar_select %p69, %s70, %s71
    %p75 = pneg %p69
    %p76 = scmp.eq.s32.totalorder %s8, 1
    %p77 = por %p75, %p76
    %p78 = scmp.ne.s32.totalorder %s70, %s73
    %p79 = scmp.eq.s32.totalorder %s8, 0
    %p80 = por %p78, %p79
    %p81 = scmp.ne.s32.totalorder %s70, %s73
    %p82 = scmp.eq.s32.totalorder %s13, 1
    %p83 = por %p81, %p82
    %p84 = scmp.ne.s32.totalorder %s73, %s74
    %p85 = scmp.eq.s32.totalorder %s13, 0
    %p86 = por %p84, %p85
    %p87 = scmp.ne.s32.totalorder %s73, %s74
    %p88 = scmp.eq.s32.totalorder %s14, 1
    %p89 = por %p87, %p88
    %p91 = scmp.ne.s32.totalorder %s74, %s90
    %p92 = scmp.eq.s32.totalorder %s14, 0
    %p93 = por %p91, %p92
    %p94 = scmp.le.s32.totalorder 1, %s8
    %p95 = scmp.lt.s32.totalorder %s8, 3
    %p96 = pnand %p94, %p95
    %p97 = pneg %p96
    // Predicated region
    $region9: #{mca_ed_forward.33} parent=5 // pred_check
      _
    $region10: #{mca_ed_forward.33} parent=5 // pred_check_branch
      %99 = sbr.rel (%p96) target = $region12
    $region11: #{mca_ed_forward.33} parent=5 // pred_region
      %s100 = ssub.s32 %s8, 1
    $region12: #{mca_ed_forward.33} parent=5 // pred_fallthru
      _
    %p101 = scmp.lt.s32.totalorder %s8, 2
    // Predicated region
    $region13: #{mca_ed_forward.33} parent=5 // pred_check
      %p102 = pneg %p101
    $region14: #{mca_ed_forward.33} parent=5 // pred_check_branch
      %104 = sbr.rel (%p102) target = $region16
    $region15: #{mca_ed_forward.33} parent=5 // pred_region
      // Predicated region
      $region17: #{mca_ed_forward.33} parent=15 // pred_check
        %p105 = pneg %p28
      $region18: #{mca_ed_forward.33} parent=15 // pred_check_branch
        %107 = sbr.rel (%p105) target = $region20
      $region19: #{mca_ed_forward.33} parent=15 // pred_region
        %p108 = scmp.lt.s32.totalorder %s8, 1
        %s109 = scalar_select %p108, %s8, 1
        %s110 = smul.addr %s109, 6
        %s111 = smul.addr %s110, 8
        %s112 = scalar_lea.vmem %s0, %s111
      $region20: #{mca_ed_forward.33} parent=15 // pred_fallthru
        _
      // Predicated region
      $region21: #{mca_ed_forward.33} parent=15 // pred_check
        %p113 = pneg %p54
      $region22: #{mca_ed_forward.33} parent=15 // pred_check_branch
        %115 = sbr.rel (%p113) target = $region24
      $region23: #{mca_ed_forward.33} parent=15 // pred_region
        %p116 = scmp.lt.s32.totalorder %s8, 1
        %s117 = scalar_select %p116, %s8, 1
        %s118 = scalar_lea.vmem %s1, %s117
      $region24: #{mca_ed_forward.33} parent=15 // pred_fallthru
        _
    $region16: #{mca_ed_forward.33} parent=5 // pred_fallthru
      _
    %p119 = scmp.le.s32.totalorder 1, %s8
    %p120 = scmp.lt.s32.totalorder %s8, 3
    %p121 = pnand %p119, %p120
    %p122 = pneg %p121
    // Predicated region
    $region25: #{mca_ed_forward.33} parent=5 // pred_check
      _
    $region26: #{mca_ed_forward.33} parent=5 // pred_check_branch
      %124 = sbr.rel (%p121) target = $region28
    $region27: #{mca_ed_forward.33} parent=5 // pred_region
      %s125 = ssub.s32 %s8, 1
      %p126 = scmp.lt.s32.totalorder %s13, 1
      %s127 = scalar_select %p126, %s13, 1
      %s128 = smul.addr %s127, 6
      %s129 = smul.addr %s128, 8
      %s130 = scalar_lea.vmem %s0, %s129
      %p131 = pneg %p34
      %p132 = pneg %p31
      %p133 = scmp.lt.s32.totalorder %s13, 1
      %s134 = scalar_select %p133, %s13, 1
      %s135 = scalar_lea.vmem %s1, %s134
      %p136 = pneg %p60
      %p137 = pneg %p57
      %p138 = pneg %p86
      %p139 = pneg %p83
      %p140 = scmp.lt.s32.totalorder %s13, 1
      %s141 = scalar_select %p140, %s13, 1
      %s142 = smul.addr %s141, 2
      %s143 = smul.addr %s142, 8
      %s144 = scalar_lea.vmem %s2, %s143
      %p145 = scmp.lt.s32.totalorder %s13, 1
      %s146 = scalar_select %p145, %s13, 1
      %s147 = smul.addr %s146, 6
      %s148 = smul.addr %s147, 8
      %s149 = scalar_lea.vmem %s0, %s148
      %p150 = scmp.lt.s32.totalorder %s13, 1
      %s151 = scalar_select %p150, %s13, 1
      %s152 = scalar_lea.vmem %s1, %s151
      %p153 = scmp.lt.s32.totalorder %s13, 1
      %s154 = scalar_select %p153, %s13, 1
      %s155 = smul.addr %s154, 2
      %s156 = smul.addr %s155, 8
      %s157 = scalar_lea.vmem %s2, %s156
      %v158 = vld [vmem:[%s149] sm:$0xff]
      %v159 = vld [vmem:[%s149 + $0x8] sm:$0xff]
      %v160 = vld [vmem:[%s149 + $0x10] sm:$0xff]
      %v161 = vld [vmem:[%s149 + $0x18] sm:$0xff]
      %v162 = vld [vmem:[%s149 + $0x20] sm:$0xff]
      %v163 = vld [vmem:[%s149 + $0x28] sm:$0xff]
      %v164 = vld [vmem:[%s152] sm:$0x1]
      %vm165 = vcmask 261120
      %v167 = vsel %vm165, %v158, 0
      %v170 = vsel %vm165, %v161, 0
      %v173 = vsel %vm165, %v159, 0
      %v176 = vsel %vm165, %v162, 0
      %178 = vmatpush.xpose.msra.mxu0 0.0
      %179 = vmatpush.xpose.msra.mxu0 0.0
      %180 = vmatpush.xpose.msra.mxu0 0.0
      %181 = vmatpush.xpose.msra.mxu0 0.0
      %182 = vmatpush.xpose.msra.mxu0 0.0
      %183 = vmatpush.xpose.msra.mxu0 0.0
      %184 = vmatpush.xpose.msra.mxu0 0.0
      %185 = vmatpush.xpose.msra.mxu0 0.0
      %186 = vmatpush.xpose.msra.mxu0 0.0
      %187 = vmatpush.xpose.msra.mxu0 0.0
      %188 = vmatpush.xpose.msra.mxu0 0.0
      %189 = vmatpush.xpose.msra.mxu0 0.0
      %190 = vmatpush.xpose.msra.mxu0 0.0
      %191 = vmatpush.xpose.msra.mxu0 0.0
      %192 = vmatpush.xpose.msra.mxu0 %v176
      %193 = vmatpush.xpose.msra.mxu0 %v173
      %194 = vmatmul.f32.gmra.mxu0 %v167
      %v195 = vpop.f32.mrf.mxu0
      %v196 = vadd.f32 0.0, %v195
      %197 = vmatmul.f32.gmra.mxu0 %v170
      %v198 = vpop.f32.mrf.mxu0
      %v199 = vadd.f32 0.0, %v198
      %200 = vdwg.mxu0
      %v201 = vmul.f32 %v196, 0.17677669
      %v202 = vmul.f32 %v199, 0.17677669
      %vm203 = vcmp.gt.f32.partialorder %v164, 0.5
      %v204 = vsel %vm203, 1, 0
      %v205 = vperm.slane %v204, 0
      %vm206 = vcmp.eq.s32.totalorder %v205, 1
      %v207 = vsel %vm206, -1e+09, %v201
      %v208 = vsel %vm206, -1e+09, %v202
      %vm209 = vcmask 130048
      %v210 = vsel %vm209, %v207, -inf
      %211 = vmax.xlane.f32.xlu0 %v210
      %v212 = vpop.xlane.xlu0 %211
      %v213 = vsel %vm209, %v208, -inf
      %214 = vmax.xlane.f32.xlu0 %v213
      %v215 = vpop.xlane.xlu0 %214
      %v216 = vsub.f32 %v207, %v212
      %v217 = vsub.f32 %v208, %v215
      %v218 = vmul.f32 %v216, 1.442695
      %v219 = vpow.pop %v218
      %v220 = vmul.f32 %v217, 1.442695
      %v221 = vpow.pop %v220
      %v222 = vsel %vm209, %v219, 0.0
      %223 = vadd.xlane.f32.xlu0 %v222
      %v224 = vpop.xlane.xlu0 %223
      %v225 = vsel %vm209, %v221, 0.0
      %226 = vadd.xlane.f32.xlu0 %v225
      %v227 = vpop.xlane.xlu0 %226
      %v228 = vrcp.pop %v224
      %v229 = vrcp.pop %v227
      %v230 = vmul.f32 %v219, %v228
      %v231 = vmul.f32 %v221, %v229
      %v233 = vsel %vm209, %v230, 0
      %v236 = vsel %vm209, %v231, 0
      %238 = vmatpush.msra.mxu0 0.0
      %239 = vmatpush.msra.mxu0 0.0
      %240 = vmatpush.msra.mxu0 0.0
      %241 = vmatpush.msra.mxu0 0.0
      %242 = vmatpush.msra.mxu0 0.0
      %243 = vmatpush.msra.mxu0 0.0
      %244 = vmatpush.msra.mxu0 0.0
      %245 = vmatpush.msra.mxu0 0.0
      %246 = vmatpush.msra.mxu0 0.0
      %247 = vmatpush.msra.mxu0 0.0
      %248 = vmatpush.msra.mxu0 0.0
      %249 = vmatpush.msra.mxu0 0.0
      %250 = vmatpush.msra.mxu0 0.0
      %251 = vmatpush.msra.mxu0 0.0
      %252 = vmatpush.msra.mxu0 %v163
      %253 = vmatpush.msra.mxu0 %v160
      %254 = vmatmul.f32.gmra.mxu0 %v233
      %v255 = vpop.f32.mrf.mxu0
      %v256 = vadd.f32 0.0, %v255
      %257 = vmatmul.f32.gmra.mxu0 %v236
      %v258 = vpop.f32.mrf.mxu0
      %v259 = vadd.f32 0.0, %v258
      %260 = vdwg.mxu0
      %261 = vrot.lane.b32.xlu0 %v158, 96
      %v262 = vpop.permute.xlu0 %261
      %263 = vrot.lane.b32.xlu0 %v161, 96
      %v264 = vpop.permute.xlu0 %263
      %265 = vrot.lane.b32.xlu0 %v159, 96
      %v266 = vpop.permute.xlu0 %265
      %267 = vrot.lane.b32.xlu0 %v162, 96
      %v268 = vpop.permute.xlu0 %267
      %v269 = vsel %vm165, %v262, 0
      %v271 = vsel %vm165, %v264, 0
      %v273 = vsel %vm165, %v266, 0
      %v275 = vsel %vm165, %v268, 0
      %277 = vmatpush.xpose.msra.mxu0 0.0
      %278 = vmatpush.xpose.msra.mxu0 0.0
      %279 = vmatpush.xpose.msra.mxu0 0.0
      %280 = vmatpush.xpose.msra.mxu0 0.0
      %281 = vmatpush.xpose.msra.mxu0 0.0
      %282 = vmatpush.xpose.msra.mxu0 0.0
      %283 = vmatpush.xpose.msra.mxu0 0.0
      %284 = vmatpush.xpose.msra.mxu0 0.0
      %285 = vmatpush.xpose.msra.mxu0 0.0
      %286 = vmatpush.xpose.msra.mxu0 0.0
      %287 = vmatpush.xpose.msra.mxu0 0.0
      %288 = vmatpush.xpose.msra.mxu0 0.0
      %289 = vmatpush.xpose.msra.mxu0 0.0
      %290 = vmatpush.xpose.msra.mxu0 0.0
      %291 = vmatpush.xpose.msra.mxu0 %v275
      %292 = vmatpush.xpose.msra.mxu0 %v273
      %293 = vmatmul.f32.gmra.mxu0 %v269
      %v294 = vpop.f32.mrf.mxu0
      %v295 = vadd.f32 0.0, %v294
      %296 = vmatmul.f32.gmra.mxu0 %v271
      %v297 = vpop.f32.mrf.mxu0
      %v298 = vadd.f32 0.0, %v297
      %299 = vdwg.mxu0
      %v300 = vmul.f32 %v295, 0.17677669
      %v301 = vmul.f32 %v298, 0.17677669
      %v302 = vsel %vm206, -1e+09, %v300
      %v303 = vsel %vm206, -1e+09, %v301
      %v304 = vsel %vm209, %v302, -inf
      %305 = vmax.xlane.f32.xlu0 %v304
      %v306 = vpop.xlane.xlu0 %305
      %v307 = vsel %vm209, %v303, -inf
      %308 = vmax.xlane.f32.xlu0 %v307
      %v309 = vpop.xlane.xlu0 %308
      %v310 = vsub.f32 %v302, %v306
      %v311 = vsub.f32 %v303, %v309
      %v312 = vmul.f32 %v310, 1.442695
      %v313 = vpow.pop %v312
      %v314 = vmul.f32 %v311, 1.442695
      %v315 = vpow.pop %v314
      %v316 = vsel %vm209, %v313, 0.0
      %317 = vadd.xlane.f32.xlu0 %v316
      %v318 = vpop.xlane.xlu0 %317
      %v319 = vsel %vm209, %v315, 0.0
      %320 = vadd.xlane.f32.xlu0 %v319
      %v321 = vpop.xlane.xlu0 %320
      %v322 = vrcp.pop %v318
      %v323 = vrcp.pop %v321
      %v324 = vmul.f32 %v313, %v322
      %v325 = vmul.f32 %v315, %v323
      %328 = vrot.lane.b32.xlu0 %v160, 96
      %v329 = vpop.permute.xlu0 %328
      %330 = vrot.lane.b32.xlu0 %v163, 96
      %v331 = vpop.permute.xlu0 %330
      %v335 = vsel %vm209, %v324, 0
      %v338 = vsel %vm209, %v325, 0
      %340 = vmatpush.msra.mxu0 0.0
      %341 = vmatpush.msra.mxu0 0.0
      %342 = vmatpush.msra.mxu0 0.0
      %343 = vmatpush.msra.mxu0 0.0
      %344 = vmatpush.msra.mxu0 0.0
      %345 = vmatpush.msra.mxu0 0.0
      %346 = vmatpush.msra.mxu0 0.0
      %347 = vmatpush.msra.mxu0 0.0
      %348 = vmatpush.msra.mxu0 0.0
      %349 = vmatpush.msra.mxu0 0.0
      %350 = vmatpush.msra.mxu0 0.0
      %351 = vmatpush.msra.mxu0 0.0
      %352 = vmatpush.msra.mxu0 0.0
      %353 = vmatpush.msra.mxu0 0.0
      %354 = vmatpush.msra.mxu0 %v331
      %355 = vmatpush.msra.mxu0 %v329
      %356 = vmatmul.f32.gmra.mxu0 %v335
      %v357 = vpop.f32.mrf.mxu0
      %v358 = vadd.f32 0.0, %v357
      %359 = vmatmul.f32.gmra.mxu0 %v338
      %v360 = vpop.f32.mrf.mxu0
      %v361 = vadd.f32 0.0, %v360
      %362 = vdwg.mxu0
      %363 = vrot.lane.b32.xlu0 %v158, 64
      %v364 = vpop.permute.xlu0 %363
      %365 = vrot.lane.b32.xlu0 %v161, 64
      %v366 = vpop.permute.xlu0 %365
      %367 = vrot.lane.b32.xlu0 %v159, 64
      %v368 = vpop.permute.xlu0 %367
      %369 = vrot.lane.b32.xlu0 %v162, 64
      %v370 = vpop.permute.xlu0 %369
      %v371 = vsel %vm165, %v364, 0
      %v373 = vsel %vm165, %v366, 0
      %v375 = vsel %vm165, %v368, 0
      %v377 = vsel %vm165, %v370, 0
      %379 = vmatpush.xpose.msra.mxu0 0.0
      %380 = vmatpush.xpose.msra.mxu0 0.0
      %381 = vmatpush.xpose.msra.mxu0 0.0
      %382 = vmatpush.xpose.msra.mxu0 0.0
      %383 = vmatpush.xpose.msra.mxu0 0.0
      %384 = vmatpush.xpose.msra.mxu0 0.0
      %385 = vmatpush.xpose.msra.mxu0 0.0
      %386 = vmatpush.xpose.msra.mxu0 0.0
      %387 = vmatpush.xpose.msra.mxu0 0.0
      %388 = vmatpush.xpose.msra.mxu0 0.0
      %389 = vmatpush.xpose.msra.mxu0 0.0
      %390 = vmatpush.xpose.msra.mxu0 0.0
      %391 = vmatpush.xpose.msra.mxu0 0.0
      %392 = vmatpush.xpose.msra.mxu0 0.0
      %393 = vmatpush.xpose.msra.mxu0 %v377
      %394 = vmatpush.xpose.msra.mxu0 %v375
      %395 = vmatmul.f32.gmra.mxu0 %v371
      %v396 = vpop.f32.mrf.mxu0
      %v397 = vadd.f32 0.0, %v396
      %398 = vmatmul.f32.gmra.mxu0 %v373
      %v399 = vpop.f32.mrf.mxu0
      %v400 = vadd.f32 0.0, %v399
      %401 = vdwg.mxu0
      %v402 = vmul.f32 %v397, 0.17677669
      %v403 = vmul.f32 %v400, 0.17677669
      %v404 = vsel %vm206, -1e+09, %v402
      %v405 = vsel %vm206, -1e+09, %v403
      %v406 = vsel %vm209, %v404, -inf
      %407 = vmax.xlane.f32.xlu0 %v406
      %v408 = vpop.xlane.xlu0 %407
      %v409 = vsel %vm209, %v405, -inf
      %410 = vmax.xlane.f32.xlu0 %v409
      %v411 = vpop.xlane.xlu0 %410
      %v412 = vsub.f32 %v404, %v408
      %v413 = vsub.f32 %v405, %v411
      %v414 = vmul.f32 %v412, 1.442695
      %v415 = vpow.pop %v414
      %v416 = vmul.f32 %v413, 1.442695
      %v417 = vpow.pop %v416
      %v418 = vsel %vm209, %v415, 0.0
      %419 = vadd.xlane.f32.xlu0 %v418
      %v420 = vpop.xlane.xlu0 %419
      %v421 = vsel %vm209, %v417, 0.0
      %422 = vadd.xlane.f32.xlu0 %v421
      %v423 = vpop.xlane.xlu0 %422
      %v424 = vrcp.pop %v420
      %v425 = vrcp.pop %v423
      %v426 = vmul.f32 %v415, %v424
      %v427 = vmul.f32 %v417, %v425
      %428 = vrot.lane.b32.xlu0 %v160, 64
      %v429 = vpop.permute.xlu0 %428
      %430 = vrot.lane.b32.xlu0 %v163, 64
      %v431 = vpop.permute.xlu0 %430
      %v435 = vsel %vm209, %v426, 0
      %v438 = vsel %vm209, %v427, 0
      %440 = vmatpush.msra.mxu0 0.0
      %441 = vmatpush.msra.mxu0 0.0
      %442 = vmatpush.msra.mxu0 0.0
      %443 = vmatpush.msra.mxu0 0.0
      %444 = vmatpush.msra.mxu0 0.0
      %445 = vmatpush.msra.mxu0 0.0
      %446 = vmatpush.msra.mxu0 0.0
      %447 = vmatpush.msra.mxu0 0.0
      %448 = vmatpush.msra.mxu0 0.0
      %449 = vmatpush.msra.mxu0 0.0
      %450 = vmatpush.msra.mxu0 0.0
      %451 = vmatpush.msra.mxu0 0.0
      %452 = vmatpush.msra.mxu0 0.0
      %453 = vmatpush.msra.mxu0 0.0
      %454 = vmatpush.msra.mxu0 %v431
      %455 = vmatpush.msra.mxu0 %v429
      %456 = vmatmul.f32.gmra.mxu0 %v435
      %v457 = vpop.f32.mrf.mxu0
      %v458 = vadd.f32 0.0, %v457
      %459 = vmatmul.f32.gmra.mxu0 %v438
      %v460 = vpop.f32.mrf.mxu0
      %v461 = vadd.f32 0.0, %v460
      %462 = vdwg.mxu0
      %463 = vrot.lane.b32.xlu0 %v158, 32
      %v464 = vpop.permute.xlu0 %463
      %465 = vrot.lane.b32.xlu0 %v161, 32
      %v466 = vpop.permute.xlu0 %465
      %467 = vrot.lane.b32.xlu0 %v159, 32
      %v468 = vpop.permute.xlu0 %467
      %469 = vrot.lane.b32.xlu0 %v162, 32
      %v470 = vpop.permute.xlu0 %469
      %v471 = vsel %vm165, %v464, 0
      %v473 = vsel %vm165, %v466, 0
      %v475 = vsel %vm165, %v468, 0
      %v477 = vsel %vm165, %v470, 0
      %479 = vmatpush.xpose.msra.mxu0 0.0
      %480 = vmatpush.xpose.msra.mxu0 0.0
      %481 = vmatpush.xpose.msra.mxu0 0.0
      %482 = vmatpush.xpose.msra.mxu0 0.0
      %483 = vmatpush.xpose.msra.mxu0 0.0
      %484 = vmatpush.xpose.msra.mxu0 0.0
      %485 = vmatpush.xpose.msra.mxu0 0.0
      %486 = vmatpush.xpose.msra.mxu0 0.0
      %487 = vmatpush.xpose.msra.mxu0 0.0
      %488 = vmatpush.xpose.msra.mxu0 0.0
      %489 = vmatpush.xpose.msra.mxu0 0.0
      %490 = vmatpush.xpose.msra.mxu0 0.0
      %491 = vmatpush.xpose.msra.mxu0 0.0
      %492 = vmatpush.xpose.msra.mxu0 0.0
      %493 = vmatpush.xpose.msra.mxu0 %v477
      %494 = vmatpush.xpose.msra.mxu0 %v475
      %495 = vmatmul.f32.gmra.mxu0 %v471
      %v496 = vpop.f32.mrf.mxu0
      %v497 = vadd.f32 0.0, %v496
      %498 = vmatmul.f32.gmra.mxu0 %v473
      %v499 = vpop.f32.mrf.mxu0
      %v500 = vadd.f32 0.0, %v499
      %501 = vdwg.mxu0
      %v502 = vmul.f32 %v497, 0.17677669
      %v503 = vmul.f32 %v500, 0.17677669
      %v504 = vsel %vm206, -1e+09, %v502
      %v505 = vsel %vm206, -1e+09, %v503
      %v506 = vsel %vm209, %v504, -inf
      %507 = vmax.xlane.f32.xlu0 %v506
      %v508 = vpop.xlane.xlu0 %507
      %v509 = vsel %vm209, %v505, -inf
      %510 = vmax.xlane.f32.xlu0 %v509
      %v511 = vpop.xlane.xlu0 %510
      %v512 = vsub.f32 %v504, %v508
      %v513 = vsub.f32 %v505, %v511
      %v514 = vmul.f32 %v512, 1.442695
      %v515 = vpow.pop %v514
      %v516 = vmul.f32 %v513, 1.442695
      %v517 = vpow.pop %v516
      %v518 = vsel %vm209, %v515, 0.0
      %519 = vadd.xlane.f32.xlu0 %v518
      %v520 = vpop.xlane.xlu0 %519
      %v521 = vsel %vm209, %v517, 0.0
      %522 = vadd.xlane.f32.xlu0 %v521
      %v523 = vpop.xlane.xlu0 %522
      %v524 = vrcp.pop %v520
      %v525 = vrcp.pop %v523
      %v526 = vmul.f32 %v515, %v524
      %v527 = vmul.f32 %v517, %v525
      %528 = vrot.lane.b32.xlu0 %v160, 32
      %v529 = vpop.permute.xlu0 %528
      %530 = vrot.lane.b32.xlu0 %v163, 32
      %v531 = vpop.permute.xlu0 %530
      %v535 = vsel %vm209, %v526, 0
      %v538 = vsel %vm209, %v527, 0
      %540 = vmatpush.msra.mxu0 0.0
      %541 = vmatpush.msra.mxu0 0.0
      %542 = vmatpush.msra.mxu0 0.0
      %543 = vmatpush.msra.mxu0 0.0
      %544 = vmatpush.msra.mxu0 0.0
      %545 = vmatpush.msra.mxu0 0.0
      %546 = vmatpush.msra.mxu0 0.0
      %547 = vmatpush.msra.mxu0 0.0
      %548 = vmatpush.msra.mxu0 0.0
      %549 = vmatpush.msra.mxu0 0.0
      %550 = vmatpush.msra.mxu0 0.0
      %551 = vmatpush.msra.mxu0 0.0
      %552 = vmatpush.msra.mxu0 0.0
      %553 = vmatpush.msra.mxu0 0.0
      %554 = vmatpush.msra.mxu0 %v531
      %555 = vmatpush.msra.mxu0 %v529
      %556 = vmatmul.f32.gmra.mxu0 %v535
      %v557 = vpop.f32.mrf.mxu0
      %v558 = vadd.f32 0.0, %v557
      %559 = vmatmul.f32.gmra.mxu0 %v538
      %v560 = vpop.f32.mrf.mxu0
      %v561 = vadd.f32 0.0, %v560
      %562 = vdwg.mxu0
      %565 = vrot.lane.b32.xlu0 %v358, 32
      %v566 = vpop.permute.xlu0 %565
      %567 = vrot.lane.b32.xlu0 %v361, 32
      %v568 = vpop.permute.xlu0 %567
      %573 = vrot.lane.b32.xlu0 %v458, 64
      %v574 = vpop.permute.xlu0 %573
      %575 = vrot.lane.b32.xlu0 %v461, 64
      %v576 = vpop.permute.xlu0 %575
      %581 = vrot.lane.b32.xlu0 %v558, 96
      %v582 = vpop.permute.xlu0 %581
      %583 = vrot.lane.b32.xlu0 %v561, 96
      %v584 = vpop.permute.xlu0 %583
      %v587 = vsel %vm165, %v256, %v566
      %v588 = vsel %vm165, %v259, %v568
      %vm589 = vcmask 523264
      %v590 = vsel %vm589, %v587, %v574
      %v591 = vsel %vm589, %v588, %v576
      %vm592 = vcmask 785408
      %v593 = vsel %vm592, %v590, %v582
      %v594 = vsel %vm592, %v591, %v584
      %595 = vst [vmem:[%s157] sm:$0xff] %v593
      %596 = vst [vmem:[%s157 + $0x8] sm:$0xff] %v594
      %p597 = scmp.lt.s32.totalorder %s13, 1
      %s598 = scalar_select %p597, %s13, 1
      %s599 = smul.addr %s598, 2
      %s600 = smul.addr %s599, 8
      %s601 = scalar_lea.vmem %s2, %s600
      // Predicated region
      $region29: #{mca_ed_forward.33} parent=27 // pred_check
        %p602 = pneg %p83
      $region30: #{mca_ed_forward.33} parent=27 // pred_check_branch
        %604 = sbr.rel (%p602) target = $region32
      $region31: #{mca_ed_forward.33} parent=27 // pred_region
        _
      $region32: #{mca_ed_forward.33} parent=27 // pred_fallthru
        _
    $region28: #{mca_ed_forward.33} parent=5 // pred_fallthru
      _
    %p605 = scmp.le.s32.totalorder 2, %s8
    // Predicated region
    $region33: #{mca_ed_forward.33} parent=5 // pred_check
      %p606 = pneg %p605
    $region34: #{mca_ed_forward.33} parent=5 // pred_check_branch
      %608 = sbr.rel (%p606) target = $region36
    $region35: #{mca_ed_forward.33} parent=5 // pred_region
      %s609 = ssub.s32 %s8, 2
      // Predicated region
      $region37: #{mca_ed_forward.33} parent=35 // pred_check
        %p610 = pneg %p89
      $region38: #{mca_ed_forward.33} parent=35 // pred_check_branch
        %612 = sbr.rel (%p610) target = $region40
      $region39: #{mca_ed_forward.33} parent=35 // pred_region
        %p613 = scmp.lt.s32.totalorder %s14, 1
        %s614 = scalar_select %p613, %s14, 1
        %s615 = smul.addr %s614, 2
        %s616 = smul.addr %s615, 8
        %s617 = scalar_lea.vmem %s2, %s616
      $region40: #{mca_ed_forward.33} parent=35 // pred_fallthru
        _
    $region36: #{mca_ed_forward.33} parent=5 // pred_fallthru
      _
  $region6: #{mca_ed_forward.33} parent=0 // loop_footer
    %s12 = sadd.s32 1, %s8
  $region7: #{mca_ed_forward.33} parent=0 // loop_footer_branch
    %7 = sbr.rel target = $region3
  $region8: #{mca_ed_forward.33} parent=0 // loop_exit
    _

// kernel: mca_ed_forward.34
$region0: #{mca_ed_forward.34}
  #allocation0 [shape = 'u32[]', space=smem, size = 0x4, offset = 0x4, fixed_abs, tag = 'smem constant byte address 0x4 - core index']
  #allocation1 [shape = 'u32[72,128]{1,0:T(1,128)}', space=vmem, size = 0x9000, scoped, tag = 'internal scratch']
  %s0 = inlined_call_operand.vmem [shape: f32[32,128], index: 0, kind: input, shape index: {}]
  %s1 = inlined_call_operand.vmem [shape: f32[32,128], index: 1, kind: input, shape index: {}]
  %s2 = inlined_call_operand.hbm [shape: f32[128,128], index: 2, kind: input, shape index: {}]
  %s3 = inlined_call_operand.vmem [shape: f32[1,128], index: 3, kind: input, shape index: {}]
  %s4 = inlined_call_operand.vmem [shape: f32[1,128], index: 4, kind: input, shape index: {}]
  %s5 = inlined_call_operand.vmem [shape: f32[1,128], index: 5, kind: input, shape index: {}]
  %s6 = inlined_call_operand.vmem [shape: f32[32,128], index: 6, kind: output, shape index: {}]
  %s7 = sld [smem:[#allocation0]]
  $region38: #{mca_ed_forward.34} parent=0
    _
  %s9 = ssub.s32 1, %s7
  %s10 = scalar_select 0, %s9, %s7
  $region1: #{mca_ed_forward.34} parent=0
    #allocation2 [shape = 'u8[65536]{0}', space=vmem, size = 0x10000, scoped, tag = 'input window, operand 2, single buffered']
    #allocation3 [shape = 's32[1]{0}', space=sflag, size = 0x4, scoped, tag = 'scoped memory for mca_ed_forward.34']
    %11 = vsyncpa [#allocation3], 0
    // Predicated region
    $region2: #{mca_ed_forward.34} parent=1 // pred_check
      _
    $region3: #{mca_ed_forward.34} parent=1 // pred_check_branch
      %13 = sbr.rel (0) target = $region5
    $region4: #{mca_ed_forward.34} parent=1 // pred_region
      _
    $region5: #{mca_ed_forward.34} parent=1 // pred_fallthru
      _
    // Predicated region
    $region6: #{mca_ed_forward.34} parent=1 // pred_check
      _
    $region7: #{mca_ed_forward.34} parent=1 // pred_check_branch
      %15 = sbr.rel (0) target = $region9
    $region8: #{mca_ed_forward.34} parent=1 // pred_region
      _
    $region9: #{mca_ed_forward.34} parent=1 // pred_fallthru
      _
    // Predicated region
    $region10: #{mca_ed_forward.34} parent=1 // pred_check
      _
    $region11: #{mca_ed_forward.34} parent=1 // pred_check_branch
      %17 = sbr.rel (0) target = $region13
    $region12: #{mca_ed_forward.34} parent=1 // pred_region
      %19 = vsyncadd [#allocation3], 0
      %s20 = sshll.u32 %s2, 4
      %s21 = int_to_ptr.hbm [resolvable:$true] %s20
      %s22 = sshll.u32 [#allocation2], 4
      %s23 = int_to_ptr.vmem [resolvable:$true] %s22
      %28 = dma.hbm_to_vmem [thread:$0]  %s21, 2048, %s23, [#allocation3], 128, 128, 8
    $region13: #{mca_ed_forward.34} parent=1 // pred_fallthru
      _
    // Predicated region
    $region14: #{mca_ed_forward.34} parent=1 // pred_check
      _
    $region15: #{mca_ed_forward.34} parent=1 // pred_check_branch
      %30 = sbr.rel (0) target = $region17
    $region16: #{mca_ed_forward.34} parent=1 // pred_region
      _
    $region17: #{mca_ed_forward.34} parent=1 // pred_fallthru
      _
    // Predicated region
    $region18: #{mca_ed_forward.34} parent=1 // pred_check
      _
    $region19: #{mca_ed_forward.34} parent=1 // pred_check_branch
      %32 = sbr.rel (0) target = $region21
    $region20: #{mca_ed_forward.34} parent=1 // pred_region
      _
    $region21: #{mca_ed_forward.34} parent=1 // pred_fallthru
      _
    // Predicated region
    $region22: #{mca_ed_forward.34} parent=1 // pred_check
      _
    $region23: #{mca_ed_forward.34} parent=1 // pred_check_branch
      %34 = sbr.rel (0) target = $region25
    $region24: #{mca_ed_forward.34} parent=1 // pred_region
      _
    $region25: #{mca_ed_forward.34} parent=1 // pred_fallthru
      _
    // Predicated region
    $region26: #{mca_ed_forward.34} parent=1 // pred_check
      _
    $region27: #{mca_ed_forward.34} parent=1 // pred_check_branch
      %36 = sbr.rel (0) target = $region29
    $region28: #{mca_ed_forward.34} parent=1 // pred_region
      %38 = dma.done [#allocation3], 2048
    $region29: #{mca_ed_forward.34} parent=1 // pred_fallthru
      _
    %v39 = vld [vmem:[%s0] sm:$0xff]
    %v40 = vld [vmem:[%s0 + $0x8] sm:$0xff]
    %v41 = vld [vmem:[%s0 + $0x10] sm:$0xff]
    %v42 = vld [vmem:[%s0 + $0x18] sm:$0xff]
    %v43 = vld [vmem:[#allocation2] sm:$0xff]
    %v44 = vld [vmem:[#allocation2 + $0x8] sm:$0xff]
    %v45 = vld [vmem:[#allocation2 + $0x10] sm:$0xff]
    %v46 = vld [vmem:[#allocation2 + $0x18] sm:$0xff]
    %v47 = vld [vmem:[#allocation2 + $0x20] sm:$0xff]
    %v48 = vld [vmem:[#allocation2 + $0x28] sm:$0xff]
    %v49 = vld [vmem:[#allocation2 + $0x30] sm:$0xff]
    %v50 = vld [vmem:[#allocation2 + $0x38] sm:$0xff]
    %v51 = vld [vmem:[#allocation2 + $0x40] sm:$0xff]
    %v52 = vld [vmem:[#allocation2 + $0x48] sm:$0xff]
    %v53 = vld [vmem:[#allocation2 + $0x50] sm:$0xff]
    %v54 = vld [vmem:[#allocation2 + $0x58] sm:$0xff]
    %v55 = vld [vmem:[#allocation2 + $0x60] sm:$0xff]
    %v56 = vld [vmem:[#allocation2 + $0x68] sm:$0xff]
    %v57 = vld [vmem:[#allocation2 + $0x70] sm:$0xff]
    %v58 = vld [vmem:[#allocation2 + $0x78] sm:$0xff]
    %v59 = vld [vmem:[%s3] sm:$0x1]
    %v61 = vperm.slane %v59, 0
    %63 = vmatpush.msra.mxu0 %v58
    %64 = vmatpush.msra.mxu0 %v57
    %65 = vmatpush.msra.mxu0 %v56
    %66 = vmatpush.msra.mxu0 %v55
    %67 = vmatpush.msra.mxu0 %v54
    %68 = vmatpush.msra.mxu0 %v53
    %69 = vmatpush.msra.mxu0 %v52
    %70 = vmatpush.msra.mxu0 %v51
    %71 = vmatpush.msra.mxu0 %v50
    %72 = vmatpush.msra.mxu0 %v49
    %73 = vmatpush.msra.mxu0 %v48
    %74 = vmatpush.msra.mxu0 %v47
    %75 = vmatpush.msra.mxu0 %v46
    %76 = vmatpush.msra.mxu0 %v45
    %77 = vmatpush.msra.mxu0 %v44
    %78 = vmatpush.msra.mxu0 %v43
    %79 = vmatmul.f32.gmra.mxu0 %v39
    %v80 = vpop.f32.mrf.mxu0
    %v81 = vadd.f32 %v61, %v80
    %82 = vmatmul.f32.gmra.mxu0 %v40
    %v83 = vpop.f32.mrf.mxu0
    %v84 = vadd.f32 %v61, %v83
    %85 = vmatmul.f32.gmra.mxu0 %v41
    %v86 = vpop.f32.mrf.mxu0
    %v87 = vadd.f32 %v61, %v86
    %88 = vmatmul.f32.gmra.mxu0 %v42
    %v89 = vpop.f32.mrf.mxu0
    %v90 = vadd.f32 %v61, %v89
    %91 = vdwg.mxu0
    %v92 = vld [vmem:[%s1] sm:$0xff]
    %v93 = vld [vmem:[%s1 + $0x8] sm:$0xff]
    %v94 = vld [vmem:[%s1 + $0x10] sm:$0xff]
    %v95 = vld [vmem:[%s1 + $0x18] sm:$0xff]
    %v96 = vadd.f32 %v92, %v81
    %v97 = vadd.f32 %v93, %v84
    %v98 = vadd.f32 %v94, %v87
    %v99 = vadd.f32 %v95, %v90
    %v100 = vld [vmem:[%s4] sm:$0x1]
    %v101 = vld [vmem:[%s5] sm:$0x1]
    %102 = vadd.xlane.f32.xlu0 %v96
    %v103 = vpop.xlane.xlu0 %102
    %104 = vadd.xlane.f32.xlu0 %v97
    %v105 = vpop.xlane.xlu0 %104
    %106 = vadd.xlane.f32.xlu0 %v98
    %v107 = vpop.xlane.xlu0 %106
    %108 = vadd.xlane.f32.xlu0 %v99
    %v109 = vpop.xlane.xlu0 %108
    %v110 = vrcp.pop 128.0
    %v111 = vmul.f32 128.0, %v110
    %v112 = vsub.f32 1.0, %v111
    %v113 = vmul.f32 %v110, %v112
    %v114 = vadd.f32 %v110, %v113
    %vm115 = vweird.f32 %v110
    %v116 = vsel %vm115, %v110, %v114
    %v117 = vmul.f32 %v103, %v116
    %v118 = vmul.f32 %v105, %v116
    %v119 = vmul.f32 %v107, %v116
    %v120 = vmul.f32 %v109, %v116
    %v121 = vsub.f32 %v96, %v117
    %v122 = vsub.f32 %v97, %v118
    %v123 = vsub.f32 %v98, %v119
    %v124 = vsub.f32 %v99, %v120
    %v125 = vmul.f32 %v121, %v121
    %v126 = vmul.f32 %v122, %v122
    %v127 = vmul.f32 %v123, %v123
    %v128 = vmul.f32 %v124, %v124
    %129 = vadd.xlane.f32.xlu0 %v125
    %v130 = vpop.xlane.xlu0 %129
    %131 = vadd.xlane.f32.xlu0 %v126
    %v132 = vpop.xlane.xlu0 %131
    %133 = vadd.xlane.f32.xlu0 %v127
    %v134 = vpop.xlane.xlu0 %133
    %135 = vadd.xlane.f32.xlu0 %v128
    %v136 = vpop.xlane.xlu0 %135
    %v137 = vmul.f32 %v130, 0.007874016
    %v138 = vmul.f32 %v132, 0.007874016
    %v139 = vmul.f32 %v134, 0.007874016
    %v140 = vmul.f32 %v136, 0.007874016
    %v141 = vrsqrt.pop %v137
    %v142 = vmul.f32 %v141, %v137
    %v143 = vmul.f32 %v142, %v141
    %v144 = vmul.f32 0.5, %v143
    %v145 = vsub.f32 1.5, %v144
    %v146 = vmul.f32 %v141, %v145
    %v147 = vmul.f32 %v137, %v146
    %vm148 = vcmp.eq.f32.partialorder %v137, inf
    %v149 = vsel %vm148, %v137, %v147
    %vm150 = vcmp.eq.f32.partialorder %v137, 0.0
    %v151 = vand.u32 %v137, 2147483648
    %v152 = vsel %vm150, %v151, %v149
    %v153 = vrsqrt.pop %v138
    %v154 = vmul.f32 %v153, %v138
    %v155 = vmul.f32 %v154, %v153
    %v156 = vmul.f32 0.5, %v155
    %v157 = vsub.f32 1.5, %v156
    %v158 = vmul.f32 %v153, %v157
    %v159 = vmul.f32 %v138, %v158
    %vm160 = vcmp.eq.f32.partialorder %v138, inf
    %v161 = vsel %vm160, %v138, %v159
    %vm162 = vcmp.eq.f32.partialorder %v138, 0.0
    %v163 = vand.u32 %v138, 2147483648
    %v164 = vsel %vm162, %v163, %v161
    %v165 = vrsqrt.pop %v139
    %v166 = vmul.f32 %v165, %v139
    %v167 = vmul.f32 %v166, %v165
    %v168 = vmul.f32 0.5, %v167
    %v169 = vsub.f32 1.5, %v168
    %v170 = vmul.f32 %v165, %v169
    %v171 = vmul.f32 %v139, %v170
    %vm172 = vcmp.eq.f32.partialorder %v139, inf
    %v173 = vsel %vm172, %v139, %v171
    %vm174 = vcmp.eq.f32.partialorder %v139, 0.0
    %v175 = vand.u32 %v139, 2147483648
    %v176 = vsel %vm174, %v175, %v173
    %v177 = vrsqrt.pop %v140
    %v178 = vmul.f32 %v177, %v140
    %v179 = vmul.f32 %v178, %v177
    %v180 = vmul.f32 0.5, %v179
    %v181 = vsub.f32 1.5, %v180
    %v182 = vmul.f32 %v177, %v181
    %v183 = vmul.f32 %v140, %v182
    %vm184 = vcmp.eq.f32.partialorder %v140, inf
    %v185 = vsel %vm184, %v140, %v183
    %vm186 = vcmp.eq.f32.partialorder %v140, 0.0
    %v187 = vand.u32 %v140, 2147483648
    %v188 = vsel %vm186, %v187, %v185
    %v189 = vadd.f32 %v152, 1e-06
    %v190 = vadd.f32 %v164, 1e-06
    %v191 = vadd.f32 %v176, 1e-06
    %v192 = vadd.f32 %v188, 1e-06
    %v193 = vrcp.pop %v189
    %v194 = vrcp.pop %v190
    %v195 = vrcp.pop %v191
    %v196 = vrcp.pop %v192
    %v198 = vperm.slane %v100, 0
    %v200 = vmul.f32 %v198, %v121
    %v201 = vmul.f32 %v198, %v122
    %v202 = vmul.f32 %v198, %v123
    %v203 = vmul.f32 %v198, %v124
    %v204 = vmul.f32 %v200, %v193
    %v205 = vmul.f32 %v201, %v194
    %v206 = vmul.f32 %v202, %v195
    %v207 = vmul.f32 %v203, %v196
    %v209 = vperm.slane %v101, 0
    %v211 = vadd.f32 %v204, %v209
    %v212 = vadd.f32 %v205, %v209
    %v213 = vadd.f32 %v206, %v209
    %v214 = vadd.f32 %v207, %v209
    %215 = vst [vmem:[%s6] sm:$0xff] %v211
    %216 = vst [vmem:[%s6 + $0x8] sm:$0xff] %v212
    %217 = vst [vmem:[%s6 + $0x10] sm:$0xff] %v213
    %218 = vst [vmem:[%s6 + $0x18] sm:$0xff] %v214
    // Predicated region
    $region30: #{mca_ed_forward.34} parent=1 // pred_check
      _
    $region31: #{mca_ed_forward.34} parent=1 // pred_check_branch
      %220 = sbr.rel (0) target = $region33
    $region32: #{mca_ed_forward.34} parent=1 // pred_region
      _
    $region33: #{mca_ed_forward.34} parent=1 // pred_fallthru
      _
    // Predicated region
    $region34: #{mca_ed_forward.34} parent=1 // pred_check
      _
    $region35: #{mca_ed_forward.34} parent=1 // pred_check_branch
      %222 = sbr.rel (0) target = $region37
    $region36: #{mca_ed_forward.34} parent=1 // pred_region
      _
    $region37: #{mca_ed_forward.34} parent=1 // pred_fallthru
      _
    %223 = vsyncpa [#allocation3], 1

// kernel: mca_ed_forward.35
$region0: #{mca_ed_forward.35}
  #allocation0 [shape = 'u32[]', space=smem, size = 0x4, offset = 0x4, fixed_abs, tag = 'smem constant byte address 0x4 - core index']
  #allocation1 [shape = 'u32[72,128]{1,0:T(1,128)}', space=vmem, size = 0x9000, scoped, tag = 'internal scratch']
  %s0 = inlined_call_operand.vmem [shape: f32[32,128], index: 0, kind: input, shape index: {}]
  %s1 = inlined_call_operand.hbm [shape: f32[128,128], index: 1, kind: input, shape index: {}]
  %s2 = inlined_call_operand.vmem [shape: f32[1,128], index: 2, kind: input, shape index: {}]
  %s3 = inlined_call_operand.vmem [shape: f32[32,128], index: 3, kind: output, shape index: {}]
  %s4 = sld [smem:[#allocation0]]
  $region26: #{mca_ed_forward.35} parent=0
    _
  %s6 = ssub.s32 1, %s4
  %s7 = scalar_select 0, %s6, %s4
  $region1: #{mca_ed_forward.35} parent=0
    #allocation2 [shape = 'u8[65536]{0}', space=vmem, size = 0x10000, scoped, tag = 'input window, operand 1, single buffered']
    #allocation3 [shape = 's32[1]{0}', space=sflag, size = 0x4, scoped, tag = 'scoped memory for mca_ed_forward.35']
    %8 = vsyncpa [#allocation3], 0
    // Predicated region
    $region2: #{mca_ed_forward.35} parent=1 // pred_check
      _
    $region3: #{mca_ed_forward.35} parent=1 // pred_check_branch
      %10 = sbr.rel (0) target = $region5
    $region4: #{mca_ed_forward.35} parent=1 // pred_region
      _
    $region5: #{mca_ed_forward.35} parent=1 // pred_fallthru
      _
    // Predicated region
    $region6: #{mca_ed_forward.35} parent=1 // pred_check
      _
    $region7: #{mca_ed_forward.35} parent=1 // pred_check_branch
      %12 = sbr.rel (0) target = $region9
    $region8: #{mca_ed_forward.35} parent=1 // pred_region
      %14 = vsyncadd [#allocation3], 0
      %s15 = sshll.u32 %s1, 4
      %s16 = int_to_ptr.hbm [resolvable:$true] %s15
      %s17 = sshll.u32 [#allocation2], 4
      %s18 = int_to_ptr.vmem [resolvable:$true] %s17
      %23 = dma.hbm_to_vmem [thread:$0]  %s16, 2048, %s18, [#allocation3], 128, 128, 8
    $region9: #{mca_ed_forward.35} parent=1 // pred_fallthru
      _
    // Predicated region
    $region10: #{mca_ed_forward.35} parent=1 // pred_check
      _
    $region11: #{mca_ed_forward.35} parent=1 // pred_check_branch
      %25 = sbr.rel (0) target = $region13
    $region12: #{mca_ed_forward.35} parent=1 // pred_region
      _
    $region13: #{mca_ed_forward.35} parent=1 // pred_fallthru
      _
    // Predicated region
    $region14: #{mca_ed_forward.35} parent=1 // pred_check
      _
    $region15: #{mca_ed_forward.35} parent=1 // pred_check_branch
      %27 = sbr.rel (0) target = $region17
    $region16: #{mca_ed_forward.35} parent=1 // pred_region
      %29 = dma.done [#allocation3], 2048
    $region17: #{mca_ed_forward.35} parent=1 // pred_fallthru
      _
    %v30 = vld [vmem:[%s0] sm:$0xff]
    %v31 = vld [vmem:[%s0 + $0x8] sm:$0xff]
    %v32 = vld [vmem:[%s0 + $0x10] sm:$0xff]
    %v33 = vld [vmem:[%s0 + $0x18] sm:$0xff]
    %v34 = vld [vmem:[#allocation2] sm:$0xff]
    %v35 = vld [vmem:[#allocation2 + $0x8] sm:$0xff]
    %v36 = vld [vmem:[#allocation2 + $0x10] sm:$0xff]
    %v37 = vld [vmem:[#allocation2 + $0x18] sm:$0xff]
    %v38 = vld [vmem:[#allocation2 + $0x20] sm:$0xff]
    %v39 = vld [vmem:[#allocation2 + $0x28] sm:$0xff]
    %v40 = vld [vmem:[#allocation2 + $0x30] sm:$0xff]
    %v41 = vld [vmem:[#allocation2 + $0x38] sm:$0xff]
    %v42 = vld [vmem:[#allocation2 + $0x40] sm:$0xff]
    %v43 = vld [vmem:[#allocation2 + $0x48] sm:$0xff]
    %v44 = vld [vmem:[#allocation2 + $0x50] sm:$0xff]
    %v45 = vld [vmem:[#allocation2 + $0x58] sm:$0xff]
    %v46 = vld [vmem:[#allocation2 + $0x60] sm:$0xff]
    %v47 = vld [vmem:[#allocation2 + $0x68] sm:$0xff]
    %v48 = vld [vmem:[#allocation2 + $0x70] sm:$0xff]
    %v49 = vld [vmem:[#allocation2 + $0x78] sm:$0xff]
    %v50 = vld [vmem:[%s2] sm:$0x1]
    %v52 = vperm.slane %v50, 0
    %54 = vmatpush.msra.mxu0 %v49
    %55 = vmatpush.msra.mxu0 %v48
    %56 = vmatpush.msra.mxu0 %v47
    %57 = vmatpush.msra.mxu0 %v46
    %58 = vmatpush.msra.mxu0 %v45
    %59 = vmatpush.msra.mxu0 %v44
    %60 = vmatpush.msra.mxu0 %v43
    %61 = vmatpush.msra.mxu0 %v42
    %62 = vmatpush.msra.mxu0 %v41
    %63 = vmatpush.msra.mxu0 %v40
    %64 = vmatpush.msra.mxu0 %v39
    %65 = vmatpush.msra.mxu0 %v38
    %66 = vmatpush.msra.mxu0 %v37
    %67 = vmatpush.msra.mxu0 %v36
    %68 = vmatpush.msra.mxu0 %v35
    %69 = vmatpush.msra.mxu0 %v34
    %70 = vmatmul.f32.gmra.mxu0 %v30
    %v71 = vpop.f32.mrf.mxu0
    %v72 = vadd.f32 %v52, %v71
    %73 = vmatmul.f32.gmra.mxu0 %v31
    %v74 = vpop.f32.mrf.mxu0
    %v75 = vadd.f32 %v52, %v74
    %76 = vmatmul.f32.gmra.mxu0 %v32
    %v77 = vpop.f32.mrf.mxu0
    %v78 = vadd.f32 %v52, %v77
    %79 = vmatmul.f32.gmra.mxu0 %v33
    %v80 = vpop.f32.mrf.mxu0
    %v81 = vadd.f32 %v52, %v80
    %82 = vdwg.mxu0
    %83 = vst [vmem:[%s3] sm:$0xff] %v72
    %84 = vst [vmem:[%s3 + $0x8] sm:$0xff] %v75
    %85 = vst [vmem:[%s3 + $0x10] sm:$0xff] %v78
    %86 = vst [vmem:[%s3 + $0x18] sm:$0xff] %v81
    // Predicated region
    $region18: #{mca_ed_forward.35} parent=1 // pred_check
      _
    $region19: #{mca_ed_forward.35} parent=1 // pred_check_branch
      %88 = sbr.rel (0) target = $region21
    $region20: #{mca_ed_forward.35} parent=1 // pred_region
      _
    $region21: #{mca_ed_forward.35} parent=1 // pred_fallthru
      _
    // Predicated region
    $region22: #{mca_ed_forward.35} parent=1 // pred_check
      _
    $region23: #{mca_ed_forward.35} parent=1 // pred_check_branch
      %90 = sbr.rel (0) target = $region25
    $region24: #{mca_ed_forward.35} parent=1 // pred_region
      _
    $region25: #{mca_ed_forward.35} parent=1 // pred_fallthru
      _
    %91 = vsyncpa [#allocation3], 1

// kernel: mca_ed_forward.37
$region0: #{mca_ed_forward.37}
  #allocation0 [shape = 'u32[]', space=smem, size = 0x4, offset = 0x4, fixed_abs, tag = 'smem constant byte address 0x4 - core index']
  #allocation1 [shape = 'u32[72,128]{1,0:T(1,128)}', space=vmem, size = 0x9000, scoped, tag = 'internal scratch']
  %s0 = inlined_call_operand.vmem [shape: f32[2,16,128], index: 0, kind: input, shape index: {}]
  %s1 = inlined_call_operand.vmem [shape: f32[2,8,256], index: 1, kind: input, shape index: {}]
  %s2 = inlined_call_operand.vmem [shape: f32[2,1,1,8], index: 2, kind: input, shape index: {}]
  %s3 = inlined_call_operand.vmem [shape: f32[2,16,128], index: 3, kind: output, shape index: {}]
  %s4 = sld [smem:[#allocation0]]
  $region45: #{mca_ed_forward.37} parent=0
    _
  %s6 = ssub.s32 1, %s4
  %s7 = scalar_select 0, %s6, %s4
  loop: start=0, step=1, limit=4
  $region2: #{mca_ed_forward.37} parent=0 // loop_pre_header
    _
  $region3: #{mca_ed_forward.37} parent=0 // loop_header
    %s9 = sphi 0, %s13
    %p10 = scmp.ge.s32.totalorder %s9, 4
    %s19 = sphi 0, %s21
    %s22 = sphi 0, %s19
    %s23 = sphi 0, %s22
    %s39 = sphi 0, %s23
    %s45 = sphi 0, %s47
    %s48 = sphi 0, %s45
    %s49 = sphi 0, %s48
    %s65 = sphi 0, %s49
    %s71 = sphi 0, %s73
    %s74 = sphi 0, %s71
    %s75 = sphi 0, %s74
    %s91 = sphi 0, %s75
    %s97 = sphi 0, %s99
    %s100 = sphi 0, %s97
    %s101 = sphi 0, %s100
    %s117 = sphi 0, %s101
  $region4: #{mca_ed_forward.37} parent=0 // loop_header_branch
    %12 = sbr.rel (%p10) target = $region8
  $region5: #{mca_ed_forward.37} parent=0 // loop_body
    %s14 = ssub.s32 %s9, 1
    %s15 = ssub.s32 %s9, 2
    %s16 = sadd.s32 %s9, 1
    %s17 = ssub.s32 %s9, %s16
    %p18 = scmp.eq.s32.totalorder %s17, 0
    %s20 = sadd.s32 %s19, 1
    %s21 = scalar_select %p18, %s19, %s20
    %p24 = pneg %p18
    %p25 = scmp.eq.s32.totalorder %s9, 1
    %p26 = por %p24, %p25
    %p27 = scmp.ne.s32.totalorder %s19, %s22
    %p28 = scmp.eq.s32.totalorder %s9, 0
    %p29 = por %p27, %p28
    %p30 = scmp.ne.s32.totalorder %s19, %s22
    %p31 = scmp.eq.s32.totalorder %s14, 1
    %p32 = por %p30, %p31
    %p33 = scmp.ne.s32.totalorder %s22, %s23
    %p34 = scmp.eq.s32.totalorder %s14, 0
    %p35 = por %p33, %p34
    %p36 = scmp.ne.s32.totalorder %s22, %s23
    %p37 = scmp.eq.s32.totalorder %s15, 1
    %p38 = por %p36, %p37
    %p40 = scmp.ne.s32.totalorder %s23, %s39
    %p41 = scmp.eq.s32.totalorder %s15, 0
    %p42 = por %p40, %p41
    %s43 = ssub.s32 %s9, %s16
    %p44 = scmp.eq.s32.totalorder %s43, 0
    %s46 = sadd.s32 %s45, 1
    %s47 = scalar_select %p44, %s45, %s46
    %p50 = pneg %p44
    %p51 = scmp.eq.s32.totalorder %s9, 1
    %p52 = por %p50, %p51
    %p53 = scmp.ne.s32.totalorder %s45, %s48
    %p54 = scmp.eq.s32.totalorder %s9, 0
    %p55 = por %p53, %p54
    %p56 = scmp.ne.s32.totalorder %s45, %s48
    %p57 = scmp.eq.s32.totalorder %s14, 1
    %p58 = por %p56, %p57
    %p59 = scmp.ne.s32.totalorder %s48, %s49
    %p60 = scmp.eq.s32.totalorder %s14, 0
    %p61 = por %p59, %p60
    %p62 = scmp.ne.s32.totalorder %s48, %s49
    %p63 = scmp.eq.s32.totalorder %s15, 1
    %p64 = por %p62, %p63
    %p66 = scmp.ne.s32.totalorder %s49, %s65
    %p67 = scmp.eq.s32.totalorder %s15, 0
    %p68 = por %p66, %p67
    %s69 = ssub.s32 %s9, %s16
    %p70 = scmp.eq.s32.totalorder %s69, 0
    %s72 = sadd.s32 %s71, 1
    %s73 = scalar_select %p70, %s71, %s72
    %p76 = pneg %p70
    %p77 = scmp.eq.s32.totalorder %s9, 1
    %p78 = por %p76, %p77
    %p79 = scmp.ne.s32.totalorder %s71, %s74
    %p80 = scmp.eq.s32.totalorder %s9, 0
    %p81 = por %p79, %p80
    %p82 = scmp.ne.s32.totalorder %s71, %s74
    %p83 = scmp.eq.s32.totalorder %s14, 1
    %p84 = por %p82, %p83
    %p85 = scmp.ne.s32.totalorder %s74, %s75
    %p86 = scmp.eq.s32.totalorder %s14, 0
    %p87 = por %p85, %p86
    %p88 = scmp.ne.s32.totalorder %s74, %s75
    %p89 = scmp.eq.s32.totalorder %s15, 1
    %p90 = por %p88, %p89
    %p92 = scmp.ne.s32.totalorder %s75, %s91
    %p93 = scmp.eq.s32.totalorder %s15, 0
    %p94 = por %p92, %p93
    %s95 = ssub.s32 %s9, %s16
    %p96 = scmp.eq.s32.totalorder %s95, 0
    %s98 = sadd.s32 %s97, 1
    %s99 = scalar_select %p96, %s97, %s98
    %p102 = pneg %p96
    %p103 = scmp.eq.s32.totalorder %s9, 1
    %p104 = por %p102, %p103
    %p105 = scmp.ne.s32.totalorder %s97, %s100
    %p106 = scmp.eq.s32.totalorder %s9, 0
    %p107 = por %p105, %p106
    %p108 = scmp.ne.s32.totalorder %s97, %s100
    %p109 = scmp.eq.s32.totalorder %s14, 1
    %p110 = por %p108, %p109
    %p111 = scmp.ne.s32.totalorder %s100, %s101
    %p112 = scmp.eq.s32.totalorder %s14, 0
    %p113 = por %p111, %p112
    %p114 = scmp.ne.s32.totalorder %s100, %s101
    %p115 = scmp.eq.s32.totalorder %s15, 1
    %p116 = por %p114, %p115
    %p118 = scmp.ne.s32.totalorder %s101, %s117
    %p119 = scmp.eq.s32.totalorder %s15, 0
    %p120 = por %p118, %p119
    %p121 = scmp.le.s32.totalorder 1, %s9
    %p122 = scmp.lt.s32.totalorder %s9, 3
    %p123 = pnand %p121, %p122
    %p124 = pneg %p123
    // Predicated region
    $region9: #{mca_ed_forward.37} parent=5 // pred_check
      _
    $region10: #{mca_ed_forward.37} parent=5 // pred_check_branch
      %126 = sbr.rel (%p123) target = $region12
    $region11: #{mca_ed_forward.37} parent=5 // pred_region
      %s127 = ssub.s32 %s9, 1
    $region12: #{mca_ed_forward.37} parent=5 // pred_fallthru
      _
    %p128 = scmp.lt.s32.totalorder %s9, 2
    // Predicated region
    $region13: #{mca_ed_forward.37} parent=5 // pred_check
      %p129 = pneg %p128
    $region14: #{mca_ed_forward.37} parent=5 // pred_check_branch
      %131 = sbr.rel (%p129) target = $region16
    $region15: #{mca_ed_forward.37} parent=5 // pred_region
      // Predicated region
      $region17: #{mca_ed_forward.37} parent=15 // pred_check
        %p132 = pneg %p29
      $region18: #{mca_ed_forward.37} parent=15 // pred_check_branch
        %134 = sbr.rel (%p132) target = $region20
      $region19: #{mca_ed_forward.37} parent=15 // pred_region
        %p135 = scmp.lt.s32.totalorder %s9, 1
        %s136 = scalar_select %p135, %s9, 1
        %s137 = smul.addr %s136, 2
        %s138 = smul.addr %s137, 8
        %s139 = scalar_lea.vmem %s0, %s138
      $region20: #{mca_ed_forward.37} parent=15 // pred_fallthru
        _
      // Predicated region
      $region21: #{mca_ed_forward.37} parent=15 // pred_check
        %p140 = pneg %p55
      $region22: #{mca_ed_forward.37} parent=15 // pred_check_branch
        %142 = sbr.rel (%p140) target = $region24
      $region23: #{mca_ed_forward.37} parent=15 // pred_region
        %p143 = scmp.lt.s32.totalorder %s9, 1
        %s144 = scalar_select %p143, %s9, 1
        %s145 = smul.addr %s144, 2
        %s146 = smul.addr %s145, 8
        %s147 = scalar_lea.vmem %s1, %s146
      $region24: #{mca_ed_forward.37} parent=15 // pred_fallthru
        _
      // Predicated region
      $region25: #{mca_ed_forward.37} parent=15 // pred_check
        %p148 = pneg %p81
      $region26: #{mca_ed_forward.37} parent=15 // pred_check_branch
        %150 = sbr.rel (%p148) target = $region28
      $region27: #{mca_ed_forward.37} parent=15 // pred_region
        %p151 = scmp.lt.s32.totalorder %s9, 1
        %s152 = scalar_select %p151, %s9, 1
        %s153 = scalar_lea.vmem %s2, %s152
      $region28: #{mca_ed_forward.37} parent=15 // pred_fallthru
        _
    $region16: #{mca_ed_forward.37} parent=5 // pred_fallthru
      _
    %p154 = scmp.le.s32.totalorder 1, %s9
    %p155 = scmp.lt.s32.totalorder %s9, 3
    %p156 = pnand %p154, %p155
    %p157 = pneg %p156
    // Predicated region
    $region29: #{mca_ed_forward.37} parent=5 // pred_check
      _
    $region30: #{mca_ed_forward.37} parent=5 // pred_check_branch
      %159 = sbr.rel (%p156) target = $region32
    $region31: #{mca_ed_forward.37} parent=5 // pred_region
      %s160 = ssub.s32 %s9, 1
      %p161 = scmp.lt.s32.totalorder %s14, 1
      %s162 = scalar_select %p161, %s14, 1
      %s163 = smul.addr %s162, 2
      %s164 = smul.addr %s163, 8
      %s165 = scalar_lea.vmem %s0, %s164
      %p166 = pneg %p35
      %p167 = pneg %p32
      %p168 = scmp.lt.s32.totalorder %s14, 1
      %s169 = scalar_select %p168, %s14, 1
      %s170 = smul.addr %s169, 2
      %s171 = smul.addr %s170, 8
      %s172 = scalar_lea.vmem %s1, %s171
      %p173 = pneg %p61
      %p174 = pneg %p58
      %p175 = scmp.lt.s32.totalorder %s14, 1
      %s176 = scalar_select %p175, %s14, 1
      %s177 = scalar_lea.vmem %s2, %s176
      %p178 = pneg %p87
      %p179 = pneg %p84
      %p180 = pneg %p113
      %p181 = pneg %p110
      %p182 = scmp.lt.s32.totalorder %s14, 1
      %s183 = scalar_select %p182, %s14, 1
      %s184 = smul.addr %s183, 2
      %s185 = smul.addr %s184, 8
      %s186 = scalar_lea.vmem %s3, %s185
      %p187 = scmp.lt.s32.totalorder %s14, 1
      %s188 = scalar_select %p187, %s14, 1
      %s189 = smul.addr %s188, 2
      %s190 = smul.addr %s189, 8
      %s191 = scalar_lea.vmem %s0, %s190
      %p192 = scmp.lt.s32.totalorder %s14, 1
      %s193 = scalar_select %p192, %s14, 1
      %s194 = smul.addr %s193, 2
      %s195 = smul.addr %s194, 8
      %s196 = scalar_lea.vmem %s1, %s195
      %p197 = scmp.lt.s32.totalorder %s14, 1
      %s198 = scalar_select %p197, %s14, 1
      %s199 = scalar_lea.vmem %s2, %s198
      %p200 = scmp.lt.s32.totalorder %s14, 1
      %s201 = scalar_select %p200, %s14, 1
      %s202 = smul.addr %s201, 2
      %s203 = smul.addr %s202, 8
      %s204 = scalar_lea.vmem %s3, %s203
      %v205 = vld [vmem:[%s191] sm:$0xff]
      %v206 = vld [vmem:[%s191 + $0x8] sm:$0xff]
      %v207 = vld [vmem:[%s196] sm:$0xff]
      %v208 = vld [vmem:[%s196 + $0x8] sm:$0xff]
      %v209 = vld [vmem:[%s199] sm:$0x1]
      %vm210 = vcmask 261120
      %v212 = vsel %vm210, %v205, 0
      %v215 = vsel %vm210, %v206, 0
      %v218 = vsel %vm210, %v207, 0
      %220 = vmatpush.xpose.msra.mxu0 0.0
      %221 = vmatpush.xpose.msra.mxu0 0.0
      %222 = vmatpush.xpose.msra.mxu0 0.0
      %223 = vmatpush.xpose.msra.mxu0 0.0
      %224 = vmatpush.xpose.msra.mxu0 0.0
      %225 = vmatpush.xpose.msra.mxu0 0.0
      %226 = vmatpush.xpose.msra.mxu0 0.0
      %227 = vmatpush.xpose.msra.mxu0 0.0
      %228 = vmatpush.xpose.msra.mxu0 0.0
      %229 = vmatpush.xpose.msra.mxu0 0.0
      %230 = vmatpush.xpose.msra.mxu0 0.0
      %231 = vmatpush.xpose.msra.mxu0 0.0
      %232 = vmatpush.xpose.msra.mxu0 0.0
      %233 = vmatpush.xpose.msra.mxu0 0.0
      %234 = vmatpush.xpose.msra.mxu0 0.0
      %235 = vmatpush.xpose.msra.mxu0 %v218
      %236 = vmatmul.f32.gmra.mxu0 %v212
      %v237 = vpop.f32.mrf.mxu0
      %v238 = vadd.f32 0.0, %v237
      %239 = vmatmul.f32.gmra.mxu0 %v215
      %v240 = vpop.f32.mrf.mxu0
      %v241 = vadd.f32 0.0, %v240
      %242 = vdwg.mxu0
      %v243 = vmul.f32 %v238, 0.17677669
      %v244 = vmul.f32 %v241, 0.17677669
      %vm245 = vcmp.gt.f32.partialorder %v209, 0.5
      %v246 = vsel %vm245, 1, 0
      %v247 = vperm.slane %v246, 0
      %vm248 = vcmp.eq.s32.totalorder %v247, 1
      %v249 = vsel %vm248, -1e+09, %v243
      %v250 = vsel %vm248, -1e+09, %v244
      %vm251 = vcmask 64512
      %v252 = vsel %vm251, %v249, -inf
      %253 = vmax.xlane.f32.xlu0 %v252
      %v254 = vpop.xlane.xlu0 %253
      %v255 = vsel %vm251, %v250, -inf
      %256 = vmax.xlane.f32.xlu0 %v255
      %v257 = vpop.xlane.xlu0 %256
      %v258 = vsub.f32 %v249, %v254
      %v259 = vsub.f32 %v250, %v257
      %v260 = vmul.f32 %v258, 1.442695
      %v261 = vpow.pop %v260
      %v262 = vmul.f32 %v259, 1.442695
      %v263 = vpow.pop %v262
      %v264 = vsel %vm251, %v261, 0.0
      %265 = vadd.xlane.f32.xlu0 %v264
      %v266 = vpop.xlane.xlu0 %265
      %v267 = vsel %vm251, %v263, 0.0
      %268 = vadd.xlane.f32.xlu0 %v267
      %v269 = vpop.xlane.xlu0 %268
      %v270 = vrcp.pop %v266
      %v271 = vrcp.pop %v269
      %v272 = vmul.f32 %v261, %v270
      %v273 = vmul.f32 %v263, %v271
      %v275 = vsel %vm251, %v272, 0
      %v278 = vsel %vm251, %v273, 0
      %280 = vmatpush.msra.mxu0 0.0
      %281 = vmatpush.msra.mxu0 0.0
      %282 = vmatpush.msra.mxu0 0.0
      %283 = vmatpush.msra.mxu0 0.0
      %284 = vmatpush.msra.mxu0 0.0
      %285 = vmatpush.msra.mxu0 0.0
      %286 = vmatpush.msra.mxu0 0.0
      %287 = vmatpush.msra.mxu0 0.0
      %288 = vmatpush.msra.mxu0 0.0
      %289 = vmatpush.msra.mxu0 0.0
      %290 = vmatpush.msra.mxu0 0.0
      %291 = vmatpush.msra.mxu0 0.0
      %292 = vmatpush.msra.mxu0 0.0
      %293 = vmatpush.msra.mxu0 0.0
      %294 = vmatpush.msra.mxu0 0.0
      %295 = vmatpush.msra.mxu0 %v208
      %296 = vmatmul.f32.gmra.mxu0 %v275
      %v297 = vpop.f32.mrf.mxu0
      %v298 = vadd.f32 0.0, %v297
      %299 = vmatmul.f32.gmra.mxu0 %v278
      %v300 = vpop.f32.mrf.mxu0
      %v301 = vadd.f32 0.0, %v300
      %302 = vdwg.mxu0
      %303 = vrot.lane.b32.xlu0 %v205, 96
      %v304 = vpop.permute.xlu0 %303
      %305 = vrot.lane.b32.xlu0 %v206, 96
      %v306 = vpop.permute.xlu0 %305
      %307 = vrot.lane.b32.xlu0 %v207, 96
      %v308 = vpop.permute.xlu0 %307
      %v309 = vsel %vm210, %v304, 0
      %v311 = vsel %vm210, %v306, 0
      %v313 = vsel %vm210, %v308, 0
      %315 = vmatpush.xpose.msra.mxu0 0.0
      %316 = vmatpush.xpose.msra.mxu0 0.0
      %317 = vmatpush.xpose.msra.mxu0 0.0
      %318 = vmatpush.xpose.msra.mxu0 0.0
      %319 = vmatpush.xpose.msra.mxu0 0.0
      %320 = vmatpush.xpose.msra.mxu0 0.0
      %321 = vmatpush.xpose.msra.mxu0 0.0
      %322 = vmatpush.xpose.msra.mxu0 0.0
      %323 = vmatpush.xpose.msra.mxu0 0.0
      %324 = vmatpush.xpose.msra.mxu0 0.0
      %325 = vmatpush.xpose.msra.mxu0 0.0
      %326 = vmatpush.xpose.msra.mxu0 0.0
      %327 = vmatpush.xpose.msra.mxu0 0.0
      %328 = vmatpush.xpose.msra.mxu0 0.0
      %329 = vmatpush.xpose.msra.mxu0 0.0
      %330 = vmatpush.xpose.msra.mxu0 %v313
      %331 = vmatmul.f32.gmra.mxu0 %v309
      %v332 = vpop.f32.mrf.mxu0
      %v333 = vadd.f32 0.0, %v332
      %334 = vmatmul.f32.gmra.mxu0 %v311
      %v335 = vpop.f32.mrf.mxu0
      %v336 = vadd.f32 0.0, %v335
      %337 = vdwg.mxu0
      %v338 = vmul.f32 %v333, 0.17677669
      %v339 = vmul.f32 %v336, 0.17677669
      %v340 = vsel %vm248, -1e+09, %v338
      %v341 = vsel %vm248, -1e+09, %v339
      %v342 = vsel %vm251, %v340, -inf
      %343 = vmax.xlane.f32.xlu0 %v342
      %v344 = vpop.xlane.xlu0 %343
      %v345 = vsel %vm251, %v341, -inf
      %346 = vmax.xlane.f32.xlu0 %v345
      %v347 = vpop.xlane.xlu0 %346
      %v348 = vsub.f32 %v340, %v344
      %v349 = vsub.f32 %v341, %v347
      %v350 = vmul.f32 %v348, 1.442695
      %v351 = vpow.pop %v350
      %v352 = vmul.f32 %v349, 1.442695
      %v353 = vpow.pop %v352
      %v354 = vsel %vm251, %v351, 0.0
      %355 = vadd.xlane.f32.xlu0 %v354
      %v356 = vpop.xlane.xlu0 %355
      %v357 = vsel %vm251, %v353, 0.0
      %358 = vadd.xlane.f32.xlu0 %v357
      %v359 = vpop.xlane.xlu0 %358
      %v360 = vrcp.pop %v356
      %v361 = vrcp.pop %v359
      %v362 = vmul.f32 %v351, %v360
      %v363 = vmul.f32 %v353, %v361
      %365 = vrot.lane.b32.xlu0 %v208, 96
      %v366 = vpop.permute.xlu0 %365
      %v369 = vsel %vm251, %v362, 0
      %v372 = vsel %vm251, %v363, 0
      %374 = vmatpush.msra.mxu0 0.0
      %375 = vmatpush.msra.mxu0 0.0
      %376 = vmatpush.msra.mxu0 0.0
      %377 = vmatpush.msra.mxu0 0.0
      %378 = vmatpush.msra.mxu0 0.0
      %379 = vmatpush.msra.mxu0 0.0
      %380 = vmatpush.msra.mxu0 0.0
      %381 = vmatpush.msra.mxu0 0.0
      %382 = vmatpush.msra.mxu0 0.0
      %383 = vmatpush.msra.mxu0 0.0
      %384 = vmatpush.msra.mxu0 0.0
      %385 = vmatpush.msra.mxu0 0.0
      %386 = vmatpush.msra.mxu0 0.0
      %387 = vmatpush.msra.mxu0 0.0
      %388 = vmatpush.msra.mxu0 0.0
      %389 = vmatpush.msra.mxu0 %v366
      %390 = vmatmul.f32.gmra.mxu0 %v369
      %v391 = vpop.f32.mrf.mxu0
      %v392 = vadd.f32 0.0, %v391
      %393 = vmatmul.f32.gmra.mxu0 %v372
      %v394 = vpop.f32.mrf.mxu0
      %v395 = vadd.f32 0.0, %v394
      %396 = vdwg.mxu0
      %397 = vrot.lane.b32.xlu0 %v205, 64
      %v398 = vpop.permute.xlu0 %397
      %399 = vrot.lane.b32.xlu0 %v206, 64
      %v400 = vpop.permute.xlu0 %399
      %401 = vrot.lane.b32.xlu0 %v207, 64
      %v402 = vpop.permute.xlu0 %401
      %v403 = vsel %vm210, %v398, 0
      %v405 = vsel %vm210, %v400, 0
      %v407 = vsel %vm210, %v402, 0
      %409 = vmatpush.xpose.msra.mxu0 0.0
      %410 = vmatpush.xpose.msra.mxu0 0.0
      %411 = vmatpush.xpose.msra.mxu0 0.0
      %412 = vmatpush.xpose.msra.mxu0 0.0
      %413 = vmatpush.xpose.msra.mxu0 0.0
      %414 = vmatpush.xpose.msra.mxu0 0.0
      %415 = vmatpush.xpose.msra.mxu0 0.0
      %416 = vmatpush.xpose.msra.mxu0 0.0
      %417 = vmatpush.xpose.msra.mxu0 0.0
      %418 = vmatpush.xpose.msra.mxu0 0.0
      %419 = vmatpush.xpose.msra.mxu0 0.0
      %420 = vmatpush.xpose.msra.mxu0 0.0
      %421 = vmatpush.xpose.msra.mxu0 0.0
      %422 = vmatpush.xpose.msra.mxu0 0.0
      %423 = vmatpush.xpose.msra.mxu0 0.0
      %424 = vmatpush.xpose.msra.mxu0 %v407
      %425 = vmatmul.f32.gmra.mxu0 %v403
      %v426 = vpop.f32.mrf.mxu0
      %v427 = vadd.f32 0.0, %v426
      %428 = vmatmul.f32.gmra.mxu0 %v405
      %v429 = vpop.f32.mrf.mxu0
      %v430 = vadd.f32 0.0, %v429
      %431 = vdwg.mxu0
      %v432 = vmul.f32 %v427, 0.17677669
      %v433 = vmul.f32 %v430, 0.17677669
      %v434 = vsel %vm248, -1e+09, %v432
      %v435 = vsel %vm248, -1e+09, %v433
      %v436 = vsel %vm251, %v434, -inf
      %437 = vmax.xlane.f32.xlu0 %v436
      %v438 = vpop.xlane.xlu0 %437
      %v439 = vsel %vm251, %v435, -inf
      %440 = vmax.xlane.f32.xlu0 %v439
      %v441 = vpop.xlane.xlu0 %440
      %v442 = vsub.f32 %v434, %v438
      %v443 = vsub.f32 %v435, %v441
      %v444 = vmul.f32 %v442, 1.442695
      %v445 = vpow.pop %v444
      %v446 = vmul.f32 %v443, 1.442695
      %v447 = vpow.pop %v446
      %v448 = vsel %vm251, %v445, 0.0
      %449 = vadd.xlane.f32.xlu0 %v448
      %v450 = vpop.xlane.xlu0 %449
      %v451 = vsel %vm251, %v447, 0.0
      %452 = vadd.xlane.f32.xlu0 %v451
      %v453 = vpop.xlane.xlu0 %452
      %v454 = vrcp.pop %v450
      %v455 = vrcp.pop %v453
      %v456 = vmul.f32 %v445, %v454
      %v457 = vmul.f32 %v447, %v455
      %458 = vrot.lane.b32.xlu0 %v208, 64
      %v459 = vpop.permute.xlu0 %458
      %v462 = vsel %vm251, %v456, 0
      %v465 = vsel %vm251, %v457, 0
      %467 = vmatpush.msra.mxu0 0.0
      %468 = vmatpush.msra.mxu0 0.0
      %469 = vmatpush.msra.mxu0 0.0
      %470 = vmatpush.msra.mxu0 0.0
      %471 = vmatpush.msra.mxu0 0.0
      %472 = vmatpush.msra.mxu0 0.0
      %473 = vmatpush.msra.mxu0 0.0
      %474 = vmatpush.msra.mxu0 0.0
      %475 = vmatpush.msra.mxu0 0.0
      %476 = vmatpush.msra.mxu0 0.0
      %477 = vmatpush.msra.mxu0 0.0
      %478 = vmatpush.msra.mxu0 0.0
      %479 = vmatpush.msra.mxu0 0.0
      %480 = vmatpush.msra.mxu0 0.0
      %481 = vmatpush.msra.mxu0 0.0
      %482 = vmatpush.msra.mxu0 %v459
      %483 = vmatmul.f32.gmra.mxu0 %v462
      %v484 = vpop.f32.mrf.mxu0
      %v485 = vadd.f32 0.0, %v484
      %486 = vmatmul.f32.gmra.mxu0 %v465
      %v487 = vpop.f32.mrf.mxu0
      %v488 = vadd.f32 0.0, %v487
      %489 = vdwg.mxu0
      %490 = vrot.lane.b32.xlu0 %v205, 32
      %v491 = vpop.permute.xlu0 %490
      %492 = vrot.lane.b32.xlu0 %v206, 32
      %v493 = vpop.permute.xlu0 %492
      %494 = vrot.lane.b32.xlu0 %v207, 32
      %v495 = vpop.permute.xlu0 %494
      %v496 = vsel %vm210, %v491, 0
      %v498 = vsel %vm210, %v493, 0
      %v500 = vsel %vm210, %v495, 0
      %502 = vmatpush.xpose.msra.mxu0 0.0
      %503 = vmatpush.xpose.msra.mxu0 0.0
      %504 = vmatpush.xpose.msra.mxu0 0.0
      %505 = vmatpush.xpose.msra.mxu0 0.0
      %506 = vmatpush.xpose.msra.mxu0 0.0
      %507 = vmatpush.xpose.msra.mxu0 0.0
      %508 = vmatpush.xpose.msra.mxu0 0.0
      %509 = vmatpush.xpose.msra.mxu0 0.0
      %510 = vmatpush.xpose.msra.mxu0 0.0
      %511 = vmatpush.xpose.msra.mxu0 0.0
      %512 = vmatpush.xpose.msra.mxu0 0.0
      %513 = vmatpush.xpose.msra.mxu0 0.0
      %514 = vmatpush.xpose.msra.mxu0 0.0
      %515 = vmatpush.xpose.msra.mxu0 0.0
      %516 = vmatpush.xpose.msra.mxu0 0.0
      %517 = vmatpush.xpose.msra.mxu0 %v500
      %518 = vmatmul.f32.gmra.mxu0 %v496
      %v519 = vpop.f32.mrf.mxu0
      %v520 = vadd.f32 0.0, %v519
      %521 = vmatmul.f32.gmra.mxu0 %v498
      %v522 = vpop.f32.mrf.mxu0
      %v523 = vadd.f32 0.0, %v522
      %524 = vdwg.mxu0
      %v525 = vmul.f32 %v520, 0.17677669
      %v526 = vmul.f32 %v523, 0.17677669
      %v527 = vsel %vm248, -1e+09, %v525
      %v528 = vsel %vm248, -1e+09, %v526
      %v529 = vsel %vm251, %v527, -inf
      %530 = vmax.xlane.f32.xlu0 %v529
      %v531 = vpop.xlane.xlu0 %530
      %v532 = vsel %vm251, %v528, -inf
      %533 = vmax.xlane.f32.xlu0 %v532
      %v534 = vpop.xlane.xlu0 %533
      %v535 = vsub.f32 %v527, %v531
      %v536 = vsub.f32 %v528, %v534
      %v537 = vmul.f32 %v535, 1.442695
      %v538 = vpow.pop %v537
      %v539 = vmul.f32 %v536, 1.442695
      %v540 = vpow.pop %v539
      %v541 = vsel %vm251, %v538, 0.0
      %542 = vadd.xlane.f32.xlu0 %v541
      %v543 = vpop.xlane.xlu0 %542
      %v544 = vsel %vm251, %v540, 0.0
      %545 = vadd.xlane.f32.xlu0 %v544
      %v546 = vpop.xlane.xlu0 %545
      %v547 = vrcp.pop %v543
      %v548 = vrcp.pop %v546
      %v549 = vmul.f32 %v538, %v547
      %v550 = vmul.f32 %v540, %v548
      %551 = vrot.lane.b32.xlu0 %v208, 32
      %v552 = vpop.permute.xlu0 %551
      %v555 = vsel %vm251, %v549, 0
      %v558 = vsel %vm251, %v550, 0
      %560 = vmatpush.msra.mxu0 0.0
      %561 = vmatpush.msra.mxu0 0.0
      %562 = vmatpush.msra.mxu0 0.0
      %563 = vmatpush.msra.mxu0 0.0
      %564 = vmatpush.msra.mxu0 0.0
      %565 = vmatpush.msra.mxu0 0.0
      %566 = vmatpush.msra.mxu0 0.0
      %567 = vmatpush.msra.mxu0 0.0
      %568 = vmatpush.msra.mxu0 0.0
      %569 = vmatpush.msra.mxu0 0.0
      %570 = vmatpush.msra.mxu0 0.0
      %571 = vmatpush.msra.mxu0 0.0
      %572 = vmatpush.msra.mxu0 0.0
      %573 = vmatpush.msra.mxu0 0.0
      %574 = vmatpush.msra.mxu0 0.0
      %575 = vmatpush.msra.mxu0 %v552
      %576 = vmatmul.f32.gmra.mxu0 %v555
      %v577 = vpop.f32.mrf.mxu0
      %v578 = vadd.f32 0.0, %v577
      %579 = vmatmul.f32.gmra.mxu0 %v558
      %v580 = vpop.f32.mrf.mxu0
      %v581 = vadd.f32 0.0, %v580
      %582 = vdwg.mxu0
      %585 = vrot.lane.b32.xlu0 %v392, 32
      %v586 = vpop.permute.xlu0 %585
      %587 = vrot.lane.b32.xlu0 %v395, 32
      %v588 = vpop.permute.xlu0 %587
      %593 = vrot.lane.b32.xlu0 %v485, 64
      %v594 = vpop.permute.xlu0 %593
      %595 = vrot.lane.b32.xlu0 %v488, 64
      %v596 = vpop.permute.xlu0 %595
      %601 = vrot.lane.b32.xlu0 %v578, 96
      %v602 = vpop.permute.xlu0 %601
      %603 = vrot.lane.b32.xlu0 %v581, 96
      %v604 = vpop.permute.xlu0 %603
      %v607 = vsel %vm210, %v298, %v586
      %v608 = vsel %vm210, %v301, %v588
      %vm609 = vcmask 523264
      %v610 = vsel %vm609, %v607, %v594
      %v611 = vsel %vm609, %v608, %v596
      %vm612 = vcmask 785408
      %v613 = vsel %vm612, %v610, %v602
      %v614 = vsel %vm612, %v611, %v604
      %615 = vst [vmem:[%s204] sm:$0xff] %v613
      %616 = vst [vmem:[%s204 + $0x8] sm:$0xff] %v614
      %p617 = scmp.lt.s32.totalorder %s14, 1
      %s618 = scalar_select %p617, %s14, 1
      %s619 = smul.addr %s618, 2
      %s620 = smul.addr %s619, 8
      %s621 = scalar_lea.vmem %s3, %s620
      // Predicated region
      $region33: #{mca_ed_forward.37} parent=31 // pred_check
        %p622 = pneg %p110
      $region34: #{mca_ed_forward.37} parent=31 // pred_check_branch
        %624 = sbr.rel (%p622) target = $region36
      $region35: #{mca_ed_forward.37} parent=31 // pred_region
        _
      $region36: #{mca_ed_forward.37} parent=31 // pred_fallthru
        _
    $region32: #{mca_ed_forward.37} parent=5 // pred_fallthru
      _
    %p625 = scmp.le.s32.totalorder 2, %s9
    // Predicated region
    $region37: #{mca_ed_forward.37} parent=5 // pred_check
      %p626 = pneg %p625
    $region38: #{mca_ed_forward.37} parent=5 // pred_check_branch
      %628 = sbr.rel (%p626) target = $region40
    $region39: #{mca_ed_forward.37} parent=5 // pred_region
      %s629 = ssub.s32 %s9, 2
      // Predicated region
      $region41: #{mca_ed_forward.37} parent=39 // pred_check
        %p630 = pneg %p116
      $region42: #{mca_ed_forward.37} parent=39 // pred_check_branch
        %632 = sbr.rel (%p630) target = $region44
      $region43: #{mca_ed_forward.37} parent=39 // pred_region
        %p633 = scmp.lt.s32.totalorder %s15, 1
        %s634 = scalar_select %p633, %s15, 1
        %s635 = smul.addr %s634, 2
        %s636 = smul.addr %s635, 8
        %s637 = scalar_lea.vmem %s3, %s636
      $region44: #{mca_ed_forward.37} parent=39 // pred_fallthru
        _
    $region40: #{mca_ed_forward.37} parent=5 // pred_fallthru
      _
  $region6: #{mca_ed_forward.37} parent=0 // loop_footer
    %s13 = sadd.s32 1, %s9
  $region7: #{mca_ed_forward.37} parent=0 // loop_footer_branch
    %8 = sbr.rel target = $region3
  $region8: #{mca_ed_forward.37} parent=0 // loop_exit
    _

// kernel: mca_ed_forward.39
$region0: #{mca_ed_forward.39}
  #allocation0 [shape = 'u32[]', space=smem, size = 0x4, offset = 0x4, fixed_abs, tag = 'smem constant byte address 0x4 - core index']
  #allocation1 [shape = 'u32[72,128]{1,0:T(1,128)}', space=vmem, size = 0x9000, scoped, tag = 'internal scratch']
  %s0 = inlined_call_operand.vmem [shape: f32[32,128], index: 0, kind: input, shape index: {}]
  %s1 = inlined_call_operand.hbm [shape: f32[128,512], index: 1, kind: input, shape index: {}]
  %s2 = inlined_call_operand.vmem [shape: f32[1,512], index: 2, kind: input, shape index: {}]
  %s3 = inlined_call_operand.hbm [shape: f32[512,128], index: 3, kind: input, shape index: {}]
  %s4 = inlined_call_operand.vmem [shape: f32[1,128], index: 4, kind: input, shape index: {}]
  %s5 = inlined_call_operand.vmem [shape: f32[1,128], index: 5, kind: input, shape index: {}]
  %s6 = inlined_call_operand.vmem [shape: f32[1,128], index: 6, kind: input, shape index: {}]
  %s7 = inlined_call_operand.vmem [shape: f32[32,128], index: 7, kind: output, shape index: {}]
  %s8 = sld [smem:[#allocation0]]
  $region46: #{mca_ed_forward.39} parent=0
    _
  %s10 = ssub.s32 1, %s8
  %s11 = scalar_select 0, %s10, %s8
  $region1: #{mca_ed_forward.39} parent=0
    #allocation2 [shape = 'u8[262144]{0}', space=vmem, size = 0x40000, scoped, tag = 'input window, operand 1, single buffered']
    #allocation3 [shape = 's32[1]{0}', space=sflag, size = 0x4, scoped, tag = 'scoped memory for mca_ed_forward.39']
    #allocation4 [shape = 'u8[262144]{0}', space=vmem, size = 0x40000, scoped, tag = 'input window, operand 3, single buffered']
    #allocation5 [shape = 's32[1]{0}', space=sflag, size = 0x4, scoped, tag = 'scoped memory for mca_ed_forward.39']
    %12 = vsyncpa [#allocation3], 0
    %13 = vsyncpa [#allocation5], 0
    // Predicated region
    $region2: #{mca_ed_forward.39} parent=1 // pred_check
      _
    $region3: #{mca_ed_forward.39} parent=1 // pred_check_branch
      %15 = sbr.rel (0) target = $region5
    $region4: #{mca_ed_forward.39} parent=1 // pred_region
      _
    $region5: #{mca_ed_forward.39} parent=1 // pred_fallthru
      _
    // Predicated region
    $region6: #{mca_ed_forward.39} parent=1 // pred_check
      _
    $region7: #{mca_ed_forward.39} parent=1 // pred_check_branch
      %17 = sbr.rel (0) target = $region9
    $region8: #{mca_ed_forward.39} parent=1 // pred_region
      %19 = vsyncadd [#allocation3], 0
      %s20 = sshll.u32 %s1, 4
      %s21 = int_to_ptr.hbm [resolvable:$true] %s20
      %s22 = sshll.u32 [#allocation2], 4
      %s23 = int_to_ptr.vmem [resolvable:$true] %s22
      %28 = dma.hbm_to_vmem [thread:$0]  %s21, 8192, %s23, [#allocation3], 512, 512, 32
    $region9: #{mca_ed_forward.39} parent=1 // pred_fallthru
      _
    // Predicated region
    $region10: #{mca_ed_forward.39} parent=1 // pred_check
      _
    $region11: #{mca_ed_forward.39} parent=1 // pred_check_branch
      %30 = sbr.rel (0) target = $region13
    $region12: #{mca_ed_forward.39} parent=1 // pred_region
      _
    $region13: #{mca_ed_forward.39} parent=1 // pred_fallthru
      _
    // Predicated region
    $region14: #{mca_ed_forward.39} parent=1 // pred_check
      _
    $region15: #{mca_ed_forward.39} parent=1 // pred_check_branch
      %32 = sbr.rel (0) target = $region17
    $region16: #{mca_ed_forward.39} parent=1 // pred_region
      %34 = vsyncadd [#allocation5], 0
      %s35 = sshll.u32 %s3, 4
      %s36 = int_to_ptr.hbm [resolvable:$true] %s35
      %s37 = sshll.u32 [#allocation4], 4
      %s38 = int_to_ptr.vmem [resolvable:$true] %s37
      %43 = dma.hbm_to_vmem [thread:$0]  %s36, 8192, %s38, [#allocation5], 128, 128, 8
    $region17: #{mca_ed_forward.39} parent=1 // pred_fallthru
      _
    // Predicated region
    $region18: #{mca_ed_forward.39} parent=1 // pred_check
      _
    $region19: #{mca_ed_forward.39} parent=1 // pred_check_branch
      %45 = sbr.rel (0) target = $region21
    $region20: #{mca_ed_forward.39} parent=1 // pred_region
      _
    $region21: #{mca_ed_forward.39} parent=1 // pred_fallthru
      _
    // Predicated region
    $region22: #{mca_ed_forward.39} parent=1 // pred_check
      _
    $region23: #{mca_ed_forward.39} parent=1 // pred_check_branch
      %47 = sbr.rel (0) target = $region25
    $region24: #{mca_ed_forward.39} parent=1 // pred_region
      _
    $region25: #{mca_ed_forward.39} parent=1 // pred_fallthru
      _
    // Predicated region
    $region26: #{mca_ed_forward.39} parent=1 // pred_check
      _
    $region27: #{mca_ed_forward.39} parent=1 // pred_check_branch
      %49 = sbr.rel (0) target = $region29
    $region28: #{mca_ed_forward.39} parent=1 // pred_region
      _
    $region29: #{mca_ed_forward.39} parent=1 // pred_fallthru
      _
    // Predicated region
    $region30: #{mca_ed_forward.39} parent=1 // pred_check
      _
    $region31: #{mca_ed_forward.39} parent=1 // pred_check_branch
      %51 = sbr.rel (0) target = $region33
    $region32: #{mca_ed_forward.39} parent=1 // pred_region
      %53 = dma.done [#allocation3], 8192
    $region33: #{mca_ed_forward.39} parent=1 // pred_fallthru
      _
    // Predicated region
    $region34: #{mca_ed_forward.39} parent=1 // pred_check
      _
    $region35: #{mca_ed_forward.39} parent=1 // pred_check_branch
      %55 = sbr.rel (0) target = $region37
    $region36: #{mca_ed_forward.39} parent=1 // pred_region
      %57 = dma.done [#allocation5], 8192
    $region37: #{mca_ed_forward.39} parent=1 // pred_fallthru
      _
    %v58 = vld [vmem:[%s0] sm:$0xff]
    %v59 = vld [vmem:[%s0 + $0x8] sm:$0xff]
    %v60 = vld [vmem:[%s0 + $0x10] sm:$0xff]
    %v61 = vld [vmem:[%s0 + $0x18] sm:$0xff]
    %v62 = vld [vmem:[#allocation2] sm:$0xff]
    %v63 = vld [vmem:[#allocation2 + $0x8] sm:$0xff]
    %v64 = vld [vmem:[#allocation2 + $0x10] sm:$0xff]
    %v65 = vld [vmem:[#allocation2 + $0x18] sm:$0xff]
    %v66 = vld [vmem:[#allocation2 + $0x20] sm:$0xff]
    %v67 = vld [vmem:[#allocation2 + $0x28] sm:$0xff]
    %v68 = vld [vmem:[#allocation2 + $0x30] sm:$0xff]
    %v69 = vld [vmem:[#allocation2 + $0x38] sm:$0xff]
    %v70 = vld [vmem:[#allocation2 + $0x40] sm:$0xff]
    %v71 = vld [vmem:[#allocation2 + $0x48] sm:$0xff]
    %v72 = vld [vmem:[#allocation2 + $0x50] sm:$0xff]
    %v73 = vld [vmem:[#allocation2 + $0x58] sm:$0xff]
    %v74 = vld [vmem:[#allocation2 + $0x60] sm:$0xff]
    %v75 = vld [vmem:[#allocation2 + $0x68] sm:$0xff]
    %v76 = vld [vmem:[#allocation2 + $0x70] sm:$0xff]
    %v77 = vld [vmem:[#allocation2 + $0x78] sm:$0xff]
    %v78 = vld [vmem:[#allocation2 + $0x80] sm:$0xff]
    %v79 = vld [vmem:[#allocation2 + $0x88] sm:$0xff]
    %v80 = vld [vmem:[#allocation2 + $0x90] sm:$0xff]
    %v81 = vld [vmem:[#allocation2 + $0x98] sm:$0xff]
    %v82 = vld [vmem:[#allocation2 + $0xa0] sm:$0xff]
    %v83 = vld [vmem:[#allocation2 + $0xa8] sm:$0xff]
    %v84 = vld [vmem:[#allocation2 + $0xb0] sm:$0xff]
    %v85 = vld [vmem:[#allocation2 + $0xb8] sm:$0xff]
    %v86 = vld [vmem:[#allocation2 + $0xc0] sm:$0xff]
    %v87 = vld [vmem:[#allocation2 + $0xc8] sm:$0xff]
    %v88 = vld [vmem:[#allocation2 + $0xd0] sm:$0xff]
    %v89 = vld [vmem:[#allocation2 + $0xd8] sm:$0xff]
    %v90 = vld [vmem:[#allocation2 + $0xe0] sm:$0xff]
    %v91 = vld [vmem:[#allocation2 + $0xe8] sm:$0xff]
    %v92 = vld [vmem:[#allocation2 + $0xf0] sm:$0xff]
    %v93 = vld [vmem:[#allocation2 + $0xf8] sm:$0xff]
    %v94 = vld [vmem:[#allocation2 + $0x100] sm:$0xff]
    %v95 = vld [vmem:[#allocation2 + $0x108] sm:$0xff]
    %v96 = vld [vmem:[#allocation2 + $0x110] sm:$0xff]
    %v97 = vld [vmem:[#allocation2 + $0x118] sm:$0xff]
    %v98 = vld [vmem:[#allocation2 + $0x120] sm:$0xff]
    %v99 = vld [vmem:[#allocation2 + $0x128] sm:$0xff]
    %v100 = vld [vmem:[#allocation2 + $0x130] sm:$0xff]
    %v101 = vld [vmem:[#allocation2 + $0x138] sm:$0xff]
    %v102 = vld [vmem:[#allocation2 + $0x140] sm:$0xff]
    %v103 = vld [vmem:[#allocation2 + $0x148] sm:$0xff]
    %v104 = vld [vmem:[#allocation2 + $0x150] sm:$0xff]
    %v105 = vld [vmem:[#allocation2 + $0x158] sm:$0xff]
    %v106 = vld [vmem:[#allocation2 + $0x160] sm:$0xff]
    %v107 = vld [vmem:[#allocation2 + $0x168] sm:$0xff]
    %v108 = vld [vmem:[#allocation2 + $0x170] sm:$0xff]
    %v109 = vld [vmem:[#allocation2 + $0x178] sm:$0xff]
    %v110 = vld [vmem:[#allocation2 + $0x180] sm:$0xff]
    %v111 = vld [vmem:[#allocation2 + $0x188] sm:$0xff]
    %v112 = vld [vmem:[#allocation2 + $0x190] sm:$0xff]
    %v113 = vld [vmem:[#allocation2 + $0x198] sm:$0xff]
    %v114 = vld [vmem:[#allocation2 + $0x1a0] sm:$0xff]
    %v115 = vld [vmem:[#allocation2 + $0x1a8] sm:$0xff]
    %v116 = vld [vmem:[#allocation2 + $0x1b0] sm:$0xff]
    %v117 = vld [vmem:[#allocation2 + $0x1b8] sm:$0xff]
    %v118 = vld [vmem:[#allocation2 + $0x1c0] sm:$0xff]
    %v119 = vld [vmem:[#allocation2 + $0x1c8] sm:$0xff]
    %v120 = vld [vmem:[#allocation2 + $0x1d0] sm:$0xff]
    %v121 = vld [vmem:[#allocation2 + $0x1d8] sm:$0xff]
    %v122 = vld [vmem:[#allocation2 + $0x1e0] sm:$0xff]
    %v123 = vld [vmem:[#allocation2 + $0x1e8] sm:$0xff]
    %v124 = vld [vmem:[#allocation2 + $0x1f0] sm:$0xff]
    %v125 = vld [vmem:[#allocation2 + $0x1f8] sm:$0xff]
    %v126 = vld [vmem:[%s2] sm:$0xf]
    %v128 = vperm.slane %v126, 0
    %v129 = vperm.slane %v126, 1
    %v130 = vperm.slane %v126, 2
    %v131 = vperm.slane %v126, 3
    %136 = vmatpush.msra.mxu0 %v122
    %137 = vmatpush.msra.mxu0 %v118
    %138 = vmatpush.msra.mxu0 %v114
    %139 = vmatpush.msra.mxu0 %v110
    %140 = vmatpush.msra.mxu0 %v106
    %141 = vmatpush.msra.mxu0 %v102
    %142 = vmatpush.msra.mxu0 %v98
    %143 = vmatpush.msra.mxu0 %v94
    %144 = vmatpush.msra.mxu0 %v90
    %145 = vmatpush.msra.mxu0 %v86
    %146 = vmatpush.msra.mxu0 %v82
    %147 = vmatpush.msra.mxu0 %v78
    %148 = vmatpush.msra.mxu0 %v74
    %149 = vmatpush.msra.mxu0 %v70
    %150 = vmatpush.msra.mxu0 %v66
    %151 = vmatpush.msra.mxu0 %v62
    %152 = vmatmul.f32.gmra.mxu0 %v58
    %v153 = vpop.f32.mrf.mxu0
    %v154 = vadd.f32 %v128, %v153
    %155 = vmatmul.f32.gmra.mxu0 %v59
    %v156 = vpop.f32.mrf.mxu0
    %v157 = vadd.f32 %v128, %v156
    %158 = vmatmul.f32.gmra.mxu0 %v60
    %v159 = vpop.f32.mrf.mxu0
    %v160 = vadd.f32 %v128, %v159
    %161 = vmatmul.f32.gmra.mxu0 %v61
    %v162 = vpop.f32.mrf.mxu0
    %v163 = vadd.f32 %v128, %v162
    %164 = vdwg.mxu0
    %165 = vmatpush.msra.mxu0 %v123
    %166 = vmatpush.msra.mxu0 %v119
    %167 = vmatpush.msra.mxu0 %v115
    %168 = vmatpush.msra.mxu0 %v111
    %169 = vmatpush.msra.mxu0 %v107
    %170 = vmatpush.msra.mxu0 %v103
    %171 = vmatpush.msra.mxu0 %v99
    %172 = vmatpush.msra.mxu0 %v95
    %173 = vmatpush.msra.mxu0 %v91
    %174 = vmatpush.msra.mxu0 %v87
    %175 = vmatpush.msra.mxu0 %v83
    %176 = vmatpush.msra.mxu0 %v79
    %177 = vmatpush.msra.mxu0 %v75
    %178 = vmatpush.msra.mxu0 %v71
    %179 = vmatpush.msra.mxu0 %v67
    %180 = vmatpush.msra.mxu0 %v63
    %181 = vmatmul.f32.gmra.mxu0 %v58
    %v182 = vpop.f32.mrf.mxu0
    %v183 = vadd.f32 %v129, %v182
    %184 = vmatmul.f32.gmra.mxu0 %v59
    %v185 = vpop.f32.mrf.mxu0
    %v186 = vadd.f32 %v129, %v185
    %187 = vmatmul.f32.gmra.mxu0 %v60
    %v188 = vpop.f32.mrf.mxu0
    %v189 = vadd.f32 %v129, %v188
    %190 = vmatmul.f32.gmra.mxu0 %v61
    %v191 = vpop.f32.mrf.mxu0
    %v192 = vadd.f32 %v129, %v191
    %193 = vdwg.mxu0
    %194 = vmatpush.msra.mxu0 %v124
    %195 = vmatpush.msra.mxu0 %v120
    %196 = vmatpush.msra.mxu0 %v116
    %197 = vmatpush.msra.mxu0 %v112
    %198 = vmatpush.msra.mxu0 %v108
    %199 = vmatpush.msra.mxu0 %v104
    %200 = vmatpush.msra.mxu0 %v100
    %201 = vmatpush.msra.mxu0 %v96
    %202 = vmatpush.msra.mxu0 %v92
    %203 = vmatpush.msra.mxu0 %v88
    %204 = vmatpush.msra.mxu0 %v84
    %205 = vmatpush.msra.mxu0 %v80
    %206 = vmatpush.msra.mxu0 %v76
    %207 = vmatpush.msra.mxu0 %v72
    %208 = vmatpush.msra.mxu0 %v68
    %209 = vmatpush.msra.mxu0 %v64
    %210 = vmatmul.f32.gmra.mxu0 %v58
    %v211 = vpop.f32.mrf.mxu0
    %v212 = vadd.f32 %v130, %v211
    %213 = vmatmul.f32.gmra.mxu0 %v59
    %v214 = vpop.f32.mrf.mxu0
    %v215 = vadd.f32 %v130, %v214
    %216 = vmatmul.f32.gmra.mxu0 %v60
    %v217 = vpop.f32.mrf.mxu0
    %v218 = vadd.f32 %v130, %v217
    %219 = vmatmul.f32.gmra.mxu0 %v61
    %v220 = vpop.f32.mrf.mxu0
    %v221 = vadd.f32 %v130, %v220
    %222 = vdwg.mxu0
    %223 = vmatpush.msra.mxu0 %v125
    %224 = vmatpush.msra.mxu0 %v121
    %225 = vmatpush.msra.mxu0 %v117
    %226 = vmatpush.msra.mxu0 %v113
    %227 = vmatpush.msra.mxu0 %v109
    %228 = vmatpush.msra.mxu0 %v105
    %229 = vmatpush.msra.mxu0 %v101
    %230 = vmatpush.msra.mxu0 %v97
    %231 = vmatpush.msra.mxu0 %v93
    %232 = vmatpush.msra.mxu0 %v89
    %233 = vmatpush.msra.mxu0 %v85
    %234 = vmatpush.msra.mxu0 %v81
    %235 = vmatpush.msra.mxu0 %v77
    %236 = vmatpush.msra.mxu0 %v73
    %237 = vmatpush.msra.mxu0 %v69
    %238 = vmatpush.msra.mxu0 %v65
    %239 = vmatmul.f32.gmra.mxu0 %v58
    %v240 = vpop.f32.mrf.mxu0
    %v241 = vadd.f32 %v131, %v240
    %242 = vmatmul.f32.gmra.mxu0 %v59
    %v243 = vpop.f32.mrf.mxu0
    %v244 = vadd.f32 %v131, %v243
    %245 = vmatmul.f32.gmra.mxu0 %v60
    %v246 = vpop.f32.mrf.mxu0
    %v247 = vadd.f32 %v131, %v246
    %248 = vmatmul.f32.gmra.mxu0 %v61
    %v249 = vpop.f32.mrf.mxu0
    %v250 = vadd.f32 %v131, %v249
    %251 = vdwg.mxu0
    %v252 = vmax.f32 %v154, 0.0
    %v253 = vmax.f32 %v183, 0.0
    %v254 = vmax.f32 %v212, 0.0
    %v255 = vmax.f32 %v241, 0.0
    %v256 = vmax.f32 %v157, 0.0
    %v257 = vmax.f32 %v186, 0.0
    %v258 = vmax.f32 %v215, 0.0
    %v259 = vmax.f32 %v244, 0.0
    %v260 = vmax.f32 %v160, 0.0
    %v261 = vmax.f32 %v189, 0.0
    %v262 = vmax.f32 %v218, 0.0
    %v263 = vmax.f32 %v247, 0.0
    %v264 = vmax.f32 %v163, 0.0
    %v265 = vmax.f32 %v192, 0.0
    %v266 = vmax.f32 %v221, 0.0
    %v267 = vmax.f32 %v250, 0.0
    %v268 = vld [vmem:[#allocation4] sm:$0xff]
    %v269 = vld [vmem:[#allocation4 + $0x8] sm:$0xff]
    %v270 = vld [vmem:[#allocation4 + $0x10] sm:$0xff]
    %v271 = vld [vmem:[#allocation4 + $0x18] sm:$0xff]
    %v272 = vld [vmem:[#allocation4 + $0x20] sm:$0xff]
    %v273 = vld [vmem:[#allocation4 + $0x28] sm:$0xff]
    %v274 = vld [vmem:[#allocation4 + $0x30] sm:$0xff]
    %v275 = vld [vmem:[#allocation4 + $0x38] sm:$0xff]
    %v276 = vld [vmem:[#allocation4 + $0x40] sm:$0xff]
    %v277 = vld [vmem:[#allocation4 + $0x48] sm:$0xff]
    %v278 = vld [vmem:[#allocation4 + $0x50] sm:$0xff]
    %v279 = vld [vmem:[#allocation4 + $0x58] sm:$0xff]
    %v280 = vld [vmem:[#allocation4 + $0x60] sm:$0xff]
    %v281 = vld [vmem:[#allocation4 + $0x68] sm:$0xff]
    %v282 = vld [vmem:[#allocation4 + $0x70] sm:$0xff]
    %v283 = vld [vmem:[#allocation4 + $0x78] sm:$0xff]
    %v284 = vld [vmem:[#allocation4 + $0x80] sm:$0xff]
    %v285 = vld [vmem:[#allocation4 + $0x88] sm:$0xff]
    %v286 = vld [vmem:[#allocation4 + $0x90] sm:$0xff]
    %v287 = vld [vmem:[#allocation4 + $0x98] sm:$0xff]
    %v288 = vld [vmem:[#allocation4 + $0xa0] sm:$0xff]
    %v289 = vld [vmem:[#allocation4 + $0xa8] sm:$0xff]
    %v290 = vld [vmem:[#allocation4 + $0xb0] sm:$0xff]
    %v291 = vld [vmem:[#allocation4 + $0xb8] sm:$0xff]
    %v292 = vld [vmem:[#allocation4 + $0xc0] sm:$0xff]
    %v293 = vld [vmem:[#allocation4 + $0xc8] sm:$0xff]
    %v294 = vld [vmem:[#allocation4 + $0xd0] sm:$0xff]
    %v295 = vld [vmem:[#allocation4 + $0xd8] sm:$0xff]
    %v296 = vld [vmem:[#allocation4 + $0xe0] sm:$0xff]
    %v297 = vld [vmem:[#allocation4 + $0xe8] sm:$0xff]
    %v298 = vld [vmem:[#allocation4 + $0xf0] sm:$0xff]
    %v299 = vld [vmem:[#allocation4 + $0xf8] sm:$0xff]
    %v300 = vld [vmem:[#allocation4 + $0x100] sm:$0xff]
    %v301 = vld [vmem:[#allocation4 + $0x108] sm:$0xff]
    %v302 = vld [vmem:[#allocation4 + $0x110] sm:$0xff]
    %v303 = vld [vmem:[#allocation4 + $0x118] sm:$0xff]
    %v304 = vld [vmem:[#allocation4 + $0x120] sm:$0xff]
    %v305 = vld [vmem:[#allocation4 + $0x128] sm:$0xff]
    %v306 = vld [vmem:[#allocation4 + $0x130] sm:$0xff]
    %v307 = vld [vmem:[#allocation4 + $0x138] sm:$0xff]
    %v308 = vld [vmem:[#allocation4 + $0x140] sm:$0xff]
    %v309 = vld [vmem:[#allocation4 + $0x148] sm:$0xff]
    %v310 = vld [vmem:[#allocation4 + $0x150] sm:$0xff]
    %v311 = vld [vmem:[#allocation4 + $0x158] sm:$0xff]
    %v312 = vld [vmem:[#allocation4 + $0x160] sm:$0xff]
    %v313 = vld [vmem:[#allocation4 + $0x168] sm:$0xff]
    %v314 = vld [vmem:[#allocation4 + $0x170] sm:$0xff]
    %v315 = vld [vmem:[#allocation4 + $0x178] sm:$0xff]
    %v316 = vld [vmem:[#allocation4 + $0x180] sm:$0xff]
    %v317 = vld [vmem:[#allocation4 + $0x188] sm:$0xff]
    %v318 = vld [vmem:[#allocation4 + $0x190] sm:$0xff]
    %v319 = vld [vmem:[#allocation4 + $0x198] sm:$0xff]
    %v320 = vld [vmem:[#allocation4 + $0x1a0] sm:$0xff]
    %v321 = vld [vmem:[#allocation4 + $0x1a8] sm:$0xff]
    %v322 = vld [vmem:[#allocation4 + $0x1b0] sm:$0xff]
    %v323 = vld [vmem:[#allocation4 + $0x1b8] sm:$0xff]
    %v324 = vld [vmem:[#allocation4 + $0x1c0] sm:$0xff]
    %v325 = vld [vmem:[#allocation4 + $0x1c8] sm:$0xff]
    %v326 = vld [vmem:[#allocation4 + $0x1d0] sm:$0xff]
    %v327 = vld [vmem:[#allocation4 + $0x1d8] sm:$0xff]
    %v328 = vld [vmem:[#allocation4 + $0x1e0] sm:$0xff]
    %v329 = vld [vmem:[#allocation4 + $0x1e8] sm:$0xff]
    %v330 = vld [vmem:[#allocation4 + $0x1f0] sm:$0xff]
    %v331 = vld [vmem:[#allocation4 + $0x1f8] sm:$0xff]
    %v332 = vld [vmem:[%s4] sm:$0x1]
    %v334 = vperm.slane %v332, 0
    %336 = vmatpush.msra.mxu0 %v283
    %337 = vmatpush.msra.mxu0 %v282
    %338 = vmatpush.msra.mxu0 %v281
    %339 = vmatpush.msra.mxu0 %v280
    %340 = vmatpush.msra.mxu0 %v279
    %341 = vmatpush.msra.mxu0 %v278
    %342 = vmatpush.msra.mxu0 %v277
    %343 = vmatpush.msra.mxu0 %v276
    %344 = vmatpush.msra.mxu0 %v275
    %345 = vmatpush.msra.mxu0 %v274
    %346 = vmatpush.msra.mxu0 %v273
    %347 = vmatpush.msra.mxu0 %v272
    %348 = vmatpush.msra.mxu0 %v271
    %349 = vmatpush.msra.mxu0 %v270
    %350 = vmatpush.msra.mxu0 %v269
    %351 = vmatpush.msra.mxu0 %v268
    %352 = vmatmul.f32.gmra.mxu0 %v252
    %v353 = vpop.f32.mrf.mxu0
    %v354 = vadd.f32 %v334, %v353
    %355 = vmatmul.f32.gmra.mxu0 %v256
    %v356 = vpop.f32.mrf.mxu0
    %v357 = vadd.f32 %v334, %v356
    %358 = vmatmul.f32.gmra.mxu0 %v260
    %v359 = vpop.f32.mrf.mxu0
    %v360 = vadd.f32 %v334, %v359
    %361 = vmatmul.f32.gmra.mxu0 %v264
    %v362 = vpop.f32.mrf.mxu0
    %v363 = vadd.f32 %v334, %v362
    %364 = vdwg.mxu0
    %365 = vmatpush.msra.mxu0 %v299
    %366 = vmatpush.msra.mxu0 %v298
    %367 = vmatpush.msra.mxu0 %v297
    %368 = vmatpush.msra.mxu0 %v296
    %369 = vmatpush.msra.mxu0 %v295
    %370 = vmatpush.msra.mxu0 %v294
    %371 = vmatpush.msra.mxu0 %v293
    %372 = vmatpush.msra.mxu0 %v292
    %373 = vmatpush.msra.mxu0 %v291
    %374 = vmatpush.msra.mxu0 %v290
    %375 = vmatpush.msra.mxu0 %v289
    %376 = vmatpush.msra.mxu0 %v288
    %377 = vmatpush.msra.mxu0 %v287
    %378 = vmatpush.msra.mxu0 %v286
    %379 = vmatpush.msra.mxu0 %v285
    %380 = vmatpush.msra.mxu0 %v284
    %381 = vmatmul.f32.gmra.mxu0 %v253
    %v382 = vpop.f32.mrf.mxu0
    %v383 = vadd.f32 %v354, %v382
    %384 = vmatmul.f32.gmra.mxu0 %v257
    %v385 = vpop.f32.mrf.mxu0
    %v386 = vadd.f32 %v357, %v385
    %387 = vmatmul.f32.gmra.mxu0 %v261
    %v388 = vpop.f32.mrf.mxu0
    %v389 = vadd.f32 %v360, %v388
    %390 = vmatmul.f32.gmra.mxu0 %v265
    %v391 = vpop.f32.mrf.mxu0
    %v392 = vadd.f32 %v363, %v391
    %393 = vdwg.mxu0
    %394 = vmatpush.msra.mxu0 %v315
    %395 = vmatpush.msra.mxu0 %v314
    %396 = vmatpush.msra.mxu0 %v313
    %397 = vmatpush.msra.mxu0 %v312
    %398 = vmatpush.msra.mxu0 %v311
    %399 = vmatpush.msra.mxu0 %v310
    %400 = vmatpush.msra.mxu0 %v309
    %401 = vmatpush.msra.mxu0 %v308
    %402 = vmatpush.msra.mxu0 %v307
    %403 = vmatpush.msra.mxu0 %v306
    %404 = vmatpush.msra.mxu0 %v305
    %405 = vmatpush.msra.mxu0 %v304
    %406 = vmatpush.msra.mxu0 %v303
    %407 = vmatpush.msra.mxu0 %v302
    %408 = vmatpush.msra.mxu0 %v301
    %409 = vmatpush.msra.mxu0 %v300
    %410 = vmatmul.f32.gmra.mxu0 %v254
    %v411 = vpop.f32.mrf.mxu0
    %v412 = vadd.f32 %v383, %v411
    %413 = vmatmul.f32.gmra.mxu0 %v258
    %v414 = vpop.f32.mrf.mxu0
    %v415 = vadd.f32 %v386, %v414
    %416 = vmatmul.f32.gmra.mxu0 %v262
    %v417 = vpop.f32.mrf.mxu0
    %v418 = vadd.f32 %v389, %v417
    %419 = vmatmul.f32.gmra.mxu0 %v266
    %v420 = vpop.f32.mrf.mxu0
    %v421 = vadd.f32 %v392, %v420
    %422 = vdwg.mxu0
    %423 = vmatpush.msra.mxu0 %v331
    %424 = vmatpush.msra.mxu0 %v330
    %425 = vmatpush.msra.mxu0 %v329
    %426 = vmatpush.msra.mxu0 %v328
    %427 = vmatpush.msra.mxu0 %v327
    %428 = vmatpush.msra.mxu0 %v326
    %429 = vmatpush.msra.mxu0 %v325
    %430 = vmatpush.msra.mxu0 %v324
    %431 = vmatpush.msra.mxu0 %v323
    %432 = vmatpush.msra.mxu0 %v322
    %433 = vmatpush.msra.mxu0 %v321
    %434 = vmatpush.msra.mxu0 %v320
    %435 = vmatpush.msra.mxu0 %v319
    %436 = vmatpush.msra.mxu0 %v318
    %437 = vmatpush.msra.mxu0 %v317
    %438 = vmatpush.msra.mxu0 %v316
    %439 = vmatmul.f32.gmra.mxu0 %v255
    %v440 = vpop.f32.mrf.mxu0
    %v441 = vadd.f32 %v412, %v440
    %442 = vmatmul.f32.gmra.mxu0 %v259
    %v443 = vpop.f32.mrf.mxu0
    %v444 = vadd.f32 %v415, %v443
    %445 = vmatmul.f32.gmra.mxu0 %v263
    %v446 = vpop.f32.mrf.mxu0
    %v447 = vadd.f32 %v418, %v446
    %448 = vmatmul.f32.gmra.mxu0 %v267
    %v449 = vpop.f32.mrf.mxu0
    %v450 = vadd.f32 %v421, %v449
    %451 = vdwg.mxu0
    %v452 = vadd.f32 %v58, %v441
    %v453 = vadd.f32 %v59, %v444
    %v454 = vadd.f32 %v60, %v447
    %v455 = vadd.f32 %v61, %v450
    %v456 = vld [vmem:[%s5] sm:$0x1]
    %v457 = vld [vmem:[%s6] sm:$0x1]
    %458 = vadd.xlane.f32.xlu0 %v452
    %v459 = vpop.xlane.xlu0 %458
    %460 = vadd.xlane.f32.xlu0 %v453
    %v461 = vpop.xlane.xlu0 %460
    %462 = vadd.xlane.f32.xlu0 %v454
    %v463 = vpop.xlane.xlu0 %462
    %464 = vadd.xlane.f32.xlu0 %v455
    %v465 = vpop.xlane.xlu0 %464
    %v466 = vrcp.pop 128.0
    %v467 = vmul.f32 128.0, %v466
    %v468 = vsub.f32 1.0, %v467
    %v469 = vmul.f32 %v466, %v468
    %v470 = vadd.f32 %v466, %v469
    %vm471 = vweird.f32 %v466
    %v472 = vsel %vm471, %v466, %v470
    %v473 = vmul.f32 %v459, %v472
    %v474 = vmul.f32 %v461, %v472
    %v475 = vmul.f32 %v463, %v472
    %v476 = vmul.f32 %v465, %v472
    %v477 = vsub.f32 %v452, %v473
    %v478 = vsub.f32 %v453, %v474
    %v479 = vsub.f32 %v454, %v475
    %v480 = vsub.f32 %v455, %v476
    %v481 = vmul.f32 %v477, %v477
    %v482 = vmul.f32 %v478, %v478
    %v483 = vmul.f32 %v479, %v479
    %v484 = vmul.f32 %v480, %v480
    %485 = vadd.xlane.f32.xlu0 %v481
    %v486 = vpop.xlane.xlu0 %485
    %487 = vadd.xlane.f32.xlu0 %v482
    %v488 = vpop.xlane.xlu0 %487
    %489 = vadd.xlane.f32.xlu0 %v483
    %v490 = vpop.xlane.xlu0 %489
    %491 = vadd.xlane.f32.xlu0 %v484
    %v492 = vpop.xlane.xlu0 %491
    %v493 = vmul.f32 %v486, 0.007874016
    %v494 = vmul.f32 %v488, 0.007874016
    %v495 = vmul.f32 %v490, 0.007874016
    %v496 = vmul.f32 %v492, 0.007874016
    %v497 = vrsqrt.pop %v493
    %v498 = vmul.f32 %v497, %v493
    %v499 = vmul.f32 %v498, %v497
    %v500 = vmul.f32 0.5, %v499
    %v501 = vsub.f32 1.5, %v500
    %v502 = vmul.f32 %v497, %v501
    %v503 = vmul.f32 %v493, %v502
    %vm504 = vcmp.eq.f32.partialorder %v493, inf
    %v505 = vsel %vm504, %v493, %v503
    %vm506 = vcmp.eq.f32.partialorder %v493, 0.0
    %v507 = vand.u32 %v493, 2147483648
    %v508 = vsel %vm506, %v507, %v505
    %v509 = vrsqrt.pop %v494
    %v510 = vmul.f32 %v509, %v494
    %v511 = vmul.f32 %v510, %v509
    %v512 = vmul.f32 0.5, %v511
    %v513 = vsub.f32 1.5, %v512
    %v514 = vmul.f32 %v509, %v513
    %v515 = vmul.f32 %v494, %v514
    %vm516 = vcmp.eq.f32.partialorder %v494, inf
    %v517 = vsel %vm516, %v494, %v515
    %vm518 = vcmp.eq.f32.partialorder %v494, 0.0
    %v519 = vand.u32 %v494, 2147483648
    %v520 = vsel %vm518, %v519, %v517
    %v521 = vrsqrt.pop %v495
    %v522 = vmul.f32 %v521, %v495
    %v523 = vmul.f32 %v522, %v521
    %v524 = vmul.f32 0.5, %v523
    %v525 = vsub.f32 1.5, %v524
    %v526 = vmul.f32 %v521, %v525
    %v527 = vmul.f32 %v495, %v526
    %vm528 = vcmp.eq.f32.partialorder %v495, inf
    %v529 = vsel %vm528, %v495, %v527
    %vm530 = vcmp.eq.f32.partialorder %v495, 0.0
    %v531 = vand.u32 %v495, 2147483648
    %v532 = vsel %vm530, %v531, %v529
    %v533 = vrsqrt.pop %v496
    %v534 = vmul.f32 %v533, %v496
    %v535 = vmul.f32 %v534, %v533
    %v536 = vmul.f32 0.5, %v535
    %v537 = vsub.f32 1.5, %v536
    %v538 = vmul.f32 %v533, %v537
    %v539 = vmul.f32 %v496, %v538
    %vm540 = vcmp.eq.f32.partialorder %v496, inf
    %v541 = vsel %vm540, %v496, %v539
    %vm542 = vcmp.eq.f32.partialorder %v496, 0.0
    %v543 = vand.u32 %v496, 2147483648
    %v544 = vsel %vm542, %v543, %v541
    %v545 = vadd.f32 %v508, 1e-06
    %v546 = vadd.f32 %v520, 1e-06
    %v547 = vadd.f32 %v532, 1e-06
    %v548 = vadd.f32 %v544, 1e-06
    %v549 = vrcp.pop %v545
    %v550 = vrcp.pop %v546
    %v551 = vrcp.pop %v547
    %v552 = vrcp.pop %v548
    %v554 = vperm.slane %v456, 0
    %v556 = vmul.f32 %v554, %v477
    %v557 = vmul.f32 %v554, %v478
    %v558 = vmul.f32 %v554, %v479
    %v559 = vmul.f32 %v554, %v480
    %v560 = vmul.f32 %v556, %v549
    %v561 = vmul.f32 %v557, %v550
    %v562 = vmul.f32 %v558, %v551
    %v563 = vmul.f32 %v559, %v552
    %v565 = vperm.slane %v457, 0
    %v567 = vadd.f32 %v560, %v565
    %v568 = vadd.f32 %v561, %v565
    %v569 = vadd.f32 %v562, %v565
    %v570 = vadd.f32 %v563, %v565
    %571 = vst [vmem:[%s7] sm:$0xff] %v567
    %572 = vst [vmem:[%s7 + $0x8] sm:$0xff] %v568
    %573 = vst [vmem:[%s7 + $0x10] sm:$0xff] %v569
    %574 = vst [vmem:[%s7 + $0x18] sm:$0xff] %v570
    // Predicated region
    $region38: #{mca_ed_forward.39} parent=1 // pred_check
      _
    $region39: #{mca_ed_forward.39} parent=1 // pred_check_branch
      %576 = sbr.rel (0) target = $region41
    $region40: #{mca_ed_forward.39} parent=1 // pred_region
      _
    $region41: #{mca_ed_forward.39} parent=1 // pred_fallthru
      _
    // Predicated region
    $region42: #{mca_ed_forward.39} parent=1 // pred_check
      _
    $region43: #{mca_ed_forward.39} parent=1 // pred_check_branch
      %578 = sbr.rel (0) target = $region45
    $region44: #{mca_ed_forward.39} parent=1 // pred_region
      _
    $region45: #{mca_ed_forward.39} parent=1 // pred_fallthru
      _
    %579 = vsyncpa [#allocation3], 1
    %580 = vsyncpa [#allocation5], 1

// kernel: mca_ed_forward.47
$region0: #{mca_ed_forward.47}
  #allocation0 [shape = 'u32[]', space=smem, size = 0x4, offset = 0x4, fixed_abs, tag = 'smem constant byte address 0x4 - core index']
  #allocation1 [shape = 'u32[72,128]{1,0:T(1,128)}', space=vmem, size = 0x9000, scoped, tag = 'internal scratch']
  %s0 = inlined_call_operand.vmem [shape: f32[32,128], index: 0, kind: input, shape index: {}]
  %s1 = inlined_call_operand.hbm [shape: f32[128,512], index: 1, kind: input, shape index: {}]
  %s2 = inlined_call_operand.vmem [shape: f32[1,512], index: 2, kind: input, shape index: {}]
  %s3 = inlined_call_operand.hbm [shape: f32[512,128], index: 3, kind: input, shape index: {}]
  %s4 = inlined_call_operand.vmem [shape: f32[1,128], index: 4, kind: input, shape index: {}]
  %s5 = inlined_call_operand.vmem [shape: f32[1,128], index: 5, kind: input, shape index: {}]
  %s6 = inlined_call_operand.vmem [shape: f32[1,128], index: 6, kind: input, shape index: {}]
  %s7 = inlined_call_operand.hbm [shape: f32[32,128], index: 7, kind: output, shape index: {}]
  %s8 = sld [smem:[#allocation0]]
  $region46: #{mca_ed_forward.47} parent=0
    _
  %s10 = ssub.s32 1, %s8
  %s11 = scalar_select 0, %s10, %s8
  $region1: #{mca_ed_forward.47} parent=0
    #allocation2 [shape = 'u8[262144]{0}', space=vmem, size = 0x40000, scoped, tag = 'input window, operand 1, single buffered']
    #allocation3 [shape = 's32[1]{0}', space=sflag, size = 0x4, scoped, tag = 'scoped memory for mca_ed_forward.47']
    #allocation4 [shape = 's32[1]{0}', space=sflag, size = 0x4, scoped, tag = 'scoped memory for mca_ed_forward.47']
    #allocation5 [shape = 'u8[262144]{0}', space=vmem, size = 0x40000, scoped, tag = 'input window, operand 3, single buffered']
    #allocation6 [shape = 's32[1]{0}', space=sflag, size = 0x4, scoped, tag = 'scoped memory for mca_ed_forward.47']
    #allocation7 [shape = 'u8[16384]{0}', space=vmem, size = 0x4000, scoped, tag = 'output window, operand 0, single buffered']
    %12 = vsyncpa [#allocation3], 0
    %13 = vsyncpa [#allocation6], 0
    %14 = vsyncpa [#allocation4], 0
    // Predicated region
    $region2: #{mca_ed_forward.47} parent=1 // pred_check
      _
    $region3: #{mca_ed_forward.47} parent=1 // pred_check_branch
      %16 = sbr.rel (0) target = $region5
    $region4: #{mca_ed_forward.47} parent=1 // pred_region
      _
    $region5: #{mca_ed_forward.47} parent=1 // pred_fallthru
      _
    // Predicated region
    $region6: #{mca_ed_forward.47} parent=1 // pred_check
      _
    $region7: #{mca_ed_forward.47} parent=1 // pred_check_branch
      %18 = sbr.rel (0) target = $region9
    $region8: #{mca_ed_forward.47} parent=1 // pred_region
      %20 = vsyncadd [#allocation3], 0
      %s21 = sshll.u32 %s1, 4
      %s22 = int_to_ptr.hbm [resolvable:$true] %s21
      %s23 = sshll.u32 [#allocation2], 4
      %s24 = int_to_ptr.vmem [resolvable:$true] %s23
      %29 = dma.hbm_to_vmem [thread:$0]  %s22, 8192, %s24, [#allocation3], 512, 512, 32
    $region9: #{mca_ed_forward.47} parent=1 // pred_fallthru
      _
    // Predicated region
    $region10: #{mca_ed_forward.47} parent=1 // pred_check
      _
    $region11: #{mca_ed_forward.47} parent=1 // pred_check_branch
      %31 = sbr.rel (0) target = $region13
    $region12: #{mca_ed_forward.47} parent=1 // pred_region
      _
    $region13: #{mca_ed_forward.47} parent=1 // pred_fallthru
      _
    // Predicated region
    $region14: #{mca_ed_forward.47} parent=1 // pred_check
      _
    $region15: #{mca_ed_forward.47} parent=1 // pred_check_branch
      %33 = sbr.rel (0) target = $region17
    $region16: #{mca_ed_forward.47} parent=1 // pred_region
      %35 = vsyncadd [#allocation6], 0
      %s36 = sshll.u32 %s3, 4
      %s37 = int_to_ptr.hbm [resolvable:$true] %s36
      %s38 = sshll.u32 [#allocation5], 4
      %s39 = int_to_ptr.vmem [resolvable:$true] %s38
      %44 = dma.hbm_to_vmem [thread:$0]  %s37, 8192, %s39, [#allocation6], 128, 128, 8
    $region17: #{mca_ed_forward.47} parent=1 // pred_fallthru
      _
    // Predicated region
    $region18: #{mca_ed_forward.47} parent=1 // pred_check
      _
    $region19: #{mca_ed_forward.47} parent=1 // pred_check_branch
      %46 = sbr.rel (0) target = $region21
    $region20: #{mca_ed_forward.47} parent=1 // pred_region
      _
    $region21: #{mca_ed_forward.47} parent=1 // pred_fallthru
      _
    // Predicated region
    $region22: #{mca_ed_forward.47} parent=1 // pred_check
      _
    $region23: #{mca_ed_forward.47} parent=1 // pred_check_branch
      %48 = sbr.rel (0) target = $region25
    $region24: #{mca_ed_forward.47} parent=1 // pred_region
      _
    $region25: #{mca_ed_forward.47} parent=1 // pred_fallthru
      _
    // Predicated region
    $region26: #{mca_ed_forward.47} parent=1 // pred_check
      _
    $region27: #{mca_ed_forward.47} parent=1 // pred_check_branch
      %50 = sbr.rel (0) target = $region29
    $region28: #{mca_ed_forward.47} parent=1 // pred_region
      _
    $region29: #{mca_ed_forward.47} parent=1 // pred_fallthru
      _
    // Predicated region
    $region30: #{mca_ed_forward.47} parent=1 // pred_check
      _
    $region31: #{mca_ed_forward.47} parent=1 // pred_check_branch
      %52 = sbr.rel (0) target = $region33
    $region32: #{mca_ed_forward.47} parent=1 // pred_region
      %54 = dma.done [#allocation3], 8192
    $region33: #{mca_ed_forward.47} parent=1 // pred_fallthru
      _
    // Predicated region
    $region34: #{mca_ed_forward.47} parent=1 // pred_check
      _
    $region35: #{mca_ed_forward.47} parent=1 // pred_check_branch
      %56 = sbr.rel (0) target = $region37
    $region36: #{mca_ed_forward.47} parent=1 // pred_region
      %58 = dma.done [#allocation6], 8192
    $region37: #{mca_ed_forward.47} parent=1 // pred_fallthru
      _
    %v59 = vld [vmem:[%s0] sm:$0xff]
    %v60 = vld [vmem:[%s0 + $0x8] sm:$0xff]
    %v61 = vld [vmem:[%s0 + $0x10] sm:$0xff]
    %v62 = vld [vmem:[%s0 + $0x18] sm:$0xff]
    %v63 = vld [vmem:[#allocation2] sm:$0xff]
    %v64 = vld [vmem:[#allocation2 + $0x8] sm:$0xff]
    %v65 = vld [vmem:[#allocation2 + $0x10] sm:$0xff]
    %v66 = vld [vmem:[#allocation2 + $0x18] sm:$0xff]
    %v67 = vld [vmem:[#allocation2 + $0x20] sm:$0xff]
    %v68 = vld [vmem:[#allocation2 + $0x28] sm:$0xff]
    %v69 = vld [vmem:[#allocation2 + $0x30] sm:$0xff]
    %v70 = vld [vmem:[#allocation2 + $0x38] sm:$0xff]
    %v71 = vld [vmem:[#allocation2 + $0x40] sm:$0xff]
    %v72 = vld [vmem:[#allocation2 + $0x48] sm:$0xff]
    %v73 = vld [vmem:[#allocation2 + $0x50] sm:$0xff]
    %v74 = vld [vmem:[#allocation2 + $0x58] sm:$0xff]
    %v75 = vld [vmem:[#allocation2 + $0x60] sm:$0xff]
    %v76 = vld [vmem:[#allocation2 + $0x68] sm:$0xff]
    %v77 = vld [vmem:[#allocation2 + $0x70] sm:$0xff]
    %v78 = vld [vmem:[#allocation2 + $0x78] sm:$0xff]
    %v79 = vld [vmem:[#allocation2 + $0x80] sm:$0xff]
    %v80 = vld [vmem:[#allocation2 + $0x88] sm:$0xff]
    %v81 = vld [vmem:[#allocation2 + $0x90] sm:$0xff]
    %v82 = vld [vmem:[#allocation2 + $0x98] sm:$0xff]
    %v83 = vld [vmem:[#allocation2 + $0xa0] sm:$0xff]
    %v84 = vld [vmem:[#allocation2 + $0xa8] sm:$0xff]
    %v85 = vld [vmem:[#allocation2 + $0xb0] sm:$0xff]
    %v86 = vld [vmem:[#allocation2 + $0xb8] sm:$0xff]
    %v87 = vld [vmem:[#allocation2 + $0xc0] sm:$0xff]
    %v88 = vld [vmem:[#allocation2 + $0xc8] sm:$0xff]
    %v89 = vld [vmem:[#allocation2 + $0xd0] sm:$0xff]
    %v90 = vld [vmem:[#allocation2 + $0xd8] sm:$0xff]
    %v91 = vld [vmem:[#allocation2 + $0xe0] sm:$0xff]
    %v92 = vld [vmem:[#allocation2 + $0xe8] sm:$0xff]
    %v93 = vld [vmem:[#allocation2 + $0xf0] sm:$0xff]
    %v94 = vld [vmem:[#allocation2 + $0xf8] sm:$0xff]
    %v95 = vld [vmem:[#allocation2 + $0x100] sm:$0xff]
    %v96 = vld [vmem:[#allocation2 + $0x108] sm:$0xff]
    %v97 = vld [vmem:[#allocation2 + $0x110] sm:$0xff]
    %v98 = vld [vmem:[#allocation2 + $0x118] sm:$0xff]
    %v99 = vld [vmem:[#allocation2 + $0x120] sm:$0xff]
    %v100 = vld [vmem:[#allocation2 + $0x128] sm:$0xff]
    %v101 = vld [vmem:[#allocation2 + $0x130] sm:$0xff]
    %v102 = vld [vmem:[#allocation2 + $0x138] sm:$0xff]
    %v103 = vld [vmem:[#allocation2 + $0x140] sm:$0xff]
    %v104 = vld [vmem:[#allocation2 + $0x148] sm:$0xff]
    %v105 = vld [vmem:[#allocation2 + $0x150] sm:$0xff]
    %v106 = vld [vmem:[#allocation2 + $0x158] sm:$0xff]
    %v107 = vld [vmem:[#allocation2 + $0x160] sm:$0xff]
    %v108 = vld [vmem:[#allocation2 + $0x168] sm:$0xff]
    %v109 = vld [vmem:[#allocation2 + $0x170] sm:$0xff]
    %v110 = vld [vmem:[#allocation2 + $0x178] sm:$0xff]
    %v111 = vld [vmem:[#allocation2 + $0x180] sm:$0xff]
    %v112 = vld [vmem:[#allocation2 + $0x188] sm:$0xff]
    %v113 = vld [vmem:[#allocation2 + $0x190] sm:$0xff]
    %v114 = vld [vmem:[#allocation2 + $0x198] sm:$0xff]
    %v115 = vld [vmem:[#allocation2 + $0x1a0] sm:$0xff]
    %v116 = vld [vmem:[#allocation2 + $0x1a8] sm:$0xff]
    %v117 = vld [vmem:[#allocation2 + $0x1b0] sm:$0xff]
    %v118 = vld [vmem:[#allocation2 + $0x1b8] sm:$0xff]
    %v119 = vld [vmem:[#allocation2 + $0x1c0] sm:$0xff]
    %v120 = vld [vmem:[#allocation2 + $0x1c8] sm:$0xff]
    %v121 = vld [vmem:[#allocation2 + $0x1d0] sm:$0xff]
    %v122 = vld [vmem:[#allocation2 + $0x1d8] sm:$0xff]
    %v123 = vld [vmem:[#allocation2 + $0x1e0] sm:$0xff]
    %v124 = vld [vmem:[#allocation2 + $0x1e8] sm:$0xff]
    %v125 = vld [vmem:[#allocation2 + $0x1f0] sm:$0xff]
    %v126 = vld [vmem:[#allocation2 + $0x1f8] sm:$0xff]
    %v127 = vld [vmem:[%s2] sm:$0xf]
    %v129 = vperm.slane %v127, 0
    %v130 = vperm.slane %v127, 1
    %v131 = vperm.slane %v127, 2
    %v132 = vperm.slane %v127, 3
    %137 = vmatpush.msra.mxu0 %v123
    %138 = vmatpush.msra.mxu0 %v119
    %139 = vmatpush.msra.mxu0 %v115
    %140 = vmatpush.msra.mxu0 %v111
    %141 = vmatpush.msra.mxu0 %v107
    %142 = vmatpush.msra.mxu0 %v103
    %143 = vmatpush.msra.mxu0 %v99
    %144 = vmatpush.msra.mxu0 %v95
    %145 = vmatpush.msra.mxu0 %v91
    %146 = vmatpush.msra.mxu0 %v87
    %147 = vmatpush.msra.mxu0 %v83
    %148 = vmatpush.msra.mxu0 %v79
    %149 = vmatpush.msra.mxu0 %v75
    %150 = vmatpush.msra.mxu0 %v71
    %151 = vmatpush.msra.mxu0 %v67
    %152 = vmatpush.msra.mxu0 %v63
    %153 = vmatmul.f32.gmra.mxu0 %v59
    %v154 = vpop.f32.mrf.mxu0
    %v155 = vadd.f32 %v129, %v154
    %156 = vmatmul.f32.gmra.mxu0 %v60
    %v157 = vpop.f32.mrf.mxu0
    %v158 = vadd.f32 %v129, %v157
    %159 = vmatmul.f32.gmra.mxu0 %v61
    %v160 = vpop.f32.mrf.mxu0
    %v161 = vadd.f32 %v129, %v160
    %162 = vmatmul.f32.gmra.mxu0 %v62
    %v163 = vpop.f32.mrf.mxu0
    %v164 = vadd.f32 %v129, %v163
    %165 = vdwg.mxu0
    %166 = vmatpush.msra.mxu0 %v124
    %167 = vmatpush.msra.mxu0 %v120
    %168 = vmatpush.msra.mxu0 %v116
    %169 = vmatpush.msra.mxu0 %v112
    %170 = vmatpush.msra.mxu0 %v108
    %171 = vmatpush.msra.mxu0 %v104
    %172 = vmatpush.msra.mxu0 %v100
    %173 = vmatpush.msra.mxu0 %v96
    %174 = vmatpush.msra.mxu0 %v92
    %175 = vmatpush.msra.mxu0 %v88
    %176 = vmatpush.msra.mxu0 %v84
    %177 = vmatpush.msra.mxu0 %v80
    %178 = vmatpush.msra.mxu0 %v76
    %179 = vmatpush.msra.mxu0 %v72
    %180 = vmatpush.msra.mxu0 %v68
    %181 = vmatpush.msra.mxu0 %v64
    %182 = vmatmul.f32.gmra.mxu0 %v59
    %v183 = vpop.f32.mrf.mxu0
    %v184 = vadd.f32 %v130, %v183
    %185 = vmatmul.f32.gmra.mxu0 %v60
    %v186 = vpop.f32.mrf.mxu0
    %v187 = vadd.f32 %v130, %v186
    %188 = vmatmul.f32.gmra.mxu0 %v61
    %v189 = vpop.f32.mrf.mxu0
    %v190 = vadd.f32 %v130, %v189
    %191 = vmatmul.f32.gmra.mxu0 %v62
    %v192 = vpop.f32.mrf.mxu0
    %v193 = vadd.f32 %v130, %v192
    %194 = vdwg.mxu0
    %195 = vmatpush.msra.mxu0 %v125
    %196 = vmatpush.msra.mxu0 %v121
    %197 = vmatpush.msra.mxu0 %v117
    %198 = vmatpush.msra.mxu0 %v113
    %199 = vmatpush.msra.mxu0 %v109
    %200 = vmatpush.msra.mxu0 %v105
    %201 = vmatpush.msra.mxu0 %v101
    %202 = vmatpush.msra.mxu0 %v97
    %203 = vmatpush.msra.mxu0 %v93
    %204 = vmatpush.msra.mxu0 %v89
    %205 = vmatpush.msra.mxu0 %v85
    %206 = vmatpush.msra.mxu0 %v81
    %207 = vmatpush.msra.mxu0 %v77
    %208 = vmatpush.msra.mxu0 %v73
    %209 = vmatpush.msra.mxu0 %v69
    %210 = vmatpush.msra.mxu0 %v65
    %211 = vmatmul.f32.gmra.mxu0 %v59
    %v212 = vpop.f32.mrf.mxu0
    %v213 = vadd.f32 %v131, %v212
    %214 = vmatmul.f32.gmra.mxu0 %v60
    %v215 = vpop.f32.mrf.mxu0
    %v216 = vadd.f32 %v131, %v215
    %217 = vmatmul.f32.gmra.mxu0 %v61
    %v218 = vpop.f32.mrf.mxu0
    %v219 = vadd.f32 %v131, %v218
    %220 = vmatmul.f32.gmra.mxu0 %v62
    %v221 = vpop.f32.mrf.mxu0
    %v222 = vadd.f32 %v131, %v221
    %223 = vdwg.mxu0
    %224 = vmatpush.msra.mxu0 %v126
    %225 = vmatpush.msra.mxu0 %v122
    %226 = vmatpush.msra.mxu0 %v118
    %227 = vmatpush.msra.mxu0 %v114
    %228 = vmatpush.msra.mxu0 %v110
    %229 = vmatpush.msra.mxu0 %v106
    %230 = vmatpush.msra.mxu0 %v102
    %231 = vmatpush.msra.mxu0 %v98
    %232 = vmatpush.msra.mxu0 %v94
    %233 = vmatpush.msra.mxu0 %v90
    %234 = vmatpush.msra.mxu0 %v86
    %235 = vmatpush.msra.mxu0 %v82
    %236 = vmatpush.msra.mxu0 %v78
    %237 = vmatpush.msra.mxu0 %v74
    %238 = vmatpush.msra.mxu0 %v70
    %239 = vmatpush.msra.mxu0 %v66
    %240 = vmatmul.f32.gmra.mxu0 %v59
    %v241 = vpop.f32.mrf.mxu0
    %v242 = vadd.f32 %v132, %v241
    %243 = vmatmul.f32.gmra.mxu0 %v60
    %v244 = vpop.f32.mrf.mxu0
    %v245 = vadd.f32 %v132, %v244
    %246 = vmatmul.f32.gmra.mxu0 %v61
    %v247 = vpop.f32.mrf.mxu0
    %v248 = vadd.f32 %v132, %v247
    %249 = vmatmul.f32.gmra.mxu0 %v62
    %v250 = vpop.f32.mrf.mxu0
    %v251 = vadd.f32 %v132, %v250
    %252 = vdwg.mxu0
    %v253 = vmax.f32 %v155, 0.0
    %v254 = vmax.f32 %v184, 0.0
    %v255 = vmax.f32 %v213, 0.0
    %v256 = vmax.f32 %v242, 0.0
    %v257 = vmax.f32 %v158, 0.0
    %v258 = vmax.f32 %v187, 0.0
    %v259 = vmax.f32 %v216, 0.0
    %v260 = vmax.f32 %v245, 0.0
    %v261 = vmax.f32 %v161, 0.0
    %v262 = vmax.f32 %v190, 0.0
    %v263 = vmax.f32 %v219, 0.0
    %v264 = vmax.f32 %v248, 0.0
    %v265 = vmax.f32 %v164, 0.0
    %v266 = vmax.f32 %v193, 0.0
    %v267 = vmax.f32 %v222, 0.0
    %v268 = vmax.f32 %v251, 0.0
    %v269 = vld [vmem:[#allocation5] sm:$0xff]
    %v270 = vld [vmem:[#allocation5 + $0x8] sm:$0xff]
    %v271 = vld [vmem:[#allocation5 + $0x10] sm:$0xff]
    %v272 = vld [vmem:[#allocation5 + $0x18] sm:$0xff]
    %v273 = vld [vmem:[#allocation5 + $0x20] sm:$0xff]
    %v274 = vld [vmem:[#allocation5 + $0x28] sm:$0xff]
    %v275 = vld [vmem:[#allocation5 + $0x30] sm:$0xff]
    %v276 = vld [vmem:[#allocation5 + $0x38] sm:$0xff]
    %v277 = vld [vmem:[#allocation5 + $0x40] sm:$0xff]
    %v278 = vld [vmem:[#allocation5 + $0x48] sm:$0xff]
    %v279 = vld [vmem:[#allocation5 + $0x50] sm:$0xff]
    %v280 = vld [vmem:[#allocation5 + $0x58] sm:$0xff]
    %v281 = vld [vmem:[#allocation5 + $0x60] sm:$0xff]
    %v282 = vld [vmem:[#allocation5 + $0x68] sm:$0xff]
    %v283 = vld [vmem:[#allocation5 + $0x70] sm:$0xff]
    %v284 = vld [vmem:[#allocation5 + $0x78] sm:$0xff]
    %v285 = vld [vmem:[#allocation5 + $0x80] sm:$0xff]
    %v286 = vld [vmem:[#allocation5 + $0x88] sm:$0xff]
    %v287 = vld [vmem:[#allocation5 + $0x90] sm:$0xff]
    %v288 = vld [vmem:[#allocation5 + $0x98] sm:$0xff]
    %v289 = vld [vmem:[#allocation5 + $0xa0] sm:$0xff]
    %v290 = vld [vmem:[#allocation5 + $0xa8] sm:$0xff]
    %v291 = vld [vmem:[#allocation5 + $0xb0] sm:$0xff]
    %v292 = vld [vmem:[#allocation5 + $0xb8] sm:$0xff]
    %v293 = vld [vmem:[#allocation5 + $0xc0] sm:$0xff]
    %v294 = vld [vmem:[#allocation5 + $0xc8] sm:$0xff]
    %v295 = vld [vmem:[#allocation5 + $0xd0] sm:$0xff]
    %v296 = vld [vmem:[#allocation5 + $0xd8] sm:$0xff]
    %v297 = vld [vmem:[#allocation5 + $0xe0] sm:$0xff]
    %v298 = vld [vmem:[#allocation5 + $0xe8] sm:$0xff]
    %v299 = vld [vmem:[#allocation5 + $0xf0] sm:$0xff]
    %v300 = vld [vmem:[#allocation5 + $0xf8] sm:$0xff]
    %v301 = vld [vmem:[#allocation5 + $0x100] sm:$0xff]
    %v302 = vld [vmem:[#allocation5 + $0x108] sm:$0xff]
    %v303 = vld [vmem:[#allocation5 + $0x110] sm:$0xff]
    %v304 = vld [vmem:[#allocation5 + $0x118] sm:$0xff]
    %v305 = vld [vmem:[#allocation5 + $0x120] sm:$0xff]
    %v306 = vld [vmem:[#allocation5 + $0x128] sm:$0xff]
    %v307 = vld [vmem:[#allocation5 + $0x130] sm:$0xff]
    %v308 = vld [vmem:[#allocation5 + $0x138] sm:$0xff]
    %v309 = vld [vmem:[#allocation5 + $0x140] sm:$0xff]
    %v310 = vld [vmem:[#allocation5 + $0x148] sm:$0xff]
    %v311 = vld [vmem:[#allocation5 + $0x150] sm:$0xff]
    %v312 = vld [vmem:[#allocation5 + $0x158] sm:$0xff]
    %v313 = vld [vmem:[#allocation5 + $0x160] sm:$0xff]
    %v314 = vld [vmem:[#allocation5 + $0x168] sm:$0xff]
    %v315 = vld [vmem:[#allocation5 + $0x170] sm:$0xff]
    %v316 = vld [vmem:[#allocation5 + $0x178] sm:$0xff]
    %v317 = vld [vmem:[#allocation5 + $0x180] sm:$0xff]
    %v318 = vld [vmem:[#allocation5 + $0x188] sm:$0xff]
    %v319 = vld [vmem:[#allocation5 + $0x190] sm:$0xff]
    %v320 = vld [vmem:[#allocation5 + $0x198] sm:$0xff]
    %v321 = vld [vmem:[#allocation5 + $0x1a0] sm:$0xff]
    %v322 = vld [vmem:[#allocation5 + $0x1a8] sm:$0xff]
    %v323 = vld [vmem:[#allocation5 + $0x1b0] sm:$0xff]
    %v324 = vld [vmem:[#allocation5 + $0x1b8] sm:$0xff]
    %v325 = vld [vmem:[#allocation5 + $0x1c0] sm:$0xff]
    %v326 = vld [vmem:[#allocation5 + $0x1c8] sm:$0xff]
    %v327 = vld [vmem:[#allocation5 + $0x1d0] sm:$0xff]
    %v328 = vld [vmem:[#allocation5 + $0x1d8] sm:$0xff]
    %v329 = vld [vmem:[#allocation5 + $0x1e0] sm:$0xff]
    %v330 = vld [vmem:[#allocation5 + $0x1e8] sm:$0xff]
    %v331 = vld [vmem:[#allocation5 + $0x1f0] sm:$0xff]
    %v332 = vld [vmem:[#allocation5 + $0x1f8] sm:$0xff]
    %v333 = vld [vmem:[%s4] sm:$0x1]
    %v335 = vperm.slane %v333, 0
    %337 = vmatpush.msra.mxu0 %v284
    %338 = vmatpush.msra.mxu0 %v283
    %339 = vmatpush.msra.mxu0 %v282
    %340 = vmatpush.msra.mxu0 %v281
    %341 = vmatpush.msra.mxu0 %v280
    %342 = vmatpush.msra.mxu0 %v279
    %343 = vmatpush.msra.mxu0 %v278
    %344 = vmatpush.msra.mxu0 %v277
    %345 = vmatpush.msra.mxu0 %v276
    %346 = vmatpush.msra.mxu0 %v275
    %347 = vmatpush.msra.mxu0 %v274
    %348 = vmatpush.msra.mxu0 %v273
    %349 = vmatpush.msra.mxu0 %v272
    %350 = vmatpush.msra.mxu0 %v271
    %351 = vmatpush.msra.mxu0 %v270
    %352 = vmatpush.msra.mxu0 %v269
    %353 = vmatmul.f32.gmra.mxu0 %v253
    %v354 = vpop.f32.mrf.mxu0
    %v355 = vadd.f32 %v335, %v354
    %356 = vmatmul.f32.gmra.mxu0 %v257
    %v357 = vpop.f32.mrf.mxu0
    %v358 = vadd.f32 %v335, %v357
    %359 = vmatmul.f32.gmra.mxu0 %v261
    %v360 = vpop.f32.mrf.mxu0
    %v361 = vadd.f32 %v335, %v360
    %362 = vmatmul.f32.gmra.mxu0 %v265
    %v363 = vpop.f32.mrf.mxu0
    %v364 = vadd.f32 %v335, %v363
    %365 = vdwg.mxu0
    %366 = vmatpush.msra.mxu0 %v300
    %367 = vmatpush.msra.mxu0 %v299
    %368 = vmatpush.msra.mxu0 %v298
    %369 = vmatpush.msra.mxu0 %v297
    %370 = vmatpush.msra.mxu0 %v296
    %371 = vmatpush.msra.mxu0 %v295
    %372 = vmatpush.msra.mxu0 %v294
    %373 = vmatpush.msra.mxu0 %v293
    %374 = vmatpush.msra.mxu0 %v292
    %375 = vmatpush.msra.mxu0 %v291
    %376 = vmatpush.msra.mxu0 %v290
    %377 = vmatpush.msra.mxu0 %v289
    %378 = vmatpush.msra.mxu0 %v288
    %379 = vmatpush.msra.mxu0 %v287
    %380 = vmatpush.msra.mxu0 %v286
    %381 = vmatpush.msra.mxu0 %v285
    %382 = vmatmul.f32.gmra.mxu0 %v254
    %v383 = vpop.f32.mrf.mxu0
    %v384 = vadd.f32 %v355, %v383
    %385 = vmatmul.f32.gmra.mxu0 %v258
    %v386 = vpop.f32.mrf.mxu0
    %v387 = vadd.f32 %v358, %v386
    %388 = vmatmul.f32.gmra.mxu0 %v262
    %v389 = vpop.f32.mrf.mxu0
    %v390 = vadd.f32 %v361, %v389
    %391 = vmatmul.f32.gmra.mxu0 %v266
    %v392 = vpop.f32.mrf.mxu0
    %v393 = vadd.f32 %v364, %v392
    %394 = vdwg.mxu0
    %395 = vmatpush.msra.mxu0 %v316
    %396 = vmatpush.msra.mxu0 %v315
    %397 = vmatpush.msra.mxu0 %v314
    %398 = vmatpush.msra.mxu0 %v313
    %399 = vmatpush.msra.mxu0 %v312
    %400 = vmatpush.msra.mxu0 %v311
    %401 = vmatpush.msra.mxu0 %v310
    %402 = vmatpush.msra.mxu0 %v309
    %403 = vmatpush.msra.mxu0 %v308
    %404 = vmatpush.msra.mxu0 %v307
    %405 = vmatpush.msra.mxu0 %v306
    %406 = vmatpush.msra.mxu0 %v305
    %407 = vmatpush.msra.mxu0 %v304
    %408 = vmatpush.msra.mxu0 %v303
    %409 = vmatpush.msra.mxu0 %v302
    %410 = vmatpush.msra.mxu0 %v301
    %411 = vmatmul.f32.gmra.mxu0 %v255
    %v412 = vpop.f32.mrf.mxu0
    %v413 = vadd.f32 %v384, %v412
    %414 = vmatmul.f32.gmra.mxu0 %v259
    %v415 = vpop.f32.mrf.mxu0
    %v416 = vadd.f32 %v387, %v415
    %417 = vmatmul.f32.gmra.mxu0 %v263
    %v418 = vpop.f32.mrf.mxu0
    %v419 = vadd.f32 %v390, %v418
    %420 = vmatmul.f32.gmra.mxu0 %v267
    %v421 = vpop.f32.mrf.mxu0
    %v422 = vadd.f32 %v393, %v421
    %423 = vdwg.mxu0
    %424 = vmatpush.msra.mxu0 %v332
    %425 = vmatpush.msra.mxu0 %v331
    %426 = vmatpush.msra.mxu0 %v330
    %427 = vmatpush.msra.mxu0 %v329
    %428 = vmatpush.msra.mxu0 %v328
    %429 = vmatpush.msra.mxu0 %v327
    %430 = vmatpush.msra.mxu0 %v326
    %431 = vmatpush.msra.mxu0 %v325
    %432 = vmatpush.msra.mxu0 %v324
    %433 = vmatpush.msra.mxu0 %v323
    %434 = vmatpush.msra.mxu0 %v322
    %435 = vmatpush.msra.mxu0 %v321
    %436 = vmatpush.msra.mxu0 %v320
    %437 = vmatpush.msra.mxu0 %v319
    %438 = vmatpush.msra.mxu0 %v318
    %439 = vmatpush.msra.mxu0 %v317
    %440 = vmatmul.f32.gmra.mxu0 %v256
    %v441 = vpop.f32.mrf.mxu0
    %v442 = vadd.f32 %v413, %v441
    %443 = vmatmul.f32.gmra.mxu0 %v260
    %v444 = vpop.f32.mrf.mxu0
    %v445 = vadd.f32 %v416, %v444
    %446 = vmatmul.f32.gmra.mxu0 %v264
    %v447 = vpop.f32.mrf.mxu0
    %v448 = vadd.f32 %v419, %v447
    %449 = vmatmul.f32.gmra.mxu0 %v268
    %v450 = vpop.f32.mrf.mxu0
    %v451 = vadd.f32 %v422, %v450
    %452 = vdwg.mxu0
    %v453 = vadd.f32 %v59, %v442
    %v454 = vadd.f32 %v60, %v445
    %v455 = vadd.f32 %v61, %v448
    %v456 = vadd.f32 %v62, %v451
    %v457 = vld [vmem:[%s5] sm:$0x1]
    %v458 = vld [vmem:[%s6] sm:$0x1]
    %459 = vadd.xlane.f32.xlu0 %v453
    %v460 = vpop.xlane.xlu0 %459
    %461 = vadd.xlane.f32.xlu0 %v454
    %v462 = vpop.xlane.xlu0 %461
    %463 = vadd.xlane.f32.xlu0 %v455
    %v464 = vpop.xlane.xlu0 %463
    %465 = vadd.xlane.f32.xlu0 %v456
    %v466 = vpop.xlane.xlu0 %465
    %v467 = vrcp.pop 128.0
    %v468 = vmul.f32 128.0, %v467
    %v469 = vsub.f32 1.0, %v468
    %v470 = vmul.f32 %v467, %v469
    %v471 = vadd.f32 %v467, %v470
    %vm472 = vweird.f32 %v467
    %v473 = vsel %vm472, %v467, %v471
    %v474 = vmul.f32 %v460, %v473
    %v475 = vmul.f32 %v462, %v473
    %v476 = vmul.f32 %v464, %v473
    %v477 = vmul.f32 %v466, %v473
    %v478 = vsub.f32 %v453, %v474
    %v479 = vsub.f32 %v454, %v475
    %v480 = vsub.f32 %v455, %v476
    %v481 = vsub.f32 %v456, %v477
    %v482 = vmul.f32 %v478, %v478
    %v483 = vmul.f32 %v479, %v479
    %v484 = vmul.f32 %v480, %v480
    %v485 = vmul.f32 %v481, %v481
    %486 = vadd.xlane.f32.xlu0 %v482
    %v487 = vpop.xlane.xlu0 %486
    %488 = vadd.xlane.f32.xlu0 %v483
    %v489 = vpop.xlane.xlu0 %488
    %490 = vadd.xlane.f32.xlu0 %v484
    %v491 = vpop.xlane.xlu0 %490
    %492 = vadd.xlane.f32.xlu0 %v485
    %v493 = vpop.xlane.xlu0 %492
    %v494 = vmul.f32 %v487, 0.007874016
    %v495 = vmul.f32 %v489, 0.007874016
    %v496 = vmul.f32 %v491, 0.007874016
    %v497 = vmul.f32 %v493, 0.007874016
    %v498 = vrsqrt.pop %v494
    %v499 = vmul.f32 %v498, %v494
    %v500 = vmul.f32 %v499, %v498
    %v501 = vmul.f32 0.5, %v500
    %v502 = vsub.f32 1.5, %v501
    %v503 = vmul.f32 %v498, %v502
    %v504 = vmul.f32 %v494, %v503
    %vm505 = vcmp.eq.f32.partialorder %v494, inf
    %v506 = vsel %vm505, %v494, %v504
    %vm507 = vcmp.eq.f32.partialorder %v494, 0.0
    %v508 = vand.u32 %v494, 2147483648
    %v509 = vsel %vm507, %v508, %v506
    %v510 = vrsqrt.pop %v495
    %v511 = vmul.f32 %v510, %v495
    %v512 = vmul.f32 %v511, %v510
    %v513 = vmul.f32 0.5, %v512
    %v514 = vsub.f32 1.5, %v513
    %v515 = vmul.f32 %v510, %v514
    %v516 = vmul.f32 %v495, %v515
    %vm517 = vcmp.eq.f32.partialorder %v495, inf
    %v518 = vsel %vm517, %v495, %v516
    %vm519 = vcmp.eq.f32.partialorder %v495, 0.0
    %v520 = vand.u32 %v495, 2147483648
    %v521 = vsel %vm519, %v520, %v518
    %v522 = vrsqrt.pop %v496
    %v523 = vmul.f32 %v522, %v496
    %v524 = vmul.f32 %v523, %v522
    %v525 = vmul.f32 0.5, %v524
    %v526 = vsub.f32 1.5, %v525
    %v527 = vmul.f32 %v522, %v526
    %v528 = vmul.f32 %v496, %v527
    %vm529 = vcmp.eq.f32.partialorder %v496, inf
    %v530 = vsel %vm529, %v496, %v528
    %vm531 = vcmp.eq.f32.partialorder %v496, 0.0
    %v532 = vand.u32 %v496, 2147483648
    %v533 = vsel %vm531, %v532, %v530
    %v534 = vrsqrt.pop %v497
    %v535 = vmul.f32 %v534, %v497
    %v536 = vmul.f32 %v535, %v534
    %v537 = vmul.f32 0.5, %v536
    %v538 = vsub.f32 1.5, %v537
    %v539 = vmul.f32 %v534, %v538
    %v540 = vmul.f32 %v497, %v539
    %vm541 = vcmp.eq.f32.partialorder %v497, inf
    %v542 = vsel %vm541, %v497, %v540
    %vm543 = vcmp.eq.f32.partialorder %v497, 0.0
    %v544 = vand.u32 %v497, 2147483648
    %v545 = vsel %vm543, %v544, %v542
    %v546 = vadd.f32 %v509, 1e-06
    %v547 = vadd.f32 %v521, 1e-06
    %v548 = vadd.f32 %v533, 1e-06
    %v549 = vadd.f32 %v545, 1e-06
    %v550 = vrcp.pop %v546
    %v551 = vrcp.pop %v547
    %v552 = vrcp.pop %v548
    %v553 = vrcp.pop %v549
    %v555 = vperm.slane %v457, 0
    %v557 = vmul.f32 %v555, %v478
    %v558 = vmul.f32 %v555, %v479
    %v559 = vmul.f32 %v555, %v480
    %v560 = vmul.f32 %v555, %v481
    %v561 = vmul.f32 %v557, %v550
    %v562 = vmul.f32 %v558, %v551
    %v563 = vmul.f32 %v559, %v552
    %v564 = vmul.f32 %v560, %v553
    %v566 = vperm.slane %v458, 0
    %v568 = vadd.f32 %v561, %v566
    %v569 = vadd.f32 %v562, %v566
    %v570 = vadd.f32 %v563, %v566
    %v571 = vadd.f32 %v564, %v566
    %572 = vst [vmem:[#allocation7] sm:$0xff] %v568
    %573 = vst [vmem:[#allocation7 + $0x8] sm:$0xff] %v569
    %574 = vst [vmem:[#allocation7 + $0x10] sm:$0xff] %v570
    %575 = vst [vmem:[#allocation7 + $0x18] sm:$0xff] %v571
    // Predicated region
    $region38: #{mca_ed_forward.47} parent=1 // pred_check
      _
    $region39: #{mca_ed_forward.47} parent=1 // pred_check_branch
      %577 = sbr.rel (0) target = $region41
    $region40: #{mca_ed_forward.47} parent=1 // pred_region
      %579 = vsyncadd [#allocation4], 0
      %s580 = sshll.u32 [#allocation7], 4
      %s581 = int_to_ptr.vmem [resolvable:$true] %s580
      %s582 = sshll.u32 %s7, 4
      %s583 = int_to_ptr.hbm [resolvable:$true] %s582
      %588 = dma.vmem_to_hbm [thread:$0]  %s581, 512, %s583, [#allocation4], 128, 128, 8
    $region41: #{mca_ed_forward.47} parent=1 // pred_fallthru
      _
    // Predicated region
    $region42: #{mca_ed_forward.47} parent=1 // pred_check
      _
    $region43: #{mca_ed_forward.47} parent=1 // pred_check_branch
      %590 = sbr.rel (0) target = $region45
    $region44: #{mca_ed_forward.47} parent=1 // pred_region
      %592 = dma.done [#allocation4], 512
    $region45: #{mca_ed_forward.47} parent=1 // pred_fallthru
      _
    %593 = vsyncpa [#allocation3], 1
    %594 = vsyncpa [#allocation6], 1
    %595 = vsyncpa [#allocation4], 1

</llo_original>
